<compile_context>
chip_gen: v6e
topology: v6e:2x2x1
jax: 0.10.0
libtpu: 0.0.40
codegen_flags: <defaults>
</compile_context>

<pallas_src>
import functools

import jax
import jax.numpy as jnp
from jax import lax
from jax.experimental import pallas as pl
from jax.experimental.pallas import tpu as pltpu

DILATIONS = (6, 12, 18)


def _aspp_kernel(dilations, pad, tile_h, H, W,
                 gpb_ref, xpad_ref,
                 w1_ref, wd_ref, wproj_ref,
                 b1_ref, bd_ref, bp_ref,
                 o_ref):
    Cin = xpad_ref.shape[-1]
    Cout = o_ref.shape[-1]
    R = tile_h * W
    cdt = w1_ref.dtype

    # first output row handled by this spatial tile
    row0 = pl.multiple_of(pl.program_id(1) * tile_h, tile_h)

    def tap_slice(hs, ws):
        return xpad_ref[0, pl.ds(hs, tile_h), pl.ds(ws, W), :]   # (tile_h, W, Cin)

    # shared centre tap (ky=kx=1), flattened once (W % 8 == 0 -> layout-preserving)
    x_c3 = tap_slice(row0 + pad, pad)
    x_c2 = x_c3.reshape(R, Cin)

    # projection accumulator lives in vregs (compiler-managed spills), seeded
    # with the hoisted global-pool contribution and the projection BN shift.
    proj = gpb_ref[0] + bp_ref[...]                              # (1, Cout) f32

    # ---- 1x1 conv branch --------------------------------------------------
    b1 = jnp.dot(x_c2, w1_ref[...], preferred_element_type=jnp.float32)
    b1 = jnp.maximum(b1 + b1_ref[...], 0.0).astype(cdt)
    proj = proj + jnp.dot(b1, wproj_ref[0:Cout, :],
                          preferred_element_type=jnp.float32)

    # ---- dilated 3x3 branches: one im2col slab + one matmul per dilation ---
    for di, d in enumerate(dilations):
        r0 = di * 9 * Cin
        only_centre = (d >= H) and (d >= W)
        if only_centre:
            # every non-centre tap reads only zero padding -> depth-Cin matmul
            y = jnp.dot(x_c2, wd_ref[r0 + 4 * Cin:r0 + 5 * Cin, :],
                        preferred_element_type=jnp.float32)
        else:
            taps = []
            for ky in range(3):
                for kx in range(3):
                    if ky == 1 and kx == 1:
                        taps.append(x_c3)                        # shared centre
                    elif (ky != 1 and d >= H) or (kx != 1 and d >= W):
                        # statically all-padding tap: contribute zeros, skip the load
                        taps.append(jnp.zeros((tile_h, W, Cin), cdt))
                    else:
                        taps.append(tap_slice(row0 + pad + d * (ky - 1),
                                              pad + d * (kx - 1)))
            slab = jnp.concatenate(taps, axis=-1).reshape(R, 9 * Cin)
            y = jnp.dot(slab, wd_ref[r0:r0 + 9 * Cin, :],
                        preferred_element_type=jnp.float32)
        y = jnp.maximum(y + bd_ref[di:di + 1, :], 0.0).astype(cdt)
        proj = proj + jnp.dot(y, wproj_ref[(1 + di) * Cout:(2 + di) * Cout, :],
                              preferred_element_type=jnp.float32)

    # ---- projection shift + ReLU (BN scales folded into weights) -----------
    out = jnp.maximum(proj, 0.0)
    o_ref[0] = out.reshape(tile_h, W, Cout).astype(o_ref.dtype)


def _vmem_capacity_bytes():
    # Generation-aware cap (v7x has 64 MiB/TC, v5e/v6e 128 MiB).  This only
    # affects a compiler hint, so a conservative fallback is fine.
    try:
        return int(pltpu.get_tpu_info().vmem_capacity_bytes)
    except Exception:
        return 64 << 20


def aspp_forward(x_nhwc, params, dilations=DILATIONS, tile_h=None):
    N, H, W, Cin = x_nhwc.shape
    Cout = params['w1'].shape[1]
    nd = len(dilations)
    pad = max(dilations)
    Hp, Wp = H + 2 * pad, W + 2 * pad

    assert W % 8 == 0, "W must be a multiple of 8 for layout-preserving flattens"
    if tile_h is None:
        # Largest divisor of H whose f32 output tile stays within ~2 MiB:
        # bigger tiles fill the 256-deep v6e/v7x MXU rows and amortize the
        # ~0.35us per-grid-step overhead.
        budget = 2 << 20
        tile_h = 1
        for cand in range(H, 0, -1):
            if H % cand == 0 and cand * W * Cout * 4 <= budget:
                tile_h = cand
                break
    assert H % tile_h == 0, "H must be divisible by tile_h"
    n_th = H // tile_h

    cdt = jnp.bfloat16   # matmul-operand dtype (f32 accumulation on the MXU)

    # -- fold eval-mode BN scales into the conv weights (host-side, cheap) ---
    w1_s = (params['w1'] * params['s1']).astype(cdt)                     # (Cin, Cout)
    wd_s = (params['wd'] * params['sd'][:, None, None, None, :]).astype(cdt)
    wd_flat = wd_s.reshape(nd * 9 * Cin, Cout)                           # (9*nd*Cin, Cout)
    wproj_s = params['wproj'] * params['sp']                             # ((2+nd)*Cout, Cout) f32
    wproj_gp = wproj_s[0:Cout, :]                                        # gp rows, used host-side
    wproj_k = wproj_s[Cout:, :].astype(cdt)                              # ((1+nd)*Cout, Cout)
    b1s = params['b1'].astype(jnp.float32)                               # (1, Cout)
    bds = params['bd'].astype(jnp.float32)                               # (nd, Cout)
    bps = params['bp'].astype(jnp.float32)                               # (1, Cout)

    # -- global-average-pool branch hoisted entirely host-side (f32) ---------
    # mean -> 1x1 conv -> BN/ReLU -> (bilinear upsample of 1x1 == broadcast)
    # -> its projection rows collapse to a per-image (1, Cout) bias.
    gp_mean = jnp.mean(x_nhwc, axis=(1, 2))                              # (N, Cin)
    wgp_s = params['wgp'] * params['sgp']
    gp = jnp.maximum(gp_mean @ wgp_s + params['bgp'], 0.0)               # (N, Cout)
    gp_bias = (gp @ wproj_gp).reshape(N, 1, Cout).astype(jnp.float32)

    # single padded input; every branch slices out of it
    xpad = jnp.pad(x_nhwc, ((0, 0), (pad, pad), (pad, pad), (0, 0))).astype(cdt)

    args = (gp_bias, xpad, w1_s, wd_flat, wproj_k, b1s, bds, bps)

    # -- VMEM budget / cost estimate ------------------------------------------
    weight_bytes = 2 * int(w1_s.size + wd_flat.size + wproj_k.size) * 2
    shift_bytes = 2 * int(b1s.size + bds.size + bps.size + Cout) * 4
    xpad_bytes = 2 * Hp * Wp * Cin * 2            # double-buffered bf16 block
    out_bytes = 2 * tile_h * W * Cout * 4         # double-buffered f32 block
    spill_bytes = 2 * tile_h * W * Cout * 4       # headroom for accumulator spills
    vmem_est = weight_bytes + shift_bytes + xpad_bytes + out_bytes + spill_bytes
    vmem_cap = _vmem_capacity_bytes()
    vmem_limit = int(min(max(2 * vmem_est + (8 << 20), 32 << 20),
                         int(0.85 * vmem_cap)))

    flops = 2 * N * H * W * (Cin * Cout * (1 + 9 * nd) + Cout * Cout * (1 + nd))
    bytes_acc = (N * Hp * Wp * Cin * 2 + weight_bytes // 2 + shift_bytes // 2
                 + N * Cout * 4 + N * H * W * Cout * 4)

    kernel = functools.partial(_aspp_kernel, tuple(dilations), pad, tile_h, H, W)

    return pl.pallas_call(
        kernel,
        out_shape=jax.ShapeDtypeStruct((N, H, W, Cout), jnp.float32),
        grid=(N, n_th),
        in_specs=[
            pl.BlockSpec((1, 1, Cout), lambda n, t: (n, 0, 0)),          # gp_bias
            pl.BlockSpec((1, Hp, Wp, Cin), lambda n, t: (n, 0, 0, 0)),   # xpad
            pl.BlockSpec((Cin, Cout), lambda n, t: (0, 0)),              # w1
            pl.BlockSpec((nd * 9 * Cin, Cout), lambda n, t: (0, 0)),     # wd slab
            pl.BlockSpec(((1 + nd) * Cout, Cout), lambda n, t: (0, 0)),  # wproj
            pl.BlockSpec((1, Cout), lambda n, t: (0, 0)),                # b1 shift
            pl.BlockSpec((nd, Cout), lambda n, t: (0, 0)),               # bd shifts
            pl.BlockSpec((1, Cout), lambda n, t: (0, 0)),                # bp shift
        ],
        out_specs=pl.BlockSpec((1, tile_h, W, Cout), lambda n, t: (n, t, 0, 0)),
        compiler_params=pltpu.CompilerParams(
            # t is "arbitrary": megacore shards over N only, so the xpad block
            # (whose index_map ignores t) is not fetched twice per image.
            dimension_semantics=("parallel", "arbitrary"),
            vmem_limit_bytes=vmem_limit),
        cost_estimate=pl.CostEstimate(
            flops=int(flops), transcendentals=0,
            bytes_accessed=int(bytes_acc)),
    )(*args)


# ---------------- deterministic parameter init (synthetic) ----------------
def _folded_bn(key, c):
    k1, k2, k3, k4 = jax.random.split(key, 4)
    gamma = 1.0 + 0.1 * jax.random.normal(k1, (c,), jnp.float32)
    beta = 0.1 * jax.random.normal(k2, (c,), jnp.float32)
    mean = 0.1 * jax.random.normal(k3, (c,), jnp.float32)
    var = jax.nn.softplus(jax.random.normal(k4, (c,), jnp.float32)) + 0.5
    scale = gamma / jnp.sqrt(var + 1e-5)
    shift = beta - mean * scale
    return scale, shift


def init_params(key, in_channels, out_channels, dilations):
    nd = len(dilations)
    keys = jax.random.split(key, 8)
    wgp = 0.2 * jax.random.normal(keys[0], (in_channels, out_channels), jnp.float32)
    w1 = 0.2 * jax.random.normal(keys[1], (in_channels, out_channels), jnp.float32)
    wd = 0.1 * jax.random.normal(keys[2], (nd, 3, 3, in_channels, out_channels),
                                 jnp.float32)
    wproj = 0.1 * jax.random.normal(
        keys[3], ((2 + nd) * out_channels, out_channels), jnp.float32)

    sgp, bgp = _folded_bn(keys[4], out_channels)
    s1, b1 = _folded_bn(keys[5], out_channels)
    sd_list, bd_list = [], []
    dk = jax.random.split(keys[6], nd)
    for i in range(nd):
        s, b = _folded_bn(dk[i], out_channels)
        sd_list.append(s)
        bd_list.append(b)
    sp, bp = _folded_bn(keys[7], out_channels)

    return dict(
        wgp=wgp, w1=w1, wd=wd, wproj=wproj,
        sgp=sgp.reshape(1, -1), bgp=bgp.reshape(1, -1),
        s1=s1.reshape(1, -1), b1=b1.reshape(1, -1),
        sd=jnp.stack(sd_list), bd=jnp.stack(bd_list),
        sp=sp.reshape(1, -1), bp=bp.reshape(1, -1),
    )


# ---------------- pure-JAX reference (mirrors the PyTorch forward) ----------
def aspp_ref(x_nhwc, params, dilations=DILATIONS):
    x = jnp.transpose(x_nhwc, (0, 3, 1, 2))  # NCHW like PyTorch
    N, Cin, H, W = x.shape
    Cout = params['w1'].shape[1]

    def bn_relu(y, s, b):
        return jnp.maximum(y * s.reshape(1, Cout, 1, 1) + b.reshape(1, Cout, 1, 1),
                           0.0)

    gp = jnp.mean(x, axis=(2, 3), keepdims=True)
    gp = jnp.einsum('nchw,cd->ndhw', gp, params['wgp'])
    gp = bn_relu(gp, params['sgp'], params['bgp'])
    gp = jnp.broadcast_to(gp, (N, Cout, H, W))  # bilinear upsample of a 1x1 map

    b1 = bn_relu(jnp.einsum('nchw,cd->ndhw', x, params['w1']),
                 params['s1'], params['b1'])
    feats = [gp, b1]
    for di, d in enumerate(dilations):
        w_oihw = jnp.transpose(params['wd'][di], (3, 2, 0, 1))
        y = lax.conv_general_dilated(
            x, w_oihw, window_strides=(1, 1),
            padding=((d, d), (d, d)), rhs_dilation=(d, d),
            dimension_numbers=('NCHW', 'OIHW', 'NCHW'))
        feats.append(bn_relu(y, params['sd'][di], params['bd'][di]))

    cat = jnp.concatenate(feats, axis=1)
    out = jnp.einsum('nchw,cd->ndhw', cat, params['wproj'])
    out = bn_relu(out, params['sp'], params['bp'])
    return jnp.transpose(out, (0, 2, 3, 1))


if __name__ == "__main__":
    key = jax.random.PRNGKey(0)
    # small but lane-dense: Cout = 128 keeps the output last dim a full lane
    # width; Cin stays small so the demo remains tiny.
    in_channels, out_channels = 8, 128
    dilations = DILATIONS
    N, H, W = 2, 16, 16

    kx, kp = jax.random.split(key)
    x = jax.random.normal(kx, (N, H, W, in_channels), jnp.float32)
    params = init_params(kp, in_channels, out_channels, dilations)

    out = jax.block_until_ready(aspp_forward(x, params, dilations))
    ref = aspp_ref(x, params, dilations)

    assert out.shape == (N, H, W, out_channels)
    rel = float(jnp.linalg.norm(out - ref) / jnp.linalg.norm(ref))
    max_err = float(jnp.max(jnp.abs(out - ref)))
    # bf16 matmul operands (folded-BN weights + activations) vs. f32 reference
    assert rel < 5e-2 and max_err < 0.25, f"rel={rel} max_abs={max_err}"

    print("KERNEL_OK")
</pallas_src>

<mosaic_0001>
module attributes {stable_mosaic.version = 11 : i64} {
  func.func @_aspp_kernel(%arg0: i32, %arg1: i32, %arg2: memref<1x1x128xf32, #tpu.memory_space<vmem>>, %arg3: memref<1x52x52x8xbf16, #tpu.memory_space<vmem>>, %arg4: memref<8x128xbf16, #tpu.memory_space<vmem>>, %arg5: memref<216x128xbf16, #tpu.memory_space<vmem>>, %arg6: memref<512x128xbf16, #tpu.memory_space<vmem>>, %arg7: memref<1x128xf32, #tpu.memory_space<vmem>>, %arg8: memref<3x128xf32, #tpu.memory_space<vmem>>, %arg9: memref<1x128xf32, #tpu.memory_space<vmem>>, %arg10: memref<1x16x16x128xf32, #tpu.memory_space<vmem>>) attributes {dimension_semantics = [#tpu.dimension_semantics<parallel>, #tpu.dimension_semantics<arbitrary>], iteration_bounds = array<i64: 2, 1>, scalar_prefetch = 0 : i64, scratch_operands = 0 : i64, tpu.core_type = #tpu.core_type<tc>, window_params = [{transform_indices = @transform_0, window_bounds = array<i64: 1, 1, 128>}, {transform_indices = @transform_1, window_bounds = array<i64: 1, 52, 52, 8>}, {pipeline_mode = #tpu.pipeline_mode<synchronous>, transform_indices = @transform_2, window_bounds = array<i64: 8, 128>}, {pipeline_mode = #tpu.pipeline_mode<synchronous>, transform_indices = @transform_3, window_bounds = array<i64: 216, 128>}, {pipeline_mode = #tpu.pipeline_mode<synchronous>, transform_indices = @transform_4, window_bounds = array<i64: 512, 128>}, {pipeline_mode = #tpu.pipeline_mode<synchronous>, transform_indices = @transform_5, window_bounds = array<i64: 1, 128>}, {pipeline_mode = #tpu.pipeline_mode<synchronous>, transform_indices = @transform_6, window_bounds = array<i64: 3, 128>}, {pipeline_mode = #tpu.pipeline_mode<synchronous>, transform_indices = @transform_7, window_bounds = array<i64: 1, 128>}, {transform_indices = @transform_8, window_bounds = array<i64: 1, 16, 16, 128>}]} {
    %c16_i32 = arith.constant 16 : i32
    %0 = arith.muli %arg1, %c16_i32 : i32
    %1 = tpu.assume_multiple %0, 16 : i32
    %c18_i32 = arith.constant 18 : i32
    %2 = arith.addi %1, %c18_i32 : i32
    %c0 = arith.constant 0 : index
    %3 = arith.index_cast %2 : i32 to index
    %c18 = arith.constant 18 : index
    %c0_0 = arith.constant 0 : index
    %4 = vector.load %arg3[%c0, %3, %c18, %c0_0] : memref<1x52x52x8xbf16, #tpu.memory_space<vmem>>, vector<1x16x16x8xbf16>
    %5 = vector.shape_cast %4 : vector<1x16x16x8xbf16> to vector<16x16x8xbf16>
    %6 = vector.shape_cast %5 : vector<16x16x8xbf16> to vector<256x8xbf16>
    %c0_1 = arith.constant 0 : index
    %c0_2 = arith.constant 0 : index
    %c0_3 = arith.constant 0 : index
    %7 = vector.load %arg2[%c0_1, %c0_2, %c0_3] : memref<1x1x128xf32, #tpu.memory_space<vmem>>, vector<1x1x128xf32>
    %8 = vector.shape_cast %7 : vector<1x1x128xf32> to vector<1x128xf32>
    %c0_4 = arith.constant 0 : index
    %c0_5 = arith.constant 0 : index
    %9 = vector.load %arg9[%c0_4, %c0_5] : memref<1x128xf32, #tpu.memory_space<vmem>>, vector<1x128xf32>
    %10 = arith.addf %8, %9 : vector<1x128xf32>
    %c0_6 = arith.constant 0 : index
    %c0_7 = arith.constant 0 : index
    %11 = vector.load %arg4[%c0_6, %c0_7] : memref<8x128xbf16, #tpu.memory_space<vmem>>, vector<8x128xbf16>
    %cst = arith.constant dense<0.000000e+00> : vector<256x128xf32>
    %12 = tpu.matmul %6, %11, %cst {dimension_numbers = #tpu.dot_dimension_numbers<[1], [0], [0], [1], [0, 0, 1, 1], [], []>} : vector<256x8xbf16>, vector<8x128xbf16>, vector<256x128xf32> -> vector<256x128xf32>
    %c0_8 = arith.constant 0 : index
    %c0_9 = arith.constant 0 : index
    %13 = vector.load %arg7[%c0_8, %c0_9] : memref<1x128xf32, #tpu.memory_space<vmem>>, vector<1x128xf32>
    %14 = vector.broadcast %13 : vector<1x128xf32> to vector<256x128xf32>
    %15 = arith.addf %12, %14 : vector<256x128xf32>
    %cst_10 = arith.constant 0.000000e+00 : f32
    %16 = vector.broadcast %cst_10 : f32 to vector<256x128xf32>
    %17 = arith.maximumf %15, %16 : vector<256x128xf32>
    %18 = arith.truncf %17 : vector<256x128xf32> to vector<256x128xbf16>
    %c0_11 = arith.constant 0 : index
    %c0_12 = arith.constant 0 : index
    %19 = vector.load %arg6[%c0_11, %c0_12] : memref<512x128xbf16, #tpu.memory_space<vmem>>, vector<128x128xbf16>
    %cst_13 = arith.constant dense<0.000000e+00> : vector<256x128xf32>
    %20 = tpu.matmul %18, %19, %cst_13 {dimension_numbers = #tpu.dot_dimension_numbers<[1], [0], [0], [1], [0, 0, 1, 1], [], []>} : vector<256x128xbf16>, vector<128x128xbf16>, vector<256x128xf32> -> vector<256x128xf32>
    %21 = vector.broadcast %10 : vector<1x128xf32> to vector<256x128xf32>
    %22 = arith.addf %21, %20 : vector<256x128xf32>
    %c18_i32_14 = arith.constant 18 : i32
    %23 = arith.addi %1, %c18_i32_14 : i32
    %c-6_i32 = arith.constant -6 : i32
    %24 = arith.addi %23, %c-6_i32 : i32
    %c0_15 = arith.constant 0 : index
    %25 = arith.index_cast %24 : i32 to index
    %c12 = arith.constant 12 : index
    %c0_16 = arith.constant 0 : index
    %26 = vector.load %arg3[%c0_15, %25, %c12, %c0_16] : memref<1x52x52x8xbf16, #tpu.memory_space<vmem>>, vector<1x16x16x8xbf16>
    %27 = vector.shape_cast %26 : vector<1x16x16x8xbf16> to vector<16x16x8xbf16>
    %c18_i32_17 = arith.constant 18 : i32
    %28 = arith.addi %1, %c18_i32_17 : i32
    %c-6_i32_18 = arith.constant -6 : i32
    %29 = arith.addi %28, %c-6_i32_18 : i32
    %c0_19 = arith.constant 0 : index
    %30 = arith.index_cast %29 : i32 to index
    %c18_20 = arith.constant 18 : index
    %c0_21 = arith.constant 0 : index
    %31 = vector.load %arg3[%c0_19, %30, %c18_20, %c0_21] : memref<1x52x52x8xbf16, #tpu.memory_space<vmem>>, vector<1x16x16x8xbf16>
    %32 = vector.shape_cast %31 : vector<1x16x16x8xbf16> to vector<16x16x8xbf16>
    %c18_i32_22 = arith.constant 18 : i32
    %33 = arith.addi %1, %c18_i32_22 : i32
    %c-6_i32_23 = arith.constant -6 : i32
    %34 = arith.addi %33, %c-6_i32_23 : i32
    %c0_24 = arith.constant 0 : index
    %35 = arith.index_cast %34 : i32 to index
    %c24 = arith.constant 24 : index
    %c0_25 = arith.constant 0 : index
    %36 = vector.load %arg3[%c0_24, %35, %c24, %c0_25] : memref<1x52x52x8xbf16, #tpu.memory_space<vmem>>, vector<1x16x16x8xbf16>
    %37 = vector.shape_cast %36 : vector<1x16x16x8xbf16> to vector<16x16x8xbf16>
    %c18_i32_26 = arith.constant 18 : i32
    %38 = arith.addi %1, %c18_i32_26 : i32
    %c0_i32 = arith.constant 0 : i32
    %39 = arith.addi %38, %c0_i32 : i32
    %c0_27 = arith.constant 0 : index
    %40 = arith.index_cast %39 : i32 to index
    %c12_28 = arith.constant 12 : index
    %c0_29 = arith.constant 0 : index
    %41 = vector.load %arg3[%c0_27, %40, %c12_28, %c0_29] : memref<1x52x52x8xbf16, #tpu.memory_space<vmem>>, vector<1x16x16x8xbf16>
    %42 = vector.shape_cast %41 : vector<1x16x16x8xbf16> to vector<16x16x8xbf16>
    %c18_i32_30 = arith.constant 18 : i32
    %43 = arith.addi %1, %c18_i32_30 : i32
    %c0_i32_31 = arith.constant 0 : i32
    %44 = arith.addi %43, %c0_i32_31 : i32
    %c0_32 = arith.constant 0 : index
    %45 = arith.index_cast %44 : i32 to index
    %c24_33 = arith.constant 24 : index
    %c0_34 = arith.constant 0 : index
    %46 = vector.load %arg3[%c0_32, %45, %c24_33, %c0_34] : memref<1x52x52x8xbf16, #tpu.memory_space<vmem>>, vector<1x16x16x8xbf16>
    %47 = vector.shape_cast %46 : vector<1x16x16x8xbf16> to vector<16x16x8xbf16>
    %c18_i32_35 = arith.constant 18 : i32
    %48 = arith.addi %1, %c18_i32_35 : i32
    %c6_i32 = arith.constant 6 : i32
    %49 = arith.addi %48, %c6_i32 : i32
    %c0_36 = arith.constant 0 : index
    %50 = arith.index_cast %49 : i32 to index
    %c12_37 = arith.constant 12 : index
    %c0_38 = arith.constant 0 : index
    %51 = vector.load %arg3[%c0_36, %50, %c12_37, %c0_38] : memref<1x52x52x8xbf16, #tpu.memory_space<vmem>>, vector<1x16x16x8xbf16>
    %52 = vector.shape_cast %51 : vector<1x16x16x8xbf16> to vector<16x16x8xbf16>
    %c18_i32_39 = arith.constant 18 : i32
    %53 = arith.addi %1, %c18_i32_39 : i32
    %c6_i32_40 = arith.constant 6 : i32
    %54 = arith.addi %53, %c6_i32_40 : i32
    %c0_41 = arith.constant 0 : index
    %55 = arith.index_cast %54 : i32 to index
    %c18_42 = arith.constant 18 : index
    %c0_43 = arith.constant 0 : index
    %56 = vector.load %arg3[%c0_41, %55, %c18_42, %c0_43] : memref<1x52x52x8xbf16, #tpu.memory_space<vmem>>, vector<1x16x16x8xbf16>
    %57 = vector.shape_cast %56 : vector<1x16x16x8xbf16> to vector<16x16x8xbf16>
    %c18_i32_44 = arith.constant 18 : i32
    %58 = arith.addi %1, %c18_i32_44 : i32
    %c6_i32_45 = arith.constant 6 : i32
    %59 = arith.addi %58, %c6_i32_45 : i32
    %c0_46 = arith.constant 0 : index
    %60 = arith.index_cast %59 : i32 to index
    %c24_47 = arith.constant 24 : index
    %c0_48 = arith.constant 0 : index
    %61 = vector.load %arg3[%c0_46, %60, %c24_47, %c0_48] : memref<1x52x52x8xbf16, #tpu.memory_space<vmem>>, vector<1x16x16x8xbf16>
    %62 = vector.shape_cast %61 : vector<1x16x16x8xbf16> to vector<16x16x8xbf16>
    %63 = tpu.concatenate %27, %32, %37, %42, %5, %47, %52, %57, %62 in 2 : vector<16x16x8xbf16>, vector<16x16x8xbf16>, vector<16x16x8xbf16>, vector<16x16x8xbf16>, vector<16x16x8xbf16>, vector<16x16x8xbf16>, vector<16x16x8xbf16>, vector<16x16x8xbf16>, vector<16x16x8xbf16> -> vector<16x16x72xbf16>
    %64 = vector.shape_cast %63 : vector<16x16x72xbf16> to vector<256x72xbf16>
    %c0_49 = arith.constant 0 : index
    %c0_50 = arith.constant 0 : index
    %65 = vector.load %arg5[%c0_49, %c0_50] : memref<216x128xbf16, #tpu.memory_space<vmem>>, vector<72x128xbf16>
    %cst_51 = arith.constant dense<0.000000e+00> : vector<256x128xf32>
    %66 = tpu.matmul %64, %65, %cst_51 {dimension_numbers = #tpu.dot_dimension_numbers<[1], [0], [0], [1], [0, 0, 1, 1], [], []>} : vector<256x72xbf16>, vector<72x128xbf16>, vector<256x128xf32> -> vector<256x128xf32>
    %c0_52 = arith.constant 0 : index
    %c0_53 = arith.constant 0 : index
    %67 = vector.load %arg8[%c0_52, %c0_53] : memref<3x128xf32, #tpu.memory_space<vmem>>, vector<1x128xf32>
    %68 = vector.broadcast %67 : vector<1x128xf32> to vector<256x128xf32>
    %69 = arith.addf %66, %68 : vector<256x128xf32>
    %cst_54 = arith.constant 0.000000e+00 : f32
    %70 = vector.broadcast %cst_54 : f32 to vector<256x128xf32>
    %71 = arith.maximumf %69, %70 : vector<256x128xf32>
    %72 = arith.truncf %71 : vector<256x128xf32> to vector<256x128xbf16>
    %c128 = arith.constant 128 : index
    %c0_55 = arith.constant 0 : index
    %73 = vector.load %arg6[%c128, %c0_55] : memref<512x128xbf16, #tpu.memory_space<vmem>>, vector<128x128xbf16>
    %cst_56 = arith.constant dense<0.000000e+00> : vector<256x128xf32>
    %74 = tpu.matmul %72, %73, %cst_56 {dimension_numbers = #tpu.dot_dimension_numbers<[1], [0], [0], [1], [0, 0, 1, 1], [], []>} : vector<256x128xbf16>, vector<128x128xbf16>, vector<256x128xf32> -> vector<256x128xf32>
    %75 = arith.addf %22, %74 : vector<256x128xf32>
    %c18_i32_57 = arith.constant 18 : i32
    %76 = arith.addi %1, %c18_i32_57 : i32
    %c-12_i32 = arith.constant -12 : i32
    %77 = arith.addi %76, %c-12_i32 : i32
    %c0_58 = arith.constant 0 : index
    %78 = arith.index_cast %77 : i32 to index
    %c6 = arith.constant 6 : index
    %c0_59 = arith.constant 0 : index
    %79 = vector.load %arg3[%c0_58, %78, %c6, %c0_59] : memref<1x52x52x8xbf16, #tpu.memory_space<vmem>>, vector<1x16x16x8xbf16>
    %80 = vector.shape_cast %79 : vector<1x16x16x8xbf16> to vector<16x16x8xbf16>
    %c18_i32_60 = arith.constant 18 : i32
    %81 = arith.addi %1, %c18_i32_60 : i32
    %c-12_i32_61 = arith.constant -12 : i32
    %82 = arith.addi %81, %c-12_i32_61 : i32
    %c0_62 = arith.constant 0 : index
    %83 = arith.index_cast %82 : i32 to index
    %c18_63 = arith.constant 18 : index
    %c0_64 = arith.constant 0 : index
    %84 = vector.load %arg3[%c0_62, %83, %c18_63, %c0_64] : memref<1x52x52x8xbf16, #tpu.memory_space<vmem>>, vector<1x16x16x8xbf16>
    %85 = vector.shape_cast %84 : vector<1x16x16x8xbf16> to vector<16x16x8xbf16>
    %c18_i32_65 = arith.constant 18 : i32
    %86 = arith.addi %1, %c18_i32_65 : i32
    %c-12_i32_66 = arith.constant -12 : i32
    %87 = arith.addi %86, %c-12_i32_66 : i32
    %c0_67 = arith.constant 0 : index
    %88 = arith.index_cast %87 : i32 to index
    %c30 = arith.constant 30 : index
    %c0_68 = arith.constant 0 : index
    %89 = vector.load %arg3[%c0_67, %88, %c30, %c0_68] : memref<1x52x52x8xbf16, #tpu.memory_space<vmem>>, vector<1x16x16x8xbf16>
    %90 = vector.shape_cast %89 : vector<1x16x16x8xbf16> to vector<16x16x8xbf16>
    %c18_i32_69 = arith.constant 18 : i32
    %91 = arith.addi %1, %c18_i32_69 : i32
    %c0_i32_70 = arith.constant 0 : i32
    %92 = arith.addi %91, %c0_i32_70 : i32
    %c0_71 = arith.constant 0 : index
    %93 = arith.index_cast %92 : i32 to index
    %c6_72 = arith.constant 6 : index
    %c0_73 = arith.constant 0 : index
    %94 = vector.load %arg3[%c0_71, %93, %c6_72, %c0_73] : memref<1x52x52x8xbf16, #tpu.memory_space<vmem>>, vector<1x16x16x8xbf16>
    %95 = vector.shape_cast %94 : vector<1x16x16x8xbf16> to vector<16x16x8xbf16>
    %c18_i32_74 = arith.constant 18 : i32
    %96 = arith.addi %1, %c18_i32_74 : i32
    %c0_i32_75 = arith.constant 0 : i32
    %97 = arith.addi %96, %c0_i32_75 : i32
    %c0_76 = arith.constant 0 : index
    %98 = arith.index_cast %97 : i32 to index
    %c30_77 = arith.constant 30 : index
    %c0_78 = arith.constant 0 : index
    %99 = vector.load %arg3[%c0_76, %98, %c30_77, %c0_78] : memref<1x52x52x8xbf16, #tpu.memory_space<vmem>>, vector<1x16x16x8xbf16>
    %100 = vector.shape_cast %99 : vector<1x16x16x8xbf16> to vector<16x16x8xbf16>
    %c18_i32_79 = arith.constant 18 : i32
    %101 = arith.addi %1, %c18_i32_79 : i32
    %c12_i32 = arith.constant 12 : i32
    %102 = arith.addi %101, %c12_i32 : i32
    %c0_80 = arith.constant 0 : index
    %103 = arith.index_cast %102 : i32 to index
    %c6_81 = arith.constant 6 : index
    %c0_82 = arith.constant 0 : index
    %104 = vector.load %arg3[%c0_80, %103, %c6_81, %c0_82] : memref<1x52x52x8xbf16, #tpu.memory_space<vmem>>, vector<1x16x16x8xbf16>
    %105 = vector.shape_cast %104 : vector<1x16x16x8xbf16> to vector<16x16x8xbf16>
    %c18_i32_83 = arith.constant 18 : i32
    %106 = arith.addi %1, %c18_i32_83 : i32
    %c12_i32_84 = arith.constant 12 : i32
    %107 = arith.addi %106, %c12_i32_84 : i32
    %c0_85 = arith.constant 0 : index
    %108 = arith.index_cast %107 : i32 to index
    %c18_86 = arith.constant 18 : index
    %c0_87 = arith.constant 0 : index
    %109 = vector.load %arg3[%c0_85, %108, %c18_86, %c0_87] : memref<1x52x52x8xbf16, #tpu.memory_space<vmem>>, vector<1x16x16x8xbf16>
    %110 = vector.shape_cast %109 : vector<1x16x16x8xbf16> to vector<16x16x8xbf16>
    %c18_i32_88 = arith.constant 18 : i32
    %111 = arith.addi %1, %c18_i32_88 : i32
    %c12_i32_89 = arith.constant 12 : i32
    %112 = arith.addi %111, %c12_i32_89 : i32
    %c0_90 = arith.constant 0 : index
    %113 = arith.index_cast %112 : i32 to index
    %c30_91 = arith.constant 30 : index
    %c0_92 = arith.constant 0 : index
    %114 = vector.load %arg3[%c0_90, %113, %c30_91, %c0_92] : memref<1x52x52x8xbf16, #tpu.memory_space<vmem>>, vector<1x16x16x8xbf16>
    %115 = vector.shape_cast %114 : vector<1x16x16x8xbf16> to vector<16x16x8xbf16>
    %116 = tpu.concatenate %80, %85, %90, %95, %5, %100, %105, %110, %115 in 2 : vector<16x16x8xbf16>, vector<16x16x8xbf16>, vector<16x16x8xbf16>, vector<16x16x8xbf16>, vector<16x16x8xbf16>, vector<16x16x8xbf16>, vector<16x16x8xbf16>, vector<16x16x8xbf16>, vector<16x16x8xbf16> -> vector<16x16x72xbf16>
    %117 = vector.shape_cast %116 : vector<16x16x72xbf16> to vector<256x72xbf16>
    %c72 = arith.constant 72 : index
    %c0_93 = arith.constant 0 : index
    %118 = vector.load %arg5[%c72, %c0_93] : memref<216x128xbf16, #tpu.memory_space<vmem>>, vector<72x128xbf16>
    %cst_94 = arith.constant dense<0.000000e+00> : vector<256x128xf32>
    %119 = tpu.matmul %117, %118, %cst_94 {dimension_numbers = #tpu.dot_dimension_numbers<[1], [0], [0], [1], [0, 0, 1, 1], [], []>} : vector<256x72xbf16>, vector<72x128xbf16>, vector<256x128xf32> -> vector<256x128xf32>
    %c1 = arith.constant 1 : index
    %c0_95 = arith.constant 0 : index
    %120 = vector.load %arg8[%c1, %c0_95] : memref<3x128xf32, #tpu.memory_space<vmem>>, vector<1x128xf32>
    %121 = vector.broadcast %120 : vector<1x128xf32> to vector<256x128xf32>
    %122 = arith.addf %119, %121 : vector<256x128xf32>
    %cst_96 = arith.constant 0.000000e+00 : f32
    %123 = vector.broadcast %cst_96 : f32 to vector<256x128xf32>
    %124 = arith.maximumf %122, %123 : vector<256x128xf32>
    %125 = arith.truncf %124 : vector<256x128xf32> to vector<256x128xbf16>
    %c256 = arith.constant 256 : index
    %c0_97 = arith.constant 0 : index
    %126 = vector.load %arg6[%c256, %c0_97] : memref<512x128xbf16, #tpu.memory_space<vmem>>, vector<128x128xbf16>
    %cst_98 = arith.constant dense<0.000000e+00> : vector<256x128xf32>
    %127 = tpu.matmul %125, %126, %cst_98 {dimension_numbers = #tpu.dot_dimension_numbers<[1], [0], [0], [1], [0, 0, 1, 1], [], []>} : vector<256x128xbf16>, vector<128x128xbf16>, vector<256x128xf32> -> vector<256x128xf32>
    %128 = arith.addf %75, %127 : vector<256x128xf32>
    %c176 = arith.constant 176 : index
    %c0_99 = arith.constant 0 : index
    %129 = vector.load %arg5[%c176, %c0_99] : memref<216x128xbf16, #tpu.memory_space<vmem>>, vector<8x128xbf16>
    %cst_100 = arith.constant dense<0.000000e+00> : vector<256x128xf32>
    %130 = tpu.matmul %6, %129, %cst_100 {dimension_numbers = #tpu.dot_dimension_numbers<[1], [0], [0], [1], [0, 0, 1, 1], [], []>} : vector<256x8xbf16>, vector<8x128xbf16>, vector<256x128xf32> -> vector<256x128xf32>
    %c2 = arith.constant 2 : index
    %c0_101 = arith.constant 0 : index
    %131 = vector.load %arg8[%c2, %c0_101] : memref<3x128xf32, #tpu.memory_space<vmem>>, vector<1x128xf32>
    %132 = vector.broadcast %131 : vector<1x128xf32> to vector<256x128xf32>
    %133 = arith.addf %130, %132 : vector<256x128xf32>
    %cst_102 = arith.constant 0.000000e+00 : f32
    %134 = vector.broadcast %cst_102 : f32 to vector<256x128xf32>
    %135 = arith.maximumf %133, %134 : vector<256x128xf32>
    %136 = arith.truncf %135 : vector<256x128xf32> to vector<256x128xbf16>
    %c384 = arith.constant 384 : index
    %c0_103 = arith.constant 0 : index
    %137 = vector.load %arg6[%c384, %c0_103] : memref<512x128xbf16, #tpu.memory_space<vmem>>, vector<128x128xbf16>
    %cst_104 = arith.constant dense<0.000000e+00> : vector<256x128xf32>
    %138 = tpu.matmul %136, %137, %cst_104 {dimension_numbers = #tpu.dot_dimension_numbers<[1], [0], [0], [1], [0, 0, 1, 1], [], []>} : vector<256x128xbf16>, vector<128x128xbf16>, vector<256x128xf32> -> vector<256x128xf32>
    %139 = arith.addf %128, %138 : vector<256x128xf32>
    %cst_105 = arith.constant 0.000000e+00 : f32
    %140 = vector.broadcast %cst_105 : f32 to vector<256x128xf32>
    %141 = arith.maximumf %139, %140 : vector<256x128xf32>
    %142 = vector.shape_cast %141 : vector<256x128xf32> to vector<16x16x128xf32>
    %c0_106 = arith.constant 0 : index
    %c0_107 = arith.constant 0 : index
    %c0_108 = arith.constant 0 : index
    %c0_109 = arith.constant 0 : index
    %143 = vector.load %arg10[%c0_106, %c0_107, %c0_108, %c0_109] : memref<1x16x16x128xf32, #tpu.memory_space<vmem>>, vector<1x16x16x128xf32>
    %144 = vector.shape_cast %143 : vector<1x16x16x128xf32> to vector<16x16x128xf32>
    %145 = vector.shape_cast %142 : vector<16x16x128xf32> to vector<1x16x16x128xf32>
    tpu.vector_store %arg10[%c0_106, %c0_107, %c0_108, %c0_109], %145 {strides = array<i32>} : memref<1x16x16x128xf32, #tpu.memory_space<vmem>>, vector<1x16x16x128xf32>,
    return
  }
  func.func @transform_0(%arg0: i32, %arg1: i32) -> (i32, i32, i32) {
    %c0_i32 = arith.constant 0 : i32
    %c0_i32_0 = arith.constant 0 : i32
    %c0_i32_1 = arith.constant 0 : i32
    return %arg0, %c0_i32, %c0_i32_0 : i32, i32, i32
  }
  func.func @transform_1(%arg0: i32, %arg1: i32) -> (i32, i32, i32, i32) {
    %c0_i32 = arith.constant 0 : i32
    %c0_i32_0 = arith.constant 0 : i32
    %c0_i32_1 = arith.constant 0 : i32
    %c0_i32_2 = arith.constant 0 : i32
    return %arg0, %c0_i32, %c0_i32_0, %c0_i32_1 : i32, i32, i32, i32
  }
  func.func @transform_2(%arg0: i32, %arg1: i32) -> (i32, i32) {
    %c0_i32 = arith.constant 0 : i32
    %c0_i32_0 = arith.constant 0 : i32
    %c0_i32_1 = arith.constant 0 : i32
    return %c0_i32, %c0_i32_0 : i32, i32
  }
  func.func @transform_3(%arg0: i32, %arg1: i32) -> (i32, i32) {
    %c0_i32 = arith.constant 0 : i32
    %c0_i32_0 = arith.constant 0 : i32
    %c0_i32_1 = arith.constant 0 : i32
    return %c0_i32, %c0_i32_0 : i32, i32
  }
  func.func @transform_4(%arg0: i32, %arg1: i32) -> (i32, i32) {
    %c0_i32 = arith.constant 0 : i32
    %c0_i32_0 = arith.constant 0 : i32
    %c0_i32_1 = arith.constant 0 : i32
    return %c0_i32, %c0_i32_0 : i32, i32
  }
  func.func @transform_5(%arg0: i32, %arg1: i32) -> (i32, i32) {
    %c0_i32 = arith.constant 0 : i32
    %c0_i32_0 = arith.constant 0 : i32
    %c0_i32_1 = arith.constant 0 : i32
    return %c0_i32, %c0_i32_0 : i32, i32
  }
  func.func @transform_6(%arg0: i32, %arg1: i32) -> (i32, i32) {
    %c0_i32 = arith.constant 0 : i32
    %c0_i32_0 = arith.constant 0 : i32
    %c0_i32_1 = arith.constant 0 : i32
    return %c0_i32, %c0_i32_0 : i32, i32
  }
  func.func @transform_7(%arg0: i32, %arg1: i32) -> (i32, i32) {
    %c0_i32 = arith.constant 0 : i32
    %c0_i32_0 = arith.constant 0 : i32
    %c0_i32_1 = arith.constant 0 : i32
    return %c0_i32, %c0_i32_0 : i32, i32
  }
  func.func @transform_8(%arg0: i32, %arg1: i32) -> (i32, i32, i32, i32) {
    %c0_i32 = arith.constant 0 : i32
    %c0_i32_0 = arith.constant 0 : i32
    %c0_i32_1 = arith.constant 0 : i32
    return %arg0, %arg1, %c0_i32, %c0_i32_0 : i32, i32, i32, i32
  }
}

</mosaic_0001>

<llo_original>
// kernel: tpu_custom_call.1
$region0: #{tpu_custom_call.1}
  #allocation0 [shape = 'u32[]', space=smem, size = 0x4, offset = 0x4, fixed_abs, tag = 'smem constant byte address 0x4 - core index']
  #allocation1 [shape = 'u32[144,128]{1,0:T(1,128)}', space=vmem, size = 0x12000, scoped, tag = 'internal scratch']
  %s0 = inlined_call_operand.vmem [shape: f32[2,1,128], index: 0, kind: input, shape index: {}]
  %s1 = inlined_call_operand.vmem [shape: bf16[2,52,52,8], index: 1, kind: input, shape index: {}]
  %s2 = inlined_call_operand.vmem [shape: bf16[8,128], index: 2, kind: input, shape index: {}]
  %s3 = inlined_call_operand.vmem [shape: bf16[216,128], index: 3, kind: input, shape index: {}]
  %s4 = inlined_call_operand.vmem [shape: bf16[512,128], index: 4, kind: input, shape index: {}]
  %s5 = inlined_call_operand.vmem [shape: f32[1,128], index: 5, kind: input, shape index: {}]
  %s6 = inlined_call_operand.vmem [shape: f32[3,128], index: 6, kind: input, shape index: {}]
  %s7 = inlined_call_operand.vmem [shape: f32[1,128], index: 7, kind: input, shape index: {}]
  %s8 = inlined_call_operand.hbm [shape: f32[2,16,16,128], index: 8, kind: output, shape index: {}]
  %s9 = sld [smem:[#allocation0]]
  $region65: #{tpu_custom_call.1} parent=0
    _
  %s11 = ssub.s32 1, %s9
  %s12 = scalar_select 0, %s11, %s9
  $region1: #{tpu_custom_call.1} parent=0
    #allocation2 [shape = 'u8[262144]{0}', space=vmem, size = 0x40000, scoped, tag = 'output window, operand 0']
    #allocation3 [shape = 's32[2]{0}', space=sflag, size = 0x8, scoped, tag = 'scoped memory for tpu_custom_call.1']
    %13 = vsyncpa [#allocation3], 0
    %s14 = scalar_lea.sflag [#allocation3], 1
    %15 = vsyncpa %s14, 0
    loop: start=0, step=1, limit=4
    $region2: #{tpu_custom_call.1} parent=1 // loop_pre_header
      _
    $region3: #{tpu_custom_call.1} parent=1 // loop_header
      %s17 = sphi 0, %s21
      %p18 = scmp.ge.s32.totalorder %s17, 4
      %s24 = sphi 0, %s36
      %s25 = sphi 0, %s32
      %s26 = sphi 0, %s24
      %s27 = sphi 0, %s25
      %s28 = sphi 0, %s26
      %s29 = sphi 0, %s27
      %s39 = sphi 0, %s41
      %s42 = sphi 0, %s39
      %s43 = sphi 0, %s42
      %s59 = sphi 0, %s43
      %s65 = sphi 0, %s67
      %s68 = sphi 0, %s65
      %s69 = sphi 0, %s68
      %s85 = sphi 0, %s69
      %s89 = sphi 0, %s89
      %s91 = sphi 0, %s89
      %s92 = sphi 0, %s91
      %s106 = sphi 0, %s92
      %s110 = sphi 0, %s110
      %s112 = sphi 0, %s110
      %s113 = sphi 0, %s112
      %s127 = sphi 0, %s113
      %s131 = sphi 0, %s131
      %s133 = sphi 0, %s131
      %s134 = sphi 0, %s133
      %s148 = sphi 0, %s134
      %s152 = sphi 0, %s152
      %s154 = sphi 0, %s152
      %s155 = sphi 0, %s154
      %s169 = sphi 0, %s155
      %s173 = sphi 0, %s173
      %s175 = sphi 0, %s173
      %s176 = sphi 0, %s175
      %s190 = sphi 0, %s176
      %s194 = sphi 0, %s194
      %s196 = sphi 0, %s194
      %s197 = sphi 0, %s196
      %s211 = sphi 0, %s197
      %s219 = sphi 0, %s221
      %s222 = sphi 0, %s219
      %s223 = sphi 0, %s222
      %s239 = sphi 0, %s223
    $region4: #{tpu_custom_call.1} parent=1 // loop_header_branch
      %20 = sbr.rel (%p18) target = $region8
    $region5: #{tpu_custom_call.1} parent=1 // loop_body
      %s22 = ssub.s32 %s17, 1
      %s23 = ssub.s32 %s17, 2
      %s30 = sadd.s32 1, %s25
      %p31 = scmp.ge.s32.totalorder %s30, 1
      %s32 = scalar_select %p31, 0, %s30
      %s33 = sadd.s32 1, %s24
      %s34 = scalar_select %p31, %s33, %s24
      %p35 = scmp.ge.s32.totalorder %s34, 2
      %s36 = scalar_select %p35, 0, %s34
      %s37 = ssub.s32 %s24, %s36
      %p38 = scmp.eq.s32.totalorder %s37, 0
      %s40 = sadd.s32 %s39, 1
      %s41 = scalar_select %p38, %s39, %s40
      %p44 = pneg %p38
      %p45 = scmp.eq.s32.totalorder %s17, 1
      %p46 = por %p44, %p45
      %p47 = scmp.ne.s32.totalorder %s39, %s42
      %p48 = scmp.eq.s32.totalorder %s17, 0
      %p49 = por %p47, %p48
      %p50 = scmp.ne.s32.totalorder %s39, %s42
      %p51 = scmp.eq.s32.totalorder %s22, 1
      %p52 = por %p50, %p51
      %p53 = scmp.ne.s32.totalorder %s42, %s43
      %p54 = scmp.eq.s32.totalorder %s22, 0
      %p55 = por %p53, %p54
      %p56 = scmp.ne.s32.totalorder %s42, %s43
      %p57 = scmp.eq.s32.totalorder %s23, 1
      %p58 = por %p56, %p57
      %p60 = scmp.ne.s32.totalorder %s43, %s59
      %p61 = scmp.eq.s32.totalorder %s23, 0
      %p62 = por %p60, %p61
      %s63 = ssub.s32 %s24, %s36
      %p64 = scmp.eq.s32.totalorder %s63, 0
      %s66 = sadd.s32 %s65, 1
      %s67 = scalar_select %p64, %s65, %s66
      %p70 = pneg %p64
      %p71 = scmp.eq.s32.totalorder %s17, 1
      %p72 = por %p70, %p71
      %p73 = scmp.ne.s32.totalorder %s65, %s68
      %p74 = scmp.eq.s32.totalorder %s17, 0
      %p75 = por %p73, %p74
      %p76 = scmp.ne.s32.totalorder %s65, %s68
      %p77 = scmp.eq.s32.totalorder %s22, 1
      %p78 = por %p76, %p77
      %p79 = scmp.ne.s32.totalorder %s68, %s69
      %p80 = scmp.eq.s32.totalorder %s22, 0
      %p81 = por %p79, %p80
      %p82 = scmp.ne.s32.totalorder %s68, %s69
      %p83 = scmp.eq.s32.totalorder %s23, 1
      %p84 = por %p82, %p83
      %p86 = scmp.ne.s32.totalorder %s69, %s85
      %p87 = scmp.eq.s32.totalorder %s23, 0
      %p88 = por %p86, %p87
      %s90 = sadd.s32 %s89, 1
      %p93 = scmp.eq.s32.totalorder %s17, 1
      %p94 = scmp.ne.s32.totalorder %s89, %s91
      %p95 = scmp.eq.s32.totalorder %s17, 0
      %p96 = por %p94, %p95
      %p97 = scmp.ne.s32.totalorder %s89, %s91
      %p98 = scmp.eq.s32.totalorder %s22, 1
      %p99 = por %p97, %p98
      %p100 = scmp.ne.s32.totalorder %s91, %s92
      %p101 = scmp.eq.s32.totalorder %s22, 0
      %p102 = por %p100, %p101
      %p103 = scmp.ne.s32.totalorder %s91, %s92
      %p104 = scmp.eq.s32.totalorder %s23, 1
      %p105 = por %p103, %p104
      %p107 = scmp.ne.s32.totalorder %s92, %s106
      %p108 = scmp.eq.s32.totalorder %s23, 0
      %p109 = por %p107, %p108
      %s111 = sadd.s32 %s110, 1
      %p114 = scmp.eq.s32.totalorder %s17, 1
      %p115 = scmp.ne.s32.totalorder %s110, %s112
      %p116 = scmp.eq.s32.totalorder %s17, 0
      %p117 = por %p115, %p116
      %p118 = scmp.ne.s32.totalorder %s110, %s112
      %p119 = scmp.eq.s32.totalorder %s22, 1
      %p120 = por %p118, %p119
      %p121 = scmp.ne.s32.totalorder %s112, %s113
      %p122 = scmp.eq.s32.totalorder %s22, 0
      %p123 = por %p121, %p122
      %p124 = scmp.ne.s32.totalorder %s112, %s113
      %p125 = scmp.eq.s32.totalorder %s23, 1
      %p126 = por %p124, %p125
      %p128 = scmp.ne.s32.totalorder %s113, %s127
      %p129 = scmp.eq.s32.totalorder %s23, 0
      %p130 = por %p128, %p129
      %s132 = sadd.s32 %s131, 1
      %p135 = scmp.eq.s32.totalorder %s17, 1
      %p136 = scmp.ne.s32.totalorder %s131, %s133
      %p137 = scmp.eq.s32.totalorder %s17, 0
      %p138 = por %p136, %p137
      %p139 = scmp.ne.s32.totalorder %s131, %s133
      %p140 = scmp.eq.s32.totalorder %s22, 1
      %p141 = por %p139, %p140
      %p142 = scmp.ne.s32.totalorder %s133, %s134
      %p143 = scmp.eq.s32.totalorder %s22, 0
      %p144 = por %p142, %p143
      %p145 = scmp.ne.s32.totalorder %s133, %s134
      %p146 = scmp.eq.s32.totalorder %s23, 1
      %p147 = por %p145, %p146
      %p149 = scmp.ne.s32.totalorder %s134, %s148
      %p150 = scmp.eq.s32.totalorder %s23, 0
      %p151 = por %p149, %p150
      %s153 = sadd.s32 %s152, 1
      %p156 = scmp.eq.s32.totalorder %s17, 1
      %p157 = scmp.ne.s32.totalorder %s152, %s154
      %p158 = scmp.eq.s32.totalorder %s17, 0
      %p159 = por %p157, %p158
      %p160 = scmp.ne.s32.totalorder %s152, %s154
      %p161 = scmp.eq.s32.totalorder %s22, 1
      %p162 = por %p160, %p161
      %p163 = scmp.ne.s32.totalorder %s154, %s155
      %p164 = scmp.eq.s32.totalorder %s22, 0
      %p165 = por %p163, %p164
      %p166 = scmp.ne.s32.totalorder %s154, %s155
      %p167 = scmp.eq.s32.totalorder %s23, 1
      %p168 = por %p166, %p167
      %p170 = scmp.ne.s32.totalorder %s155, %s169
      %p171 = scmp.eq.s32.totalorder %s23, 0
      %p172 = por %p170, %p171
      %s174 = sadd.s32 %s173, 1
      %p177 = scmp.eq.s32.totalorder %s17, 1
      %p178 = scmp.ne.s32.totalorder %s173, %s175
      %p179 = scmp.eq.s32.totalorder %s17, 0
      %p180 = por %p178, %p179
      %p181 = scmp.ne.s32.totalorder %s173, %s175
      %p182 = scmp.eq.s32.totalorder %s22, 1
      %p183 = por %p181, %p182
      %p184 = scmp.ne.s32.totalorder %s175, %s176
      %p185 = scmp.eq.s32.totalorder %s22, 0
      %p186 = por %p184, %p185
      %p187 = scmp.ne.s32.totalorder %s175, %s176
      %p188 = scmp.eq.s32.totalorder %s23, 1
      %p189 = por %p187, %p188
      %p191 = scmp.ne.s32.totalorder %s176, %s190
      %p192 = scmp.eq.s32.totalorder %s23, 0
      %p193 = por %p191, %p192
      %s195 = sadd.s32 %s194, 1
      %p198 = scmp.eq.s32.totalorder %s17, 1
      %p199 = scmp.ne.s32.totalorder %s194, %s196
      %p200 = scmp.eq.s32.totalorder %s17, 0
      %p201 = por %p199, %p200
      %p202 = scmp.ne.s32.totalorder %s194, %s196
      %p203 = scmp.eq.s32.totalorder %s22, 1
      %p204 = por %p202, %p203
      %p205 = scmp.ne.s32.totalorder %s196, %s197
      %p206 = scmp.eq.s32.totalorder %s22, 0
      %p207 = por %p205, %p206
      %p208 = scmp.ne.s32.totalorder %s196, %s197
      %p209 = scmp.eq.s32.totalorder %s23, 1
      %p210 = por %p208, %p209
      %p212 = scmp.ne.s32.totalorder %s197, %s211
      %p213 = scmp.eq.s32.totalorder %s23, 0
      %p214 = por %p212, %p213
      %s215 = ssub.s32 %s24, %s36
      %s216 = ssub.s32 %s25, %s32
      %s217 = sor.u32 %s215, %s216
      %p218 = scmp.eq.s32.totalorder %s217, 0
      %s220 = sadd.s32 %s219, 1
      %s221 = scalar_select %p218, %s219, %s220
      %p224 = pneg %p218
      %p225 = scmp.eq.s32.totalorder %s17, 1
      %p226 = por %p224, %p225
      %p227 = scmp.ne.s32.totalorder %s219, %s222
      %p228 = scmp.eq.s32.totalorder %s17, 0
      %p229 = por %p227, %p228
      %p230 = scmp.ne.s32.totalorder %s219, %s222
      %p231 = scmp.eq.s32.totalorder %s22, 1
      %p232 = por %p230, %p231
      %p233 = scmp.ne.s32.totalorder %s222, %s223
      %p234 = scmp.eq.s32.totalorder %s22, 0
      %p235 = por %p233, %p234
      %p236 = scmp.ne.s32.totalorder %s222, %s223
      %p237 = scmp.eq.s32.totalorder %s23, 1
      %p238 = por %p236, %p237
      %p240 = scmp.ne.s32.totalorder %s223, %s239
      %p241 = scmp.eq.s32.totalorder %s23, 0
      %p242 = por %p240, %p241
      %p243 = scmp.le.s32.totalorder 1, %s17
      %p244 = scmp.lt.s32.totalorder %s17, 3
      %p245 = pnand %p243, %p244
      %p246 = pneg %p245
      // Predicated region
      $region9: #{tpu_custom_call.1} parent=5 // pred_check
        _
      $region10: #{tpu_custom_call.1} parent=5 // pred_check_branch
        %248 = sbr.rel (%p245) target = $region12
      $region11: #{tpu_custom_call.1} parent=5 // pred_region
        %s249 = ssub.s32 %s17, 1
        // Predicated region
        $region13: #{tpu_custom_call.1} parent=11 // pred_check
          %p250 = pneg %p102
        $region14: #{tpu_custom_call.1} parent=11 // pred_check_branch
          %252 = sbr.rel (%p250) target = $region16
        $region15: #{tpu_custom_call.1} parent=11 // pred_region
          _
        $region16: #{tpu_custom_call.1} parent=11 // pred_fallthru
          _
        // Predicated region
        $region17: #{tpu_custom_call.1} parent=11 // pred_check
          %p253 = pneg %p123
        $region18: #{tpu_custom_call.1} parent=11 // pred_check_branch
          %255 = sbr.rel (%p253) target = $region20
        $region19: #{tpu_custom_call.1} parent=11 // pred_region
          _
        $region20: #{tpu_custom_call.1} parent=11 // pred_fallthru
          _
        // Predicated region
        $region21: #{tpu_custom_call.1} parent=11 // pred_check
          %p256 = pneg %p144
        $region22: #{tpu_custom_call.1} parent=11 // pred_check_branch
          %258 = sbr.rel (%p256) target = $region24
        $region23: #{tpu_custom_call.1} parent=11 // pred_region
          _
        $region24: #{tpu_custom_call.1} parent=11 // pred_fallthru
          _
        // Predicated region
        $region25: #{tpu_custom_call.1} parent=11 // pred_check
          %p259 = pneg %p165
        $region26: #{tpu_custom_call.1} parent=11 // pred_check_branch
          %261 = sbr.rel (%p259) target = $region28
        $region27: #{tpu_custom_call.1} parent=11 // pred_region
          _
        $region28: #{tpu_custom_call.1} parent=11 // pred_fallthru
          _
        // Predicated region
        $region29: #{tpu_custom_call.1} parent=11 // pred_check
          %p262 = pneg %p186
        $region30: #{tpu_custom_call.1} parent=11 // pred_check_branch
          %264 = sbr.rel (%p262) target = $region32
        $region31: #{tpu_custom_call.1} parent=11 // pred_region
          _
        $region32: #{tpu_custom_call.1} parent=11 // pred_fallthru
          _
        // Predicated region
        $region33: #{tpu_custom_call.1} parent=11 // pred_check
          %p265 = pneg %p207
        $region34: #{tpu_custom_call.1} parent=11 // pred_check_branch
          %267 = sbr.rel (%p265) target = $region36
        $region35: #{tpu_custom_call.1} parent=11 // pred_region
          _
        $region36: #{tpu_custom_call.1} parent=11 // pred_fallthru
          _
      $region12: #{tpu_custom_call.1} parent=5 // pred_fallthru
        _
      %p268 = scmp.lt.s32.totalorder %s17, 2
      // Predicated region
      $region37: #{tpu_custom_call.1} parent=5 // pred_check
        %p269 = pneg %p268
      $region38: #{tpu_custom_call.1} parent=5 // pred_check_branch
        %271 = sbr.rel (%p269) target = $region40
      $region39: #{tpu_custom_call.1} parent=5 // pred_region
        // Predicated region
        $region41: #{tpu_custom_call.1} parent=39 // pred_check
          %p272 = pneg %p49
        $region42: #{tpu_custom_call.1} parent=39 // pred_check_branch
          %274 = sbr.rel (%p272) target = $region44
        $region43: #{tpu_custom_call.1} parent=39 // pred_region
          %p275 = scmp.lt.s32.totalorder %s24, 1
          %s276 = scalar_select %p275, %s24, 1
          %s277 = scalar_lea.vmem %s0, %s276
        $region44: #{tpu_custom_call.1} parent=39 // pred_fallthru
          _
        // Predicated region
        $region45: #{tpu_custom_call.1} parent=39 // pred_check
          %p278 = pneg %p75
        $region46: #{tpu_custom_call.1} parent=39 // pred_check_branch
          %280 = sbr.rel (%p278) target = $region48
        $region47: #{tpu_custom_call.1} parent=39 // pred_region
          %p281 = scmp.lt.s32.totalorder %s24, 1
          %s282 = scalar_select %p281, %s24, 1
          %s283 = smul.addr %s282, 364
          %s284 = smul.addr %s283, 4
          %s285 = scalar_lea.vmem %s1, %s284
        $region48: #{tpu_custom_call.1} parent=39 // pred_fallthru
          _
      $region40: #{tpu_custom_call.1} parent=5 // pred_fallthru
        _
      %p286 = scmp.le.s32.totalorder 1, %s17
      %p287 = scmp.lt.s32.totalorder %s17, 3
      %p288 = pnand %p286, %p287
      %p289 = pneg %p288
      // Predicated region
      $region49: #{tpu_custom_call.1} parent=5 // pred_check
        _
      $region50: #{tpu_custom_call.1} parent=5 // pred_check_branch
        %291 = sbr.rel (%p288) target = $region52
      $region51: #{tpu_custom_call.1} parent=5 // pred_region
        %s292 = ssub.s32 %s17, 1
        %p293 = scmp.lt.s32.totalorder %s26, 1
        %s294 = scalar_select %p293, %s26, 1
        %s295 = scalar_lea.vmem %s0, %s294
        %p296 = pneg %p55
        %p297 = pneg %p52
        %p298 = scmp.lt.s32.totalorder %s26, 1
        %s299 = scalar_select %p298, %s26, 1
        %s300 = smul.addr %s299, 364
        %s301 = smul.addr %s300, 4
        %s302 = scalar_lea.vmem %s1, %s301
        %p303 = pneg %p81
        %p304 = pneg %p78
        %p305 = pneg %p102
        %p306 = pneg %p99
        %p307 = pneg %p123
        %p308 = pneg %p120
        %p309 = pneg %p144
        %p310 = pneg %p141
        %p311 = pneg %p165
        %p312 = pneg %p162
        %p313 = pneg %p186
        %p314 = pneg %p183
        %p315 = pneg %p207
        %p316 = pneg %p204
        %p317 = pneg %p235
        %p318 = pneg %p232
        %s319 = sand.u32 %s222, 1
        %s320 = scalar_lea.sflag [#allocation3], %s319
        %s321 = sand.u32 %s222, 1
        %s322 = smul.addr %s321, 256
        %s323 = scalar_lea.vmem [#allocation2], %s322
        %p324 = scmp.lt.s32.totalorder %s26, 1
        %s325 = scalar_select %p324, %s26, 1
        %s326 = scalar_lea.vmem %s0, %s325
        %p327 = scmp.lt.s32.totalorder %s26, 1
        %s328 = scalar_select %p327, %s26, 1
        %s329 = smul.addr %s328, 364
        %s330 = smul.addr %s329, 4
        %s331 = scalar_lea.vmem %s1, %s330
        %s332 = smul.u32 16, %s27
        %s334 = smul.u32 %s27, 16
        %s335 = sadd.s32 %s334, 18
        %s336 = smul.u32 %s335, 7
        %s337 = smul.addr %s336, 4
        %s338 = scalar_lea.vmem %s331, %s337
        %v339 = vld [vmem:[%s338 + $0x8] sm:$0xe]
        %v340 = vld [vmem:[%s338 + $0xc] sm:$0xf]
        %v341 = vld [vmem:[%s338 + $0x10] sm:$0x1]
        %v342 = vld [vmem:[%s338 + $0x24] sm:$0xe]
        %v343 = vld [vmem:[%s338 + $0x28] sm:$0xf]
        %v344 = vld [vmem:[%s338 + $0x2c] sm:$0x1]
        %v345 = vld [vmem:[%s338 + $0x40] sm:$0xe]
        %v346 = vld [vmem:[%s338 + $0x44] sm:$0xf]
        %v347 = vld [vmem:[%s338 + $0x48] sm:$0x1]
        %v348 = vld [vmem:[%s338 + $0x5c] sm:$0xe]
        %v349 = vld [vmem:[%s338 + $0x60] sm:$0xf]
        %v350 = vld [vmem:[%s338 + $0x64] sm:$0x1]
        %v351 = vld [vmem:[%s338 + $0x78] sm:$0xe]
        %v352 = vld [vmem:[%s338 + $0x7c] sm:$0xf]
        %v353 = vld [vmem:[%s338 + $0x80] sm:$0x1]
        %v354 = vld [vmem:[%s338 + $0x94] sm:$0xe]
        %v355 = vld [vmem:[%s338 + $0x98] sm:$0xf]
        %v356 = vld [vmem:[%s338 + $0x9c] sm:$0x1]
        %v357 = vld [vmem:[%s338 + $0xb0] sm:$0xe]
        %v358 = vld [vmem:[%s338 + $0xb4] sm:$0xf]
        %v359 = vld [vmem:[%s338 + $0xb8] sm:$0x1]
        %v360 = vld [vmem:[%s338 + $0xcc] sm:$0xe]
        %v361 = vld [vmem:[%s338 + $0xd0] sm:$0xf]
        %v362 = vld [vmem:[%s338 + $0xd4] sm:$0x1]
        %v363 = vld [vmem:[%s338 + $0xe8] sm:$0xe]
        %v364 = vld [vmem:[%s338 + $0xec] sm:$0xf]
        %v365 = vld [vmem:[%s338 + $0xf0] sm:$0x1]
        %v366 = vld [vmem:[%s338 + $0x104] sm:$0xe]
        %v367 = vld [vmem:[%s338 + $0x108] sm:$0xf]
        %v368 = vld [vmem:[%s338 + $0x10c] sm:$0x1]
        %v369 = vld [vmem:[%s338 + $0x120] sm:$0xe]
        %v370 = vld [vmem:[%s338 + $0x124] sm:$0xf]
        %v371 = vld [vmem:[%s338 + $0x128] sm:$0x1]
        %v372 = vld [vmem:[%s338 + $0x13c] sm:$0xe]
        %v373 = vld [vmem:[%s338 + $0x140] sm:$0xf]
        %v374 = vld [vmem:[%s338 + $0x144] sm:$0x1]
        %v375 = vld [vmem:[%s338 + $0x158] sm:$0xe]
        %v376 = vld [vmem:[%s338 + $0x15c] sm:$0xf]
        %v377 = vld [vmem:[%s338 + $0x160] sm:$0x1]
        %v378 = vld [vmem:[%s338 + $0x174] sm:$0xe]
        %v379 = vld [vmem:[%s338 + $0x178] sm:$0xf]
        %v380 = vld [vmem:[%s338 + $0x17c] sm:$0x1]
        %v381 = vld [vmem:[%s338 + $0x190] sm:$0xe]
        %v382 = vld [vmem:[%s338 + $0x194] sm:$0xf]
        %v383 = vld [vmem:[%s338 + $0x198] sm:$0x1]
        %v384 = vld [vmem:[%s338 + $0x1ac] sm:$0xe]
        %v385 = vld [vmem:[%s338 + $0x1b0] sm:$0xf]
        %v386 = vld [vmem:[%s338 + $0x1b4] sm:$0x1]
        %vm435 = vcmask 1042432
        %vm436 = vcmask 1046532
        %vm437 = vmor %vm435, %vm436
        %v438 = vrot.slane %v339, 5
        %v439 = vrot.slane %v438, 4
        %v440 = vrot.slane %v340, 5
        %v441 = vsel %vm437, %v439, %v440
        %v442 = vrot.slane %v440, 4
        %v443 = vrot.slane %v341, 5
        %v444 = vsel %vm437, %v442, %v443
        %v445 = vrot.slane %v342, 5
        %v446 = vrot.slane %v445, 4
        %v447 = vrot.slane %v343, 5
        %v448 = vsel %vm437, %v446, %v447
        %v449 = vrot.slane %v447, 4
        %v450 = vrot.slane %v344, 5
        %v451 = vsel %vm437, %v449, %v450
        %v452 = vrot.slane %v345, 5
        %v453 = vrot.slane %v452, 4
        %v454 = vrot.slane %v346, 5
        %v455 = vsel %vm437, %v453, %v454
        %v456 = vrot.slane %v454, 4
        %v457 = vrot.slane %v347, 5
        %v458 = vsel %vm437, %v456, %v457
        %v459 = vrot.slane %v348, 5
        %v460 = vrot.slane %v459, 4
        %v461 = vrot.slane %v349, 5
        %v462 = vsel %vm437, %v460, %v461
        %v463 = vrot.slane %v461, 4
        %v464 = vrot.slane %v350, 5
        %v465 = vsel %vm437, %v463, %v464
        %v466 = vrot.slane %v351, 5
        %v467 = vrot.slane %v466, 4
        %v468 = vrot.slane %v352, 5
        %v469 = vsel %vm437, %v467, %v468
        %v470 = vrot.slane %v468, 4
        %v471 = vrot.slane %v353, 5
        %v472 = vsel %vm437, %v470, %v471
        %v473 = vrot.slane %v354, 5
        %v474 = vrot.slane %v473, 4
        %v475 = vrot.slane %v355, 5
        %v476 = vsel %vm437, %v474, %v475
        %v477 = vrot.slane %v475, 4
        %v478 = vrot.slane %v356, 5
        %v479 = vsel %vm437, %v477, %v478
        %v480 = vrot.slane %v357, 5
        %v481 = vrot.slane %v480, 4
        %v482 = vrot.slane %v358, 5
        %v483 = vsel %vm437, %v481, %v482
        %v484 = vrot.slane %v482, 4
        %v485 = vrot.slane %v359, 5
        %v486 = vsel %vm437, %v484, %v485
        %v487 = vrot.slane %v360, 5
        %v488 = vrot.slane %v487, 4
        %v489 = vrot.slane %v361, 5
        %v490 = vsel %vm437, %v488, %v489
        %v491 = vrot.slane %v489, 4
        %v492 = vrot.slane %v362, 5
        %v493 = vsel %vm437, %v491, %v492
        %v494 = vrot.slane %v363, 5
        %v495 = vrot.slane %v494, 4
        %v496 = vrot.slane %v364, 5
        %v497 = vsel %vm437, %v495, %v496
        %v498 = vrot.slane %v496, 4
        %v499 = vrot.slane %v365, 5
        %v500 = vsel %vm437, %v498, %v499
        %v501 = vrot.slane %v366, 5
        %v502 = vrot.slane %v501, 4
        %v503 = vrot.slane %v367, 5
        %v504 = vsel %vm437, %v502, %v503
        %v505 = vrot.slane %v503, 4
        %v506 = vrot.slane %v368, 5
        %v507 = vsel %vm437, %v505, %v506
        %v508 = vrot.slane %v369, 5
        %v509 = vrot.slane %v508, 4
        %v510 = vrot.slane %v370, 5
        %v511 = vsel %vm437, %v509, %v510
        %v512 = vrot.slane %v510, 4
        %v513 = vrot.slane %v371, 5
        %v514 = vsel %vm437, %v512, %v513
        %v515 = vrot.slane %v372, 5
        %v516 = vrot.slane %v515, 4
        %v517 = vrot.slane %v373, 5
        %v518 = vsel %vm437, %v516, %v517
        %v519 = vrot.slane %v517, 4
        %v520 = vrot.slane %v374, 5
        %v521 = vsel %vm437, %v519, %v520
        %v522 = vrot.slane %v375, 5
        %v523 = vrot.slane %v522, 4
        %v524 = vrot.slane %v376, 5
        %v525 = vsel %vm437, %v523, %v524
        %v526 = vrot.slane %v524, 4
        %v527 = vrot.slane %v377, 5
        %v528 = vsel %vm437, %v526, %v527
        %v529 = vrot.slane %v378, 5
        %v530 = vrot.slane %v529, 4
        %v531 = vrot.slane %v379, 5
        %v532 = vsel %vm437, %v530, %v531
        %v533 = vrot.slane %v531, 4
        %v534 = vrot.slane %v380, 5
        %v535 = vsel %vm437, %v533, %v534
        %v536 = vrot.slane %v381, 5
        %v537 = vrot.slane %v536, 4
        %v538 = vrot.slane %v382, 5
        %v539 = vsel %vm437, %v537, %v538
        %v540 = vrot.slane %v538, 4
        %v541 = vrot.slane %v383, 5
        %v542 = vsel %vm437, %v540, %v541
        %v543 = vrot.slane %v384, 5
        %v544 = vrot.slane %v543, 4
        %v545 = vrot.slane %v385, 5
        %v546 = vsel %vm437, %v544, %v545
        %v547 = vrot.slane %v545, 4
        %v548 = vrot.slane %v386, 5
        %v549 = vsel %vm437, %v547, %v548
        %v550 = vld [vmem:[%s326] sm:$0x1]
        %v551 = vld [vmem:[%s7] sm:$0x1]
        %v552 = vadd.f32 %v550, %v551
        %v553 = vld [vmem:[%s2] sm:$0xf]
        %v554 = vld [vmem:[%s5] sm:$0x1]
        %v556 = vlaneseq
        %v557 = vshrl.u32 %v556, 7
        %v558 = vsub.s32 0, %v557
        %v559 = vrot.slane %v554, %v558
        %v561 = vunpack.c.l.b16 %v441
        %v562 = vunpack.c.l.b16 %v444
        %v563 = vunpack.c.l.b16 %v448
        %v564 = vunpack.c.l.b16 %v451
        %v565 = vunpack.c.l.b16 %v455
        %v566 = vunpack.c.l.b16 %v458
        %v567 = vunpack.c.l.b16 %v462
        %v568 = vunpack.c.l.b16 %v465
        %v569 = vunpack.c.l.b16 %v469
        %v570 = vunpack.c.l.b16 %v472
        %v571 = vunpack.c.l.b16 %v476
        %v572 = vunpack.c.l.b16 %v479
        %v573 = vunpack.c.l.b16 %v483
        %v574 = vunpack.c.l.b16 %v486
        %v575 = vunpack.c.l.b16 %v490
        %v576 = vunpack.c.l.b16 %v493
        %v577 = vunpack.c.l.b16 %v497
        %v578 = vunpack.c.l.b16 %v500
        %v579 = vunpack.c.l.b16 %v504
        %v580 = vunpack.c.l.b16 %v507
        %v581 = vunpack.c.l.b16 %v511
        %v582 = vunpack.c.l.b16 %v514
        %v583 = vunpack.c.l.b16 %v518
        %v584 = vunpack.c.l.b16 %v521
        %v585 = vunpack.c.l.b16 %v525
        %v586 = vunpack.c.l.b16 %v528
        %v587 = vunpack.c.l.b16 %v532
        %v588 = vunpack.c.l.b16 %v535
        %v589 = vunpack.c.l.b16 %v539
        %v590 = vunpack.c.l.b16 %v542
        %v591 = vunpack.c.l.b16 %v546
        %v592 = vunpack.c.l.b16 %v549
        %v593 = vpack.c.b16 %v562, %v561
        %v594 = vpack.c.b16 %v564, %v563
        %v595 = vpack.c.b16 %v566, %v565
        %v596 = vpack.c.b16 %v568, %v567
        %v597 = vpack.c.b16 %v570, %v569
        %v598 = vpack.c.b16 %v572, %v571
        %v599 = vpack.c.b16 %v574, %v573
        %v600 = vpack.c.b16 %v576, %v575
        %v601 = vpack.c.b16 %v578, %v577
        %v602 = vpack.c.b16 %v580, %v579
        %v603 = vpack.c.b16 %v582, %v581
        %v604 = vpack.c.b16 %v584, %v583
        %v605 = vpack.c.b16 %v586, %v585
        %v606 = vpack.c.b16 %v588, %v587
        %v607 = vpack.c.b16 %v590, %v589
        %v608 = vpack.c.b16 %v592, %v591
        %vm609 = vcmask 64512
        %v611 = vsel %vm609, %v593, 0
        %v614 = vsel %vm609, %v594, 0
        %v617 = vsel %vm609, %v595, 0
        %v620 = vsel %vm609, %v596, 0
        %v623 = vsel %vm609, %v597, 0
        %v626 = vsel %vm609, %v598, 0
        %v629 = vsel %vm609, %v599, 0
        %v632 = vsel %vm609, %v600, 0
        %v635 = vsel %vm609, %v601, 0
        %v638 = vsel %vm609, %v602, 0
        %v641 = vsel %vm609, %v603, 0
        %v644 = vsel %vm609, %v604, 0
        %v647 = vsel %vm609, %v605, 0
        %v650 = vsel %vm609, %v606, 0
        %v653 = vsel %vm609, %v607, 0
        %v656 = vsel %vm609, %v608, 0
        %vm658 = vcmask 1043456
        %v660 = vsel %vm658, %v553, 0
        %662 = vmatprep.subr.bf16.mxu0 0
        %663 = vmatpush1.bf16.msra.mxu0 0
        %664 = vmatprep.subr.bf16.mxu0 0
        %665 = vmatpush1.bf16.msra.mxu0 0
        %666 = vmatprep.subr.bf16.mxu0 0
        %667 = vmatpush1.bf16.msra.mxu0 0
        %668 = vmatprep.subr.bf16.mxu0 0
        %669 = vmatpush1.bf16.msra.mxu0 0
        %670 = vmatprep.subr.bf16.mxu0 0
        %671 = vmatpush1.bf16.msra.mxu0 0
        %672 = vmatprep.subr.bf16.mxu0 0
        %673 = vmatpush1.bf16.msra.mxu0 0
        %674 = vmatprep.subr.bf16.mxu0 0
        %675 = vmatpush1.bf16.msra.mxu0 0
        %676 = vmatprep.subr.bf16.mxu0 0
        %677 = vmatpush1.bf16.msra.mxu0 %v660
        %678 = vmatprep.subr.bf16.mxu0 0
        %679 = vmatpush2.bf16.msra.mxu0 0
        %680 = vmatprep.subr.bf16.mxu0 0
        %681 = vmatpush2.bf16.msra.mxu0 0
        %682 = vmatprep.subr.bf16.mxu0 0
        %683 = vmatpush2.bf16.msra.mxu0 0
        %684 = vmatprep.subr.bf16.mxu0 0
        %685 = vmatpush2.bf16.msra.mxu0 0
        %686 = vmatprep.subr.bf16.mxu0 0
        %687 = vmatpush2.bf16.msra.mxu0 0
        %688 = vmatprep.subr.bf16.mxu0 0
        %689 = vmatpush2.bf16.msra.mxu0 0
        %690 = vmatprep.subr.bf16.mxu0 0
        %691 = vmatpush2.bf16.msra.mxu0 0
        %692 = vmatprep.subr.bf16.mxu0 0
        %693 = vmatpush2.bf16.msra.mxu0 0
        %694 = vmatprep.mubr.bf16.mxu0 0
        %695 = vmatmul.mubr.bf16.gmra.mxu0 %v611
        %v696 = vpop.f32.mrf.mxu0
        %v697 = vadd.f32 %v559, %v696
        %v698 = vpop.f32.mrf.mxu0
        %v699 = vpop.f32.mrf.mxu0
        %v700 = vadd.f32 %v559, %v699
        %v701 = vpop.f32.mrf.mxu0
        %702 = vmatprep.mubr.bf16.mxu0 0
        %703 = vmatmul.mubr.bf16.gmra.mxu0 %v614
        %v704 = vpop.f32.mrf.mxu0
        %v705 = vadd.f32 %v559, %v704
        %v706 = vpop.f32.mrf.mxu0
        %v707 = vpop.f32.mrf.mxu0
        %v708 = vadd.f32 %v559, %v707
        %v709 = vpop.f32.mrf.mxu0
        %710 = vmatprep.mubr.bf16.mxu0 0
        %711 = vmatmul.mubr.bf16.gmra.mxu0 %v617
        %v712 = vpop.f32.mrf.mxu0
        %v713 = vadd.f32 %v559, %v712
        %v714 = vpop.f32.mrf.mxu0
        %v715 = vpop.f32.mrf.mxu0
        %v716 = vadd.f32 %v559, %v715
        %v717 = vpop.f32.mrf.mxu0
        %718 = vmatprep.mubr.bf16.mxu0 0
        %719 = vmatmul.mubr.bf16.gmra.mxu0 %v620
        %v720 = vpop.f32.mrf.mxu0
        %v721 = vadd.f32 %v559, %v720
        %v722 = vpop.f32.mrf.mxu0
        %v723 = vpop.f32.mrf.mxu0
        %v724 = vadd.f32 %v559, %v723
        %v725 = vpop.f32.mrf.mxu0
        %726 = vmatprep.mubr.bf16.mxu0 0
        %727 = vmatmul.mubr.bf16.gmra.mxu0 %v623
        %v728 = vpop.f32.mrf.mxu0
        %v729 = vadd.f32 %v559, %v728
        %v730 = vpop.f32.mrf.mxu0
        %v731 = vpop.f32.mrf.mxu0
        %v732 = vadd.f32 %v559, %v731
        %v733 = vpop.f32.mrf.mxu0
        %734 = vmatprep.mubr.bf16.mxu0 0
        %735 = vmatmul.mubr.bf16.gmra.mxu0 %v626
        %v736 = vpop.f32.mrf.mxu0
        %v737 = vadd.f32 %v559, %v736
        %v738 = vpop.f32.mrf.mxu0
        %v739 = vpop.f32.mrf.mxu0
        %v740 = vadd.f32 %v559, %v739
        %v741 = vpop.f32.mrf.mxu0
        %742 = vmatprep.mubr.bf16.mxu0 0
        %743 = vmatmul.mubr.bf16.gmra.mxu0 %v629
        %v744 = vpop.f32.mrf.mxu0
        %v745 = vadd.f32 %v559, %v744
        %v746 = vpop.f32.mrf.mxu0
        %v747 = vpop.f32.mrf.mxu0
        %v748 = vadd.f32 %v559, %v747
        %v749 = vpop.f32.mrf.mxu0
        %750 = vmatprep.mubr.bf16.mxu0 0
        %751 = vmatmul.mubr.bf16.gmra.mxu0 %v632
        %v752 = vpop.f32.mrf.mxu0
        %v753 = vadd.f32 %v559, %v752
        %v754 = vpop.f32.mrf.mxu0
        %v755 = vpop.f32.mrf.mxu0
        %v756 = vadd.f32 %v559, %v755
        %v757 = vpop.f32.mrf.mxu0
        %758 = vmatprep.mubr.bf16.mxu0 0
        %759 = vmatmul.mubr.bf16.gmra.mxu0 %v635
        %v760 = vpop.f32.mrf.mxu0
        %v761 = vadd.f32 %v559, %v760
        %v762 = vpop.f32.mrf.mxu0
        %v763 = vpop.f32.mrf.mxu0
        %v764 = vadd.f32 %v559, %v763
        %v765 = vpop.f32.mrf.mxu0
        %766 = vmatprep.mubr.bf16.mxu0 0
        %767 = vmatmul.mubr.bf16.gmra.mxu0 %v638
        %v768 = vpop.f32.mrf.mxu0
        %v769 = vadd.f32 %v559, %v768
        %v770 = vpop.f32.mrf.mxu0
        %v771 = vpop.f32.mrf.mxu0
        %v772 = vadd.f32 %v559, %v771
        %v773 = vpop.f32.mrf.mxu0
        %774 = vmatprep.mubr.bf16.mxu0 0
        %775 = vmatmul.mubr.bf16.gmra.mxu0 %v641
        %v776 = vpop.f32.mrf.mxu0
        %v777 = vadd.f32 %v559, %v776
        %v778 = vpop.f32.mrf.mxu0
        %v779 = vpop.f32.mrf.mxu0
        %v780 = vadd.f32 %v559, %v779
        %v781 = vpop.f32.mrf.mxu0
        %782 = vmatprep.mubr.bf16.mxu0 0
        %783 = vmatmul.mubr.bf16.gmra.mxu0 %v644
        %v784 = vpop.f32.mrf.mxu0
        %v785 = vadd.f32 %v559, %v784
        %v786 = vpop.f32.mrf.mxu0
        %v787 = vpop.f32.mrf.mxu0
        %v788 = vadd.f32 %v559, %v787
        %v789 = vpop.f32.mrf.mxu0
        %790 = vmatprep.mubr.bf16.mxu0 0
        %791 = vmatmul.mubr.bf16.gmra.mxu0 %v647
        %v792 = vpop.f32.mrf.mxu0
        %v793 = vadd.f32 %v559, %v792
        %v794 = vpop.f32.mrf.mxu0
        %v795 = vpop.f32.mrf.mxu0
        %v796 = vadd.f32 %v559, %v795
        %v797 = vpop.f32.mrf.mxu0
        %798 = vmatprep.mubr.bf16.mxu0 0
        %799 = vmatmul.mubr.bf16.gmra.mxu0 %v650
        %v800 = vpop.f32.mrf.mxu0
        %v801 = vadd.f32 %v559, %v800
        %v802 = vpop.f32.mrf.mxu0
        %v803 = vpop.f32.mrf.mxu0
        %v804 = vadd.f32 %v559, %v803
        %v805 = vpop.f32.mrf.mxu0
        %806 = vmatprep.mubr.bf16.mxu0 0
        %807 = vmatmul.mubr.bf16.gmra.mxu0 %v653
        %v808 = vpop.f32.mrf.mxu0
        %v809 = vadd.f32 %v559, %v808
        %v810 = vpop.f32.mrf.mxu0
        %v811 = vpop.f32.mrf.mxu0
        %v812 = vadd.f32 %v559, %v811
        %v813 = vpop.f32.mrf.mxu0
        %814 = vmatprep.mubr.bf16.mxu0 0
        %815 = vmatmul.mubr.bf16.gmra.mxu0 %v656
        %v816 = vpop.f32.mrf.mxu0
        %v817 = vadd.f32 %v559, %v816
        %v818 = vpop.f32.mrf.mxu0
        %v819 = vpop.f32.mrf.mxu0
        %v820 = vadd.f32 %v559, %v819
        %v821 = vpop.f32.mrf.mxu0
        %822 = vdwg.mxu0
        %v823 = vmax.f32 %v697, 0.0
        %v824 = vmax.f32 %v700, 0.0
        %v825 = vmax.f32 %v705, 0.0
        %v826 = vmax.f32 %v708, 0.0
        %v827 = vmax.f32 %v713, 0.0
        %v828 = vmax.f32 %v716, 0.0
        %v829 = vmax.f32 %v721, 0.0
        %v830 = vmax.f32 %v724, 0.0
        %v831 = vmax.f32 %v729, 0.0
        %v832 = vmax.f32 %v732, 0.0
        %v833 = vmax.f32 %v737, 0.0
        %v834 = vmax.f32 %v740, 0.0
        %v835 = vmax.f32 %v745, 0.0
        %v836 = vmax.f32 %v748, 0.0
        %v837 = vmax.f32 %v753, 0.0
        %v838 = vmax.f32 %v756, 0.0
        %v839 = vmax.f32 %v761, 0.0
        %v840 = vmax.f32 %v764, 0.0
        %v841 = vmax.f32 %v769, 0.0
        %v842 = vmax.f32 %v772, 0.0
        %v843 = vmax.f32 %v777, 0.0
        %v844 = vmax.f32 %v780, 0.0
        %v845 = vmax.f32 %v785, 0.0
        %v846 = vmax.f32 %v788, 0.0
        %v847 = vmax.f32 %v793, 0.0
        %v848 = vmax.f32 %v796, 0.0
        %v849 = vmax.f32 %v801, 0.0
        %v850 = vmax.f32 %v804, 0.0
        %v851 = vmax.f32 %v809, 0.0
        %v852 = vmax.f32 %v812, 0.0
        %v853 = vmax.f32 %v817, 0.0
        %v854 = vmax.f32 %v820, 0.0
        %v855 = vpack.c.bf16 %v824, %v823
        %v856 = vpack.c.bf16 %v826, %v825
        %v857 = vpack.c.bf16 %v828, %v827
        %v858 = vpack.c.bf16 %v830, %v829
        %v859 = vpack.c.bf16 %v832, %v831
        %v860 = vpack.c.bf16 %v834, %v833
        %v861 = vpack.c.bf16 %v836, %v835
        %v862 = vpack.c.bf16 %v838, %v837
        %v863 = vpack.c.bf16 %v840, %v839
        %v864 = vpack.c.bf16 %v842, %v841
        %v865 = vpack.c.bf16 %v844, %v843
        %v866 = vpack.c.bf16 %v846, %v845
        %v867 = vpack.c.bf16 %v848, %v847
        %v868 = vpack.c.bf16 %v850, %v849
        %v869 = vpack.c.bf16 %v852, %v851
        %v870 = vpack.c.bf16 %v854, %v853
        %v871 = vld [vmem:[%s4] sm:$0xf]
        %v872 = vld [vmem:[%s4 + $0x4] sm:$0xf]
        %v873 = vld [vmem:[%s4 + $0x8] sm:$0xf]
        %v874 = vld [vmem:[%s4 + $0xc] sm:$0xf]
        %v875 = vld [vmem:[%s4 + $0x10] sm:$0xf]
        %v876 = vld [vmem:[%s4 + $0x14] sm:$0xf]
        %v877 = vld [vmem:[%s4 + $0x18] sm:$0xf]
        %v878 = vld [vmem:[%s4 + $0x1c] sm:$0xf]
        %v879 = vld [vmem:[%s4 + $0x20] sm:$0xf]
        %v880 = vld [vmem:[%s4 + $0x24] sm:$0xf]
        %v881 = vld [vmem:[%s4 + $0x28] sm:$0xf]
        %v882 = vld [vmem:[%s4 + $0x2c] sm:$0xf]
        %v883 = vld [vmem:[%s4 + $0x30] sm:$0xf]
        %v884 = vld [vmem:[%s4 + $0x34] sm:$0xf]
        %v885 = vld [vmem:[%s4 + $0x38] sm:$0xf]
        %v886 = vld [vmem:[%s4 + $0x3c] sm:$0xf]
        %v903 = vunpack.c.l.b16 %v871
        %v904 = vunpack.c.l.b16 %v872
        %v905 = vunpack.c.l.b16 %v873
        %v906 = vunpack.c.l.b16 %v874
        %v907 = vunpack.c.l.b16 %v875
        %v908 = vunpack.c.l.b16 %v876
        %v909 = vunpack.c.l.b16 %v877
        %v910 = vunpack.c.l.b16 %v878
        %v911 = vunpack.c.l.b16 %v879
        %v912 = vunpack.c.l.b16 %v880
        %v913 = vunpack.c.l.b16 %v881
        %v914 = vunpack.c.l.b16 %v882
        %v915 = vunpack.c.l.b16 %v883
        %v916 = vunpack.c.l.b16 %v884
        %v917 = vunpack.c.l.b16 %v885
        %v918 = vunpack.c.l.b16 %v886
        %v919 = vpack.c.b16 %v904, %v903
        %v920 = vpack.c.b16 %v906, %v905
        %v921 = vpack.c.b16 %v908, %v907
        %v922 = vpack.c.b16 %v910, %v909
        %v923 = vpack.c.b16 %v912, %v911
        %v924 = vpack.c.b16 %v914, %v913
        %v925 = vpack.c.b16 %v916, %v915
        %v926 = vpack.c.b16 %v918, %v917
        %935 = vmatprep.subr.bf16.mxu0 0
        %936 = vmatpush1.bf16.msra.mxu0 %v926
        %937 = vmatprep.subr.bf16.mxu0 0
        %938 = vmatpush1.bf16.msra.mxu0 %v925
        %939 = vmatprep.subr.bf16.mxu0 0
        %940 = vmatpush1.bf16.msra.mxu0 %v924
        %941 = vmatprep.subr.bf16.mxu0 0
        %942 = vmatpush1.bf16.msra.mxu0 %v923
        %943 = vmatprep.subr.bf16.mxu0 0
        %944 = vmatpush1.bf16.msra.mxu0 %v922
        %945 = vmatprep.subr.bf16.mxu0 0
        %946 = vmatpush1.bf16.msra.mxu0 %v921
        %947 = vmatprep.subr.bf16.mxu0 0
        %948 = vmatpush1.bf16.msra.mxu0 %v920
        %949 = vmatprep.subr.bf16.mxu0 0
        %950 = vmatpush1.bf16.msra.mxu0 %v919
        %951 = vmatprep.subr.bf16.mxu0 0
        %952 = vmatpush2.bf16.msra.mxu0 0
        %953 = vmatprep.subr.bf16.mxu0 0
        %954 = vmatpush2.bf16.msra.mxu0 0
        %955 = vmatprep.subr.bf16.mxu0 0
        %956 = vmatpush2.bf16.msra.mxu0 0
        %957 = vmatprep.subr.bf16.mxu0 0
        %958 = vmatpush2.bf16.msra.mxu0 0
        %959 = vmatprep.subr.bf16.mxu0 0
        %960 = vmatpush2.bf16.msra.mxu0 0
        %961 = vmatprep.subr.bf16.mxu0 0
        %962 = vmatpush2.bf16.msra.mxu0 0
        %963 = vmatprep.subr.bf16.mxu0 0
        %964 = vmatpush2.bf16.msra.mxu0 0
        %965 = vmatprep.subr.bf16.mxu0 0
        %966 = vmatpush2.bf16.msra.mxu0 0
        %967 = vmatprep.mubr.bf16.mxu0 0
        %968 = vmatmul.mubr.bf16.gmra.mxu0 %v855
        %v969 = vpop.f32.mrf.mxu0
        %v970 = vadd.f32 0.0, %v969
        %v971 = vpop.f32.mrf.mxu0
        %v972 = vpop.f32.mrf.mxu0
        %v973 = vadd.f32 0.0, %v972
        %v974 = vpop.f32.mrf.mxu0
        %975 = vmatprep.mubr.bf16.mxu0 0
        %976 = vmatmul.mubr.bf16.gmra.mxu0 %v856
        %v977 = vpop.f32.mrf.mxu0
        %v978 = vadd.f32 0.0, %v977
        %v979 = vpop.f32.mrf.mxu0
        %v980 = vpop.f32.mrf.mxu0
        %v981 = vadd.f32 0.0, %v980
        %v982 = vpop.f32.mrf.mxu0
        %983 = vmatprep.mubr.bf16.mxu0 0
        %984 = vmatmul.mubr.bf16.gmra.mxu0 %v857
        %v985 = vpop.f32.mrf.mxu0
        %v986 = vadd.f32 0.0, %v985
        %v987 = vpop.f32.mrf.mxu0
        %v988 = vpop.f32.mrf.mxu0
        %v989 = vadd.f32 0.0, %v988
        %v990 = vpop.f32.mrf.mxu0
        %991 = vmatprep.mubr.bf16.mxu0 0
        %992 = vmatmul.mubr.bf16.gmra.mxu0 %v858
        %v993 = vpop.f32.mrf.mxu0
        %v994 = vadd.f32 0.0, %v993
        %v995 = vpop.f32.mrf.mxu0
        %v996 = vpop.f32.mrf.mxu0
        %v997 = vadd.f32 0.0, %v996
        %v998 = vpop.f32.mrf.mxu0
        %999 = vmatprep.mubr.bf16.mxu0 0
        %1000 = vmatmul.mubr.bf16.gmra.mxu0 %v859
        %v1001 = vpop.f32.mrf.mxu0
        %v1002 = vadd.f32 0.0, %v1001
        %v1003 = vpop.f32.mrf.mxu0
        %v1004 = vpop.f32.mrf.mxu0
        %v1005 = vadd.f32 0.0, %v1004
        %v1006 = vpop.f32.mrf.mxu0
        %1007 = vmatprep.mubr.bf16.mxu0 0
        %1008 = vmatmul.mubr.bf16.gmra.mxu0 %v860
        %v1009 = vpop.f32.mrf.mxu0
        %v1010 = vadd.f32 0.0, %v1009
        %v1011 = vpop.f32.mrf.mxu0
        %v1012 = vpop.f32.mrf.mxu0
        %v1013 = vadd.f32 0.0, %v1012
        %v1014 = vpop.f32.mrf.mxu0
        %1015 = vmatprep.mubr.bf16.mxu0 0
        %1016 = vmatmul.mubr.bf16.gmra.mxu0 %v861
        %v1017 = vpop.f32.mrf.mxu0
        %v1018 = vadd.f32 0.0, %v1017
        %v1019 = vpop.f32.mrf.mxu0
        %v1020 = vpop.f32.mrf.mxu0
        %v1021 = vadd.f32 0.0, %v1020
        %v1022 = vpop.f32.mrf.mxu0
        %1023 = vmatprep.mubr.bf16.mxu0 0
        %1024 = vmatmul.mubr.bf16.gmra.mxu0 %v862
        %v1025 = vpop.f32.mrf.mxu0
        %v1026 = vadd.f32 0.0, %v1025
        %v1027 = vpop.f32.mrf.mxu0
        %v1028 = vpop.f32.mrf.mxu0
        %v1029 = vadd.f32 0.0, %v1028
        %v1030 = vpop.f32.mrf.mxu0
        %1031 = vmatprep.mubr.bf16.mxu0 0
        %1032 = vmatmul.mubr.bf16.gmra.mxu0 %v863
        %v1033 = vpop.f32.mrf.mxu0
        %v1034 = vadd.f32 0.0, %v1033
        %v1035 = vpop.f32.mrf.mxu0
        %v1036 = vpop.f32.mrf.mxu0
        %v1037 = vadd.f32 0.0, %v1036
        %v1038 = vpop.f32.mrf.mxu0
        %1039 = vmatprep.mubr.bf16.mxu0 0
        %1040 = vmatmul.mubr.bf16.gmra.mxu0 %v864
        %v1041 = vpop.f32.mrf.mxu0
        %v1042 = vadd.f32 0.0, %v1041
        %v1043 = vpop.f32.mrf.mxu0
        %v1044 = vpop.f32.mrf.mxu0
        %v1045 = vadd.f32 0.0, %v1044
        %v1046 = vpop.f32.mrf.mxu0
        %1047 = vmatprep.mubr.bf16.mxu0 0
        %1048 = vmatmul.mubr.bf16.gmra.mxu0 %v865
        %v1049 = vpop.f32.mrf.mxu0
        %v1050 = vadd.f32 0.0, %v1049
        %v1051 = vpop.f32.mrf.mxu0
        %v1052 = vpop.f32.mrf.mxu0
        %v1053 = vadd.f32 0.0, %v1052
        %v1054 = vpop.f32.mrf.mxu0
        %1055 = vmatprep.mubr.bf16.mxu0 0
        %1056 = vmatmul.mubr.bf16.gmra.mxu0 %v866
        %v1057 = vpop.f32.mrf.mxu0
        %v1058 = vadd.f32 0.0, %v1057
        %v1059 = vpop.f32.mrf.mxu0
        %v1060 = vpop.f32.mrf.mxu0
        %v1061 = vadd.f32 0.0, %v1060
        %v1062 = vpop.f32.mrf.mxu0
        %1063 = vmatprep.mubr.bf16.mxu0 0
        %1064 = vmatmul.mubr.bf16.gmra.mxu0 %v867
        %v1065 = vpop.f32.mrf.mxu0
        %v1066 = vadd.f32 0.0, %v1065
        %v1067 = vpop.f32.mrf.mxu0
        %v1068 = vpop.f32.mrf.mxu0
        %v1069 = vadd.f32 0.0, %v1068
        %v1070 = vpop.f32.mrf.mxu0
        %1071 = vmatprep.mubr.bf16.mxu0 0
        %1072 = vmatmul.mubr.bf16.gmra.mxu0 %v868
        %v1073 = vpop.f32.mrf.mxu0
        %v1074 = vadd.f32 0.0, %v1073
        %v1075 = vpop.f32.mrf.mxu0
        %v1076 = vpop.f32.mrf.mxu0
        %v1077 = vadd.f32 0.0, %v1076
        %v1078 = vpop.f32.mrf.mxu0
        %1079 = vmatprep.mubr.bf16.mxu0 0
        %1080 = vmatmul.mubr.bf16.gmra.mxu0 %v869
        %v1081 = vpop.f32.mrf.mxu0
        %v1082 = vadd.f32 0.0, %v1081
        %v1083 = vpop.f32.mrf.mxu0
        %v1084 = vpop.f32.mrf.mxu0
        %v1085 = vadd.f32 0.0, %v1084
        %v1086 = vpop.f32.mrf.mxu0
        %1087 = vmatprep.mubr.bf16.mxu0 0
        %1088 = vmatmul.mubr.bf16.gmra.mxu0 %v870
        %v1089 = vpop.f32.mrf.mxu0
        %v1090 = vadd.f32 0.0, %v1089
        %v1091 = vpop.f32.mrf.mxu0
        %v1092 = vpop.f32.mrf.mxu0
        %v1093 = vadd.f32 0.0, %v1092
        %v1094 = vpop.f32.mrf.mxu0
        %1095 = vdwg.mxu0
        %v1097 = vlaneseq
        %v1098 = vshrl.u32 %v1097, 7
        %v1099 = vsub.s32 0, %v1098
        %v1100 = vrot.slane %v552, %v1099
        %v1102 = vadd.f32 %v1100, %v970
        %v1103 = vadd.f32 %v1100, %v973
        %v1104 = vadd.f32 %v1100, %v978
        %v1105 = vadd.f32 %v1100, %v981
        %v1106 = vadd.f32 %v1100, %v986
        %v1107 = vadd.f32 %v1100, %v989
        %v1108 = vadd.f32 %v1100, %v994
        %v1109 = vadd.f32 %v1100, %v997
        %v1110 = vadd.f32 %v1100, %v1002
        %v1111 = vadd.f32 %v1100, %v1005
        %v1112 = vadd.f32 %v1100, %v1010
        %v1113 = vadd.f32 %v1100, %v1013
        %v1114 = vadd.f32 %v1100, %v1018
        %v1115 = vadd.f32 %v1100, %v1021
        %v1116 = vadd.f32 %v1100, %v1026
        %v1117 = vadd.f32 %v1100, %v1029
        %v1118 = vadd.f32 %v1100, %v1034
        %v1119 = vadd.f32 %v1100, %v1037
        %v1120 = vadd.f32 %v1100, %v1042
        %v1121 = vadd.f32 %v1100, %v1045
        %v1122 = vadd.f32 %v1100, %v1050
        %v1123 = vadd.f32 %v1100, %v1053
        %v1124 = vadd.f32 %v1100, %v1058
        %v1125 = vadd.f32 %v1100, %v1061
        %v1126 = vadd.f32 %v1100, %v1066
        %v1127 = vadd.f32 %v1100, %v1069
        %v1128 = vadd.f32 %v1100, %v1074
        %v1129 = vadd.f32 %v1100, %v1077
        %v1130 = vadd.f32 %v1100, %v1082
        %v1131 = vadd.f32 %v1100, %v1085
        %v1132 = vadd.f32 %v1100, %v1090
        %v1133 = vadd.f32 %v1100, %v1093
        %s1134 = sadd.s32 %s334, 12
        %s1135 = smul.u32 %s1134, 7
        %s1136 = smul.addr %s1135, 4
        %s1137 = scalar_lea.vmem %s331, %s1136
        %v1138 = vld [vmem:[%s1137 + $0x4] sm:$0xc]
        %v1139 = vld [vmem:[%s1137 + $0x8] sm:$0xf]
        %v1140 = vld [vmem:[%s1137 + $0xc] sm:$0x3]
        %v1141 = vld [vmem:[%s1137 + $0x20] sm:$0xc]
        %v1142 = vld [vmem:[%s1137 + $0x24] sm:$0xf]
        %v1143 = vld [vmem:[%s1137 + $0x28] sm:$0x3]
        %v1144 = vld [vmem:[%s1137 + $0x3c] sm:$0xc]
        %v1145 = vld [vmem:[%s1137 + $0x40] sm:$0xf]
        %v1146 = vld [vmem:[%s1137 + $0x44] sm:$0x3]
        %v1147 = vld [vmem:[%s1137 + $0x58] sm:$0xc]
        %v1148 = vld [vmem:[%s1137 + $0x5c] sm:$0xf]
        %v1149 = vld [vmem:[%s1137 + $0x60] sm:$0x3]
        %v1150 = vld [vmem:[%s1137 + $0x74] sm:$0xc]
        %v1151 = vld [vmem:[%s1137 + $0x78] sm:$0xf]
        %v1152 = vld [vmem:[%s1137 + $0x7c] sm:$0x3]
        %v1153 = vld [vmem:[%s1137 + $0x90] sm:$0xc]
        %v1154 = vld [vmem:[%s1137 + $0x94] sm:$0xf]
        %v1155 = vld [vmem:[%s1137 + $0x98] sm:$0x3]
        %v1156 = vld [vmem:[%s1137 + $0xac] sm:$0xc]
        %v1157 = vld [vmem:[%s1137 + $0xb0] sm:$0xf]
        %v1158 = vld [vmem:[%s1137 + $0xb4] sm:$0x3]
        %v1159 = vld [vmem:[%s1137 + $0xc8] sm:$0xc]
        %v1160 = vld [vmem:[%s1137 + $0xcc] sm:$0xf]
        %v1161 = vld [vmem:[%s1137 + $0xd0] sm:$0x3]
        %v1162 = vld [vmem:[%s1137 + $0xe4] sm:$0xc]
        %v1163 = vld [vmem:[%s1137 + $0xe8] sm:$0xf]
        %v1164 = vld [vmem:[%s1137 + $0xec] sm:$0x3]
        %v1165 = vld [vmem:[%s1137 + $0x100] sm:$0xc]
        %v1166 = vld [vmem:[%s1137 + $0x104] sm:$0xf]
        %v1167 = vld [vmem:[%s1137 + $0x108] sm:$0x3]
        %v1168 = vld [vmem:[%s1137 + $0x11c] sm:$0xc]
        %v1169 = vld [vmem:[%s1137 + $0x120] sm:$0xf]
        %v1170 = vld [vmem:[%s1137 + $0x124] sm:$0x3]
        %v1171 = vld [vmem:[%s1137 + $0x138] sm:$0xc]
        %v1172 = vld [vmem:[%s1137 + $0x13c] sm:$0xf]
        %v1173 = vld [vmem:[%s1137 + $0x140] sm:$0x3]
        %v1174 = vld [vmem:[%s1137 + $0x154] sm:$0xc]
        %v1175 = vld [vmem:[%s1137 + $0x158] sm:$0xf]
        %v1176 = vld [vmem:[%s1137 + $0x15c] sm:$0x3]
        %v1177 = vld [vmem:[%s1137 + $0x170] sm:$0xc]
        %v1178 = vld [vmem:[%s1137 + $0x174] sm:$0xf]
        %v1179 = vld [vmem:[%s1137 + $0x178] sm:$0x3]
        %v1180 = vld [vmem:[%s1137 + $0x18c] sm:$0xc]
        %v1181 = vld [vmem:[%s1137 + $0x190] sm:$0xf]
        %v1182 = vld [vmem:[%s1137 + $0x194] sm:$0x3]
        %v1183 = vld [vmem:[%s1137 + $0x1a8] sm:$0xc]
        %v1184 = vld [vmem:[%s1137 + $0x1ac] sm:$0xf]
        %v1185 = vld [vmem:[%s1137 + $0x1b0] sm:$0x3]
        %v1186 = vld [vmem:[%s1137 + $0x8] sm:$0xe]
        %v1187 = vld [vmem:[%s1137 + $0xc] sm:$0xf]
        %v1188 = vld [vmem:[%s1137 + $0x10] sm:$0x1]
        %v1189 = vld [vmem:[%s1137 + $0x24] sm:$0xe]
        %v1190 = vld [vmem:[%s1137 + $0x28] sm:$0xf]
        %v1191 = vld [vmem:[%s1137 + $0x2c] sm:$0x1]
        %v1192 = vld [vmem:[%s1137 + $0x40] sm:$0xe]
        %v1193 = vld [vmem:[%s1137 + $0x44] sm:$0xf]
        %v1194 = vld [vmem:[%s1137 + $0x48] sm:$0x1]
        %v1195 = vld [vmem:[%s1137 + $0x5c] sm:$0xe]
        %v1196 = vld [vmem:[%s1137 + $0x60] sm:$0xf]
        %v1197 = vld [vmem:[%s1137 + $0x64] sm:$0x1]
        %v1198 = vld [vmem:[%s1137 + $0x78] sm:$0xe]
        %v1199 = vld [vmem:[%s1137 + $0x7c] sm:$0xf]
        %v1200 = vld [vmem:[%s1137 + $0x80] sm:$0x1]
        %v1201 = vld [vmem:[%s1137 + $0x94] sm:$0xe]
        %v1202 = vld [vmem:[%s1137 + $0x98] sm:$0xf]
        %v1203 = vld [vmem:[%s1137 + $0x9c] sm:$0x1]
        %v1204 = vld [vmem:[%s1137 + $0xb0] sm:$0xe]
        %v1205 = vld [vmem:[%s1137 + $0xb4] sm:$0xf]
        %v1206 = vld [vmem:[%s1137 + $0xb8] sm:$0x1]
        %v1207 = vld [vmem:[%s1137 + $0xcc] sm:$0xe]
        %v1208 = vld [vmem:[%s1137 + $0xd0] sm:$0xf]
        %v1209 = vld [vmem:[%s1137 + $0xd4] sm:$0x1]
        %v1210 = vld [vmem:[%s1137 + $0xe8] sm:$0xe]
        %v1211 = vld [vmem:[%s1137 + $0xec] sm:$0xf]
        %v1212 = vld [vmem:[%s1137 + $0xf0] sm:$0x1]
        %v1213 = vld [vmem:[%s1137 + $0x104] sm:$0xe]
        %v1214 = vld [vmem:[%s1137 + $0x108] sm:$0xf]
        %v1215 = vld [vmem:[%s1137 + $0x10c] sm:$0x1]
        %v1216 = vld [vmem:[%s1137 + $0x120] sm:$0xe]
        %v1217 = vld [vmem:[%s1137 + $0x124] sm:$0xf]
        %v1218 = vld [vmem:[%s1137 + $0x128] sm:$0x1]
        %v1219 = vld [vmem:[%s1137 + $0x13c] sm:$0xe]
        %v1220 = vld [vmem:[%s1137 + $0x140] sm:$0xf]
        %v1221 = vld [vmem:[%s1137 + $0x144] sm:$0x1]
        %v1222 = vld [vmem:[%s1137 + $0x158] sm:$0xe]
        %v1223 = vld [vmem:[%s1137 + $0x15c] sm:$0xf]
        %v1224 = vld [vmem:[%s1137 + $0x160] sm:$0x1]
        %v1225 = vld [vmem:[%s1137 + $0x174] sm:$0xe]
        %v1226 = vld [vmem:[%s1137 + $0x178] sm:$0xf]
        %v1227 = vld [vmem:[%s1137 + $0x17c] sm:$0x1]
        %v1228 = vld [vmem:[%s1137 + $0x190] sm:$0xe]
        %v1229 = vld [vmem:[%s1137 + $0x194] sm:$0xf]
        %v1230 = vld [vmem:[%s1137 + $0x198] sm:$0x1]
        %v1231 = vld [vmem:[%s1137 + $0x1ac] sm:$0xe]
        %v1232 = vld [vmem:[%s1137 + $0x1b0] sm:$0xf]
        %v1233 = vld [vmem:[%s1137 + $0x1b4] sm:$0x1]
        %v1234 = vld [vmem:[%s1137 + $0x10] sm:$0xf]
        %v1235 = vld [vmem:[%s1137 + $0x2c] sm:$0xf]
        %v1236 = vld [vmem:[%s1137 + $0x48] sm:$0xf]
        %v1237 = vld [vmem:[%s1137 + $0x64] sm:$0xf]
        %v1238 = vld [vmem:[%s1137 + $0x80] sm:$0xf]
        %v1239 = vld [vmem:[%s1137 + $0x9c] sm:$0xf]
        %v1240 = vld [vmem:[%s1137 + $0xb8] sm:$0xf]
        %v1241 = vld [vmem:[%s1137 + $0xd4] sm:$0xf]
        %v1242 = vld [vmem:[%s1137 + $0xf0] sm:$0xf]
        %v1243 = vld [vmem:[%s1137 + $0x10c] sm:$0xf]
        %v1244 = vld [vmem:[%s1137 + $0x128] sm:$0xf]
        %v1245 = vld [vmem:[%s1137 + $0x144] sm:$0xf]
        %v1246 = vld [vmem:[%s1137 + $0x160] sm:$0xf]
        %v1247 = vld [vmem:[%s1137 + $0x17c] sm:$0xf]
        %v1248 = vld [vmem:[%s1137 + $0x198] sm:$0xf]
        %v1249 = vld [vmem:[%s1137 + $0x1b4] sm:$0xf]
        %v1250 = vld [vmem:[%s338 + $0x4] sm:$0xc]
        %v1251 = vld [vmem:[%s338 + $0x8] sm:$0xf]
        %v1252 = vld [vmem:[%s338 + $0xc] sm:$0x3]
        %v1253 = vld [vmem:[%s338 + $0x20] sm:$0xc]
        %v1254 = vld [vmem:[%s338 + $0x24] sm:$0xf]
        %v1255 = vld [vmem:[%s338 + $0x28] sm:$0x3]
        %v1256 = vld [vmem:[%s338 + $0x3c] sm:$0xc]
        %v1257 = vld [vmem:[%s338 + $0x40] sm:$0xf]
        %v1258 = vld [vmem:[%s338 + $0x44] sm:$0x3]
        %v1259 = vld [vmem:[%s338 + $0x58] sm:$0xc]
        %v1260 = vld [vmem:[%s338 + $0x5c] sm:$0xf]
        %v1261 = vld [vmem:[%s338 + $0x60] sm:$0x3]
        %v1262 = vld [vmem:[%s338 + $0x74] sm:$0xc]
        %v1263 = vld [vmem:[%s338 + $0x78] sm:$0xf]
        %v1264 = vld [vmem:[%s338 + $0x7c] sm:$0x3]
        %v1265 = vld [vmem:[%s338 + $0x90] sm:$0xc]
        %v1266 = vld [vmem:[%s338 + $0x94] sm:$0xf]
        %v1267 = vld [vmem:[%s338 + $0x98] sm:$0x3]
        %v1268 = vld [vmem:[%s338 + $0xac] sm:$0xc]
        %v1269 = vld [vmem:[%s338 + $0xb0] sm:$0xf]
        %v1270 = vld [vmem:[%s338 + $0xb4] sm:$0x3]
        %v1271 = vld [vmem:[%s338 + $0xc8] sm:$0xc]
        %v1272 = vld [vmem:[%s338 + $0xcc] sm:$0xf]
        %v1273 = vld [vmem:[%s338 + $0xd0] sm:$0x3]
        %v1274 = vld [vmem:[%s338 + $0xe4] sm:$0xc]
        %v1275 = vld [vmem:[%s338 + $0xe8] sm:$0xf]
        %v1276 = vld [vmem:[%s338 + $0xec] sm:$0x3]
        %v1277 = vld [vmem:[%s338 + $0x100] sm:$0xc]
        %v1278 = vld [vmem:[%s338 + $0x104] sm:$0xf]
        %v1279 = vld [vmem:[%s338 + $0x108] sm:$0x3]
        %v1280 = vld [vmem:[%s338 + $0x11c] sm:$0xc]
        %v1281 = vld [vmem:[%s338 + $0x120] sm:$0xf]
        %v1282 = vld [vmem:[%s338 + $0x124] sm:$0x3]
        %v1283 = vld [vmem:[%s338 + $0x138] sm:$0xc]
        %v1284 = vld [vmem:[%s338 + $0x13c] sm:$0xf]
        %v1285 = vld [vmem:[%s338 + $0x140] sm:$0x3]
        %v1286 = vld [vmem:[%s338 + $0x154] sm:$0xc]
        %v1287 = vld [vmem:[%s338 + $0x158] sm:$0xf]
        %v1288 = vld [vmem:[%s338 + $0x15c] sm:$0x3]
        %v1289 = vld [vmem:[%s338 + $0x170] sm:$0xc]
        %v1290 = vld [vmem:[%s338 + $0x174] sm:$0xf]
        %v1291 = vld [vmem:[%s338 + $0x178] sm:$0x3]
        %v1292 = vld [vmem:[%s338 + $0x18c] sm:$0xc]
        %v1293 = vld [vmem:[%s338 + $0x190] sm:$0xf]
        %v1294 = vld [vmem:[%s338 + $0x194] sm:$0x3]
        %v1295 = vld [vmem:[%s338 + $0x1a8] sm:$0xc]
        %v1296 = vld [vmem:[%s338 + $0x1ac] sm:$0xf]
        %v1297 = vld [vmem:[%s338 + $0x1b0] sm:$0x3]
        %v1298 = vld [vmem:[%s338 + $0x10] sm:$0xf]
        %v1299 = vld [vmem:[%s338 + $0x2c] sm:$0xf]
        %v1300 = vld [vmem:[%s338 + $0x48] sm:$0xf]
        %v1301 = vld [vmem:[%s338 + $0x64] sm:$0xf]
        %v1302 = vld [vmem:[%s338 + $0x80] sm:$0xf]
        %v1303 = vld [vmem:[%s338 + $0x9c] sm:$0xf]
        %v1304 = vld [vmem:[%s338 + $0xb8] sm:$0xf]
        %v1305 = vld [vmem:[%s338 + $0xd4] sm:$0xf]
        %v1306 = vld [vmem:[%s338 + $0xf0] sm:$0xf]
        %v1307 = vld [vmem:[%s338 + $0x10c] sm:$0xf]
        %v1308 = vld [vmem:[%s338 + $0x128] sm:$0xf]
        %v1309 = vld [vmem:[%s338 + $0x144] sm:$0xf]
        %v1310 = vld [vmem:[%s338 + $0x160] sm:$0xf]
        %v1311 = vld [vmem:[%s338 + $0x17c] sm:$0xf]
        %v1312 = vld [vmem:[%s338 + $0x198] sm:$0xf]
        %v1313 = vld [vmem:[%s338 + $0x1b4] sm:$0xf]
        %s1314 = sadd.s32 %s334, 24
        %s1315 = smul.u32 %s1314, 7
        %s1316 = smul.addr %s1315, 4
        %s1317 = scalar_lea.vmem %s331, %s1316
        %v1318 = vld [vmem:[%s1317 + $0x4] sm:$0xc]
        %v1319 = vld [vmem:[%s1317 + $0x8] sm:$0xf]
        %v1320 = vld [vmem:[%s1317 + $0xc] sm:$0x3]
        %v1321 = vld [vmem:[%s1317 + $0x20] sm:$0xc]
        %v1322 = vld [vmem:[%s1317 + $0x24] sm:$0xf]
        %v1323 = vld [vmem:[%s1317 + $0x28] sm:$0x3]
        %v1324 = vld [vmem:[%s1317 + $0x3c] sm:$0xc]
        %v1325 = vld [vmem:[%s1317 + $0x40] sm:$0xf]
        %v1326 = vld [vmem:[%s1317 + $0x44] sm:$0x3]
        %v1327 = vld [vmem:[%s1317 + $0x58] sm:$0xc]
        %v1328 = vld [vmem:[%s1317 + $0x5c] sm:$0xf]
        %v1329 = vld [vmem:[%s1317 + $0x60] sm:$0x3]
        %v1330 = vld [vmem:[%s1317 + $0x74] sm:$0xc]
        %v1331 = vld [vmem:[%s1317 + $0x78] sm:$0xf]
        %v1332 = vld [vmem:[%s1317 + $0x7c] sm:$0x3]
        %v1333 = vld [vmem:[%s1317 + $0x90] sm:$0xc]
        %v1334 = vld [vmem:[%s1317 + $0x94] sm:$0xf]
        %v1335 = vld [vmem:[%s1317 + $0x98] sm:$0x3]
        %v1336 = vld [vmem:[%s1317 + $0xac] sm:$0xc]
        %v1337 = vld [vmem:[%s1317 + $0xb0] sm:$0xf]
        %v1338 = vld [vmem:[%s1317 + $0xb4] sm:$0x3]
        %v1339 = vld [vmem:[%s1317 + $0xc8] sm:$0xc]
        %v1340 = vld [vmem:[%s1317 + $0xcc] sm:$0xf]
        %v1341 = vld [vmem:[%s1317 + $0xd0] sm:$0x3]
        %v1342 = vld [vmem:[%s1317 + $0xe4] sm:$0xc]
        %v1343 = vld [vmem:[%s1317 + $0xe8] sm:$0xf]
        %v1344 = vld [vmem:[%s1317 + $0xec] sm:$0x3]
        %v1345 = vld [vmem:[%s1317 + $0x100] sm:$0xc]
        %v1346 = vld [vmem:[%s1317 + $0x104] sm:$0xf]
        %v1347 = vld [vmem:[%s1317 + $0x108] sm:$0x3]
        %v1348 = vld [vmem:[%s1317 + $0x11c] sm:$0xc]
        %v1349 = vld [vmem:[%s1317 + $0x120] sm:$0xf]
        %v1350 = vld [vmem:[%s1317 + $0x124] sm:$0x3]
        %v1351 = vld [vmem:[%s1317 + $0x138] sm:$0xc]
        %v1352 = vld [vmem:[%s1317 + $0x13c] sm:$0xf]
        %v1353 = vld [vmem:[%s1317 + $0x140] sm:$0x3]
        %v1354 = vld [vmem:[%s1317 + $0x154] sm:$0xc]
        %v1355 = vld [vmem:[%s1317 + $0x158] sm:$0xf]
        %v1356 = vld [vmem:[%s1317 + $0x15c] sm:$0x3]
        %v1357 = vld [vmem:[%s1317 + $0x170] sm:$0xc]
        %v1358 = vld [vmem:[%s1317 + $0x174] sm:$0xf]
        %v1359 = vld [vmem:[%s1317 + $0x178] sm:$0x3]
        %v1360 = vld [vmem:[%s1317 + $0x18c] sm:$0xc]
        %v1361 = vld [vmem:[%s1317 + $0x190] sm:$0xf]
        %v1362 = vld [vmem:[%s1317 + $0x194] sm:$0x3]
        %v1363 = vld [vmem:[%s1317 + $0x1a8] sm:$0xc]
        %v1364 = vld [vmem:[%s1317 + $0x1ac] sm:$0xf]
        %v1365 = vld [vmem:[%s1317 + $0x1b0] sm:$0x3]
        %v1366 = vld [vmem:[%s1317 + $0x8] sm:$0xe]
        %v1367 = vld [vmem:[%s1317 + $0xc] sm:$0xf]
        %v1368 = vld [vmem:[%s1317 + $0x10] sm:$0x1]
        %v1369 = vld [vmem:[%s1317 + $0x24] sm:$0xe]
        %v1370 = vld [vmem:[%s1317 + $0x28] sm:$0xf]
        %v1371 = vld [vmem:[%s1317 + $0x2c] sm:$0x1]
        %v1372 = vld [vmem:[%s1317 + $0x40] sm:$0xe]
        %v1373 = vld [vmem:[%s1317 + $0x44] sm:$0xf]
        %v1374 = vld [vmem:[%s1317 + $0x48] sm:$0x1]
        %v1375 = vld [vmem:[%s1317 + $0x5c] sm:$0xe]
        %v1376 = vld [vmem:[%s1317 + $0x60] sm:$0xf]
        %v1377 = vld [vmem:[%s1317 + $0x64] sm:$0x1]
        %v1378 = vld [vmem:[%s1317 + $0x78] sm:$0xe]
        %v1379 = vld [vmem:[%s1317 + $0x7c] sm:$0xf]
        %v1380 = vld [vmem:[%s1317 + $0x80] sm:$0x1]
        %v1381 = vld [vmem:[%s1317 + $0x94] sm:$0xe]
        %v1382 = vld [vmem:[%s1317 + $0x98] sm:$0xf]
        %v1383 = vld [vmem:[%s1317 + $0x9c] sm:$0x1]
        %v1384 = vld [vmem:[%s1317 + $0xb0] sm:$0xe]
        %v1385 = vld [vmem:[%s1317 + $0xb4] sm:$0xf]
        %v1386 = vld [vmem:[%s1317 + $0xb8] sm:$0x1]
        %v1387 = vld [vmem:[%s1317 + $0xcc] sm:$0xe]
        %v1388 = vld [vmem:[%s1317 + $0xd0] sm:$0xf]
        %v1389 = vld [vmem:[%s1317 + $0xd4] sm:$0x1]
        %v1390 = vld [vmem:[%s1317 + $0xe8] sm:$0xe]
        %v1391 = vld [vmem:[%s1317 + $0xec] sm:$0xf]
        %v1392 = vld [vmem:[%s1317 + $0xf0] sm:$0x1]
        %v1393 = vld [vmem:[%s1317 + $0x104] sm:$0xe]
        %v1394 = vld [vmem:[%s1317 + $0x108] sm:$0xf]
        %v1395 = vld [vmem:[%s1317 + $0x10c] sm:$0x1]
        %v1396 = vld [vmem:[%s1317 + $0x120] sm:$0xe]
        %v1397 = vld [vmem:[%s1317 + $0x124] sm:$0xf]
        %v1398 = vld [vmem:[%s1317 + $0x128] sm:$0x1]
        %v1399 = vld [vmem:[%s1317 + $0x13c] sm:$0xe]
        %v1400 = vld [vmem:[%s1317 + $0x140] sm:$0xf]
        %v1401 = vld [vmem:[%s1317 + $0x144] sm:$0x1]
        %v1402 = vld [vmem:[%s1317 + $0x158] sm:$0xe]
        %v1403 = vld [vmem:[%s1317 + $0x15c] sm:$0xf]
        %v1404 = vld [vmem:[%s1317 + $0x160] sm:$0x1]
        %v1405 = vld [vmem:[%s1317 + $0x174] sm:$0xe]
        %v1406 = vld [vmem:[%s1317 + $0x178] sm:$0xf]
        %v1407 = vld [vmem:[%s1317 + $0x17c] sm:$0x1]
        %v1408 = vld [vmem:[%s1317 + $0x190] sm:$0xe]
        %v1409 = vld [vmem:[%s1317 + $0x194] sm:$0xf]
        %v1410 = vld [vmem:[%s1317 + $0x198] sm:$0x1]
        %v1411 = vld [vmem:[%s1317 + $0x1ac] sm:$0xe]
        %v1412 = vld [vmem:[%s1317 + $0x1b0] sm:$0xf]
        %v1413 = vld [vmem:[%s1317 + $0x1b4] sm:$0x1]
        %v1414 = vld [vmem:[%s1317 + $0x10] sm:$0xf]
        %v1415 = vld [vmem:[%s1317 + $0x2c] sm:$0xf]
        %v1416 = vld [vmem:[%s1317 + $0x48] sm:$0xf]
        %v1417 = vld [vmem:[%s1317 + $0x64] sm:$0xf]
        %v1418 = vld [vmem:[%s1317 + $0x80] sm:$0xf]
        %v1419 = vld [vmem:[%s1317 + $0x9c] sm:$0xf]
        %v1420 = vld [vmem:[%s1317 + $0xb8] sm:$0xf]
        %v1421 = vld [vmem:[%s1317 + $0xd4] sm:$0xf]
        %v1422 = vld [vmem:[%s1317 + $0xf0] sm:$0xf]
        %v1423 = vld [vmem:[%s1317 + $0x10c] sm:$0xf]
        %v1424 = vld [vmem:[%s1317 + $0x128] sm:$0xf]
        %v1425 = vld [vmem:[%s1317 + $0x144] sm:$0xf]
        %v1426 = vld [vmem:[%s1317 + $0x160] sm:$0xf]
        %v1427 = vld [vmem:[%s1317 + $0x17c] sm:$0xf]
        %v1428 = vld [vmem:[%s1317 + $0x198] sm:$0xf]
        %v1429 = vld [vmem:[%s1317 + $0x1b4] sm:$0xf]
        %v1478 = vunpack.c.l.b16 %v1138
        %v1479 = vunpack.c.l.b16 %v1139
        %v1480 = vunpack.c.l.b16 %v1140
        %v1481 = vunpack.c.l.b16 %v1141
        %v1482 = vunpack.c.l.b16 %v1142
        %v1483 = vunpack.c.l.b16 %v1143
        %v1484 = vunpack.c.l.b16 %v1144
        %v1485 = vunpack.c.l.b16 %v1145
        %v1486 = vunpack.c.l.b16 %v1146
        %v1487 = vunpack.c.l.b16 %v1147
        %v1488 = vunpack.c.l.b16 %v1148
        %v1489 = vunpack.c.l.b16 %v1149
        %v1490 = vunpack.c.l.b16 %v1150
        %v1491 = vunpack.c.l.b16 %v1151
        %v1492 = vunpack.c.l.b16 %v1152
        %v1493 = vunpack.c.l.b16 %v1153
        %v1494 = vunpack.c.l.b16 %v1154
        %v1495 = vunpack.c.l.b16 %v1155
        %v1496 = vunpack.c.l.b16 %v1156
        %v1497 = vunpack.c.l.b16 %v1157
        %v1498 = vunpack.c.l.b16 %v1158
        %v1499 = vunpack.c.l.b16 %v1159
        %v1500 = vunpack.c.l.b16 %v1160
        %v1501 = vunpack.c.l.b16 %v1161
        %v1502 = vunpack.c.l.b16 %v1162
        %v1503 = vunpack.c.l.b16 %v1163
        %v1504 = vunpack.c.l.b16 %v1164
        %v1505 = vunpack.c.l.b16 %v1165
        %v1506 = vunpack.c.l.b16 %v1166
        %v1507 = vunpack.c.l.b16 %v1167
        %v1508 = vunpack.c.l.b16 %v1168
        %v1509 = vunpack.c.l.b16 %v1169
        %v1510 = vunpack.c.l.b16 %v1170
        %v1511 = vunpack.c.l.b16 %v1171
        %v1512 = vunpack.c.l.b16 %v1172
        %v1513 = vunpack.c.l.b16 %v1173
        %v1514 = vunpack.c.l.b16 %v1174
        %v1515 = vunpack.c.l.b16 %v1175
        %v1516 = vunpack.c.l.b16 %v1176
        %v1517 = vunpack.c.l.b16 %v1177
        %v1518 = vunpack.c.l.b16 %v1178
        %v1519 = vunpack.c.l.b16 %v1179
        %v1520 = vunpack.c.l.b16 %v1180
        %v1521 = vunpack.c.l.b16 %v1181
        %v1522 = vunpack.c.l.b16 %v1182
        %v1523 = vunpack.c.l.b16 %v1183
        %v1524 = vunpack.c.l.b16 %v1184
        %v1525 = vunpack.c.l.b16 %v1185
        %v1526 = vpack.c.b16 %v1479, %v1478
        %v1527 = vpack.c.b16 %v1480, %v1480
        %v1528 = vpack.c.b16 %v1482, %v1481
        %v1529 = vpack.c.b16 %v1483, %v1483
        %v1530 = vpack.c.b16 %v1485, %v1484
        %v1531 = vpack.c.b16 %v1486, %v1486
        %v1532 = vpack.c.b16 %v1488, %v1487
        %v1533 = vpack.c.b16 %v1489, %v1489
        %v1534 = vpack.c.b16 %v1491, %v1490
        %v1535 = vpack.c.b16 %v1492, %v1492
        %v1536 = vpack.c.b16 %v1494, %v1493
        %v1537 = vpack.c.b16 %v1495, %v1495
        %v1538 = vpack.c.b16 %v1497, %v1496
        %v1539 = vpack.c.b16 %v1498, %v1498
        %v1540 = vpack.c.b16 %v1500, %v1499
        %v1541 = vpack.c.b16 %v1501, %v1501
        %v1542 = vpack.c.b16 %v1503, %v1502
        %v1543 = vpack.c.b16 %v1504, %v1504
        %v1544 = vpack.c.b16 %v1506, %v1505
        %v1545 = vpack.c.b16 %v1507, %v1507
        %v1546 = vpack.c.b16 %v1509, %v1508
        %v1547 = vpack.c.b16 %v1510, %v1510
        %v1548 = vpack.c.b16 %v1512, %v1511
        %v1549 = vpack.c.b16 %v1513, %v1513
        %v1550 = vpack.c.b16 %v1515, %v1514
        %v1551 = vpack.c.b16 %v1516, %v1516
        %v1552 = vpack.c.b16 %v1518, %v1517
        %v1553 = vpack.c.b16 %v1519, %v1519
        %v1554 = vpack.c.b16 %v1521, %v1520
        %v1555 = vpack.c.b16 %v1522, %v1522
        %v1556 = vpack.c.b16 %v1524, %v1523
        %v1557 = vpack.c.b16 %v1525, %v1525
        %v1606 = vunpack.c.l.b16 %v1186
        %v1607 = vunpack.c.l.b16 %v1187
        %v1608 = vunpack.c.l.b16 %v1188
        %v1609 = vunpack.c.l.b16 %v1189
        %v1610 = vunpack.c.l.b16 %v1190
        %v1611 = vunpack.c.l.b16 %v1191
        %v1612 = vunpack.c.l.b16 %v1192
        %v1613 = vunpack.c.l.b16 %v1193
        %v1614 = vunpack.c.l.b16 %v1194
        %v1615 = vunpack.c.l.b16 %v1195
        %v1616 = vunpack.c.l.b16 %v1196
        %v1617 = vunpack.c.l.b16 %v1197
        %v1618 = vunpack.c.l.b16 %v1198
        %v1619 = vunpack.c.l.b16 %v1199
        %v1620 = vunpack.c.l.b16 %v1200
        %v1621 = vunpack.c.l.b16 %v1201
        %v1622 = vunpack.c.l.b16 %v1202
        %v1623 = vunpack.c.l.b16 %v1203
        %v1624 = vunpack.c.l.b16 %v1204
        %v1625 = vunpack.c.l.b16 %v1205
        %v1626 = vunpack.c.l.b16 %v1206
        %v1627 = vunpack.c.l.b16 %v1207
        %v1628 = vunpack.c.l.b16 %v1208
        %v1629 = vunpack.c.l.b16 %v1209
        %v1630 = vunpack.c.l.b16 %v1210
        %v1631 = vunpack.c.l.b16 %v1211
        %v1632 = vunpack.c.l.b16 %v1212
        %v1633 = vunpack.c.l.b16 %v1213
        %v1634 = vunpack.c.l.b16 %v1214
        %v1635 = vunpack.c.l.b16 %v1215
        %v1636 = vunpack.c.l.b16 %v1216
        %v1637 = vunpack.c.l.b16 %v1217
        %v1638 = vunpack.c.l.b16 %v1218
        %v1639 = vunpack.c.l.b16 %v1219
        %v1640 = vunpack.c.l.b16 %v1220
        %v1641 = vunpack.c.l.b16 %v1221
        %v1642 = vunpack.c.l.b16 %v1222
        %v1643 = vunpack.c.l.b16 %v1223
        %v1644 = vunpack.c.l.b16 %v1224
        %v1645 = vunpack.c.l.b16 %v1225
        %v1646 = vunpack.c.l.b16 %v1226
        %v1647 = vunpack.c.l.b16 %v1227
        %v1648 = vunpack.c.l.b16 %v1228
        %v1649 = vunpack.c.l.b16 %v1229
        %v1650 = vunpack.c.l.b16 %v1230
        %v1651 = vunpack.c.l.b16 %v1231
        %v1652 = vunpack.c.l.b16 %v1232
        %v1653 = vunpack.c.l.b16 %v1233
        %v1654 = vpack.c.b16 %v1607, %v1606
        %v1655 = vpack.c.b16 %v1608, %v1608
        %v1656 = vpack.c.b16 %v1610, %v1609
        %v1657 = vpack.c.b16 %v1611, %v1611
        %v1658 = vpack.c.b16 %v1613, %v1612
        %v1659 = vpack.c.b16 %v1614, %v1614
        %v1660 = vpack.c.b16 %v1616, %v1615
        %v1661 = vpack.c.b16 %v1617, %v1617
        %v1662 = vpack.c.b16 %v1619, %v1618
        %v1663 = vpack.c.b16 %v1620, %v1620
        %v1664 = vpack.c.b16 %v1622, %v1621
        %v1665 = vpack.c.b16 %v1623, %v1623
        %v1666 = vpack.c.b16 %v1625, %v1624
        %v1667 = vpack.c.b16 %v1626, %v1626
        %v1668 = vpack.c.b16 %v1628, %v1627
        %v1669 = vpack.c.b16 %v1629, %v1629
        %v1670 = vpack.c.b16 %v1631, %v1630
        %v1671 = vpack.c.b16 %v1632, %v1632
        %v1672 = vpack.c.b16 %v1634, %v1633
        %v1673 = vpack.c.b16 %v1635, %v1635
        %v1674 = vpack.c.b16 %v1637, %v1636
        %v1675 = vpack.c.b16 %v1638, %v1638
        %v1676 = vpack.c.b16 %v1640, %v1639
        %v1677 = vpack.c.b16 %v1641, %v1641
        %v1678 = vpack.c.b16 %v1643, %v1642
        %v1679 = vpack.c.b16 %v1644, %v1644
        %v1680 = vpack.c.b16 %v1646, %v1645
        %v1681 = vpack.c.b16 %v1647, %v1647
        %v1682 = vpack.c.b16 %v1649, %v1648
        %v1683 = vpack.c.b16 %v1650, %v1650
        %v1684 = vpack.c.b16 %v1652, %v1651
        %v1685 = vpack.c.b16 %v1653, %v1653
        %vm1686 = vcmask 1040384
        %v1687 = vrot.slane %v1654, 7
        %v1688 = vrot.slane %v1655, 7
        %v1689 = vsel %vm1686, %v1687, %v1688
        %v1690 = vrot.slane %v1656, 7
        %v1691 = vrot.slane %v1657, 7
        %v1692 = vsel %vm1686, %v1690, %v1691
        %v1693 = vrot.slane %v1658, 7
        %v1694 = vrot.slane %v1659, 7
        %v1695 = vsel %vm1686, %v1693, %v1694
        %v1696 = vrot.slane %v1660, 7
        %v1697 = vrot.slane %v1661, 7
        %v1698 = vsel %vm1686, %v1696, %v1697
        %v1699 = vrot.slane %v1662, 7
        %v1700 = vrot.slane %v1663, 7
        %v1701 = vsel %vm1686, %v1699, %v1700
        %v1702 = vrot.slane %v1664, 7
        %v1703 = vrot.slane %v1665, 7
        %v1704 = vsel %vm1686, %v1702, %v1703
        %v1705 = vrot.slane %v1666, 7
        %v1706 = vrot.slane %v1667, 7
        %v1707 = vsel %vm1686, %v1705, %v1706
        %v1708 = vrot.slane %v1668, 7
        %v1709 = vrot.slane %v1669, 7
        %v1710 = vsel %vm1686, %v1708, %v1709
        %v1711 = vrot.slane %v1670, 7
        %v1712 = vrot.slane %v1671, 7
        %v1713 = vsel %vm1686, %v1711, %v1712
        %v1714 = vrot.slane %v1672, 7
        %v1715 = vrot.slane %v1673, 7
        %v1716 = vsel %vm1686, %v1714, %v1715
        %v1717 = vrot.slane %v1674, 7
        %v1718 = vrot.slane %v1675, 7
        %v1719 = vsel %vm1686, %v1717, %v1718
        %v1720 = vrot.slane %v1676, 7
        %v1721 = vrot.slane %v1677, 7
        %v1722 = vsel %vm1686, %v1720, %v1721
        %v1723 = vrot.slane %v1678, 7
        %v1724 = vrot.slane %v1679, 7
        %v1725 = vsel %vm1686, %v1723, %v1724
        %v1726 = vrot.slane %v1680, 7
        %v1727 = vrot.slane %v1681, 7
        %v1728 = vsel %vm1686, %v1726, %v1727
        %v1729 = vrot.slane %v1682, 7
        %v1730 = vrot.slane %v1683, 7
        %v1731 = vsel %vm1686, %v1729, %v1730
        %v1732 = vrot.slane %v1684, 7
        %v1733 = vrot.slane %v1685, 7
        %v1734 = vsel %vm1686, %v1732, %v1733
        %1735 = vrot.lane.b32.xlu0 %v1687, 8
        %v1736 = vpop.permute.xlu0 %1735
        %1737 = vrot.lane.b32.xlu0 %v1689, 8
        %v1738 = vpop.permute.xlu0 %1737
        %1739 = vrot.lane.b32.xlu0 %v1690, 8
        %v1740 = vpop.permute.xlu0 %1739
        %1741 = vrot.lane.b32.xlu0 %v1692, 8
        %v1742 = vpop.permute.xlu0 %1741
        %1743 = vrot.lane.b32.xlu0 %v1693, 8
        %v1744 = vpop.permute.xlu0 %1743
        %1745 = vrot.lane.b32.xlu0 %v1695, 8
        %v1746 = vpop.permute.xlu0 %1745
        %1747 = vrot.lane.b32.xlu0 %v1696, 8
        %v1748 = vpop.permute.xlu0 %1747
        %1749 = vrot.lane.b32.xlu0 %v1698, 8
        %v1750 = vpop.permute.xlu0 %1749
        %1751 = vrot.lane.b32.xlu0 %v1699, 8
        %v1752 = vpop.permute.xlu0 %1751
        %1753 = vrot.lane.b32.xlu0 %v1701, 8
        %v1754 = vpop.permute.xlu0 %1753
        %1755 = vrot.lane.b32.xlu0 %v1702, 8
        %v1756 = vpop.permute.xlu0 %1755
        %1757 = vrot.lane.b32.xlu0 %v1704, 8
        %v1758 = vpop.permute.xlu0 %1757
        %1759 = vrot.lane.b32.xlu0 %v1705, 8
        %v1760 = vpop.permute.xlu0 %1759
        %1761 = vrot.lane.b32.xlu0 %v1707, 8
        %v1762 = vpop.permute.xlu0 %1761
        %1763 = vrot.lane.b32.xlu0 %v1708, 8
        %v1764 = vpop.permute.xlu0 %1763
        %1765 = vrot.lane.b32.xlu0 %v1710, 8
        %v1766 = vpop.permute.xlu0 %1765
        %1767 = vrot.lane.b32.xlu0 %v1711, 8
        %v1768 = vpop.permute.xlu0 %1767
        %1769 = vrot.lane.b32.xlu0 %v1713, 8
        %v1770 = vpop.permute.xlu0 %1769
        %1771 = vrot.lane.b32.xlu0 %v1714, 8
        %v1772 = vpop.permute.xlu0 %1771
        %1773 = vrot.lane.b32.xlu0 %v1716, 8
        %v1774 = vpop.permute.xlu0 %1773
        %1775 = vrot.lane.b32.xlu0 %v1717, 8
        %v1776 = vpop.permute.xlu0 %1775
        %1777 = vrot.lane.b32.xlu0 %v1719, 8
        %v1778 = vpop.permute.xlu0 %1777
        %1779 = vrot.lane.b32.xlu0 %v1720, 8
        %v1780 = vpop.permute.xlu0 %1779
        %1781 = vrot.lane.b32.xlu0 %v1722, 8
        %v1782 = vpop.permute.xlu0 %1781
        %1783 = vrot.lane.b32.xlu0 %v1723, 8
        %v1784 = vpop.permute.xlu0 %1783
        %1785 = vrot.lane.b32.xlu0 %v1725, 8
        %v1786 = vpop.permute.xlu0 %1785
        %1787 = vrot.lane.b32.xlu0 %v1726, 8
        %v1788 = vpop.permute.xlu0 %1787
        %1789 = vrot.lane.b32.xlu0 %v1728, 8
        %v1790 = vpop.permute.xlu0 %1789
        %1791 = vrot.lane.b32.xlu0 %v1729, 8
        %v1792 = vpop.permute.xlu0 %1791
        %1793 = vrot.lane.b32.xlu0 %v1731, 8
        %v1794 = vpop.permute.xlu0 %1793
        %1795 = vrot.lane.b32.xlu0 %v1732, 8
        %v1796 = vpop.permute.xlu0 %1795
        %1797 = vrot.lane.b32.xlu0 %v1734, 8
        %v1798 = vpop.permute.xlu0 %1797
        %v1815 = vunpack.c.l.b16 %v1234
        %v1816 = vunpack.c.l.b16 %v1235
        %v1817 = vunpack.c.l.b16 %v1236
        %v1818 = vunpack.c.l.b16 %v1237
        %v1819 = vunpack.c.l.b16 %v1238
        %v1820 = vunpack.c.l.b16 %v1239
        %v1821 = vunpack.c.l.b16 %v1240
        %v1822 = vunpack.c.l.b16 %v1241
        %v1823 = vunpack.c.l.b16 %v1242
        %v1824 = vunpack.c.l.b16 %v1243
        %v1825 = vunpack.c.l.b16 %v1244
        %v1826 = vunpack.c.l.b16 %v1245
        %v1827 = vunpack.c.l.b16 %v1246
        %v1828 = vunpack.c.l.b16 %v1247
        %v1829 = vunpack.c.l.b16 %v1248
        %v1830 = vunpack.c.l.b16 %v1249
        %v1831 = vpack.c.b16 %v1815, %v1607
        %v1832 = vpack.c.b16 %v1816, %v1610
        %v1833 = vpack.c.b16 %v1817, %v1613
        %v1834 = vpack.c.b16 %v1818, %v1616
        %v1835 = vpack.c.b16 %v1819, %v1619
        %v1836 = vpack.c.b16 %v1820, %v1622
        %v1837 = vpack.c.b16 %v1821, %v1625
        %v1838 = vpack.c.b16 %v1822, %v1628
        %v1839 = vpack.c.b16 %v1823, %v1631
        %v1840 = vpack.c.b16 %v1824, %v1634
        %v1841 = vpack.c.b16 %v1825, %v1637
        %v1842 = vpack.c.b16 %v1826, %v1640
        %v1843 = vpack.c.b16 %v1827, %v1643
        %v1844 = vpack.c.b16 %v1828, %v1646
        %v1845 = vpack.c.b16 %v1829, %v1649
        %v1846 = vpack.c.b16 %v1830, %v1652
        %v1847 = vrot.slane %v1831, 6
        %v1848 = vrot.slane %v1832, 6
        %v1849 = vrot.slane %v1833, 6
        %v1850 = vrot.slane %v1834, 6
        %v1851 = vrot.slane %v1835, 6
        %v1852 = vrot.slane %v1836, 6
        %v1853 = vrot.slane %v1837, 6
        %v1854 = vrot.slane %v1838, 6
        %v1855 = vrot.slane %v1839, 6
        %v1856 = vrot.slane %v1840, 6
        %v1857 = vrot.slane %v1841, 6
        %v1858 = vrot.slane %v1842, 6
        %v1859 = vrot.slane %v1843, 6
        %v1860 = vrot.slane %v1844, 6
        %v1861 = vrot.slane %v1845, 6
        %v1862 = vrot.slane %v1846, 6
        %1863 = vrot.lane.b32.xlu0 %v1847, 16
        %v1864 = vpop.permute.xlu0 %1863
        %1865 = vrot.lane.b32.xlu0 %v1848, 16
        %v1866 = vpop.permute.xlu0 %1865
        %1867 = vrot.lane.b32.xlu0 %v1849, 16
        %v1868 = vpop.permute.xlu0 %1867
        %1869 = vrot.lane.b32.xlu0 %v1850, 16
        %v1870 = vpop.permute.xlu0 %1869
        %1871 = vrot.lane.b32.xlu0 %v1851, 16
        %v1872 = vpop.permute.xlu0 %1871
        %1873 = vrot.lane.b32.xlu0 %v1852, 16
        %v1874 = vpop.permute.xlu0 %1873
        %1875 = vrot.lane.b32.xlu0 %v1853, 16
        %v1876 = vpop.permute.xlu0 %1875
        %1877 = vrot.lane.b32.xlu0 %v1854, 16
        %v1878 = vpop.permute.xlu0 %1877
        %1879 = vrot.lane.b32.xlu0 %v1855, 16
        %v1880 = vpop.permute.xlu0 %1879
        %1881 = vrot.lane.b32.xlu0 %v1856, 16
        %v1882 = vpop.permute.xlu0 %1881
        %1883 = vrot.lane.b32.xlu0 %v1857, 16
        %v1884 = vpop.permute.xlu0 %1883
        %1885 = vrot.lane.b32.xlu0 %v1858, 16
        %v1886 = vpop.permute.xlu0 %1885
        %1887 = vrot.lane.b32.xlu0 %v1859, 16
        %v1888 = vpop.permute.xlu0 %1887
        %1889 = vrot.lane.b32.xlu0 %v1860, 16
        %v1890 = vpop.permute.xlu0 %1889
        %1891 = vrot.lane.b32.xlu0 %v1861, 16
        %v1892 = vpop.permute.xlu0 %1891
        %1893 = vrot.lane.b32.xlu0 %v1862, 16
        %v1894 = vpop.permute.xlu0 %1893
        %v1943 = vunpack.c.l.b16 %v1250
        %v1944 = vunpack.c.l.b16 %v1251
        %v1945 = vunpack.c.l.b16 %v1252
        %v1946 = vunpack.c.l.b16 %v1253
        %v1947 = vunpack.c.l.b16 %v1254
        %v1948 = vunpack.c.l.b16 %v1255
        %v1949 = vunpack.c.l.b16 %v1256
        %v1950 = vunpack.c.l.b16 %v1257
        %v1951 = vunpack.c.l.b16 %v1258
        %v1952 = vunpack.c.l.b16 %v1259
        %v1953 = vunpack.c.l.b16 %v1260
        %v1954 = vunpack.c.l.b16 %v1261
        %v1955 = vunpack.c.l.b16 %v1262
        %v1956 = vunpack.c.l.b16 %v1263
        %v1957 = vunpack.c.l.b16 %v1264
        %v1958 = vunpack.c.l.b16 %v1265
        %v1959 = vunpack.c.l.b16 %v1266
        %v1960 = vunpack.c.l.b16 %v1267
        %v1961 = vunpack.c.l.b16 %v1268
        %v1962 = vunpack.c.l.b16 %v1269
        %v1963 = vunpack.c.l.b16 %v1270
        %v1964 = vunpack.c.l.b16 %v1271
        %v1965 = vunpack.c.l.b16 %v1272
        %v1966 = vunpack.c.l.b16 %v1273
        %v1967 = vunpack.c.l.b16 %v1274
        %v1968 = vunpack.c.l.b16 %v1275
        %v1969 = vunpack.c.l.b16 %v1276
        %v1970 = vunpack.c.l.b16 %v1277
        %v1971 = vunpack.c.l.b16 %v1278
        %v1972 = vunpack.c.l.b16 %v1279
        %v1973 = vunpack.c.l.b16 %v1280
        %v1974 = vunpack.c.l.b16 %v1281
        %v1975 = vunpack.c.l.b16 %v1282
        %v1976 = vunpack.c.l.b16 %v1283
        %v1977 = vunpack.c.l.b16 %v1284
        %v1978 = vunpack.c.l.b16 %v1285
        %v1979 = vunpack.c.l.b16 %v1286
        %v1980 = vunpack.c.l.b16 %v1287
        %v1981 = vunpack.c.l.b16 %v1288
        %v1982 = vunpack.c.l.b16 %v1289
        %v1983 = vunpack.c.l.b16 %v1290
        %v1984 = vunpack.c.l.b16 %v1291
        %v1985 = vunpack.c.l.b16 %v1292
        %v1986 = vunpack.c.l.b16 %v1293
        %v1987 = vunpack.c.l.b16 %v1294
        %v1988 = vunpack.c.l.b16 %v1295
        %v1989 = vunpack.c.l.b16 %v1296
        %v1990 = vunpack.c.l.b16 %v1297
        %v1991 = vpack.c.b16 %v1944, %v1943
        %v1992 = vpack.c.b16 %v1945, %v1945
        %v1993 = vpack.c.b16 %v1947, %v1946
        %v1994 = vpack.c.b16 %v1948, %v1948
        %v1995 = vpack.c.b16 %v1950, %v1949
        %v1996 = vpack.c.b16 %v1951, %v1951
        %v1997 = vpack.c.b16 %v1953, %v1952
        %v1998 = vpack.c.b16 %v1954, %v1954
        %v1999 = vpack.c.b16 %v1956, %v1955
        %v2000 = vpack.c.b16 %v1957, %v1957
        %v2001 = vpack.c.b16 %v1959, %v1958
        %v2002 = vpack.c.b16 %v1960, %v1960
        %v2003 = vpack.c.b16 %v1962, %v1961
        %v2004 = vpack.c.b16 %v1963, %v1963
        %v2005 = vpack.c.b16 %v1965, %v1964
        %v2006 = vpack.c.b16 %v1966, %v1966
        %v2007 = vpack.c.b16 %v1968, %v1967
        %v2008 = vpack.c.b16 %v1969, %v1969
        %v2009 = vpack.c.b16 %v1971, %v1970
        %v2010 = vpack.c.b16 %v1972, %v1972
        %v2011 = vpack.c.b16 %v1974, %v1973
        %v2012 = vpack.c.b16 %v1975, %v1975
        %v2013 = vpack.c.b16 %v1977, %v1976
        %v2014 = vpack.c.b16 %v1978, %v1978
        %v2015 = vpack.c.b16 %v1980, %v1979
        %v2016 = vpack.c.b16 %v1981, %v1981
        %v2017 = vpack.c.b16 %v1983, %v1982
        %v2018 = vpack.c.b16 %v1984, %v1984
        %v2019 = vpack.c.b16 %v1986, %v1985
        %v2020 = vpack.c.b16 %v1987, %v1987
        %v2021 = vpack.c.b16 %v1989, %v1988
        %v2022 = vpack.c.b16 %v1990, %v1990
        %2023 = vrot.lane.b32.xlu0 %v1991, 24
        %v2024 = vpop.permute.xlu0 %2023
        %2025 = vrot.lane.b32.xlu0 %v1992, 24
        %v2026 = vpop.permute.xlu0 %2025
        %2027 = vrot.lane.b32.xlu0 %v1993, 24
        %v2028 = vpop.permute.xlu0 %2027
        %2029 = vrot.lane.b32.xlu0 %v1994, 24
        %v2030 = vpop.permute.xlu0 %2029
        %2031 = vrot.lane.b32.xlu0 %v1995, 24
        %v2032 = vpop.permute.xlu0 %2031
        %2033 = vrot.lane.b32.xlu0 %v1996, 24
        %v2034 = vpop.permute.xlu0 %2033
        %2035 = vrot.lane.b32.xlu0 %v1997, 24
        %v2036 = vpop.permute.xlu0 %2035
        %2037 = vrot.lane.b32.xlu0 %v1998, 24
        %v2038 = vpop.permute.xlu0 %2037
        %2039 = vrot.lane.b32.xlu0 %v1999, 24
        %v2040 = vpop.permute.xlu0 %2039
        %2041 = vrot.lane.b32.xlu0 %v2000, 24
        %v2042 = vpop.permute.xlu0 %2041
        %2043 = vrot.lane.b32.xlu0 %v2001, 24
        %v2044 = vpop.permute.xlu0 %2043
        %2045 = vrot.lane.b32.xlu0 %v2002, 24
        %v2046 = vpop.permute.xlu0 %2045
        %2047 = vrot.lane.b32.xlu0 %v2003, 24
        %v2048 = vpop.permute.xlu0 %2047
        %2049 = vrot.lane.b32.xlu0 %v2004, 24
        %v2050 = vpop.permute.xlu0 %2049
        %2051 = vrot.lane.b32.xlu0 %v2005, 24
        %v2052 = vpop.permute.xlu0 %2051
        %2053 = vrot.lane.b32.xlu0 %v2006, 24
        %v2054 = vpop.permute.xlu0 %2053
        %2055 = vrot.lane.b32.xlu0 %v2007, 24
        %v2056 = vpop.permute.xlu0 %2055
        %2057 = vrot.lane.b32.xlu0 %v2008, 24
        %v2058 = vpop.permute.xlu0 %2057
        %2059 = vrot.lane.b32.xlu0 %v2009, 24
        %v2060 = vpop.permute.xlu0 %2059
        %2061 = vrot.lane.b32.xlu0 %v2010, 24
        %v2062 = vpop.permute.xlu0 %2061
        %2063 = vrot.lane.b32.xlu0 %v2011, 24
        %v2064 = vpop.permute.xlu0 %2063
        %2065 = vrot.lane.b32.xlu0 %v2012, 24
        %v2066 = vpop.permute.xlu0 %2065
        %2067 = vrot.lane.b32.xlu0 %v2013, 24
        %v2068 = vpop.permute.xlu0 %2067
        %2069 = vrot.lane.b32.xlu0 %v2014, 24
        %v2070 = vpop.permute.xlu0 %2069
        %2071 = vrot.lane.b32.xlu0 %v2015, 24
        %v2072 = vpop.permute.xlu0 %2071
        %2073 = vrot.lane.b32.xlu0 %v2016, 24
        %v2074 = vpop.permute.xlu0 %2073
        %2075 = vrot.lane.b32.xlu0 %v2017, 24
        %v2076 = vpop.permute.xlu0 %2075
        %2077 = vrot.lane.b32.xlu0 %v2018, 24
        %v2078 = vpop.permute.xlu0 %2077
        %2079 = vrot.lane.b32.xlu0 %v2019, 24
        %v2080 = vpop.permute.xlu0 %2079
        %2081 = vrot.lane.b32.xlu0 %v2020, 24
        %v2082 = vpop.permute.xlu0 %2081
        %2083 = vrot.lane.b32.xlu0 %v2021, 24
        %v2084 = vpop.permute.xlu0 %2083
        %2085 = vrot.lane.b32.xlu0 %v2022, 24
        %v2086 = vpop.permute.xlu0 %2085
        %v2087 = vunpack.c.l.b16 %v339
        %v2088 = vunpack.c.l.b16 %v340
        %v2089 = vunpack.c.l.b16 %v341
        %v2090 = vunpack.c.l.b16 %v342
        %v2091 = vunpack.c.l.b16 %v343
        %v2092 = vunpack.c.l.b16 %v344
        %v2093 = vunpack.c.l.b16 %v345
        %v2094 = vunpack.c.l.b16 %v346
        %v2095 = vunpack.c.l.b16 %v347
        %v2096 = vunpack.c.l.b16 %v348
        %v2097 = vunpack.c.l.b16 %v349
        %v2098 = vunpack.c.l.b16 %v350
        %v2099 = vunpack.c.l.b16 %v351
        %v2100 = vunpack.c.l.b16 %v352
        %v2101 = vunpack.c.l.b16 %v353
        %v2102 = vunpack.c.l.b16 %v354
        %v2103 = vunpack.c.l.b16 %v355
        %v2104 = vunpack.c.l.b16 %v356
        %v2105 = vunpack.c.l.b16 %v357
        %v2106 = vunpack.c.l.b16 %v358
        %v2107 = vunpack.c.l.b16 %v359
        %v2108 = vunpack.c.l.b16 %v360
        %v2109 = vunpack.c.l.b16 %v361
        %v2110 = vunpack.c.l.b16 %v362
        %v2111 = vunpack.c.l.b16 %v363
        %v2112 = vunpack.c.l.b16 %v364
        %v2113 = vunpack.c.l.b16 %v365
        %v2114 = vunpack.c.l.b16 %v366
        %v2115 = vunpack.c.l.b16 %v367
        %v2116 = vunpack.c.l.b16 %v368
        %v2117 = vunpack.c.l.b16 %v369
        %v2118 = vunpack.c.l.b16 %v370
        %v2119 = vunpack.c.l.b16 %v371
        %v2120 = vunpack.c.l.b16 %v372
        %v2121 = vunpack.c.l.b16 %v373
        %v2122 = vunpack.c.l.b16 %v374
        %v2123 = vunpack.c.l.b16 %v375
        %v2124 = vunpack.c.l.b16 %v376
        %v2125 = vunpack.c.l.b16 %v377
        %v2126 = vunpack.c.l.b16 %v378
        %v2127 = vunpack.c.l.b16 %v379
        %v2128 = vunpack.c.l.b16 %v380
        %v2129 = vunpack.c.l.b16 %v381
        %v2130 = vunpack.c.l.b16 %v382
        %v2131 = vunpack.c.l.b16 %v383
        %v2132 = vunpack.c.l.b16 %v384
        %v2133 = vunpack.c.l.b16 %v385
        %v2134 = vunpack.c.l.b16 %v386
        %v2135 = vpack.c.b16 %v2088, %v2087
        %v2136 = vpack.c.b16 %v2089, %v2089
        %v2137 = vpack.c.b16 %v2091, %v2090
        %v2138 = vpack.c.b16 %v2092, %v2092
        %v2139 = vpack.c.b16 %v2094, %v2093
        %v2140 = vpack.c.b16 %v2095, %v2095
        %v2141 = vpack.c.b16 %v2097, %v2096
        %v2142 = vpack.c.b16 %v2098, %v2098
        %v2143 = vpack.c.b16 %v2100, %v2099
        %v2144 = vpack.c.b16 %v2101, %v2101
        %v2145 = vpack.c.b16 %v2103, %v2102
        %v2146 = vpack.c.b16 %v2104, %v2104
        %v2147 = vpack.c.b16 %v2106, %v2105
        %v2148 = vpack.c.b16 %v2107, %v2107
        %v2149 = vpack.c.b16 %v2109, %v2108
        %v2150 = vpack.c.b16 %v2110, %v2110
        %v2151 = vpack.c.b16 %v2112, %v2111
        %v2152 = vpack.c.b16 %v2113, %v2113
        %v2153 = vpack.c.b16 %v2115, %v2114
        %v2154 = vpack.c.b16 %v2116, %v2116
        %v2155 = vpack.c.b16 %v2118, %v2117
        %v2156 = vpack.c.b16 %v2119, %v2119
        %v2157 = vpack.c.b16 %v2121, %v2120
        %v2158 = vpack.c.b16 %v2122, %v2122
        %v2159 = vpack.c.b16 %v2124, %v2123
        %v2160 = vpack.c.b16 %v2125, %v2125
        %v2161 = vpack.c.b16 %v2127, %v2126
        %v2162 = vpack.c.b16 %v2128, %v2128
        %v2163 = vpack.c.b16 %v2130, %v2129
        %v2164 = vpack.c.b16 %v2131, %v2131
        %v2165 = vpack.c.b16 %v2133, %v2132
        %v2166 = vpack.c.b16 %v2134, %v2134
        %v2167 = vrot.slane %v2135, 7
        %v2168 = vrot.slane %v2136, 7
        %v2169 = vsel %vm1686, %v2167, %v2168
        %v2170 = vrot.slane %v2137, 7
        %v2171 = vrot.slane %v2138, 7
        %v2172 = vsel %vm1686, %v2170, %v2171
        %v2173 = vrot.slane %v2139, 7
        %v2174 = vrot.slane %v2140, 7
        %v2175 = vsel %vm1686, %v2173, %v2174
        %v2176 = vrot.slane %v2141, 7
        %v2177 = vrot.slane %v2142, 7
        %v2178 = vsel %vm1686, %v2176, %v2177
        %v2179 = vrot.slane %v2143, 7
        %v2180 = vrot.slane %v2144, 7
        %v2181 = vsel %vm1686, %v2179, %v2180
        %v2182 = vrot.slane %v2145, 7
        %v2183 = vrot.slane %v2146, 7
        %v2184 = vsel %vm1686, %v2182, %v2183
        %v2185 = vrot.slane %v2147, 7
        %v2186 = vrot.slane %v2148, 7
        %v2187 = vsel %vm1686, %v2185, %v2186
        %v2188 = vrot.slane %v2149, 7
        %v2189 = vrot.slane %v2150, 7
        %v2190 = vsel %vm1686, %v2188, %v2189
        %v2191 = vrot.slane %v2151, 7
        %v2192 = vrot.slane %v2152, 7
        %v2193 = vsel %vm1686, %v2191, %v2192
        %v2194 = vrot.slane %v2153, 7
        %v2195 = vrot.slane %v2154, 7
        %v2196 = vsel %vm1686, %v2194, %v2195
        %v2197 = vrot.slane %v2155, 7
        %v2198 = vrot.slane %v2156, 7
        %v2199 = vsel %vm1686, %v2197, %v2198
        %v2200 = vrot.slane %v2157, 7
        %v2201 = vrot.slane %v2158, 7
        %v2202 = vsel %vm1686, %v2200, %v2201
        %v2203 = vrot.slane %v2159, 7
        %v2204 = vrot.slane %v2160, 7
        %v2205 = vsel %vm1686, %v2203, %v2204
        %v2206 = vrot.slane %v2161, 7
        %v2207 = vrot.slane %v2162, 7
        %v2208 = vsel %vm1686, %v2206, %v2207
        %v2209 = vrot.slane %v2163, 7
        %v2210 = vrot.slane %v2164, 7
        %v2211 = vsel %vm1686, %v2209, %v2210
        %v2212 = vrot.slane %v2165, 7
        %v2213 = vrot.slane %v2166, 7
        %v2214 = vsel %vm1686, %v2212, %v2213
        %2215 = vrot.lane.b32.xlu0 %v2167, 32
        %v2216 = vpop.permute.xlu0 %2215
        %2217 = vrot.lane.b32.xlu0 %v2169, 32
        %v2218 = vpop.permute.xlu0 %2217
        %2219 = vrot.lane.b32.xlu0 %v2170, 32
        %v2220 = vpop.permute.xlu0 %2219
        %2221 = vrot.lane.b32.xlu0 %v2172, 32
        %v2222 = vpop.permute.xlu0 %2221
        %2223 = vrot.lane.b32.xlu0 %v2173, 32
        %v2224 = vpop.permute.xlu0 %2223
        %2225 = vrot.lane.b32.xlu0 %v2175, 32
        %v2226 = vpop.permute.xlu0 %2225
        %2227 = vrot.lane.b32.xlu0 %v2176, 32
        %v2228 = vpop.permute.xlu0 %2227
        %2229 = vrot.lane.b32.xlu0 %v2178, 32
        %v2230 = vpop.permute.xlu0 %2229
        %2231 = vrot.lane.b32.xlu0 %v2179, 32
        %v2232 = vpop.permute.xlu0 %2231
        %2233 = vrot.lane.b32.xlu0 %v2181, 32
        %v2234 = vpop.permute.xlu0 %2233
        %2235 = vrot.lane.b32.xlu0 %v2182, 32
        %v2236 = vpop.permute.xlu0 %2235
        %2237 = vrot.lane.b32.xlu0 %v2184, 32
        %v2238 = vpop.permute.xlu0 %2237
        %2239 = vrot.lane.b32.xlu0 %v2185, 32
        %v2240 = vpop.permute.xlu0 %2239
        %2241 = vrot.lane.b32.xlu0 %v2187, 32
        %v2242 = vpop.permute.xlu0 %2241
        %2243 = vrot.lane.b32.xlu0 %v2188, 32
        %v2244 = vpop.permute.xlu0 %2243
        %2245 = vrot.lane.b32.xlu0 %v2190, 32
        %v2246 = vpop.permute.xlu0 %2245
        %2247 = vrot.lane.b32.xlu0 %v2191, 32
        %v2248 = vpop.permute.xlu0 %2247
        %2249 = vrot.lane.b32.xlu0 %v2193, 32
        %v2250 = vpop.permute.xlu0 %2249
        %2251 = vrot.lane.b32.xlu0 %v2194, 32
        %v2252 = vpop.permute.xlu0 %2251
        %2253 = vrot.lane.b32.xlu0 %v2196, 32
        %v2254 = vpop.permute.xlu0 %2253
        %2255 = vrot.lane.b32.xlu0 %v2197, 32
        %v2256 = vpop.permute.xlu0 %2255
        %2257 = vrot.lane.b32.xlu0 %v2199, 32
        %v2258 = vpop.permute.xlu0 %2257
        %2259 = vrot.lane.b32.xlu0 %v2200, 32
        %v2260 = vpop.permute.xlu0 %2259
        %2261 = vrot.lane.b32.xlu0 %v2202, 32
        %v2262 = vpop.permute.xlu0 %2261
        %2263 = vrot.lane.b32.xlu0 %v2203, 32
        %v2264 = vpop.permute.xlu0 %2263
        %2265 = vrot.lane.b32.xlu0 %v2205, 32
        %v2266 = vpop.permute.xlu0 %2265
        %2267 = vrot.lane.b32.xlu0 %v2206, 32
        %v2268 = vpop.permute.xlu0 %2267
        %2269 = vrot.lane.b32.xlu0 %v2208, 32
        %v2270 = vpop.permute.xlu0 %2269
        %2271 = vrot.lane.b32.xlu0 %v2209, 32
        %v2272 = vpop.permute.xlu0 %2271
        %2273 = vrot.lane.b32.xlu0 %v2211, 32
        %v2274 = vpop.permute.xlu0 %2273
        %2275 = vrot.lane.b32.xlu0 %v2212, 32
        %v2276 = vpop.permute.xlu0 %2275
        %2277 = vrot.lane.b32.xlu0 %v2214, 32
        %v2278 = vpop.permute.xlu0 %2277
        %v2295 = vunpack.c.l.b16 %v1298
        %v2296 = vunpack.c.l.b16 %v1299
        %v2297 = vunpack.c.l.b16 %v1300
        %v2298 = vunpack.c.l.b16 %v1301
        %v2299 = vunpack.c.l.b16 %v1302
        %v2300 = vunpack.c.l.b16 %v1303
        %v2301 = vunpack.c.l.b16 %v1304
        %v2302 = vunpack.c.l.b16 %v1305
        %v2303 = vunpack.c.l.b16 %v1306
        %v2304 = vunpack.c.l.b16 %v1307
        %v2305 = vunpack.c.l.b16 %v1308
        %v2306 = vunpack.c.l.b16 %v1309
        %v2307 = vunpack.c.l.b16 %v1310
        %v2308 = vunpack.c.l.b16 %v1311
        %v2309 = vunpack.c.l.b16 %v1312
        %v2310 = vunpack.c.l.b16 %v1313
        %v2311 = vpack.c.b16 %v2295, %v2088
        %v2312 = vpack.c.b16 %v2296, %v2091
        %v2313 = vpack.c.b16 %v2297, %v2094
        %v2314 = vpack.c.b16 %v2298, %v2097
        %v2315 = vpack.c.b16 %v2299, %v2100
        %v2316 = vpack.c.b16 %v2300, %v2103
        %v2317 = vpack.c.b16 %v2301, %v2106
        %v2318 = vpack.c.b16 %v2302, %v2109
        %v2319 = vpack.c.b16 %v2303, %v2112
        %v2320 = vpack.c.b16 %v2304, %v2115
        %v2321 = vpack.c.b16 %v2305, %v2118
        %v2322 = vpack.c.b16 %v2306, %v2121
        %v2323 = vpack.c.b16 %v2307, %v2124
        %v2324 = vpack.c.b16 %v2308, %v2127
        %v2325 = vpack.c.b16 %v2309, %v2130
        %v2326 = vpack.c.b16 %v2310, %v2133
        %v2327 = vrot.slane %v2311, 6
        %v2328 = vrot.slane %v2312, 6
        %v2329 = vrot.slane %v2313, 6
        %v2330 = vrot.slane %v2314, 6
        %v2331 = vrot.slane %v2315, 6
        %v2332 = vrot.slane %v2316, 6
        %v2333 = vrot.slane %v2317, 6
        %v2334 = vrot.slane %v2318, 6
        %v2335 = vrot.slane %v2319, 6
        %v2336 = vrot.slane %v2320, 6
        %v2337 = vrot.slane %v2321, 6
        %v2338 = vrot.slane %v2322, 6
        %v2339 = vrot.slane %v2323, 6
        %v2340 = vrot.slane %v2324, 6
        %v2341 = vrot.slane %v2325, 6
        %v2342 = vrot.slane %v2326, 6
        %2343 = vrot.lane.b32.xlu0 %v2327, 40
        %v2344 = vpop.permute.xlu0 %2343
        %2345 = vrot.lane.b32.xlu0 %v2328, 40
        %v2346 = vpop.permute.xlu0 %2345
        %2347 = vrot.lane.b32.xlu0 %v2329, 40
        %v2348 = vpop.permute.xlu0 %2347
        %2349 = vrot.lane.b32.xlu0 %v2330, 40
        %v2350 = vpop.permute.xlu0 %2349
        %2351 = vrot.lane.b32.xlu0 %v2331, 40
        %v2352 = vpop.permute.xlu0 %2351
        %2353 = vrot.lane.b32.xlu0 %v2332, 40
        %v2354 = vpop.permute.xlu0 %2353
        %2355 = vrot.lane.b32.xlu0 %v2333, 40
        %v2356 = vpop.permute.xlu0 %2355
        %2357 = vrot.lane.b32.xlu0 %v2334, 40
        %v2358 = vpop.permute.xlu0 %2357
        %2359 = vrot.lane.b32.xlu0 %v2335, 40
        %v2360 = vpop.permute.xlu0 %2359
        %2361 = vrot.lane.b32.xlu0 %v2336, 40
        %v2362 = vpop.permute.xlu0 %2361
        %2363 = vrot.lane.b32.xlu0 %v2337, 40
        %v2364 = vpop.permute.xlu0 %2363
        %2365 = vrot.lane.b32.xlu0 %v2338, 40
        %v2366 = vpop.permute.xlu0 %2365
        %2367 = vrot.lane.b32.xlu0 %v2339, 40
        %v2368 = vpop.permute.xlu0 %2367
        %2369 = vrot.lane.b32.xlu0 %v2340, 40
        %v2370 = vpop.permute.xlu0 %2369
        %2371 = vrot.lane.b32.xlu0 %v2341, 40
        %v2372 = vpop.permute.xlu0 %2371
        %2373 = vrot.lane.b32.xlu0 %v2342, 40
        %v2374 = vpop.permute.xlu0 %2373
        %v2423 = vunpack.c.l.b16 %v1318
        %v2424 = vunpack.c.l.b16 %v1319
        %v2425 = vunpack.c.l.b16 %v1320
        %v2426 = vunpack.c.l.b16 %v1321
        %v2427 = vunpack.c.l.b16 %v1322
        %v2428 = vunpack.c.l.b16 %v1323
        %v2429 = vunpack.c.l.b16 %v1324
        %v2430 = vunpack.c.l.b16 %v1325
        %v2431 = vunpack.c.l.b16 %v1326
        %v2432 = vunpack.c.l.b16 %v1327
        %v2433 = vunpack.c.l.b16 %v1328
        %v2434 = vunpack.c.l.b16 %v1329
        %v2435 = vunpack.c.l.b16 %v1330
        %v2436 = vunpack.c.l.b16 %v1331
        %v2437 = vunpack.c.l.b16 %v1332
        %v2438 = vunpack.c.l.b16 %v1333
        %v2439 = vunpack.c.l.b16 %v1334
        %v2440 = vunpack.c.l.b16 %v1335
        %v2441 = vunpack.c.l.b16 %v1336
        %v2442 = vunpack.c.l.b16 %v1337
        %v2443 = vunpack.c.l.b16 %v1338
        %v2444 = vunpack.c.l.b16 %v1339
        %v2445 = vunpack.c.l.b16 %v1340
        %v2446 = vunpack.c.l.b16 %v1341
        %v2447 = vunpack.c.l.b16 %v1342
        %v2448 = vunpack.c.l.b16 %v1343
        %v2449 = vunpack.c.l.b16 %v1344
        %v2450 = vunpack.c.l.b16 %v1345
        %v2451 = vunpack.c.l.b16 %v1346
        %v2452 = vunpack.c.l.b16 %v1347
        %v2453 = vunpack.c.l.b16 %v1348
        %v2454 = vunpack.c.l.b16 %v1349
        %v2455 = vunpack.c.l.b16 %v1350
        %v2456 = vunpack.c.l.b16 %v1351
        %v2457 = vunpack.c.l.b16 %v1352
        %v2458 = vunpack.c.l.b16 %v1353
        %v2459 = vunpack.c.l.b16 %v1354
        %v2460 = vunpack.c.l.b16 %v1355
        %v2461 = vunpack.c.l.b16 %v1356
        %v2462 = vunpack.c.l.b16 %v1357
        %v2463 = vunpack.c.l.b16 %v1358
        %v2464 = vunpack.c.l.b16 %v1359
        %v2465 = vunpack.c.l.b16 %v1360
        %v2466 = vunpack.c.l.b16 %v1361
        %v2467 = vunpack.c.l.b16 %v1362
        %v2468 = vunpack.c.l.b16 %v1363
        %v2469 = vunpack.c.l.b16 %v1364
        %v2470 = vunpack.c.l.b16 %v1365
        %v2471 = vpack.c.b16 %v2424, %v2423
        %v2472 = vpack.c.b16 %v2425, %v2425
        %v2473 = vpack.c.b16 %v2427, %v2426
        %v2474 = vpack.c.b16 %v2428, %v2428
        %v2475 = vpack.c.b16 %v2430, %v2429
        %v2476 = vpack.c.b16 %v2431, %v2431
        %v2477 = vpack.c.b16 %v2433, %v2432
        %v2478 = vpack.c.b16 %v2434, %v2434
        %v2479 = vpack.c.b16 %v2436, %v2435
        %v2480 = vpack.c.b16 %v2437, %v2437
        %v2481 = vpack.c.b16 %v2439, %v2438
        %v2482 = vpack.c.b16 %v2440, %v2440
        %v2483 = vpack.c.b16 %v2442, %v2441
        %v2484 = vpack.c.b16 %v2443, %v2443
        %v2485 = vpack.c.b16 %v2445, %v2444
        %v2486 = vpack.c.b16 %v2446, %v2446
        %v2487 = vpack.c.b16 %v2448, %v2447
        %v2488 = vpack.c.b16 %v2449, %v2449
        %v2489 = vpack.c.b16 %v2451, %v2450
        %v2490 = vpack.c.b16 %v2452, %v2452
        %v2491 = vpack.c.b16 %v2454, %v2453
        %v2492 = vpack.c.b16 %v2455, %v2455
        %v2493 = vpack.c.b16 %v2457, %v2456
        %v2494 = vpack.c.b16 %v2458, %v2458
        %v2495 = vpack.c.b16 %v2460, %v2459
        %v2496 = vpack.c.b16 %v2461, %v2461
        %v2497 = vpack.c.b16 %v2463, %v2462
        %v2498 = vpack.c.b16 %v2464, %v2464
        %v2499 = vpack.c.b16 %v2466, %v2465
        %v2500 = vpack.c.b16 %v2467, %v2467
        %v2501 = vpack.c.b16 %v2469, %v2468
        %v2502 = vpack.c.b16 %v2470, %v2470
        %2503 = vrot.lane.b32.xlu0 %v2471, 48
        %v2504 = vpop.permute.xlu0 %2503
        %2505 = vrot.lane.b32.xlu0 %v2472, 48
        %v2506 = vpop.permute.xlu0 %2505
        %2507 = vrot.lane.b32.xlu0 %v2473, 48
        %v2508 = vpop.permute.xlu0 %2507
        %2509 = vrot.lane.b32.xlu0 %v2474, 48
        %v2510 = vpop.permute.xlu0 %2509
        %2511 = vrot.lane.b32.xlu0 %v2475, 48
        %v2512 = vpop.permute.xlu0 %2511
        %2513 = vrot.lane.b32.xlu0 %v2476, 48
        %v2514 = vpop.permute.xlu0 %2513
        %2515 = vrot.lane.b32.xlu0 %v2477, 48
        %v2516 = vpop.permute.xlu0 %2515
        %2517 = vrot.lane.b32.xlu0 %v2478, 48
        %v2518 = vpop.permute.xlu0 %2517
        %2519 = vrot.lane.b32.xlu0 %v2479, 48
        %v2520 = vpop.permute.xlu0 %2519
        %2521 = vrot.lane.b32.xlu0 %v2480, 48
        %v2522 = vpop.permute.xlu0 %2521
        %2523 = vrot.lane.b32.xlu0 %v2481, 48
        %v2524 = vpop.permute.xlu0 %2523
        %2525 = vrot.lane.b32.xlu0 %v2482, 48
        %v2526 = vpop.permute.xlu0 %2525
        %2527 = vrot.lane.b32.xlu0 %v2483, 48
        %v2528 = vpop.permute.xlu0 %2527
        %2529 = vrot.lane.b32.xlu0 %v2484, 48
        %v2530 = vpop.permute.xlu0 %2529
        %2531 = vrot.lane.b32.xlu0 %v2485, 48
        %v2532 = vpop.permute.xlu0 %2531
        %2533 = vrot.lane.b32.xlu0 %v2486, 48
        %v2534 = vpop.permute.xlu0 %2533
        %2535 = vrot.lane.b32.xlu0 %v2487, 48
        %v2536 = vpop.permute.xlu0 %2535
        %2537 = vrot.lane.b32.xlu0 %v2488, 48
        %v2538 = vpop.permute.xlu0 %2537
        %2539 = vrot.lane.b32.xlu0 %v2489, 48
        %v2540 = vpop.permute.xlu0 %2539
        %2541 = vrot.lane.b32.xlu0 %v2490, 48
        %v2542 = vpop.permute.xlu0 %2541
        %2543 = vrot.lane.b32.xlu0 %v2491, 48
        %v2544 = vpop.permute.xlu0 %2543
        %2545 = vrot.lane.b32.xlu0 %v2492, 48
        %v2546 = vpop.permute.xlu0 %2545
        %2547 = vrot.lane.b32.xlu0 %v2493, 48
        %v2548 = vpop.permute.xlu0 %2547
        %2549 = vrot.lane.b32.xlu0 %v2494, 48
        %v2550 = vpop.permute.xlu0 %2549
        %2551 = vrot.lane.b32.xlu0 %v2495, 48
        %v2552 = vpop.permute.xlu0 %2551
        %2553 = vrot.lane.b32.xlu0 %v2496, 48
        %v2554 = vpop.permute.xlu0 %2553
        %2555 = vrot.lane.b32.xlu0 %v2497, 48
        %v2556 = vpop.permute.xlu0 %2555
        %2557 = vrot.lane.b32.xlu0 %v2498, 48
        %v2558 = vpop.permute.xlu0 %2557
        %2559 = vrot.lane.b32.xlu0 %v2499, 48
        %v2560 = vpop.permute.xlu0 %2559
        %2561 = vrot.lane.b32.xlu0 %v2500, 48
        %v2562 = vpop.permute.xlu0 %2561
        %2563 = vrot.lane.b32.xlu0 %v2501, 48
        %v2564 = vpop.permute.xlu0 %2563
        %2565 = vrot.lane.b32.xlu0 %v2502, 48
        %v2566 = vpop.permute.xlu0 %2565
        %v2615 = vunpack.c.l.b16 %v1366
        %v2616 = vunpack.c.l.b16 %v1367
        %v2617 = vunpack.c.l.b16 %v1368
        %v2618 = vunpack.c.l.b16 %v1369
        %v2619 = vunpack.c.l.b16 %v1370
        %v2620 = vunpack.c.l.b16 %v1371
        %v2621 = vunpack.c.l.b16 %v1372
        %v2622 = vunpack.c.l.b16 %v1373
        %v2623 = vunpack.c.l.b16 %v1374
        %v2624 = vunpack.c.l.b16 %v1375
        %v2625 = vunpack.c.l.b16 %v1376
        %v2626 = vunpack.c.l.b16 %v1377
        %v2627 = vunpack.c.l.b16 %v1378
        %v2628 = vunpack.c.l.b16 %v1379
        %v2629 = vunpack.c.l.b16 %v1380
        %v2630 = vunpack.c.l.b16 %v1381
        %v2631 = vunpack.c.l.b16 %v1382
        %v2632 = vunpack.c.l.b16 %v1383
        %v2633 = vunpack.c.l.b16 %v1384
        %v2634 = vunpack.c.l.b16 %v1385
        %v2635 = vunpack.c.l.b16 %v1386
        %v2636 = vunpack.c.l.b16 %v1387
        %v2637 = vunpack.c.l.b16 %v1388
        %v2638 = vunpack.c.l.b16 %v1389
        %v2639 = vunpack.c.l.b16 %v1390
        %v2640 = vunpack.c.l.b16 %v1391
        %v2641 = vunpack.c.l.b16 %v1392
        %v2642 = vunpack.c.l.b16 %v1393
        %v2643 = vunpack.c.l.b16 %v1394
        %v2644 = vunpack.c.l.b16 %v1395
        %v2645 = vunpack.c.l.b16 %v1396
        %v2646 = vunpack.c.l.b16 %v1397
        %v2647 = vunpack.c.l.b16 %v1398
        %v2648 = vunpack.c.l.b16 %v1399
        %v2649 = vunpack.c.l.b16 %v1400
        %v2650 = vunpack.c.l.b16 %v1401
        %v2651 = vunpack.c.l.b16 %v1402
        %v2652 = vunpack.c.l.b16 %v1403
        %v2653 = vunpack.c.l.b16 %v1404
        %v2654 = vunpack.c.l.b16 %v1405
        %v2655 = vunpack.c.l.b16 %v1406
        %v2656 = vunpack.c.l.b16 %v1407
        %v2657 = vunpack.c.l.b16 %v1408
        %v2658 = vunpack.c.l.b16 %v1409
        %v2659 = vunpack.c.l.b16 %v1410
        %v2660 = vunpack.c.l.b16 %v1411
        %v2661 = vunpack.c.l.b16 %v1412
        %v2662 = vunpack.c.l.b16 %v1413
        %v2663 = vpack.c.b16 %v2616, %v2615
        %v2664 = vpack.c.b16 %v2617, %v2617
        %v2665 = vpack.c.b16 %v2619, %v2618
        %v2666 = vpack.c.b16 %v2620, %v2620
        %v2667 = vpack.c.b16 %v2622, %v2621
        %v2668 = vpack.c.b16 %v2623, %v2623
        %v2669 = vpack.c.b16 %v2625, %v2624
        %v2670 = vpack.c.b16 %v2626, %v2626
        %v2671 = vpack.c.b16 %v2628, %v2627
        %v2672 = vpack.c.b16 %v2629, %v2629
        %v2673 = vpack.c.b16 %v2631, %v2630
        %v2674 = vpack.c.b16 %v2632, %v2632
        %v2675 = vpack.c.b16 %v2634, %v2633
        %v2676 = vpack.c.b16 %v2635, %v2635
        %v2677 = vpack.c.b16 %v2637, %v2636
        %v2678 = vpack.c.b16 %v2638, %v2638
        %v2679 = vpack.c.b16 %v2640, %v2639
        %v2680 = vpack.c.b16 %v2641, %v2641
        %v2681 = vpack.c.b16 %v2643, %v2642
        %v2682 = vpack.c.b16 %v2644, %v2644
        %v2683 = vpack.c.b16 %v2646, %v2645
        %v2684 = vpack.c.b16 %v2647, %v2647
        %v2685 = vpack.c.b16 %v2649, %v2648
        %v2686 = vpack.c.b16 %v2650, %v2650
        %v2687 = vpack.c.b16 %v2652, %v2651
        %v2688 = vpack.c.b16 %v2653, %v2653
        %v2689 = vpack.c.b16 %v2655, %v2654
        %v2690 = vpack.c.b16 %v2656, %v2656
        %v2691 = vpack.c.b16 %v2658, %v2657
        %v2692 = vpack.c.b16 %v2659, %v2659
        %v2693 = vpack.c.b16 %v2661, %v2660
        %v2694 = vpack.c.b16 %v2662, %v2662
        %v2695 = vrot.slane %v2663, 7
        %v2696 = vrot.slane %v2664, 7
        %v2697 = vsel %vm1686, %v2695, %v2696
        %v2698 = vrot.slane %v2665, 7
        %v2699 = vrot.slane %v2666, 7
        %v2700 = vsel %vm1686, %v2698, %v2699
        %v2701 = vrot.slane %v2667, 7
        %v2702 = vrot.slane %v2668, 7
        %v2703 = vsel %vm1686, %v2701, %v2702
        %v2704 = vrot.slane %v2669, 7
        %v2705 = vrot.slane %v2670, 7
        %v2706 = vsel %vm1686, %v2704, %v2705
        %v2707 = vrot.slane %v2671, 7
        %v2708 = vrot.slane %v2672, 7
        %v2709 = vsel %vm1686, %v2707, %v2708
        %v2710 = vrot.slane %v2673, 7
        %v2711 = vrot.slane %v2674, 7
        %v2712 = vsel %vm1686, %v2710, %v2711
        %v2713 = vrot.slane %v2675, 7
        %v2714 = vrot.slane %v2676, 7
        %v2715 = vsel %vm1686, %v2713, %v2714
        %v2716 = vrot.slane %v2677, 7
        %v2717 = vrot.slane %v2678, 7
        %v2718 = vsel %vm1686, %v2716, %v2717
        %v2719 = vrot.slane %v2679, 7
        %v2720 = vrot.slane %v2680, 7
        %v2721 = vsel %vm1686, %v2719, %v2720
        %v2722 = vrot.slane %v2681, 7
        %v2723 = vrot.slane %v2682, 7
        %v2724 = vsel %vm1686, %v2722, %v2723
        %v2725 = vrot.slane %v2683, 7
        %v2726 = vrot.slane %v2684, 7
        %v2727 = vsel %vm1686, %v2725, %v2726
        %v2728 = vrot.slane %v2685, 7
        %v2729 = vrot.slane %v2686, 7
        %v2730 = vsel %vm1686, %v2728, %v2729
        %v2731 = vrot.slane %v2687, 7
        %v2732 = vrot.slane %v2688, 7
        %v2733 = vsel %vm1686, %v2731, %v2732
        %v2734 = vrot.slane %v2689, 7
        %v2735 = vrot.slane %v2690, 7
        %v2736 = vsel %vm1686, %v2734, %v2735
        %v2737 = vrot.slane %v2691, 7
        %v2738 = vrot.slane %v2692, 7
        %v2739 = vsel %vm1686, %v2737, %v2738
        %v2740 = vrot.slane %v2693, 7
        %v2741 = vrot.slane %v2694, 7
        %v2742 = vsel %vm1686, %v2740, %v2741
        %2743 = vrot.lane.b32.xlu0 %v2695, 56
        %v2744 = vpop.permute.xlu0 %2743
        %2745 = vrot.lane.b32.xlu0 %v2697, 56
        %v2746 = vpop.permute.xlu0 %2745
        %2747 = vrot.lane.b32.xlu0 %v2698, 56
        %v2748 = vpop.permute.xlu0 %2747
        %2749 = vrot.lane.b32.xlu0 %v2700, 56
        %v2750 = vpop.permute.xlu0 %2749
        %2751 = vrot.lane.b32.xlu0 %v2701, 56
        %v2752 = vpop.permute.xlu0 %2751
        %2753 = vrot.lane.b32.xlu0 %v2703, 56
        %v2754 = vpop.permute.xlu0 %2753
        %2755 = vrot.lane.b32.xlu0 %v2704, 56
        %v2756 = vpop.permute.xlu0 %2755
        %2757 = vrot.lane.b32.xlu0 %v2706, 56
        %v2758 = vpop.permute.xlu0 %2757
        %2759 = vrot.lane.b32.xlu0 %v2707, 56
        %v2760 = vpop.permute.xlu0 %2759
        %2761 = vrot.lane.b32.xlu0 %v2709, 56
        %v2762 = vpop.permute.xlu0 %2761
        %2763 = vrot.lane.b32.xlu0 %v2710, 56
        %v2764 = vpop.permute.xlu0 %2763
        %2765 = vrot.lane.b32.xlu0 %v2712, 56
        %v2766 = vpop.permute.xlu0 %2765
        %2767 = vrot.lane.b32.xlu0 %v2713, 56
        %v2768 = vpop.permute.xlu0 %2767
        %2769 = vrot.lane.b32.xlu0 %v2715, 56
        %v2770 = vpop.permute.xlu0 %2769
        %2771 = vrot.lane.b32.xlu0 %v2716, 56
        %v2772 = vpop.permute.xlu0 %2771
        %2773 = vrot.lane.b32.xlu0 %v2718, 56
        %v2774 = vpop.permute.xlu0 %2773
        %2775 = vrot.lane.b32.xlu0 %v2719, 56
        %v2776 = vpop.permute.xlu0 %2775
        %2777 = vrot.lane.b32.xlu0 %v2721, 56
        %v2778 = vpop.permute.xlu0 %2777
        %2779 = vrot.lane.b32.xlu0 %v2722, 56
        %v2780 = vpop.permute.xlu0 %2779
        %2781 = vrot.lane.b32.xlu0 %v2724, 56
        %v2782 = vpop.permute.xlu0 %2781
        %2783 = vrot.lane.b32.xlu0 %v2725, 56
        %v2784 = vpop.permute.xlu0 %2783
        %2785 = vrot.lane.b32.xlu0 %v2727, 56
        %v2786 = vpop.permute.xlu0 %2785
        %2787 = vrot.lane.b32.xlu0 %v2728, 56
        %v2788 = vpop.permute.xlu0 %2787
        %2789 = vrot.lane.b32.xlu0 %v2730, 56
        %v2790 = vpop.permute.xlu0 %2789
        %2791 = vrot.lane.b32.xlu0 %v2731, 56
        %v2792 = vpop.permute.xlu0 %2791
        %2793 = vrot.lane.b32.xlu0 %v2733, 56
        %v2794 = vpop.permute.xlu0 %2793
        %2795 = vrot.lane.b32.xlu0 %v2734, 56
        %v2796 = vpop.permute.xlu0 %2795
        %2797 = vrot.lane.b32.xlu0 %v2736, 56
        %v2798 = vpop.permute.xlu0 %2797
        %2799 = vrot.lane.b32.xlu0 %v2737, 56
        %v2800 = vpop.permute.xlu0 %2799
        %2801 = vrot.lane.b32.xlu0 %v2739, 56
        %v2802 = vpop.permute.xlu0 %2801
        %2803 = vrot.lane.b32.xlu0 %v2740, 56
        %v2804 = vpop.permute.xlu0 %2803
        %2805 = vrot.lane.b32.xlu0 %v2742, 56
        %v2806 = vpop.permute.xlu0 %2805
        %v2823 = vunpack.c.l.b16 %v1414
        %v2824 = vunpack.c.l.b16 %v1415
        %v2825 = vunpack.c.l.b16 %v1416
        %v2826 = vunpack.c.l.b16 %v1417
        %v2827 = vunpack.c.l.b16 %v1418
        %v2828 = vunpack.c.l.b16 %v1419
        %v2829 = vunpack.c.l.b16 %v1420
        %v2830 = vunpack.c.l.b16 %v1421
        %v2831 = vunpack.c.l.b16 %v1422
        %v2832 = vunpack.c.l.b16 %v1423
        %v2833 = vunpack.c.l.b16 %v1424
        %v2834 = vunpack.c.l.b16 %v1425
        %v2835 = vunpack.c.l.b16 %v1426
        %v2836 = vunpack.c.l.b16 %v1427
        %v2837 = vunpack.c.l.b16 %v1428
        %v2838 = vunpack.c.l.b16 %v1429
        %v2839 = vpack.c.b16 %v2823, %v2616
        %v2840 = vpack.c.b16 %v2824, %v2619
        %v2841 = vpack.c.b16 %v2825, %v2622
        %v2842 = vpack.c.b16 %v2826, %v2625
        %v2843 = vpack.c.b16 %v2827, %v2628
        %v2844 = vpack.c.b16 %v2828, %v2631
        %v2845 = vpack.c.b16 %v2829, %v2634
        %v2846 = vpack.c.b16 %v2830, %v2637
        %v2847 = vpack.c.b16 %v2831, %v2640
        %v2848 = vpack.c.b16 %v2832, %v2643
        %v2849 = vpack.c.b16 %v2833, %v2646
        %v2850 = vpack.c.b16 %v2834, %v2649
        %v2851 = vpack.c.b16 %v2835, %v2652
        %v2852 = vpack.c.b16 %v2836, %v2655
        %v2853 = vpack.c.b16 %v2837, %v2658
        %v2854 = vpack.c.b16 %v2838, %v2661
        %v2855 = vrot.slane %v2839, 6
        %v2856 = vrot.slane %v2840, 6
        %v2857 = vrot.slane %v2841, 6
        %v2858 = vrot.slane %v2842, 6
        %v2859 = vrot.slane %v2843, 6
        %v2860 = vrot.slane %v2844, 6
        %v2861 = vrot.slane %v2845, 6
        %v2862 = vrot.slane %v2846, 6
        %v2863 = vrot.slane %v2847, 6
        %v2864 = vrot.slane %v2848, 6
        %v2865 = vrot.slane %v2849, 6
        %v2866 = vrot.slane %v2850, 6
        %v2867 = vrot.slane %v2851, 6
        %v2868 = vrot.slane %v2852, 6
        %v2869 = vrot.slane %v2853, 6
        %v2870 = vrot.slane %v2854, 6
        %2871 = vrot.lane.b32.xlu0 %v2855, 64
        %v2872 = vpop.permute.xlu0 %2871
        %2873 = vrot.lane.b32.xlu0 %v2856, 64
        %v2874 = vpop.permute.xlu0 %2873
        %2875 = vrot.lane.b32.xlu0 %v2857, 64
        %v2876 = vpop.permute.xlu0 %2875
        %2877 = vrot.lane.b32.xlu0 %v2858, 64
        %v2878 = vpop.permute.xlu0 %2877
        %2879 = vrot.lane.b32.xlu0 %v2859, 64
        %v2880 = vpop.permute.xlu0 %2879
        %2881 = vrot.lane.b32.xlu0 %v2860, 64
        %v2882 = vpop.permute.xlu0 %2881
        %2883 = vrot.lane.b32.xlu0 %v2861, 64
        %v2884 = vpop.permute.xlu0 %2883
        %2885 = vrot.lane.b32.xlu0 %v2862, 64
        %v2886 = vpop.permute.xlu0 %2885
        %2887 = vrot.lane.b32.xlu0 %v2863, 64
        %v2888 = vpop.permute.xlu0 %2887
        %2889 = vrot.lane.b32.xlu0 %v2864, 64
        %v2890 = vpop.permute.xlu0 %2889
        %2891 = vrot.lane.b32.xlu0 %v2865, 64
        %v2892 = vpop.permute.xlu0 %2891
        %2893 = vrot.lane.b32.xlu0 %v2866, 64
        %v2894 = vpop.permute.xlu0 %2893
        %2895 = vrot.lane.b32.xlu0 %v2867, 64
        %v2896 = vpop.permute.xlu0 %2895
        %2897 = vrot.lane.b32.xlu0 %v2868, 64
        %v2898 = vpop.permute.xlu0 %2897
        %2899 = vrot.lane.b32.xlu0 %v2869, 64
        %v2900 = vpop.permute.xlu0 %2899
        %2901 = vrot.lane.b32.xlu0 %v2870, 64
        %v2902 = vpop.permute.xlu0 %2901
        %v2905 = vsel %vm609, %v1526, %v1736
        %v2908 = vsel %vm609, %v1527, %v1738
        %v2911 = vsel %vm609, %v1528, %v1740
        %v2914 = vsel %vm609, %v1529, %v1742
        %v2917 = vsel %vm609, %v1530, %v1744
        %v2920 = vsel %vm609, %v1531, %v1746
        %v2923 = vsel %vm609, %v1532, %v1748
        %v2926 = vsel %vm609, %v1533, %v1750
        %v2929 = vsel %vm609, %v1534, %v1752
        %v2932 = vsel %vm609, %v1535, %v1754
        %v2935 = vsel %vm609, %v1536, %v1756
        %v2938 = vsel %vm609, %v1537, %v1758
        %v2941 = vsel %vm609, %v1538, %v1760
        %v2944 = vsel %vm609, %v1539, %v1762
        %v2947 = vsel %vm609, %v1540, %v1764
        %v2950 = vsel %vm609, %v1541, %v1766
        %v2953 = vsel %vm609, %v1542, %v1768
        %v2956 = vsel %vm609, %v1543, %v1770
        %v2959 = vsel %vm609, %v1544, %v1772
        %v2962 = vsel %vm609, %v1545, %v1774
        %v2965 = vsel %vm609, %v1546, %v1776
        %v2968 = vsel %vm609, %v1547, %v1778
        %v2971 = vsel %vm609, %v1548, %v1780
        %v2974 = vsel %vm609, %v1549, %v1782
        %v2977 = vsel %vm609, %v1550, %v1784
        %v2980 = vsel %vm609, %v1551, %v1786
        %v2983 = vsel %vm609, %v1552, %v1788
        %v2986 = vsel %vm609, %v1553, %v1790
        %v2989 = vsel %vm609, %v1554, %v1792
        %v2992 = vsel %vm609, %v1555, %v1794
        %v2995 = vsel %vm609, %v1556, %v1796
        %v2998 = vsel %vm609, %v1557, %v1798
        %vm2999 = vcmask 130048
        %v3001 = vsel %vm2999, %v2905, %v1864
        %v3002 = vsel %vm2999, %v2908, %v1864
        %v3004 = vsel %vm2999, %v2911, %v1866
        %v3005 = vsel %vm2999, %v2914, %v1866
        %v3007 = vsel %vm2999, %v2917, %v1868
        %v3008 = vsel %vm2999, %v2920, %v1868
        %v3010 = vsel %vm2999, %v2923, %v1870
        %v3011 = vsel %vm2999, %v2926, %v1870
        %v3013 = vsel %vm2999, %v2929, %v1872
        %v3014 = vsel %vm2999, %v2932, %v1872
        %v3016 = vsel %vm2999, %v2935, %v1874
        %v3017 = vsel %vm2999, %v2938, %v1874
        %v3019 = vsel %vm2999, %v2941, %v1876
        %v3020 = vsel %vm2999, %v2944, %v1876
        %v3022 = vsel %vm2999, %v2947, %v1878
        %v3023 = vsel %vm2999, %v2950, %v1878
        %v3025 = vsel %vm2999, %v2953, %v1880
        %v3026 = vsel %vm2999, %v2956, %v1880
        %v3028 = vsel %vm2999, %v2959, %v1882
        %v3029 = vsel %vm2999, %v2962, %v1882
        %v3031 = vsel %vm2999, %v2965, %v1884
        %v3032 = vsel %vm2999, %v2968, %v1884
        %v3034 = vsel %vm2999, %v2971, %v1886
        %v3035 = vsel %vm2999, %v2974, %v1886
        %v3037 = vsel %vm2999, %v2977, %v1888
        %v3038 = vsel %vm2999, %v2980, %v1888
        %v3040 = vsel %vm2999, %v2983, %v1890
        %v3041 = vsel %vm2999, %v2986, %v1890
        %v3043 = vsel %vm2999, %v2989, %v1892
        %v3044 = vsel %vm2999, %v2992, %v1892
        %v3046 = vsel %vm2999, %v2995, %v1894
        %v3047 = vsel %vm2999, %v2998, %v1894
        %vm3048 = vcmask 195584
        %v3050 = vsel %vm3048, %v3001, %v2024
        %v3052 = vsel %vm3048, %v3002, %v2026
        %v3054 = vsel %vm3048, %v3004, %v2028
        %v3056 = vsel %vm3048, %v3005, %v2030
        %v3058 = vsel %vm3048, %v3007, %v2032
        %v3060 = vsel %vm3048, %v3008, %v2034
        %v3062 = vsel %vm3048, %v3010, %v2036
        %v3064 = vsel %vm3048, %v3011, %v2038
        %v3066 = vsel %vm3048, %v3013, %v2040
        %v3068 = vsel %vm3048, %v3014, %v2042
        %v3070 = vsel %vm3048, %v3016, %v2044
        %v3072 = vsel %vm3048, %v3017, %v2046
        %v3074 = vsel %vm3048, %v3019, %v2048
        %v3076 = vsel %vm3048, %v3020, %v2050
        %v3078 = vsel %vm3048, %v3022, %v2052
        %v3080 = vsel %vm3048, %v3023, %v2054
        %v3082 = vsel %vm3048, %v3025, %v2056
        %v3084 = vsel %vm3048, %v3026, %v2058
        %v3086 = vsel %vm3048, %v3028, %v2060
        %v3088 = vsel %vm3048, %v3029, %v2062
        %v3090 = vsel %vm3048, %v3031, %v2064
        %v3092 = vsel %vm3048, %v3032, %v2066
        %v3094 = vsel %vm3048, %v3034, %v2068
        %v3096 = vsel %vm3048, %v3035, %v2070
        %v3098 = vsel %vm3048, %v3037, %v2072
        %v3100 = vsel %vm3048, %v3038, %v2074
        %v3102 = vsel %vm3048, %v3040, %v2076
        %v3104 = vsel %vm3048, %v3041, %v2078
        %v3106 = vsel %vm3048, %v3043, %v2080
        %v3108 = vsel %vm3048, %v3044, %v2082
        %v3110 = vsel %vm3048, %v3046, %v2084
        %v3112 = vsel %vm3048, %v3047, %v2086
        %vm3113 = vcmask 261120
        %v3115 = vsel %vm3113, %v3050, %v2216
        %v3117 = vsel %vm3113, %v3052, %v2218
        %v3119 = vsel %vm3113, %v3054, %v2220
        %v3121 = vsel %vm3113, %v3056, %v2222
        %v3123 = vsel %vm3113, %v3058, %v2224
        %v3125 = vsel %vm3113, %v3060, %v2226
        %v3127 = vsel %vm3113, %v3062, %v2228
        %v3129 = vsel %vm3113, %v3064, %v2230
        %v3131 = vsel %vm3113, %v3066, %v2232
        %v3133 = vsel %vm3113, %v3068, %v2234
        %v3135 = vsel %vm3113, %v3070, %v2236
        %v3137 = vsel %vm3113, %v3072, %v2238
        %v3139 = vsel %vm3113, %v3074, %v2240
        %v3141 = vsel %vm3113, %v3076, %v2242
        %v3143 = vsel %vm3113, %v3078, %v2244
        %v3145 = vsel %vm3113, %v3080, %v2246
        %v3147 = vsel %vm3113, %v3082, %v2248
        %v3149 = vsel %vm3113, %v3084, %v2250
        %v3151 = vsel %vm3113, %v3086, %v2252
        %v3153 = vsel %vm3113, %v3088, %v2254
        %v3155 = vsel %vm3113, %v3090, %v2256
        %v3157 = vsel %vm3113, %v3092, %v2258
        %v3159 = vsel %vm3113, %v3094, %v2260
        %v3161 = vsel %vm3113, %v3096, %v2262
        %v3163 = vsel %vm3113, %v3098, %v2264
        %v3165 = vsel %vm3113, %v3100, %v2266
        %v3167 = vsel %vm3113, %v3102, %v2268
        %v3169 = vsel %vm3113, %v3104, %v2270
        %v3171 = vsel %vm3113, %v3106, %v2272
        %v3173 = vsel %vm3113, %v3108, %v2274
        %v3175 = vsel %vm3113, %v3110, %v2276
        %v3177 = vsel %vm3113, %v3112, %v2278
        %vm3178 = vcmask 326656
        %v3180 = vsel %vm3178, %v3115, %v2344
        %v3181 = vsel %vm3178, %v3117, %v2344
        %v3183 = vsel %vm3178, %v3119, %v2346
        %v3184 = vsel %vm3178, %v3121, %v2346
        %v3186 = vsel %vm3178, %v3123, %v2348
        %v3187 = vsel %vm3178, %v3125, %v2348
        %v3189 = vsel %vm3178, %v3127, %v2350
        %v3190 = vsel %vm3178, %v3129, %v2350
        %v3192 = vsel %vm3178, %v3131, %v2352
        %v3193 = vsel %vm3178, %v3133, %v2352
        %v3195 = vsel %vm3178, %v3135, %v2354
        %v3196 = vsel %vm3178, %v3137, %v2354
        %v3198 = vsel %vm3178, %v3139, %v2356
        %v3199 = vsel %vm3178, %v3141, %v2356
        %v3201 = vsel %vm3178, %v3143, %v2358
        %v3202 = vsel %vm3178, %v3145, %v2358
        %v3204 = vsel %vm3178, %v3147, %v2360
        %v3205 = vsel %vm3178, %v3149, %v2360
        %v3207 = vsel %vm3178, %v3151, %v2362
        %v3208 = vsel %vm3178, %v3153, %v2362
        %v3210 = vsel %vm3178, %v3155, %v2364
        %v3211 = vsel %vm3178, %v3157, %v2364
        %v3213 = vsel %vm3178, %v3159, %v2366
        %v3214 = vsel %vm3178, %v3161, %v2366
        %v3216 = vsel %vm3178, %v3163, %v2368
        %v3217 = vsel %vm3178, %v3165, %v2368
        %v3219 = vsel %vm3178, %v3167, %v2370
        %v3220 = vsel %vm3178, %v3169, %v2370
        %v3222 = vsel %vm3178, %v3171, %v2372
        %v3223 = vsel %vm3178, %v3173, %v2372
        %v3225 = vsel %vm3178, %v3175, %v2374
        %v3226 = vsel %vm3178, %v3177, %v2374
        %vm3227 = vcmask 392192
        %v3229 = vsel %vm3227, %v3180, %v2504
        %v3231 = vsel %vm3227, %v3181, %v2506
        %v3233 = vsel %vm3227, %v3183, %v2508
        %v3235 = vsel %vm3227, %v3184, %v2510
        %v3237 = vsel %vm3227, %v3186, %v2512
        %v3239 = vsel %vm3227, %v3187, %v2514
        %v3241 = vsel %vm3227, %v3189, %v2516
        %v3243 = vsel %vm3227, %v3190, %v2518
        %v3245 = vsel %vm3227, %v3192, %v2520
        %v3247 = vsel %vm3227, %v3193, %v2522
        %v3249 = vsel %vm3227, %v3195, %v2524
        %v3251 = vsel %vm3227, %v3196, %v2526
        %v3253 = vsel %vm3227, %v3198, %v2528
        %v3255 = vsel %vm3227, %v3199, %v2530
        %v3257 = vsel %vm3227, %v3201, %v2532
        %v3259 = vsel %vm3227, %v3202, %v2534
        %v3261 = vsel %vm3227, %v3204, %v2536
        %v3263 = vsel %vm3227, %v3205, %v2538
        %v3265 = vsel %vm3227, %v3207, %v2540
        %v3267 = vsel %vm3227, %v3208, %v2542
        %v3269 = vsel %vm3227, %v3210, %v2544
        %v3271 = vsel %vm3227, %v3211, %v2546
        %v3273 = vsel %vm3227, %v3213, %v2548
        %v3275 = vsel %vm3227, %v3214, %v2550
        %v3277 = vsel %vm3227, %v3216, %v2552
        %v3279 = vsel %vm3227, %v3217, %v2554
        %v3281 = vsel %vm3227, %v3219, %v2556
        %v3283 = vsel %vm3227, %v3220, %v2558
        %v3285 = vsel %vm3227, %v3222, %v2560
        %v3287 = vsel %vm3227, %v3223, %v2562
        %v3289 = vsel %vm3227, %v3225, %v2564
        %v3291 = vsel %vm3227, %v3226, %v2566
        %vm3292 = vcmask 457728
        %v3294 = vsel %vm3292, %v3229, %v2744
        %v3296 = vsel %vm3292, %v3231, %v2746
        %v3298 = vsel %vm3292, %v3233, %v2748
        %v3300 = vsel %vm3292, %v3235, %v2750
        %v3302 = vsel %vm3292, %v3237, %v2752
        %v3304 = vsel %vm3292, %v3239, %v2754
        %v3306 = vsel %vm3292, %v3241, %v2756
        %v3308 = vsel %vm3292, %v3243, %v2758
        %v3310 = vsel %vm3292, %v3245, %v2760
        %v3312 = vsel %vm3292, %v3247, %v2762
        %v3314 = vsel %vm3292, %v3249, %v2764
        %v3316 = vsel %vm3292, %v3251, %v2766
        %v3318 = vsel %vm3292, %v3253, %v2768
        %v3320 = vsel %vm3292, %v3255, %v2770
        %v3322 = vsel %vm3292, %v3257, %v2772
        %v3324 = vsel %vm3292, %v3259, %v2774
        %v3326 = vsel %vm3292, %v3261, %v2776
        %v3328 = vsel %vm3292, %v3263, %v2778
        %v3330 = vsel %vm3292, %v3265, %v2780
        %v3332 = vsel %vm3292, %v3267, %v2782
        %v3334 = vsel %vm3292, %v3269, %v2784
        %v3336 = vsel %vm3292, %v3271, %v2786
        %v3338 = vsel %vm3292, %v3273, %v2788
        %v3340 = vsel %vm3292, %v3275, %v2790
        %v3342 = vsel %vm3292, %v3277, %v2792
        %v3344 = vsel %vm3292, %v3279, %v2794
        %v3346 = vsel %vm3292, %v3281, %v2796
        %v3348 = vsel %vm3292, %v3283, %v2798
        %v3350 = vsel %vm3292, %v3285, %v2800
        %v3352 = vsel %vm3292, %v3287, %v2802
        %v3354 = vsel %vm3292, %v3289, %v2804
        %v3356 = vsel %vm3292, %v3291, %v2806
        %vm3357 = vcmask 523264
        %v3359 = vsel %vm3357, %v3294, %v2872
        %v3360 = vsel %vm3357, %v3296, %v2872
        %v3362 = vsel %vm3357, %v3298, %v2874
        %v3363 = vsel %vm3357, %v3300, %v2874
        %v3365 = vsel %vm3357, %v3302, %v2876
        %v3366 = vsel %vm3357, %v3304, %v2876
        %v3368 = vsel %vm3357, %v3306, %v2878
        %v3369 = vsel %vm3357, %v3308, %v2878
        %v3371 = vsel %vm3357, %v3310, %v2880
        %v3372 = vsel %vm3357, %v3312, %v2880
        %v3374 = vsel %vm3357, %v3314, %v2882
        %v3375 = vsel %vm3357, %v3316, %v2882
        %v3377 = vsel %vm3357, %v3318, %v2884
        %v3378 = vsel %vm3357, %v3320, %v2884
        %v3380 = vsel %vm3357, %v3322, %v2886
        %v3381 = vsel %vm3357, %v3324, %v2886
        %v3383 = vsel %vm3357, %v3326, %v2888
        %v3384 = vsel %vm3357, %v3328, %v2888
        %v3386 = vsel %vm3357, %v3330, %v2890
        %v3387 = vsel %vm3357, %v3332, %v2890
        %v3389 = vsel %vm3357, %v3334, %v2892
        %v3390 = vsel %vm3357, %v3336, %v2892
        %v3392 = vsel %vm3357, %v3338, %v2894
        %v3393 = vsel %vm3357, %v3340, %v2894
        %v3395 = vsel %vm3357, %v3342, %v2896
        %v3396 = vsel %vm3357, %v3344, %v2896
        %v3398 = vsel %vm3357, %v3346, %v2898
        %v3399 = vsel %vm3357, %v3348, %v2898
        %v3401 = vsel %vm3357, %v3350, %v2900
        %v3402 = vsel %vm3357, %v3352, %v2900
        %v3404 = vsel %vm3357, %v3354, %v2902
        %v3405 = vsel %vm3357, %v3356, %v2902
        %vm3438 = vcmask 1045504
        %v3439 = vrot.slane %v3359, 2
        %v3440 = vrot.slane %v3360, 2
        %v3441 = vsel %vm3438, %v3439, %v3440
        %v3442 = vrot.slane %v3362, 2
        %v3443 = vrot.slane %v3363, 2
        %v3444 = vsel %vm3438, %v3442, %v3443
        %v3445 = vrot.slane %v3365, 2
        %v3446 = vrot.slane %v3366, 2
        %v3447 = vsel %vm3438, %v3445, %v3446
        %v3448 = vrot.slane %v3368, 2
        %v3449 = vrot.slane %v3369, 2
        %v3450 = vsel %vm3438, %v3448, %v3449
        %v3451 = vrot.slane %v3371, 2
        %v3452 = vrot.slane %v3372, 2
        %v3453 = vsel %vm3438, %v3451, %v3452
        %v3454 = vrot.slane %v3374, 2
        %v3455 = vrot.slane %v3375, 2
        %v3456 = vsel %vm3438, %v3454, %v3455
        %v3457 = vrot.slane %v3377, 2
        %v3458 = vrot.slane %v3378, 2
        %v3459 = vsel %vm3438, %v3457, %v3458
        %v3460 = vrot.slane %v3380, 2
        %v3461 = vrot.slane %v3381, 2
        %v3462 = vsel %vm3438, %v3460, %v3461
        %v3463 = vrot.slane %v3383, 2
        %v3464 = vrot.slane %v3384, 2
        %v3465 = vsel %vm3438, %v3463, %v3464
        %v3466 = vrot.slane %v3386, 2
        %v3467 = vrot.slane %v3387, 2
        %v3468 = vsel %vm3438, %v3466, %v3467
        %v3469 = vrot.slane %v3389, 2
        %v3470 = vrot.slane %v3390, 2
        %v3471 = vsel %vm3438, %v3469, %v3470
        %v3472 = vrot.slane %v3392, 2
        %v3473 = vrot.slane %v3393, 2
        %v3474 = vsel %vm3438, %v3472, %v3473
        %v3475 = vrot.slane %v3395, 2
        %v3476 = vrot.slane %v3396, 2
        %v3477 = vsel %vm3438, %v3475, %v3476
        %v3478 = vrot.slane %v3398, 2
        %v3479 = vrot.slane %v3399, 2
        %v3480 = vsel %vm3438, %v3478, %v3479
        %v3481 = vrot.slane %v3401, 2
        %v3482 = vrot.slane %v3402, 2
        %v3483 = vsel %vm3438, %v3481, %v3482
        %v3484 = vrot.slane %v3404, 2
        %v3485 = vrot.slane %v3405, 2
        %v3486 = vsel %vm3438, %v3484, %v3485
        %v3487 = vld [vmem:[%s3] sm:$0xf]
        %v3488 = vld [vmem:[%s3 + $0x4] sm:$0xf]
        %v3489 = vld [vmem:[%s3 + $0x8] sm:$0xf]
        %v3490 = vld [vmem:[%s3 + $0xc] sm:$0xf]
        %v3491 = vld [vmem:[%s3 + $0x10] sm:$0xf]
        %v3492 = vld [vmem:[%s3 + $0x14] sm:$0xf]
        %v3493 = vld [vmem:[%s3 + $0x18] sm:$0xf]
        %v3494 = vld [vmem:[%s3 + $0x1c] sm:$0xf]
        %v3495 = vld [vmem:[%s3 + $0x20] sm:$0xf]
        %v3496 = vld [vmem:[%s6] sm:$0x1]
        %v3497 = vlaneseq
        %v3498 = vshrl.u32 %v3497, 7
        %v3499 = vsub.s32 0, %v3498
        %v3500 = vrot.slane %v3496, %v3499
        %v3510 = vunpack.c.l.b16 %v3487
        %v3511 = vunpack.c.l.b16 %v3488
        %v3512 = vunpack.c.l.b16 %v3489
        %v3513 = vunpack.c.l.b16 %v3490
        %v3514 = vunpack.c.l.b16 %v3491
        %v3515 = vunpack.c.l.b16 %v3492
        %v3516 = vunpack.c.l.b16 %v3493
        %v3517 = vunpack.c.l.b16 %v3494
        %v3518 = vunpack.c.l.b16 %v3495
        %v3519 = vpack.c.b16 %v3511, %v3510
        %v3520 = vpack.c.b16 %v3513, %v3512
        %v3521 = vpack.c.b16 %v3515, %v3514
        %v3522 = vpack.c.b16 %v3517, %v3516
        %v3523 = vpack.c.b16 %v3518, %v3518
        %vm3528 = vcmask 588800
        %v3530 = vsel %vm3528, %v3441, 0
        %v3533 = vsel %vm3528, %v3444, 0
        %v3536 = vsel %vm3528, %v3447, 0
        %v3539 = vsel %vm3528, %v3450, 0
        %v3542 = vsel %vm3528, %v3453, 0
        %v3545 = vsel %vm3528, %v3456, 0
        %v3548 = vsel %vm3528, %v3459, 0
        %v3551 = vsel %vm3528, %v3462, 0
        %v3554 = vsel %vm3528, %v3465, 0
        %v3557 = vsel %vm3528, %v3468, 0
        %v3560 = vsel %vm3528, %v3471, 0
        %v3563 = vsel %vm3528, %v3474, 0
        %v3566 = vsel %vm3528, %v3477, 0
        %v3569 = vsel %vm3528, %v3480, 0
        %v3572 = vsel %vm3528, %v3483, 0
        %v3575 = vsel %vm3528, %v3486, 0
        %v3578 = vsel %vm658, %v3523, 0
        %3580 = vmatprep.subr.bf16.mxu0 0
        %3581 = vmatpush1.bf16.msra.mxu0 0
        %3582 = vmatprep.subr.bf16.mxu0 0
        %3583 = vmatpush1.bf16.msra.mxu0 0
        %3584 = vmatprep.subr.bf16.mxu0 0
        %3585 = vmatpush1.bf16.msra.mxu0 0
        %3586 = vmatprep.subr.bf16.mxu0 0
        %3587 = vmatpush1.bf16.msra.mxu0 %v3578
        %3588 = vmatprep.subr.bf16.mxu0 0
        %3589 = vmatpush1.bf16.msra.mxu0 %v3522
        %3590 = vmatprep.subr.bf16.mxu0 0
        %3591 = vmatpush1.bf16.msra.mxu0 %v3521
        %3592 = vmatprep.subr.bf16.mxu0 0
        %3593 = vmatpush1.bf16.msra.mxu0 %v3520
        %3594 = vmatprep.subr.bf16.mxu0 0
        %3595 = vmatpush1.bf16.msra.mxu0 %v3519
        %3596 = vmatprep.subr.bf16.mxu0 0
        %3597 = vmatpush2.bf16.msra.mxu0 0
        %3598 = vmatprep.subr.bf16.mxu0 0
        %3599 = vmatpush2.bf16.msra.mxu0 0
        %3600 = vmatprep.subr.bf16.mxu0 0
        %3601 = vmatpush2.bf16.msra.mxu0 0
        %3602 = vmatprep.subr.bf16.mxu0 0
        %3603 = vmatpush2.bf16.msra.mxu0 0
        %3604 = vmatprep.subr.bf16.mxu0 0
        %3605 = vmatpush2.bf16.msra.mxu0 0
        %3606 = vmatprep.subr.bf16.mxu0 0
        %3607 = vmatpush2.bf16.msra.mxu0 0
        %3608 = vmatprep.subr.bf16.mxu0 0
        %3609 = vmatpush2.bf16.msra.mxu0 0
        %3610 = vmatprep.subr.bf16.mxu0 0
        %3611 = vmatpush2.bf16.msra.mxu0 0
        %3612 = vmatprep.mubr.bf16.mxu0 0
        %3613 = vmatmul.mubr.bf16.gmra.mxu0 %v3530
        %v3614 = vpop.f32.mrf.mxu0
        %v3615 = vadd.f32 %v3500, %v3614
        %v3616 = vpop.f32.mrf.mxu0
        %v3617 = vpop.f32.mrf.mxu0
        %v3618 = vadd.f32 %v3500, %v3617
        %v3619 = vpop.f32.mrf.mxu0
        %3620 = vmatprep.mubr.bf16.mxu0 0
        %3621 = vmatmul.mubr.bf16.gmra.mxu0 %v3533
        %v3622 = vpop.f32.mrf.mxu0
        %v3623 = vadd.f32 %v3500, %v3622
        %v3624 = vpop.f32.mrf.mxu0
        %v3625 = vpop.f32.mrf.mxu0
        %v3626 = vadd.f32 %v3500, %v3625
        %v3627 = vpop.f32.mrf.mxu0
        %3628 = vmatprep.mubr.bf16.mxu0 0
        %3629 = vmatmul.mubr.bf16.gmra.mxu0 %v3536
        %v3630 = vpop.f32.mrf.mxu0
        %v3631 = vadd.f32 %v3500, %v3630
        %v3632 = vpop.f32.mrf.mxu0
        %v3633 = vpop.f32.mrf.mxu0
        %v3634 = vadd.f32 %v3500, %v3633
        %v3635 = vpop.f32.mrf.mxu0
        %3636 = vmatprep.mubr.bf16.mxu0 0
        %3637 = vmatmul.mubr.bf16.gmra.mxu0 %v3539
        %v3638 = vpop.f32.mrf.mxu0
        %v3639 = vadd.f32 %v3500, %v3638
        %v3640 = vpop.f32.mrf.mxu0
        %v3641 = vpop.f32.mrf.mxu0
        %v3642 = vadd.f32 %v3500, %v3641
        %v3643 = vpop.f32.mrf.mxu0
        %3644 = vmatprep.mubr.bf16.mxu0 0
        %3645 = vmatmul.mubr.bf16.gmra.mxu0 %v3542
        %v3646 = vpop.f32.mrf.mxu0
        %v3647 = vadd.f32 %v3500, %v3646
        %v3648 = vpop.f32.mrf.mxu0
        %v3649 = vpop.f32.mrf.mxu0
        %v3650 = vadd.f32 %v3500, %v3649
        %v3651 = vpop.f32.mrf.mxu0
        %3652 = vmatprep.mubr.bf16.mxu0 0
        %3653 = vmatmul.mubr.bf16.gmra.mxu0 %v3545
        %v3654 = vpop.f32.mrf.mxu0
        %v3655 = vadd.f32 %v3500, %v3654
        %v3656 = vpop.f32.mrf.mxu0
        %v3657 = vpop.f32.mrf.mxu0
        %v3658 = vadd.f32 %v3500, %v3657
        %v3659 = vpop.f32.mrf.mxu0
        %3660 = vmatprep.mubr.bf16.mxu0 0
        %3661 = vmatmul.mubr.bf16.gmra.mxu0 %v3548
        %v3662 = vpop.f32.mrf.mxu0
        %v3663 = vadd.f32 %v3500, %v3662
        %v3664 = vpop.f32.mrf.mxu0
        %v3665 = vpop.f32.mrf.mxu0
        %v3666 = vadd.f32 %v3500, %v3665
        %v3667 = vpop.f32.mrf.mxu0
        %3668 = vmatprep.mubr.bf16.mxu0 0
        %3669 = vmatmul.mubr.bf16.gmra.mxu0 %v3551
        %v3670 = vpop.f32.mrf.mxu0
        %v3671 = vadd.f32 %v3500, %v3670
        %v3672 = vpop.f32.mrf.mxu0
        %v3673 = vpop.f32.mrf.mxu0
        %v3674 = vadd.f32 %v3500, %v3673
        %v3675 = vpop.f32.mrf.mxu0
        %3676 = vmatprep.mubr.bf16.mxu0 0
        %3677 = vmatmul.mubr.bf16.gmra.mxu0 %v3554
        %v3678 = vpop.f32.mrf.mxu0
        %v3679 = vadd.f32 %v3500, %v3678
        %v3680 = vpop.f32.mrf.mxu0
        %v3681 = vpop.f32.mrf.mxu0
        %v3682 = vadd.f32 %v3500, %v3681
        %v3683 = vpop.f32.mrf.mxu0
        %3684 = vmatprep.mubr.bf16.mxu0 0
        %3685 = vmatmul.mubr.bf16.gmra.mxu0 %v3557
        %v3686 = vpop.f32.mrf.mxu0
        %v3687 = vadd.f32 %v3500, %v3686
        %v3688 = vpop.f32.mrf.mxu0
        %v3689 = vpop.f32.mrf.mxu0
        %v3690 = vadd.f32 %v3500, %v3689
        %v3691 = vpop.f32.mrf.mxu0
        %3692 = vmatprep.mubr.bf16.mxu0 0
        %3693 = vmatmul.mubr.bf16.gmra.mxu0 %v3560
        %v3694 = vpop.f32.mrf.mxu0
        %v3695 = vadd.f32 %v3500, %v3694
        %v3696 = vpop.f32.mrf.mxu0
        %v3697 = vpop.f32.mrf.mxu0
        %v3698 = vadd.f32 %v3500, %v3697
        %v3699 = vpop.f32.mrf.mxu0
        %3700 = vmatprep.mubr.bf16.mxu0 0
        %3701 = vmatmul.mubr.bf16.gmra.mxu0 %v3563
        %v3702 = vpop.f32.mrf.mxu0
        %v3703 = vadd.f32 %v3500, %v3702
        %v3704 = vpop.f32.mrf.mxu0
        %v3705 = vpop.f32.mrf.mxu0
        %v3706 = vadd.f32 %v3500, %v3705
        %v3707 = vpop.f32.mrf.mxu0
        %3708 = vmatprep.mubr.bf16.mxu0 0
        %3709 = vmatmul.mubr.bf16.gmra.mxu0 %v3566
        %v3710 = vpop.f32.mrf.mxu0
        %v3711 = vadd.f32 %v3500, %v3710
        %v3712 = vpop.f32.mrf.mxu0
        %v3713 = vpop.f32.mrf.mxu0
        %v3714 = vadd.f32 %v3500, %v3713
        %v3715 = vpop.f32.mrf.mxu0
        %3716 = vmatprep.mubr.bf16.mxu0 0
        %3717 = vmatmul.mubr.bf16.gmra.mxu0 %v3569
        %v3718 = vpop.f32.mrf.mxu0
        %v3719 = vadd.f32 %v3500, %v3718
        %v3720 = vpop.f32.mrf.mxu0
        %v3721 = vpop.f32.mrf.mxu0
        %v3722 = vadd.f32 %v3500, %v3721
        %v3723 = vpop.f32.mrf.mxu0
        %3724 = vmatprep.mubr.bf16.mxu0 0
        %3725 = vmatmul.mubr.bf16.gmra.mxu0 %v3572
        %v3726 = vpop.f32.mrf.mxu0
        %v3727 = vadd.f32 %v3500, %v3726
        %v3728 = vpop.f32.mrf.mxu0
        %v3729 = vpop.f32.mrf.mxu0
        %v3730 = vadd.f32 %v3500, %v3729
        %v3731 = vpop.f32.mrf.mxu0
        %3732 = vmatprep.mubr.bf16.mxu0 0
        %3733 = vmatmul.mubr.bf16.gmra.mxu0 %v3575
        %v3734 = vpop.f32.mrf.mxu0
        %v3735 = vadd.f32 %v3500, %v3734
        %v3736 = vpop.f32.mrf.mxu0
        %v3737 = vpop.f32.mrf.mxu0
        %v3738 = vadd.f32 %v3500, %v3737
        %v3739 = vpop.f32.mrf.mxu0
        %3740 = vdwg.mxu0
        %v3741 = vmax.f32 %v3615, 0.0
        %v3742 = vmax.f32 %v3618, 0.0
        %v3743 = vmax.f32 %v3623, 0.0
        %v3744 = vmax.f32 %v3626, 0.0
        %v3745 = vmax.f32 %v3631, 0.0
        %v3746 = vmax.f32 %v3634, 0.0
        %v3747 = vmax.f32 %v3639, 0.0
        %v3748 = vmax.f32 %v3642, 0.0
        %v3749 = vmax.f32 %v3647, 0.0
        %v3750 = vmax.f32 %v3650, 0.0
        %v3751 = vmax.f32 %v3655, 0.0
        %v3752 = vmax.f32 %v3658, 0.0
        %v3753 = vmax.f32 %v3663, 0.0
        %v3754 = vmax.f32 %v3666, 0.0
        %v3755 = vmax.f32 %v3671, 0.0
        %v3756 = vmax.f32 %v3674, 0.0
        %v3757 = vmax.f32 %v3679, 0.0
        %v3758 = vmax.f32 %v3682, 0.0
        %v3759 = vmax.f32 %v3687, 0.0
        %v3760 = vmax.f32 %v3690, 0.0
        %v3761 = vmax.f32 %v3695, 0.0
        %v3762 = vmax.f32 %v3698, 0.0
        %v3763 = vmax.f32 %v3703, 0.0
        %v3764 = vmax.f32 %v3706, 0.0
        %v3765 = vmax.f32 %v3711, 0.0
        %v3766 = vmax.f32 %v3714, 0.0
        %v3767 = vmax.f32 %v3719, 0.0
        %v3768 = vmax.f32 %v3722, 0.0
        %v3769 = vmax.f32 %v3727, 0.0
        %v3770 = vmax.f32 %v3730, 0.0
        %v3771 = vmax.f32 %v3735, 0.0
        %v3772 = vmax.f32 %v3738, 0.0
        %v3773 = vpack.c.bf16 %v3742, %v3741
        %v3774 = vpack.c.bf16 %v3744, %v3743
        %v3775 = vpack.c.bf16 %v3746, %v3745
        %v3776 = vpack.c.bf16 %v3748, %v3747
        %v3777 = vpack.c.bf16 %v3750, %v3749
        %v3778 = vpack.c.bf16 %v3752, %v3751
        %v3779 = vpack.c.bf16 %v3754, %v3753
        %v3780 = vpack.c.bf16 %v3756, %v3755
        %v3781 = vpack.c.bf16 %v3758, %v3757
        %v3782 = vpack.c.bf16 %v3760, %v3759
        %v3783 = vpack.c.bf16 %v3762, %v3761
        %v3784 = vpack.c.bf16 %v3764, %v3763
        %v3785 = vpack.c.bf16 %v3766, %v3765
        %v3786 = vpack.c.bf16 %v3768, %v3767
        %v3787 = vpack.c.bf16 %v3770, %v3769
        %v3788 = vpack.c.bf16 %v3772, %v3771
        %v3789 = vld [vmem:[%s4 + $0x40] sm:$0xf]
        %v3790 = vld [vmem:[%s4 + $0x44] sm:$0xf]
        %v3791 = vld [vmem:[%s4 + $0x48] sm:$0xf]
        %v3792 = vld [vmem:[%s4 + $0x4c] sm:$0xf]
        %v3793 = vld [vmem:[%s4 + $0x50] sm:$0xf]
        %v3794 = vld [vmem:[%s4 + $0x54] sm:$0xf]
        %v3795 = vld [vmem:[%s4 + $0x58] sm:$0xf]
        %v3796 = vld [vmem:[%s4 + $0x5c] sm:$0xf]
        %v3797 = vld [vmem:[%s4 + $0x60] sm:$0xf]
        %v3798 = vld [vmem:[%s4 + $0x64] sm:$0xf]
        %v3799 = vld [vmem:[%s4 + $0x68] sm:$0xf]
        %v3800 = vld [vmem:[%s4 + $0x6c] sm:$0xf]
        %v3801 = vld [vmem:[%s4 + $0x70] sm:$0xf]
        %v3802 = vld [vmem:[%s4 + $0x74] sm:$0xf]
        %v3803 = vld [vmem:[%s4 + $0x78] sm:$0xf]
        %v3804 = vld [vmem:[%s4 + $0x7c] sm:$0xf]
        %v3821 = vunpack.c.l.b16 %v3789
        %v3822 = vunpack.c.l.b16 %v3790
        %v3823 = vunpack.c.l.b16 %v3791
        %v3824 = vunpack.c.l.b16 %v3792
        %v3825 = vunpack.c.l.b16 %v3793
        %v3826 = vunpack.c.l.b16 %v3794
        %v3827 = vunpack.c.l.b16 %v3795
        %v3828 = vunpack.c.l.b16 %v3796
        %v3829 = vunpack.c.l.b16 %v3797
        %v3830 = vunpack.c.l.b16 %v3798
        %v3831 = vunpack.c.l.b16 %v3799
        %v3832 = vunpack.c.l.b16 %v3800
        %v3833 = vunpack.c.l.b16 %v3801
        %v3834 = vunpack.c.l.b16 %v3802
        %v3835 = vunpack.c.l.b16 %v3803
        %v3836 = vunpack.c.l.b16 %v3804
        %v3837 = vpack.c.b16 %v3822, %v3821
        %v3838 = vpack.c.b16 %v3824, %v3823
        %v3839 = vpack.c.b16 %v3826, %v3825
        %v3840 = vpack.c.b16 %v3828, %v3827
        %v3841 = vpack.c.b16 %v3830, %v3829
        %v3842 = vpack.c.b16 %v3832, %v3831
        %v3843 = vpack.c.b16 %v3834, %v3833
        %v3844 = vpack.c.b16 %v3836, %v3835
        %3853 = vmatprep.subr.bf16.mxu0 0
        %3854 = vmatpush1.bf16.msra.mxu0 %v3844
        %3855 = vmatprep.subr.bf16.mxu0 0
        %3856 = vmatpush1.bf16.msra.mxu0 %v3843
        %3857 = vmatprep.subr.bf16.mxu0 0
        %3858 = vmatpush1.bf16.msra.mxu0 %v3842
        %3859 = vmatprep.subr.bf16.mxu0 0
        %3860 = vmatpush1.bf16.msra.mxu0 %v3841
        %3861 = vmatprep.subr.bf16.mxu0 0
        %3862 = vmatpush1.bf16.msra.mxu0 %v3840
        %3863 = vmatprep.subr.bf16.mxu0 0
        %3864 = vmatpush1.bf16.msra.mxu0 %v3839
        %3865 = vmatprep.subr.bf16.mxu0 0
        %3866 = vmatpush1.bf16.msra.mxu0 %v3838
        %3867 = vmatprep.subr.bf16.mxu0 0
        %3868 = vmatpush1.bf16.msra.mxu0 %v3837
        %3869 = vmatprep.subr.bf16.mxu0 0
        %3870 = vmatpush2.bf16.msra.mxu0 0
        %3871 = vmatprep.subr.bf16.mxu0 0
        %3872 = vmatpush2.bf16.msra.mxu0 0
        %3873 = vmatprep.subr.bf16.mxu0 0
        %3874 = vmatpush2.bf16.msra.mxu0 0
        %3875 = vmatprep.subr.bf16.mxu0 0
        %3876 = vmatpush2.bf16.msra.mxu0 0
        %3877 = vmatprep.subr.bf16.mxu0 0
        %3878 = vmatpush2.bf16.msra.mxu0 0
        %3879 = vmatprep.subr.bf16.mxu0 0
        %3880 = vmatpush2.bf16.msra.mxu0 0
        %3881 = vmatprep.subr.bf16.mxu0 0
        %3882 = vmatpush2.bf16.msra.mxu0 0
        %3883 = vmatprep.subr.bf16.mxu0 0
        %3884 = vmatpush2.bf16.msra.mxu0 0
        %3885 = vmatprep.mubr.bf16.mxu0 0
        %3886 = vmatmul.mubr.bf16.gmra.mxu0 %v3773
        %v3887 = vpop.f32.mrf.mxu0
        %v3888 = vadd.f32 0.0, %v3887
        %v3889 = vpop.f32.mrf.mxu0
        %v3890 = vpop.f32.mrf.mxu0
        %v3891 = vadd.f32 0.0, %v3890
        %v3892 = vpop.f32.mrf.mxu0
        %3893 = vmatprep.mubr.bf16.mxu0 0
        %3894 = vmatmul.mubr.bf16.gmra.mxu0 %v3774
        %v3895 = vpop.f32.mrf.mxu0
        %v3896 = vadd.f32 0.0, %v3895
        %v3897 = vpop.f32.mrf.mxu0
        %v3898 = vpop.f32.mrf.mxu0
        %v3899 = vadd.f32 0.0, %v3898
        %v3900 = vpop.f32.mrf.mxu0
        %3901 = vmatprep.mubr.bf16.mxu0 0
        %3902 = vmatmul.mubr.bf16.gmra.mxu0 %v3775
        %v3903 = vpop.f32.mrf.mxu0
        %v3904 = vadd.f32 0.0, %v3903
        %v3905 = vpop.f32.mrf.mxu0
        %v3906 = vpop.f32.mrf.mxu0
        %v3907 = vadd.f32 0.0, %v3906
        %v3908 = vpop.f32.mrf.mxu0
        %3909 = vmatprep.mubr.bf16.mxu0 0
        %3910 = vmatmul.mubr.bf16.gmra.mxu0 %v3776
        %v3911 = vpop.f32.mrf.mxu0
        %v3912 = vadd.f32 0.0, %v3911
        %v3913 = vpop.f32.mrf.mxu0
        %v3914 = vpop.f32.mrf.mxu0
        %v3915 = vadd.f32 0.0, %v3914
        %v3916 = vpop.f32.mrf.mxu0
        %3917 = vmatprep.mubr.bf16.mxu0 0
        %3918 = vmatmul.mubr.bf16.gmra.mxu0 %v3777
        %v3919 = vpop.f32.mrf.mxu0
        %v3920 = vadd.f32 0.0, %v3919
        %v3921 = vpop.f32.mrf.mxu0
        %v3922 = vpop.f32.mrf.mxu0
        %v3923 = vadd.f32 0.0, %v3922
        %v3924 = vpop.f32.mrf.mxu0
        %3925 = vmatprep.mubr.bf16.mxu0 0
        %3926 = vmatmul.mubr.bf16.gmra.mxu0 %v3778
        %v3927 = vpop.f32.mrf.mxu0
        %v3928 = vadd.f32 0.0, %v3927
        %v3929 = vpop.f32.mrf.mxu0
        %v3930 = vpop.f32.mrf.mxu0
        %v3931 = vadd.f32 0.0, %v3930
        %v3932 = vpop.f32.mrf.mxu0
        %3933 = vmatprep.mubr.bf16.mxu0 0
        %3934 = vmatmul.mubr.bf16.gmra.mxu0 %v3779
        %v3935 = vpop.f32.mrf.mxu0
        %v3936 = vadd.f32 0.0, %v3935
        %v3937 = vpop.f32.mrf.mxu0
        %v3938 = vpop.f32.mrf.mxu0
        %v3939 = vadd.f32 0.0, %v3938
        %v3940 = vpop.f32.mrf.mxu0
        %3941 = vmatprep.mubr.bf16.mxu0 0
        %3942 = vmatmul.mubr.bf16.gmra.mxu0 %v3780
        %v3943 = vpop.f32.mrf.mxu0
        %v3944 = vadd.f32 0.0, %v3943
        %v3945 = vpop.f32.mrf.mxu0
        %v3946 = vpop.f32.mrf.mxu0
        %v3947 = vadd.f32 0.0, %v3946
        %v3948 = vpop.f32.mrf.mxu0
        %3949 = vmatprep.mubr.bf16.mxu0 0
        %3950 = vmatmul.mubr.bf16.gmra.mxu0 %v3781
        %v3951 = vpop.f32.mrf.mxu0
        %v3952 = vadd.f32 0.0, %v3951
        %v3953 = vpop.f32.mrf.mxu0
        %v3954 = vpop.f32.mrf.mxu0
        %v3955 = vadd.f32 0.0, %v3954
        %v3956 = vpop.f32.mrf.mxu0
        %3957 = vmatprep.mubr.bf16.mxu0 0
        %3958 = vmatmul.mubr.bf16.gmra.mxu0 %v3782
        %v3959 = vpop.f32.mrf.mxu0
        %v3960 = vadd.f32 0.0, %v3959
        %v3961 = vpop.f32.mrf.mxu0
        %v3962 = vpop.f32.mrf.mxu0
        %v3963 = vadd.f32 0.0, %v3962
        %v3964 = vpop.f32.mrf.mxu0
        %3965 = vmatprep.mubr.bf16.mxu0 0
        %3966 = vmatmul.mubr.bf16.gmra.mxu0 %v3783
        %v3967 = vpop.f32.mrf.mxu0
        %v3968 = vadd.f32 0.0, %v3967
        %v3969 = vpop.f32.mrf.mxu0
        %v3970 = vpop.f32.mrf.mxu0
        %v3971 = vadd.f32 0.0, %v3970
        %v3972 = vpop.f32.mrf.mxu0
        %3973 = vmatprep.mubr.bf16.mxu0 0
        %3974 = vmatmul.mubr.bf16.gmra.mxu0 %v3784
        %v3975 = vpop.f32.mrf.mxu0
        %v3976 = vadd.f32 0.0, %v3975
        %v3977 = vpop.f32.mrf.mxu0
        %v3978 = vpop.f32.mrf.mxu0
        %v3979 = vadd.f32 0.0, %v3978
        %v3980 = vpop.f32.mrf.mxu0
        %3981 = vmatprep.mubr.bf16.mxu0 0
        %3982 = vmatmul.mubr.bf16.gmra.mxu0 %v3785
        %v3983 = vpop.f32.mrf.mxu0
        %v3984 = vadd.f32 0.0, %v3983
        %v3985 = vpop.f32.mrf.mxu0
        %v3986 = vpop.f32.mrf.mxu0
        %v3987 = vadd.f32 0.0, %v3986
        %v3988 = vpop.f32.mrf.mxu0
        %3989 = vmatprep.mubr.bf16.mxu0 0
        %3990 = vmatmul.mubr.bf16.gmra.mxu0 %v3786
        %v3991 = vpop.f32.mrf.mxu0
        %v3992 = vadd.f32 0.0, %v3991
        %v3993 = vpop.f32.mrf.mxu0
        %v3994 = vpop.f32.mrf.mxu0
        %v3995 = vadd.f32 0.0, %v3994
        %v3996 = vpop.f32.mrf.mxu0
        %3997 = vmatprep.mubr.bf16.mxu0 0
        %3998 = vmatmul.mubr.bf16.gmra.mxu0 %v3787
        %v3999 = vpop.f32.mrf.mxu0
        %v4000 = vadd.f32 0.0, %v3999
        %v4001 = vpop.f32.mrf.mxu0
        %v4002 = vpop.f32.mrf.mxu0
        %v4003 = vadd.f32 0.0, %v4002
        %v4004 = vpop.f32.mrf.mxu0
        %4005 = vmatprep.mubr.bf16.mxu0 0
        %4006 = vmatmul.mubr.bf16.gmra.mxu0 %v3788
        %v4007 = vpop.f32.mrf.mxu0
        %v4008 = vadd.f32 0.0, %v4007
        %v4009 = vpop.f32.mrf.mxu0
        %v4010 = vpop.f32.mrf.mxu0
        %v4011 = vadd.f32 0.0, %v4010
        %v4012 = vpop.f32.mrf.mxu0
        %4013 = vdwg.mxu0
        %v4014 = vadd.f32 %v1102, %v3888
        %v4015 = vadd.f32 %v1103, %v3891
        %v4016 = vadd.f32 %v1104, %v3896
        %v4017 = vadd.f32 %v1105, %v3899
        %v4018 = vadd.f32 %v1106, %v3904
        %v4019 = vadd.f32 %v1107, %v3907
        %v4020 = vadd.f32 %v1108, %v3912
        %v4021 = vadd.f32 %v1109, %v3915
        %v4022 = vadd.f32 %v1110, %v3920
        %v4023 = vadd.f32 %v1111, %v3923
        %v4024 = vadd.f32 %v1112, %v3928
        %v4025 = vadd.f32 %v1113, %v3931
        %v4026 = vadd.f32 %v1114, %v3936
        %v4027 = vadd.f32 %v1115, %v3939
        %v4028 = vadd.f32 %v1116, %v3944
        %v4029 = vadd.f32 %v1117, %v3947
        %v4030 = vadd.f32 %v1118, %v3952
        %v4031 = vadd.f32 %v1119, %v3955
        %v4032 = vadd.f32 %v1120, %v3960
        %v4033 = vadd.f32 %v1121, %v3963
        %v4034 = vadd.f32 %v1122, %v3968
        %v4035 = vadd.f32 %v1123, %v3971
        %v4036 = vadd.f32 %v1124, %v3976
        %v4037 = vadd.f32 %v1125, %v3979
        %v4038 = vadd.f32 %v1126, %v3984
        %v4039 = vadd.f32 %v1127, %v3987
        %v4040 = vadd.f32 %v1128, %v3992
        %v4041 = vadd.f32 %v1129, %v3995
        %v4042 = vadd.f32 %v1130, %v4000
        %v4043 = vadd.f32 %v1131, %v4003
        %v4044 = vadd.f32 %v1132, %v4008
        %v4045 = vadd.f32 %v1133, %v4011
        %s4046 = sadd.s32 %s334, 6
        %s4047 = smul.u32 %s4046, 7
        %s4048 = smul.addr %s4047, 4
        %s4049 = scalar_lea.vmem %s331, %s4048
        %v4050 = vld [vmem:[%s4049] sm:$0x8]
        %v4051 = vld [vmem:[%s4049 + $0x4] sm:$0xf]
        %v4052 = vld [vmem:[%s4049 + $0x8] sm:$0x7]
        %v4053 = vld [vmem:[%s4049 + $0x1c] sm:$0x8]
        %v4054 = vld [vmem:[%s4049 + $0x20] sm:$0xf]
        %v4055 = vld [vmem:[%s4049 + $0x24] sm:$0x7]
        %v4056 = vld [vmem:[%s4049 + $0x38] sm:$0x8]
        %v4057 = vld [vmem:[%s4049 + $0x3c] sm:$0xf]
        %v4058 = vld [vmem:[%s4049 + $0x40] sm:$0x7]
        %v4059 = vld [vmem:[%s4049 + $0x54] sm:$0x8]
        %v4060 = vld [vmem:[%s4049 + $0x58] sm:$0xf]
        %v4061 = vld [vmem:[%s4049 + $0x5c] sm:$0x7]
        %v4062 = vld [vmem:[%s4049 + $0x70] sm:$0x8]
        %v4063 = vld [vmem:[%s4049 + $0x74] sm:$0xf]
        %v4064 = vld [vmem:[%s4049 + $0x78] sm:$0x7]
        %v4065 = vld [vmem:[%s4049 + $0x8c] sm:$0x8]
        %v4066 = vld [vmem:[%s4049 + $0x90] sm:$0xf]
        %v4067 = vld [vmem:[%s4049 + $0x94] sm:$0x7]
        %v4068 = vld [vmem:[%s4049 + $0xa8] sm:$0x8]
        %v4069 = vld [vmem:[%s4049 + $0xac] sm:$0xf]
        %v4070 = vld [vmem:[%s4049 + $0xb0] sm:$0x7]
        %v4071 = vld [vmem:[%s4049 + $0xc4] sm:$0x8]
        %v4072 = vld [vmem:[%s4049 + $0xc8] sm:$0xf]
        %v4073 = vld [vmem:[%s4049 + $0xcc] sm:$0x7]
        %v4074 = vld [vmem:[%s4049 + $0xe0] sm:$0x8]
        %v4075 = vld [vmem:[%s4049 + $0xe4] sm:$0xf]
        %v4076 = vld [vmem:[%s4049 + $0xe8] sm:$0x7]
        %v4077 = vld [vmem:[%s4049 + $0xfc] sm:$0x8]
        %v4078 = vld [vmem:[%s4049 + $0x100] sm:$0xf]
        %v4079 = vld [vmem:[%s4049 + $0x104] sm:$0x7]
        %v4080 = vld [vmem:[%s4049 + $0x118] sm:$0x8]
        %v4081 = vld [vmem:[%s4049 + $0x11c] sm:$0xf]
        %v4082 = vld [vmem:[%s4049 + $0x120] sm:$0x7]
        %v4083 = vld [vmem:[%s4049 + $0x134] sm:$0x8]
        %v4084 = vld [vmem:[%s4049 + $0x138] sm:$0xf]
        %v4085 = vld [vmem:[%s4049 + $0x13c] sm:$0x7]
        %v4086 = vld [vmem:[%s4049 + $0x150] sm:$0x8]
        %v4087 = vld [vmem:[%s4049 + $0x154] sm:$0xf]
        %v4088 = vld [vmem:[%s4049 + $0x158] sm:$0x7]
        %v4089 = vld [vmem:[%s4049 + $0x16c] sm:$0x8]
        %v4090 = vld [vmem:[%s4049 + $0x170] sm:$0xf]
        %v4091 = vld [vmem:[%s4049 + $0x174] sm:$0x7]
        %v4092 = vld [vmem:[%s4049 + $0x188] sm:$0x8]
        %v4093 = vld [vmem:[%s4049 + $0x18c] sm:$0xf]
        %v4094 = vld [vmem:[%s4049 + $0x190] sm:$0x7]
        %v4095 = vld [vmem:[%s4049 + $0x1a4] sm:$0x8]
        %v4096 = vld [vmem:[%s4049 + $0x1a8] sm:$0xf]
        %v4097 = vld [vmem:[%s4049 + $0x1ac] sm:$0x7]
        %v4098 = vld [vmem:[%s4049 + $0x8] sm:$0xe]
        %v4099 = vld [vmem:[%s4049 + $0xc] sm:$0xf]
        %v4100 = vld [vmem:[%s4049 + $0x10] sm:$0x1]
        %v4101 = vld [vmem:[%s4049 + $0x24] sm:$0xe]
        %v4102 = vld [vmem:[%s4049 + $0x28] sm:$0xf]
        %v4103 = vld [vmem:[%s4049 + $0x2c] sm:$0x1]
        %v4104 = vld [vmem:[%s4049 + $0x40] sm:$0xe]
        %v4105 = vld [vmem:[%s4049 + $0x44] sm:$0xf]
        %v4106 = vld [vmem:[%s4049 + $0x48] sm:$0x1]
        %v4107 = vld [vmem:[%s4049 + $0x5c] sm:$0xe]
        %v4108 = vld [vmem:[%s4049 + $0x60] sm:$0xf]
        %v4109 = vld [vmem:[%s4049 + $0x64] sm:$0x1]
        %v4110 = vld [vmem:[%s4049 + $0x78] sm:$0xe]
        %v4111 = vld [vmem:[%s4049 + $0x7c] sm:$0xf]
        %v4112 = vld [vmem:[%s4049 + $0x80] sm:$0x1]
        %v4113 = vld [vmem:[%s4049 + $0x94] sm:$0xe]
        %v4114 = vld [vmem:[%s4049 + $0x98] sm:$0xf]
        %v4115 = vld [vmem:[%s4049 + $0x9c] sm:$0x1]
        %v4116 = vld [vmem:[%s4049 + $0xb0] sm:$0xe]
        %v4117 = vld [vmem:[%s4049 + $0xb4] sm:$0xf]
        %v4118 = vld [vmem:[%s4049 + $0xb8] sm:$0x1]
        %v4119 = vld [vmem:[%s4049 + $0xcc] sm:$0xe]
        %v4120 = vld [vmem:[%s4049 + $0xd0] sm:$0xf]
        %v4121 = vld [vmem:[%s4049 + $0xd4] sm:$0x1]
        %v4122 = vld [vmem:[%s4049 + $0xe8] sm:$0xe]
        %v4123 = vld [vmem:[%s4049 + $0xec] sm:$0xf]
        %v4124 = vld [vmem:[%s4049 + $0xf0] sm:$0x1]
        %v4125 = vld [vmem:[%s4049 + $0x104] sm:$0xe]
        %v4126 = vld [vmem:[%s4049 + $0x108] sm:$0xf]
        %v4127 = vld [vmem:[%s4049 + $0x10c] sm:$0x1]
        %v4128 = vld [vmem:[%s4049 + $0x120] sm:$0xe]
        %v4129 = vld [vmem:[%s4049 + $0x124] sm:$0xf]
        %v4130 = vld [vmem:[%s4049 + $0x128] sm:$0x1]
        %v4131 = vld [vmem:[%s4049 + $0x13c] sm:$0xe]
        %v4132 = vld [vmem:[%s4049 + $0x140] sm:$0xf]
        %v4133 = vld [vmem:[%s4049 + $0x144] sm:$0x1]
        %v4134 = vld [vmem:[%s4049 + $0x158] sm:$0xe]
        %v4135 = vld [vmem:[%s4049 + $0x15c] sm:$0xf]
        %v4136 = vld [vmem:[%s4049 + $0x160] sm:$0x1]
        %v4137 = vld [vmem:[%s4049 + $0x174] sm:$0xe]
        %v4138 = vld [vmem:[%s4049 + $0x178] sm:$0xf]
        %v4139 = vld [vmem:[%s4049 + $0x17c] sm:$0x1]
        %v4140 = vld [vmem:[%s4049 + $0x190] sm:$0xe]
        %v4141 = vld [vmem:[%s4049 + $0x194] sm:$0xf]
        %v4142 = vld [vmem:[%s4049 + $0x198] sm:$0x1]
        %v4143 = vld [vmem:[%s4049 + $0x1ac] sm:$0xe]
        %v4144 = vld [vmem:[%s4049 + $0x1b0] sm:$0xf]
        %v4145 = vld [vmem:[%s4049 + $0x1b4] sm:$0x1]
        %v4146 = vld [vmem:[%s4049 + $0xc] sm:$0x8]
        %v4147 = vld [vmem:[%s4049 + $0x10] sm:$0xf]
        %v4148 = vld [vmem:[%s4049 + $0x14] sm:$0x7]
        %v4149 = vld [vmem:[%s4049 + $0x28] sm:$0x8]
        %v4150 = vld [vmem:[%s4049 + $0x2c] sm:$0xf]
        %v4151 = vld [vmem:[%s4049 + $0x30] sm:$0x7]
        %v4152 = vld [vmem:[%s4049 + $0x44] sm:$0x8]
        %v4153 = vld [vmem:[%s4049 + $0x48] sm:$0xf]
        %v4154 = vld [vmem:[%s4049 + $0x4c] sm:$0x7]
        %v4155 = vld [vmem:[%s4049 + $0x60] sm:$0x8]
        %v4156 = vld [vmem:[%s4049 + $0x64] sm:$0xf]
        %v4157 = vld [vmem:[%s4049 + $0x68] sm:$0x7]
        %v4158 = vld [vmem:[%s4049 + $0x7c] sm:$0x8]
        %v4159 = vld [vmem:[%s4049 + $0x80] sm:$0xf]
        %v4160 = vld [vmem:[%s4049 + $0x84] sm:$0x7]
        %v4161 = vld [vmem:[%s4049 + $0x98] sm:$0x8]
        %v4162 = vld [vmem:[%s4049 + $0x9c] sm:$0xf]
        %v4163 = vld [vmem:[%s4049 + $0xa0] sm:$0x7]
        %v4164 = vld [vmem:[%s4049 + $0xb4] sm:$0x8]
        %v4165 = vld [vmem:[%s4049 + $0xb8] sm:$0xf]
        %v4166 = vld [vmem:[%s4049 + $0xbc] sm:$0x7]
        %v4167 = vld [vmem:[%s4049 + $0xd0] sm:$0x8]
        %v4168 = vld [vmem:[%s4049 + $0xd4] sm:$0xf]
        %v4169 = vld [vmem:[%s4049 + $0xd8] sm:$0x7]
        %v4170 = vld [vmem:[%s4049 + $0xec] sm:$0x8]
        %v4171 = vld [vmem:[%s4049 + $0xf0] sm:$0xf]
        %v4172 = vld [vmem:[%s4049 + $0xf4] sm:$0x7]
        %v4173 = vld [vmem:[%s4049 + $0x108] sm:$0x8]
        %v4174 = vld [vmem:[%s4049 + $0x10c] sm:$0xf]
        %v4175 = vld [vmem:[%s4049 + $0x110] sm:$0x7]
        %v4176 = vld [vmem:[%s4049 + $0x124] sm:$0x8]
        %v4177 = vld [vmem:[%s4049 + $0x128] sm:$0xf]
        %v4178 = vld [vmem:[%s4049 + $0x12c] sm:$0x7]
        %v4179 = vld [vmem:[%s4049 + $0x140] sm:$0x8]
        %v4180 = vld [vmem:[%s4049 + $0x144] sm:$0xf]
        %v4181 = vld [vmem:[%s4049 + $0x148] sm:$0x7]
        %v4182 = vld [vmem:[%s4049 + $0x15c] sm:$0x8]
        %v4183 = vld [vmem:[%s4049 + $0x160] sm:$0xf]
        %v4184 = vld [vmem:[%s4049 + $0x164] sm:$0x7]
        %v4185 = vld [vmem:[%s4049 + $0x178] sm:$0x8]
        %v4186 = vld [vmem:[%s4049 + $0x17c] sm:$0xf]
        %v4187 = vld [vmem:[%s4049 + $0x180] sm:$0x7]
        %v4188 = vld [vmem:[%s4049 + $0x194] sm:$0x8]
        %v4189 = vld [vmem:[%s4049 + $0x198] sm:$0xf]
        %v4190 = vld [vmem:[%s4049 + $0x19c] sm:$0x7]
        %v4191 = vld [vmem:[%s4049 + $0x1b0] sm:$0x8]
        %v4192 = vld [vmem:[%s4049 + $0x1b4] sm:$0xf]
        %v4193 = vld [vmem:[%s4049 + $0x1b8] sm:$0x7]
        %v4194 = vld [vmem:[%s338] sm:$0x8]
        %v4195 = vld [vmem:[%s338 + $0x4] sm:$0xf]
        %v4196 = vld [vmem:[%s338 + $0x8] sm:$0x7]
        %v4197 = vld [vmem:[%s338 + $0x1c] sm:$0x8]
        %v4198 = vld [vmem:[%s338 + $0x20] sm:$0xf]
        %v4199 = vld [vmem:[%s338 + $0x24] sm:$0x7]
        %v4200 = vld [vmem:[%s338 + $0x38] sm:$0x8]
        %v4201 = vld [vmem:[%s338 + $0x3c] sm:$0xf]
        %v4202 = vld [vmem:[%s338 + $0x40] sm:$0x7]
        %v4203 = vld [vmem:[%s338 + $0x54] sm:$0x8]
        %v4204 = vld [vmem:[%s338 + $0x58] sm:$0xf]
        %v4205 = vld [vmem:[%s338 + $0x5c] sm:$0x7]
        %v4206 = vld [vmem:[%s338 + $0x70] sm:$0x8]
        %v4207 = vld [vmem:[%s338 + $0x74] sm:$0xf]
        %v4208 = vld [vmem:[%s338 + $0x78] sm:$0x7]
        %v4209 = vld [vmem:[%s338 + $0x8c] sm:$0x8]
        %v4210 = vld [vmem:[%s338 + $0x90] sm:$0xf]
        %v4211 = vld [vmem:[%s338 + $0x94] sm:$0x7]
        %v4212 = vld [vmem:[%s338 + $0xa8] sm:$0x8]
        %v4213 = vld [vmem:[%s338 + $0xac] sm:$0xf]
        %v4214 = vld [vmem:[%s338 + $0xb0] sm:$0x7]
        %v4215 = vld [vmem:[%s338 + $0xc4] sm:$0x8]
        %v4216 = vld [vmem:[%s338 + $0xc8] sm:$0xf]
        %v4217 = vld [vmem:[%s338 + $0xcc] sm:$0x7]
        %v4218 = vld [vmem:[%s338 + $0xe0] sm:$0x8]
        %v4219 = vld [vmem:[%s338 + $0xe4] sm:$0xf]
        %v4220 = vld [vmem:[%s338 + $0xe8] sm:$0x7]
        %v4221 = vld [vmem:[%s338 + $0xfc] sm:$0x8]
        %v4222 = vld [vmem:[%s338 + $0x100] sm:$0xf]
        %v4223 = vld [vmem:[%s338 + $0x104] sm:$0x7]
        %v4224 = vld [vmem:[%s338 + $0x118] sm:$0x8]
        %v4225 = vld [vmem:[%s338 + $0x11c] sm:$0xf]
        %v4226 = vld [vmem:[%s338 + $0x120] sm:$0x7]
        %v4227 = vld [vmem:[%s338 + $0x134] sm:$0x8]
        %v4228 = vld [vmem:[%s338 + $0x138] sm:$0xf]
        %v4229 = vld [vmem:[%s338 + $0x13c] sm:$0x7]
        %v4230 = vld [vmem:[%s338 + $0x150] sm:$0x8]
        %v4231 = vld [vmem:[%s338 + $0x154] sm:$0xf]
        %v4232 = vld [vmem:[%s338 + $0x158] sm:$0x7]
        %v4233 = vld [vmem:[%s338 + $0x16c] sm:$0x8]
        %v4234 = vld [vmem:[%s338 + $0x170] sm:$0xf]
        %v4235 = vld [vmem:[%s338 + $0x174] sm:$0x7]
        %v4236 = vld [vmem:[%s338 + $0x188] sm:$0x8]
        %v4237 = vld [vmem:[%s338 + $0x18c] sm:$0xf]
        %v4238 = vld [vmem:[%s338 + $0x190] sm:$0x7]
        %v4239 = vld [vmem:[%s338 + $0x1a4] sm:$0x8]
        %v4240 = vld [vmem:[%s338 + $0x1a8] sm:$0xf]
        %v4241 = vld [vmem:[%s338 + $0x1ac] sm:$0x7]
        %v4242 = vld [vmem:[%s338 + $0xc] sm:$0x8]
        %v4243 = vld [vmem:[%s338 + $0x10] sm:$0xf]
        %v4244 = vld [vmem:[%s338 + $0x14] sm:$0x7]
        %v4245 = vld [vmem:[%s338 + $0x28] sm:$0x8]
        %v4246 = vld [vmem:[%s338 + $0x2c] sm:$0xf]
        %v4247 = vld [vmem:[%s338 + $0x30] sm:$0x7]
        %v4248 = vld [vmem:[%s338 + $0x44] sm:$0x8]
        %v4249 = vld [vmem:[%s338 + $0x48] sm:$0xf]
        %v4250 = vld [vmem:[%s338 + $0x4c] sm:$0x7]
        %v4251 = vld [vmem:[%s338 + $0x60] sm:$0x8]
        %v4252 = vld [vmem:[%s338 + $0x64] sm:$0xf]
        %v4253 = vld [vmem:[%s338 + $0x68] sm:$0x7]
        %v4254 = vld [vmem:[%s338 + $0x7c] sm:$0x8]
        %v4255 = vld [vmem:[%s338 + $0x80] sm:$0xf]
        %v4256 = vld [vmem:[%s338 + $0x84] sm:$0x7]
        %v4257 = vld [vmem:[%s338 + $0x98] sm:$0x8]
        %v4258 = vld [vmem:[%s338 + $0x9c] sm:$0xf]
        %v4259 = vld [vmem:[%s338 + $0xa0] sm:$0x7]
        %v4260 = vld [vmem:[%s338 + $0xb4] sm:$0x8]
        %v4261 = vld [vmem:[%s338 + $0xb8] sm:$0xf]
        %v4262 = vld [vmem:[%s338 + $0xbc] sm:$0x7]
        %v4263 = vld [vmem:[%s338 + $0xd0] sm:$0x8]
        %v4264 = vld [vmem:[%s338 + $0xd4] sm:$0xf]
        %v4265 = vld [vmem:[%s338 + $0xd8] sm:$0x7]
        %v4266 = vld [vmem:[%s338 + $0xec] sm:$0x8]
        %v4267 = vld [vmem:[%s338 + $0xf0] sm:$0xf]
        %v4268 = vld [vmem:[%s338 + $0xf4] sm:$0x7]
        %v4269 = vld [vmem:[%s338 + $0x108] sm:$0x8]
        %v4270 = vld [vmem:[%s338 + $0x10c] sm:$0xf]
        %v4271 = vld [vmem:[%s338 + $0x110] sm:$0x7]
        %v4272 = vld [vmem:[%s338 + $0x124] sm:$0x8]
        %v4273 = vld [vmem:[%s338 + $0x128] sm:$0xf]
        %v4274 = vld [vmem:[%s338 + $0x12c] sm:$0x7]
        %v4275 = vld [vmem:[%s338 + $0x140] sm:$0x8]
        %v4276 = vld [vmem:[%s338 + $0x144] sm:$0xf]
        %v4277 = vld [vmem:[%s338 + $0x148] sm:$0x7]
        %v4278 = vld [vmem:[%s338 + $0x15c] sm:$0x8]
        %v4279 = vld [vmem:[%s338 + $0x160] sm:$0xf]
        %v4280 = vld [vmem:[%s338 + $0x164] sm:$0x7]
        %v4281 = vld [vmem:[%s338 + $0x178] sm:$0x8]
        %v4282 = vld [vmem:[%s338 + $0x17c] sm:$0xf]
        %v4283 = vld [vmem:[%s338 + $0x180] sm:$0x7]
        %v4284 = vld [vmem:[%s338 + $0x194] sm:$0x8]
        %v4285 = vld [vmem:[%s338 + $0x198] sm:$0xf]
        %v4286 = vld [vmem:[%s338 + $0x19c] sm:$0x7]
        %v4287 = vld [vmem:[%s338 + $0x1b0] sm:$0x8]
        %v4288 = vld [vmem:[%s338 + $0x1b4] sm:$0xf]
        %v4289 = vld [vmem:[%s338 + $0x1b8] sm:$0x7]
        %s4290 = sadd.s32 %s334, 30
        %s4291 = smul.u32 %s4290, 7
        %s4292 = smul.addr %s4291, 4
        %s4293 = scalar_lea.vmem %s331, %s4292
        %v4294 = vld [vmem:[%s4293] sm:$0x8]
        %v4295 = vld [vmem:[%s4293 + $0x4] sm:$0xf]
        %v4296 = vld [vmem:[%s4293 + $0x8] sm:$0x7]
        %v4297 = vld [vmem:[%s4293 + $0x1c] sm:$0x8]
        %v4298 = vld [vmem:[%s4293 + $0x20] sm:$0xf]
        %v4299 = vld [vmem:[%s4293 + $0x24] sm:$0x7]
        %v4300 = vld [vmem:[%s4293 + $0x38] sm:$0x8]
        %v4301 = vld [vmem:[%s4293 + $0x3c] sm:$0xf]
        %v4302 = vld [vmem:[%s4293 + $0x40] sm:$0x7]
        %v4303 = vld [vmem:[%s4293 + $0x54] sm:$0x8]
        %v4304 = vld [vmem:[%s4293 + $0x58] sm:$0xf]
        %v4305 = vld [vmem:[%s4293 + $0x5c] sm:$0x7]
        %v4306 = vld [vmem:[%s4293 + $0x70] sm:$0x8]
        %v4307 = vld [vmem:[%s4293 + $0x74] sm:$0xf]
        %v4308 = vld [vmem:[%s4293 + $0x78] sm:$0x7]
        %v4309 = vld [vmem:[%s4293 + $0x8c] sm:$0x8]
        %v4310 = vld [vmem:[%s4293 + $0x90] sm:$0xf]
        %v4311 = vld [vmem:[%s4293 + $0x94] sm:$0x7]
        %v4312 = vld [vmem:[%s4293 + $0xa8] sm:$0x8]
        %v4313 = vld [vmem:[%s4293 + $0xac] sm:$0xf]
        %v4314 = vld [vmem:[%s4293 + $0xb0] sm:$0x7]
        %v4315 = vld [vmem:[%s4293 + $0xc4] sm:$0x8]
        %v4316 = vld [vmem:[%s4293 + $0xc8] sm:$0xf]
        %v4317 = vld [vmem:[%s4293 + $0xcc] sm:$0x7]
        %v4318 = vld [vmem:[%s4293 + $0xe0] sm:$0x8]
        %v4319 = vld [vmem:[%s4293 + $0xe4] sm:$0xf]
        %v4320 = vld [vmem:[%s4293 + $0xe8] sm:$0x7]
        %v4321 = vld [vmem:[%s4293 + $0xfc] sm:$0x8]
        %v4322 = vld [vmem:[%s4293 + $0x100] sm:$0xf]
        %v4323 = vld [vmem:[%s4293 + $0x104] sm:$0x7]
        %v4324 = vld [vmem:[%s4293 + $0x118] sm:$0x8]
        %v4325 = vld [vmem:[%s4293 + $0x11c] sm:$0xf]
        %v4326 = vld [vmem:[%s4293 + $0x120] sm:$0x7]
        %v4327 = vld [vmem:[%s4293 + $0x134] sm:$0x8]
        %v4328 = vld [vmem:[%s4293 + $0x138] sm:$0xf]
        %v4329 = vld [vmem:[%s4293 + $0x13c] sm:$0x7]
        %v4330 = vld [vmem:[%s4293 + $0x150] sm:$0x8]
        %v4331 = vld [vmem:[%s4293 + $0x154] sm:$0xf]
        %v4332 = vld [vmem:[%s4293 + $0x158] sm:$0x7]
        %v4333 = vld [vmem:[%s4293 + $0x16c] sm:$0x8]
        %v4334 = vld [vmem:[%s4293 + $0x170] sm:$0xf]
        %v4335 = vld [vmem:[%s4293 + $0x174] sm:$0x7]
        %v4336 = vld [vmem:[%s4293 + $0x188] sm:$0x8]
        %v4337 = vld [vmem:[%s4293 + $0x18c] sm:$0xf]
        %v4338 = vld [vmem:[%s4293 + $0x190] sm:$0x7]
        %v4339 = vld [vmem:[%s4293 + $0x1a4] sm:$0x8]
        %v4340 = vld [vmem:[%s4293 + $0x1a8] sm:$0xf]
        %v4341 = vld [vmem:[%s4293 + $0x1ac] sm:$0x7]
        %v4342 = vld [vmem:[%s4293 + $0x8] sm:$0xe]
        %v4343 = vld [vmem:[%s4293 + $0xc] sm:$0xf]
        %v4344 = vld [vmem:[%s4293 + $0x10] sm:$0x1]
        %v4345 = vld [vmem:[%s4293 + $0x24] sm:$0xe]
        %v4346 = vld [vmem:[%s4293 + $0x28] sm:$0xf]
        %v4347 = vld [vmem:[%s4293 + $0x2c] sm:$0x1]
        %v4348 = vld [vmem:[%s4293 + $0x40] sm:$0xe]
        %v4349 = vld [vmem:[%s4293 + $0x44] sm:$0xf]
        %v4350 = vld [vmem:[%s4293 + $0x48] sm:$0x1]
        %v4351 = vld [vmem:[%s4293 + $0x5c] sm:$0xe]
        %v4352 = vld [vmem:[%s4293 + $0x60] sm:$0xf]
        %v4353 = vld [vmem:[%s4293 + $0x64] sm:$0x1]
        %v4354 = vld [vmem:[%s4293 + $0x78] sm:$0xe]
        %v4355 = vld [vmem:[%s4293 + $0x7c] sm:$0xf]
        %v4356 = vld [vmem:[%s4293 + $0x80] sm:$0x1]
        %v4357 = vld [vmem:[%s4293 + $0x94] sm:$0xe]
        %v4358 = vld [vmem:[%s4293 + $0x98] sm:$0xf]
        %v4359 = vld [vmem:[%s4293 + $0x9c] sm:$0x1]
        %v4360 = vld [vmem:[%s4293 + $0xb0] sm:$0xe]
        %v4361 = vld [vmem:[%s4293 + $0xb4] sm:$0xf]
        %v4362 = vld [vmem:[%s4293 + $0xb8] sm:$0x1]
        %v4363 = vld [vmem:[%s4293 + $0xcc] sm:$0xe]
        %v4364 = vld [vmem:[%s4293 + $0xd0] sm:$0xf]
        %v4365 = vld [vmem:[%s4293 + $0xd4] sm:$0x1]
        %v4366 = vld [vmem:[%s4293 + $0xe8] sm:$0xe]
        %v4367 = vld [vmem:[%s4293 + $0xec] sm:$0xf]
        %v4368 = vld [vmem:[%s4293 + $0xf0] sm:$0x1]
        %v4369 = vld [vmem:[%s4293 + $0x104] sm:$0xe]
        %v4370 = vld [vmem:[%s4293 + $0x108] sm:$0xf]
        %v4371 = vld [vmem:[%s4293 + $0x10c] sm:$0x1]
        %v4372 = vld [vmem:[%s4293 + $0x120] sm:$0xe]
        %v4373 = vld [vmem:[%s4293 + $0x124] sm:$0xf]
        %v4374 = vld [vmem:[%s4293 + $0x128] sm:$0x1]
        %v4375 = vld [vmem:[%s4293 + $0x13c] sm:$0xe]
        %v4376 = vld [vmem:[%s4293 + $0x140] sm:$0xf]
        %v4377 = vld [vmem:[%s4293 + $0x144] sm:$0x1]
        %v4378 = vld [vmem:[%s4293 + $0x158] sm:$0xe]
        %v4379 = vld [vmem:[%s4293 + $0x15c] sm:$0xf]
        %v4380 = vld [vmem:[%s4293 + $0x160] sm:$0x1]
        %v4381 = vld [vmem:[%s4293 + $0x174] sm:$0xe]
        %v4382 = vld [vmem:[%s4293 + $0x178] sm:$0xf]
        %v4383 = vld [vmem:[%s4293 + $0x17c] sm:$0x1]
        %v4384 = vld [vmem:[%s4293 + $0x190] sm:$0xe]
        %v4385 = vld [vmem:[%s4293 + $0x194] sm:$0xf]
        %v4386 = vld [vmem:[%s4293 + $0x198] sm:$0x1]
        %v4387 = vld [vmem:[%s4293 + $0x1ac] sm:$0xe]
        %v4388 = vld [vmem:[%s4293 + $0x1b0] sm:$0xf]
        %v4389 = vld [vmem:[%s4293 + $0x1b4] sm:$0x1]
        %v4390 = vld [vmem:[%s4293 + $0xc] sm:$0x8]
        %v4391 = vld [vmem:[%s4293 + $0x10] sm:$0xf]
        %v4392 = vld [vmem:[%s4293 + $0x14] sm:$0x7]
        %v4393 = vld [vmem:[%s4293 + $0x28] sm:$0x8]
        %v4394 = vld [vmem:[%s4293 + $0x2c] sm:$0xf]
        %v4395 = vld [vmem:[%s4293 + $0x30] sm:$0x7]
        %v4396 = vld [vmem:[%s4293 + $0x44] sm:$0x8]
        %v4397 = vld [vmem:[%s4293 + $0x48] sm:$0xf]
        %v4398 = vld [vmem:[%s4293 + $0x4c] sm:$0x7]
        %v4399 = vld [vmem:[%s4293 + $0x60] sm:$0x8]
        %v4400 = vld [vmem:[%s4293 + $0x64] sm:$0xf]
        %v4401 = vld [vmem:[%s4293 + $0x68] sm:$0x7]
        %v4402 = vld [vmem:[%s4293 + $0x7c] sm:$0x8]
        %v4403 = vld [vmem:[%s4293 + $0x80] sm:$0xf]
        %v4404 = vld [vmem:[%s4293 + $0x84] sm:$0x7]
        %v4405 = vld [vmem:[%s4293 + $0x98] sm:$0x8]
        %v4406 = vld [vmem:[%s4293 + $0x9c] sm:$0xf]
        %v4407 = vld [vmem:[%s4293 + $0xa0] sm:$0x7]
        %v4408 = vld [vmem:[%s4293 + $0xb4] sm:$0x8]
        %v4409 = vld [vmem:[%s4293 + $0xb8] sm:$0xf]
        %v4410 = vld [vmem:[%s4293 + $0xbc] sm:$0x7]
        %v4411 = vld [vmem:[%s4293 + $0xd0] sm:$0x8]
        %v4412 = vld [vmem:[%s4293 + $0xd4] sm:$0xf]
        %v4413 = vld [vmem:[%s4293 + $0xd8] sm:$0x7]
        %v4414 = vld [vmem:[%s4293 + $0xec] sm:$0x8]
        %v4415 = vld [vmem:[%s4293 + $0xf0] sm:$0xf]
        %v4416 = vld [vmem:[%s4293 + $0xf4] sm:$0x7]
        %v4417 = vld [vmem:[%s4293 + $0x108] sm:$0x8]
        %v4418 = vld [vmem:[%s4293 + $0x10c] sm:$0xf]
        %v4419 = vld [vmem:[%s4293 + $0x110] sm:$0x7]
        %v4420 = vld [vmem:[%s4293 + $0x124] sm:$0x8]
        %v4421 = vld [vmem:[%s4293 + $0x128] sm:$0xf]
        %v4422 = vld [vmem:[%s4293 + $0x12c] sm:$0x7]
        %v4423 = vld [vmem:[%s4293 + $0x140] sm:$0x8]
        %v4424 = vld [vmem:[%s4293 + $0x144] sm:$0xf]
        %v4425 = vld [vmem:[%s4293 + $0x148] sm:$0x7]
        %v4426 = vld [vmem:[%s4293 + $0x15c] sm:$0x8]
        %v4427 = vld [vmem:[%s4293 + $0x160] sm:$0xf]
        %v4428 = vld [vmem:[%s4293 + $0x164] sm:$0x7]
        %v4429 = vld [vmem:[%s4293 + $0x178] sm:$0x8]
        %v4430 = vld [vmem:[%s4293 + $0x17c] sm:$0xf]
        %v4431 = vld [vmem:[%s4293 + $0x180] sm:$0x7]
        %v4432 = vld [vmem:[%s4293 + $0x194] sm:$0x8]
        %v4433 = vld [vmem:[%s4293 + $0x198] sm:$0xf]
        %v4434 = vld [vmem:[%s4293 + $0x19c] sm:$0x7]
        %v4435 = vld [vmem:[%s4293 + $0x1b0] sm:$0x8]
        %v4436 = vld [vmem:[%s4293 + $0x1b4] sm:$0xf]
        %v4437 = vld [vmem:[%s4293 + $0x1b8] sm:$0x7]
        %v4486 = vunpack.c.l.b16 %v4050
        %v4487 = vunpack.c.l.b16 %v4051
        %v4488 = vunpack.c.l.b16 %v4052
        %v4489 = vunpack.c.l.b16 %v4053
        %v4490 = vunpack.c.l.b16 %v4054
        %v4491 = vunpack.c.l.b16 %v4055
        %v4492 = vunpack.c.l.b16 %v4056
        %v4493 = vunpack.c.l.b16 %v4057
        %v4494 = vunpack.c.l.b16 %v4058
        %v4495 = vunpack.c.l.b16 %v4059
        %v4496 = vunpack.c.l.b16 %v4060
        %v4497 = vunpack.c.l.b16 %v4061
        %v4498 = vunpack.c.l.b16 %v4062
        %v4499 = vunpack.c.l.b16 %v4063
        %v4500 = vunpack.c.l.b16 %v4064
        %v4501 = vunpack.c.l.b16 %v4065
        %v4502 = vunpack.c.l.b16 %v4066
        %v4503 = vunpack.c.l.b16 %v4067
        %v4504 = vunpack.c.l.b16 %v4068
        %v4505 = vunpack.c.l.b16 %v4069
        %v4506 = vunpack.c.l.b16 %v4070
        %v4507 = vunpack.c.l.b16 %v4071
        %v4508 = vunpack.c.l.b16 %v4072
        %v4509 = vunpack.c.l.b16 %v4073
        %v4510 = vunpack.c.l.b16 %v4074
        %v4511 = vunpack.c.l.b16 %v4075
        %v4512 = vunpack.c.l.b16 %v4076
        %v4513 = vunpack.c.l.b16 %v4077
        %v4514 = vunpack.c.l.b16 %v4078
        %v4515 = vunpack.c.l.b16 %v4079
        %v4516 = vunpack.c.l.b16 %v4080
        %v4517 = vunpack.c.l.b16 %v4081
        %v4518 = vunpack.c.l.b16 %v4082
        %v4519 = vunpack.c.l.b16 %v4083
        %v4520 = vunpack.c.l.b16 %v4084
        %v4521 = vunpack.c.l.b16 %v4085
        %v4522 = vunpack.c.l.b16 %v4086
        %v4523 = vunpack.c.l.b16 %v4087
        %v4524 = vunpack.c.l.b16 %v4088
        %v4525 = vunpack.c.l.b16 %v4089
        %v4526 = vunpack.c.l.b16 %v4090
        %v4527 = vunpack.c.l.b16 %v4091
        %v4528 = vunpack.c.l.b16 %v4092
        %v4529 = vunpack.c.l.b16 %v4093
        %v4530 = vunpack.c.l.b16 %v4094
        %v4531 = vunpack.c.l.b16 %v4095
        %v4532 = vunpack.c.l.b16 %v4096
        %v4533 = vunpack.c.l.b16 %v4097
        %v4534 = vpack.c.b16 %v4487, %v4486
        %v4535 = vpack.c.b16 %v4488, %v4488
        %v4536 = vpack.c.b16 %v4490, %v4489
        %v4537 = vpack.c.b16 %v4491, %v4491
        %v4538 = vpack.c.b16 %v4493, %v4492
        %v4539 = vpack.c.b16 %v4494, %v4494
        %v4540 = vpack.c.b16 %v4496, %v4495
        %v4541 = vpack.c.b16 %v4497, %v4497
        %v4542 = vpack.c.b16 %v4499, %v4498
        %v4543 = vpack.c.b16 %v4500, %v4500
        %v4544 = vpack.c.b16 %v4502, %v4501
        %v4545 = vpack.c.b16 %v4503, %v4503
        %v4546 = vpack.c.b16 %v4505, %v4504
        %v4547 = vpack.c.b16 %v4506, %v4506
        %v4548 = vpack.c.b16 %v4508, %v4507
        %v4549 = vpack.c.b16 %v4509, %v4509
        %v4550 = vpack.c.b16 %v4511, %v4510
        %v4551 = vpack.c.b16 %v4512, %v4512
        %v4552 = vpack.c.b16 %v4514, %v4513
        %v4553 = vpack.c.b16 %v4515, %v4515
        %v4554 = vpack.c.b16 %v4517, %v4516
        %v4555 = vpack.c.b16 %v4518, %v4518
        %v4556 = vpack.c.b16 %v4520, %v4519
        %v4557 = vpack.c.b16 %v4521, %v4521
        %v4558 = vpack.c.b16 %v4523, %v4522
        %v4559 = vpack.c.b16 %v4524, %v4524
        %v4560 = vpack.c.b16 %v4526, %v4525
        %v4561 = vpack.c.b16 %v4527, %v4527
        %v4562 = vpack.c.b16 %v4529, %v4528
        %v4563 = vpack.c.b16 %v4530, %v4530
        %v4564 = vpack.c.b16 %v4532, %v4531
        %v4565 = vpack.c.b16 %v4533, %v4533
        %v4614 = vunpack.c.l.b16 %v4098
        %v4615 = vunpack.c.l.b16 %v4099
        %v4616 = vunpack.c.l.b16 %v4100
        %v4617 = vunpack.c.l.b16 %v4101
        %v4618 = vunpack.c.l.b16 %v4102
        %v4619 = vunpack.c.l.b16 %v4103
        %v4620 = vunpack.c.l.b16 %v4104
        %v4621 = vunpack.c.l.b16 %v4105
        %v4622 = vunpack.c.l.b16 %v4106
        %v4623 = vunpack.c.l.b16 %v4107
        %v4624 = vunpack.c.l.b16 %v4108
        %v4625 = vunpack.c.l.b16 %v4109
        %v4626 = vunpack.c.l.b16 %v4110
        %v4627 = vunpack.c.l.b16 %v4111
        %v4628 = vunpack.c.l.b16 %v4112
        %v4629 = vunpack.c.l.b16 %v4113
        %v4630 = vunpack.c.l.b16 %v4114
        %v4631 = vunpack.c.l.b16 %v4115
        %v4632 = vunpack.c.l.b16 %v4116
        %v4633 = vunpack.c.l.b16 %v4117
        %v4634 = vunpack.c.l.b16 %v4118
        %v4635 = vunpack.c.l.b16 %v4119
        %v4636 = vunpack.c.l.b16 %v4120
        %v4637 = vunpack.c.l.b16 %v4121
        %v4638 = vunpack.c.l.b16 %v4122
        %v4639 = vunpack.c.l.b16 %v4123
        %v4640 = vunpack.c.l.b16 %v4124
        %v4641 = vunpack.c.l.b16 %v4125
        %v4642 = vunpack.c.l.b16 %v4126
        %v4643 = vunpack.c.l.b16 %v4127
        %v4644 = vunpack.c.l.b16 %v4128
        %v4645 = vunpack.c.l.b16 %v4129
        %v4646 = vunpack.c.l.b16 %v4130
        %v4647 = vunpack.c.l.b16 %v4131
        %v4648 = vunpack.c.l.b16 %v4132
        %v4649 = vunpack.c.l.b16 %v4133
        %v4650 = vunpack.c.l.b16 %v4134
        %v4651 = vunpack.c.l.b16 %v4135
        %v4652 = vunpack.c.l.b16 %v4136
        %v4653 = vunpack.c.l.b16 %v4137
        %v4654 = vunpack.c.l.b16 %v4138
        %v4655 = vunpack.c.l.b16 %v4139
        %v4656 = vunpack.c.l.b16 %v4140
        %v4657 = vunpack.c.l.b16 %v4141
        %v4658 = vunpack.c.l.b16 %v4142
        %v4659 = vunpack.c.l.b16 %v4143
        %v4660 = vunpack.c.l.b16 %v4144
        %v4661 = vunpack.c.l.b16 %v4145
        %v4662 = vpack.c.b16 %v4615, %v4614
        %v4663 = vpack.c.b16 %v4616, %v4616
        %v4664 = vpack.c.b16 %v4618, %v4617
        %v4665 = vpack.c.b16 %v4619, %v4619
        %v4666 = vpack.c.b16 %v4621, %v4620
        %v4667 = vpack.c.b16 %v4622, %v4622
        %v4668 = vpack.c.b16 %v4624, %v4623
        %v4669 = vpack.c.b16 %v4625, %v4625
        %v4670 = vpack.c.b16 %v4627, %v4626
        %v4671 = vpack.c.b16 %v4628, %v4628
        %v4672 = vpack.c.b16 %v4630, %v4629
        %v4673 = vpack.c.b16 %v4631, %v4631
        %v4674 = vpack.c.b16 %v4633, %v4632
        %v4675 = vpack.c.b16 %v4634, %v4634
        %v4676 = vpack.c.b16 %v4636, %v4635
        %v4677 = vpack.c.b16 %v4637, %v4637
        %v4678 = vpack.c.b16 %v4639, %v4638
        %v4679 = vpack.c.b16 %v4640, %v4640
        %v4680 = vpack.c.b16 %v4642, %v4641
        %v4681 = vpack.c.b16 %v4643, %v4643
        %v4682 = vpack.c.b16 %v4645, %v4644
        %v4683 = vpack.c.b16 %v4646, %v4646
        %v4684 = vpack.c.b16 %v4648, %v4647
        %v4685 = vpack.c.b16 %v4649, %v4649
        %v4686 = vpack.c.b16 %v4651, %v4650
        %v4687 = vpack.c.b16 %v4652, %v4652
        %v4688 = vpack.c.b16 %v4654, %v4653
        %v4689 = vpack.c.b16 %v4655, %v4655
        %v4690 = vpack.c.b16 %v4657, %v4656
        %v4691 = vpack.c.b16 %v4658, %v4658
        %v4692 = vpack.c.b16 %v4660, %v4659
        %v4693 = vpack.c.b16 %v4661, %v4661
        %vm4694 = vcmask 1041408
        %v4695 = vrot.slane %v4662, 6
        %v4696 = vrot.slane %v4663, 6
        %v4697 = vsel %vm4694, %v4695, %v4696
        %v4698 = vrot.slane %v4664, 6
        %v4699 = vrot.slane %v4665, 6
        %v4700 = vsel %vm4694, %v4698, %v4699
        %v4701 = vrot.slane %v4666, 6
        %v4702 = vrot.slane %v4667, 6
        %v4703 = vsel %vm4694, %v4701, %v4702
        %v4704 = vrot.slane %v4668, 6
        %v4705 = vrot.slane %v4669, 6
        %v4706 = vsel %vm4694, %v4704, %v4705
        %v4707 = vrot.slane %v4670, 6
        %v4708 = vrot.slane %v4671, 6
        %v4709 = vsel %vm4694, %v4707, %v4708
        %v4710 = vrot.slane %v4672, 6
        %v4711 = vrot.slane %v4673, 6
        %v4712 = vsel %vm4694, %v4710, %v4711
        %v4713 = vrot.slane %v4674, 6
        %v4714 = vrot.slane %v4675, 6
        %v4715 = vsel %vm4694, %v4713, %v4714
        %v4716 = vrot.slane %v4676, 6
        %v4717 = vrot.slane %v4677, 6
        %v4718 = vsel %vm4694, %v4716, %v4717
        %v4719 = vrot.slane %v4678, 6
        %v4720 = vrot.slane %v4679, 6
        %v4721 = vsel %vm4694, %v4719, %v4720
        %v4722 = vrot.slane %v4680, 6
        %v4723 = vrot.slane %v4681, 6
        %v4724 = vsel %vm4694, %v4722, %v4723
        %v4725 = vrot.slane %v4682, 6
        %v4726 = vrot.slane %v4683, 6
        %v4727 = vsel %vm4694, %v4725, %v4726
        %v4728 = vrot.slane %v4684, 6
        %v4729 = vrot.slane %v4685, 6
        %v4730 = vsel %vm4694, %v4728, %v4729
        %v4731 = vrot.slane %v4686, 6
        %v4732 = vrot.slane %v4687, 6
        %v4733 = vsel %vm4694, %v4731, %v4732
        %v4734 = vrot.slane %v4688, 6
        %v4735 = vrot.slane %v4689, 6
        %v4736 = vsel %vm4694, %v4734, %v4735
        %v4737 = vrot.slane %v4690, 6
        %v4738 = vrot.slane %v4691, 6
        %v4739 = vsel %vm4694, %v4737, %v4738
        %v4740 = vrot.slane %v4692, 6
        %v4741 = vrot.slane %v4693, 6
        %v4742 = vsel %vm4694, %v4740, %v4741
        %4743 = vrot.lane.b32.xlu0 %v4695, 8
        %v4744 = vpop.permute.xlu0 %4743
        %4745 = vrot.lane.b32.xlu0 %v4697, 8
        %v4746 = vpop.permute.xlu0 %4745
        %4747 = vrot.lane.b32.xlu0 %v4698, 8
        %v4748 = vpop.permute.xlu0 %4747
        %4749 = vrot.lane.b32.xlu0 %v4700, 8
        %v4750 = vpop.permute.xlu0 %4749
        %4751 = vrot.lane.b32.xlu0 %v4701, 8
        %v4752 = vpop.permute.xlu0 %4751
        %4753 = vrot.lane.b32.xlu0 %v4703, 8
        %v4754 = vpop.permute.xlu0 %4753
        %4755 = vrot.lane.b32.xlu0 %v4704, 8
        %v4756 = vpop.permute.xlu0 %4755
        %4757 = vrot.lane.b32.xlu0 %v4706, 8
        %v4758 = vpop.permute.xlu0 %4757
        %4759 = vrot.lane.b32.xlu0 %v4707, 8
        %v4760 = vpop.permute.xlu0 %4759
        %4761 = vrot.lane.b32.xlu0 %v4709, 8
        %v4762 = vpop.permute.xlu0 %4761
        %4763 = vrot.lane.b32.xlu0 %v4710, 8
        %v4764 = vpop.permute.xlu0 %4763
        %4765 = vrot.lane.b32.xlu0 %v4712, 8
        %v4766 = vpop.permute.xlu0 %4765
        %4767 = vrot.lane.b32.xlu0 %v4713, 8
        %v4768 = vpop.permute.xlu0 %4767
        %4769 = vrot.lane.b32.xlu0 %v4715, 8
        %v4770 = vpop.permute.xlu0 %4769
        %4771 = vrot.lane.b32.xlu0 %v4716, 8
        %v4772 = vpop.permute.xlu0 %4771
        %4773 = vrot.lane.b32.xlu0 %v4718, 8
        %v4774 = vpop.permute.xlu0 %4773
        %4775 = vrot.lane.b32.xlu0 %v4719, 8
        %v4776 = vpop.permute.xlu0 %4775
        %4777 = vrot.lane.b32.xlu0 %v4721, 8
        %v4778 = vpop.permute.xlu0 %4777
        %4779 = vrot.lane.b32.xlu0 %v4722, 8
        %v4780 = vpop.permute.xlu0 %4779
        %4781 = vrot.lane.b32.xlu0 %v4724, 8
        %v4782 = vpop.permute.xlu0 %4781
        %4783 = vrot.lane.b32.xlu0 %v4725, 8
        %v4784 = vpop.permute.xlu0 %4783
        %4785 = vrot.lane.b32.xlu0 %v4727, 8
        %v4786 = vpop.permute.xlu0 %4785
        %4787 = vrot.lane.b32.xlu0 %v4728, 8
        %v4788 = vpop.permute.xlu0 %4787
        %4789 = vrot.lane.b32.xlu0 %v4730, 8
        %v4790 = vpop.permute.xlu0 %4789
        %4791 = vrot.lane.b32.xlu0 %v4731, 8
        %v4792 = vpop.permute.xlu0 %4791
        %4793 = vrot.lane.b32.xlu0 %v4733, 8
        %v4794 = vpop.permute.xlu0 %4793
        %4795 = vrot.lane.b32.xlu0 %v4734, 8
        %v4796 = vpop.permute.xlu0 %4795
        %4797 = vrot.lane.b32.xlu0 %v4736, 8
        %v4798 = vpop.permute.xlu0 %4797
        %4799 = vrot.lane.b32.xlu0 %v4737, 8
        %v4800 = vpop.permute.xlu0 %4799
        %4801 = vrot.lane.b32.xlu0 %v4739, 8
        %v4802 = vpop.permute.xlu0 %4801
        %4803 = vrot.lane.b32.xlu0 %v4740, 8
        %v4804 = vpop.permute.xlu0 %4803
        %4805 = vrot.lane.b32.xlu0 %v4742, 8
        %v4806 = vpop.permute.xlu0 %4805
        %v4855 = vunpack.c.l.b16 %v4146
        %v4856 = vunpack.c.l.b16 %v4147
        %v4857 = vunpack.c.l.b16 %v4148
        %v4858 = vunpack.c.l.b16 %v4149
        %v4859 = vunpack.c.l.b16 %v4150
        %v4860 = vunpack.c.l.b16 %v4151
        %v4861 = vunpack.c.l.b16 %v4152
        %v4862 = vunpack.c.l.b16 %v4153
        %v4863 = vunpack.c.l.b16 %v4154
        %v4864 = vunpack.c.l.b16 %v4155
        %v4865 = vunpack.c.l.b16 %v4156
        %v4866 = vunpack.c.l.b16 %v4157
        %v4867 = vunpack.c.l.b16 %v4158
        %v4868 = vunpack.c.l.b16 %v4159
        %v4869 = vunpack.c.l.b16 %v4160
        %v4870 = vunpack.c.l.b16 %v4161
        %v4871 = vunpack.c.l.b16 %v4162
        %v4872 = vunpack.c.l.b16 %v4163
        %v4873 = vunpack.c.l.b16 %v4164
        %v4874 = vunpack.c.l.b16 %v4165
        %v4875 = vunpack.c.l.b16 %v4166
        %v4876 = vunpack.c.l.b16 %v4167
        %v4877 = vunpack.c.l.b16 %v4168
        %v4878 = vunpack.c.l.b16 %v4169
        %v4879 = vunpack.c.l.b16 %v4170
        %v4880 = vunpack.c.l.b16 %v4171
        %v4881 = vunpack.c.l.b16 %v4172
        %v4882 = vunpack.c.l.b16 %v4173
        %v4883 = vunpack.c.l.b16 %v4174
        %v4884 = vunpack.c.l.b16 %v4175
        %v4885 = vunpack.c.l.b16 %v4176
        %v4886 = vunpack.c.l.b16 %v4177
        %v4887 = vunpack.c.l.b16 %v4178
        %v4888 = vunpack.c.l.b16 %v4179
        %v4889 = vunpack.c.l.b16 %v4180
        %v4890 = vunpack.c.l.b16 %v4181
        %v4891 = vunpack.c.l.b16 %v4182
        %v4892 = vunpack.c.l.b16 %v4183
        %v4893 = vunpack.c.l.b16 %v4184
        %v4894 = vunpack.c.l.b16 %v4185
        %v4895 = vunpack.c.l.b16 %v4186
        %v4896 = vunpack.c.l.b16 %v4187
        %v4897 = vunpack.c.l.b16 %v4188
        %v4898 = vunpack.c.l.b16 %v4189
        %v4899 = vunpack.c.l.b16 %v4190
        %v4900 = vunpack.c.l.b16 %v4191
        %v4901 = vunpack.c.l.b16 %v4192
        %v4902 = vunpack.c.l.b16 %v4193
        %v4903 = vpack.c.b16 %v4856, %v4855
        %v4904 = vpack.c.b16 %v4857, %v4857
        %v4905 = vpack.c.b16 %v4859, %v4858
        %v4906 = vpack.c.b16 %v4860, %v4860
        %v4907 = vpack.c.b16 %v4862, %v4861
        %v4908 = vpack.c.b16 %v4863, %v4863
        %v4909 = vpack.c.b16 %v4865, %v4864
        %v4910 = vpack.c.b16 %v4866, %v4866
        %v4911 = vpack.c.b16 %v4868, %v4867
        %v4912 = vpack.c.b16 %v4869, %v4869
        %v4913 = vpack.c.b16 %v4871, %v4870
        %v4914 = vpack.c.b16 %v4872, %v4872
        %v4915 = vpack.c.b16 %v4874, %v4873
        %v4916 = vpack.c.b16 %v4875, %v4875
        %v4917 = vpack.c.b16 %v4877, %v4876
        %v4918 = vpack.c.b16 %v4878, %v4878
        %v4919 = vpack.c.b16 %v4880, %v4879
        %v4920 = vpack.c.b16 %v4881, %v4881
        %v4921 = vpack.c.b16 %v4883, %v4882
        %v4922 = vpack.c.b16 %v4884, %v4884
        %v4923 = vpack.c.b16 %v4886, %v4885
        %v4924 = vpack.c.b16 %v4887, %v4887
        %v4925 = vpack.c.b16 %v4889, %v4888
        %v4926 = vpack.c.b16 %v4890, %v4890
        %v4927 = vpack.c.b16 %v4892, %v4891
        %v4928 = vpack.c.b16 %v4893, %v4893
        %v4929 = vpack.c.b16 %v4895, %v4894
        %v4930 = vpack.c.b16 %v4896, %v4896
        %v4931 = vpack.c.b16 %v4898, %v4897
        %v4932 = vpack.c.b16 %v4899, %v4899
        %v4933 = vpack.c.b16 %v4901, %v4900
        %v4934 = vpack.c.b16 %v4902, %v4902
        %4935 = vrot.lane.b32.xlu0 %v4903, 16
        %v4936 = vpop.permute.xlu0 %4935
        %4937 = vrot.lane.b32.xlu0 %v4904, 16
        %v4938 = vpop.permute.xlu0 %4937
        %4939 = vrot.lane.b32.xlu0 %v4905, 16
        %v4940 = vpop.permute.xlu0 %4939
        %4941 = vrot.lane.b32.xlu0 %v4906, 16
        %v4942 = vpop.permute.xlu0 %4941
        %4943 = vrot.lane.b32.xlu0 %v4907, 16
        %v4944 = vpop.permute.xlu0 %4943
        %4945 = vrot.lane.b32.xlu0 %v4908, 16
        %v4946 = vpop.permute.xlu0 %4945
        %4947 = vrot.lane.b32.xlu0 %v4909, 16
        %v4948 = vpop.permute.xlu0 %4947
        %4949 = vrot.lane.b32.xlu0 %v4910, 16
        %v4950 = vpop.permute.xlu0 %4949
        %4951 = vrot.lane.b32.xlu0 %v4911, 16
        %v4952 = vpop.permute.xlu0 %4951
        %4953 = vrot.lane.b32.xlu0 %v4912, 16
        %v4954 = vpop.permute.xlu0 %4953
        %4955 = vrot.lane.b32.xlu0 %v4913, 16
        %v4956 = vpop.permute.xlu0 %4955
        %4957 = vrot.lane.b32.xlu0 %v4914, 16
        %v4958 = vpop.permute.xlu0 %4957
        %4959 = vrot.lane.b32.xlu0 %v4915, 16
        %v4960 = vpop.permute.xlu0 %4959
        %4961 = vrot.lane.b32.xlu0 %v4916, 16
        %v4962 = vpop.permute.xlu0 %4961
        %4963 = vrot.lane.b32.xlu0 %v4917, 16
        %v4964 = vpop.permute.xlu0 %4963
        %4965 = vrot.lane.b32.xlu0 %v4918, 16
        %v4966 = vpop.permute.xlu0 %4965
        %4967 = vrot.lane.b32.xlu0 %v4919, 16
        %v4968 = vpop.permute.xlu0 %4967
        %4969 = vrot.lane.b32.xlu0 %v4920, 16
        %v4970 = vpop.permute.xlu0 %4969
        %4971 = vrot.lane.b32.xlu0 %v4921, 16
        %v4972 = vpop.permute.xlu0 %4971
        %4973 = vrot.lane.b32.xlu0 %v4922, 16
        %v4974 = vpop.permute.xlu0 %4973
        %4975 = vrot.lane.b32.xlu0 %v4923, 16
        %v4976 = vpop.permute.xlu0 %4975
        %4977 = vrot.lane.b32.xlu0 %v4924, 16
        %v4978 = vpop.permute.xlu0 %4977
        %4979 = vrot.lane.b32.xlu0 %v4925, 16
        %v4980 = vpop.permute.xlu0 %4979
        %4981 = vrot.lane.b32.xlu0 %v4926, 16
        %v4982 = vpop.permute.xlu0 %4981
        %4983 = vrot.lane.b32.xlu0 %v4927, 16
        %v4984 = vpop.permute.xlu0 %4983
        %4985 = vrot.lane.b32.xlu0 %v4928, 16
        %v4986 = vpop.permute.xlu0 %4985
        %4987 = vrot.lane.b32.xlu0 %v4929, 16
        %v4988 = vpop.permute.xlu0 %4987
        %4989 = vrot.lane.b32.xlu0 %v4930, 16
        %v4990 = vpop.permute.xlu0 %4989
        %4991 = vrot.lane.b32.xlu0 %v4931, 16
        %v4992 = vpop.permute.xlu0 %4991
        %4993 = vrot.lane.b32.xlu0 %v4932, 16
        %v4994 = vpop.permute.xlu0 %4993
        %4995 = vrot.lane.b32.xlu0 %v4933, 16
        %v4996 = vpop.permute.xlu0 %4995
        %4997 = vrot.lane.b32.xlu0 %v4934, 16
        %v4998 = vpop.permute.xlu0 %4997
        %v5047 = vunpack.c.l.b16 %v4194
        %v5048 = vunpack.c.l.b16 %v4195
        %v5049 = vunpack.c.l.b16 %v4196
        %v5050 = vunpack.c.l.b16 %v4197
        %v5051 = vunpack.c.l.b16 %v4198
        %v5052 = vunpack.c.l.b16 %v4199
        %v5053 = vunpack.c.l.b16 %v4200
        %v5054 = vunpack.c.l.b16 %v4201
        %v5055 = vunpack.c.l.b16 %v4202
        %v5056 = vunpack.c.l.b16 %v4203
        %v5057 = vunpack.c.l.b16 %v4204
        %v5058 = vunpack.c.l.b16 %v4205
        %v5059 = vunpack.c.l.b16 %v4206
        %v5060 = vunpack.c.l.b16 %v4207
        %v5061 = vunpack.c.l.b16 %v4208
        %v5062 = vunpack.c.l.b16 %v4209
        %v5063 = vunpack.c.l.b16 %v4210
        %v5064 = vunpack.c.l.b16 %v4211
        %v5065 = vunpack.c.l.b16 %v4212
        %v5066 = vunpack.c.l.b16 %v4213
        %v5067 = vunpack.c.l.b16 %v4214
        %v5068 = vunpack.c.l.b16 %v4215
        %v5069 = vunpack.c.l.b16 %v4216
        %v5070 = vunpack.c.l.b16 %v4217
        %v5071 = vunpack.c.l.b16 %v4218
        %v5072 = vunpack.c.l.b16 %v4219
        %v5073 = vunpack.c.l.b16 %v4220
        %v5074 = vunpack.c.l.b16 %v4221
        %v5075 = vunpack.c.l.b16 %v4222
        %v5076 = vunpack.c.l.b16 %v4223
        %v5077 = vunpack.c.l.b16 %v4224
        %v5078 = vunpack.c.l.b16 %v4225
        %v5079 = vunpack.c.l.b16 %v4226
        %v5080 = vunpack.c.l.b16 %v4227
        %v5081 = vunpack.c.l.b16 %v4228
        %v5082 = vunpack.c.l.b16 %v4229
        %v5083 = vunpack.c.l.b16 %v4230
        %v5084 = vunpack.c.l.b16 %v4231
        %v5085 = vunpack.c.l.b16 %v4232
        %v5086 = vunpack.c.l.b16 %v4233
        %v5087 = vunpack.c.l.b16 %v4234
        %v5088 = vunpack.c.l.b16 %v4235
        %v5089 = vunpack.c.l.b16 %v4236
        %v5090 = vunpack.c.l.b16 %v4237
        %v5091 = vunpack.c.l.b16 %v4238
        %v5092 = vunpack.c.l.b16 %v4239
        %v5093 = vunpack.c.l.b16 %v4240
        %v5094 = vunpack.c.l.b16 %v4241
        %v5095 = vpack.c.b16 %v5048, %v5047
        %v5096 = vpack.c.b16 %v5049, %v5049
        %v5097 = vpack.c.b16 %v5051, %v5050
        %v5098 = vpack.c.b16 %v5052, %v5052
        %v5099 = vpack.c.b16 %v5054, %v5053
        %v5100 = vpack.c.b16 %v5055, %v5055
        %v5101 = vpack.c.b16 %v5057, %v5056
        %v5102 = vpack.c.b16 %v5058, %v5058
        %v5103 = vpack.c.b16 %v5060, %v5059
        %v5104 = vpack.c.b16 %v5061, %v5061
        %v5105 = vpack.c.b16 %v5063, %v5062
        %v5106 = vpack.c.b16 %v5064, %v5064
        %v5107 = vpack.c.b16 %v5066, %v5065
        %v5108 = vpack.c.b16 %v5067, %v5067
        %v5109 = vpack.c.b16 %v5069, %v5068
        %v5110 = vpack.c.b16 %v5070, %v5070
        %v5111 = vpack.c.b16 %v5072, %v5071
        %v5112 = vpack.c.b16 %v5073, %v5073
        %v5113 = vpack.c.b16 %v5075, %v5074
        %v5114 = vpack.c.b16 %v5076, %v5076
        %v5115 = vpack.c.b16 %v5078, %v5077
        %v5116 = vpack.c.b16 %v5079, %v5079
        %v5117 = vpack.c.b16 %v5081, %v5080
        %v5118 = vpack.c.b16 %v5082, %v5082
        %v5119 = vpack.c.b16 %v5084, %v5083
        %v5120 = vpack.c.b16 %v5085, %v5085
        %v5121 = vpack.c.b16 %v5087, %v5086
        %v5122 = vpack.c.b16 %v5088, %v5088
        %v5123 = vpack.c.b16 %v5090, %v5089
        %v5124 = vpack.c.b16 %v5091, %v5091
        %v5125 = vpack.c.b16 %v5093, %v5092
        %v5126 = vpack.c.b16 %v5094, %v5094
        %5127 = vrot.lane.b32.xlu0 %v5095, 24
        %v5128 = vpop.permute.xlu0 %5127
        %5129 = vrot.lane.b32.xlu0 %v5096, 24
        %v5130 = vpop.permute.xlu0 %5129
        %5131 = vrot.lane.b32.xlu0 %v5097, 24
        %v5132 = vpop.permute.xlu0 %5131
        %5133 = vrot.lane.b32.xlu0 %v5098, 24
        %v5134 = vpop.permute.xlu0 %5133
        %5135 = vrot.lane.b32.xlu0 %v5099, 24
        %v5136 = vpop.permute.xlu0 %5135
        %5137 = vrot.lane.b32.xlu0 %v5100, 24
        %v5138 = vpop.permute.xlu0 %5137
        %5139 = vrot.lane.b32.xlu0 %v5101, 24
        %v5140 = vpop.permute.xlu0 %5139
        %5141 = vrot.lane.b32.xlu0 %v5102, 24
        %v5142 = vpop.permute.xlu0 %5141
        %5143 = vrot.lane.b32.xlu0 %v5103, 24
        %v5144 = vpop.permute.xlu0 %5143
        %5145 = vrot.lane.b32.xlu0 %v5104, 24
        %v5146 = vpop.permute.xlu0 %5145
        %5147 = vrot.lane.b32.xlu0 %v5105, 24
        %v5148 = vpop.permute.xlu0 %5147
        %5149 = vrot.lane.b32.xlu0 %v5106, 24
        %v5150 = vpop.permute.xlu0 %5149
        %5151 = vrot.lane.b32.xlu0 %v5107, 24
        %v5152 = vpop.permute.xlu0 %5151
        %5153 = vrot.lane.b32.xlu0 %v5108, 24
        %v5154 = vpop.permute.xlu0 %5153
        %5155 = vrot.lane.b32.xlu0 %v5109, 24
        %v5156 = vpop.permute.xlu0 %5155
        %5157 = vrot.lane.b32.xlu0 %v5110, 24
        %v5158 = vpop.permute.xlu0 %5157
        %5159 = vrot.lane.b32.xlu0 %v5111, 24
        %v5160 = vpop.permute.xlu0 %5159
        %5161 = vrot.lane.b32.xlu0 %v5112, 24
        %v5162 = vpop.permute.xlu0 %5161
        %5163 = vrot.lane.b32.xlu0 %v5113, 24
        %v5164 = vpop.permute.xlu0 %5163
        %5165 = vrot.lane.b32.xlu0 %v5114, 24
        %v5166 = vpop.permute.xlu0 %5165
        %5167 = vrot.lane.b32.xlu0 %v5115, 24
        %v5168 = vpop.permute.xlu0 %5167
        %5169 = vrot.lane.b32.xlu0 %v5116, 24
        %v5170 = vpop.permute.xlu0 %5169
        %5171 = vrot.lane.b32.xlu0 %v5117, 24
        %v5172 = vpop.permute.xlu0 %5171
        %5173 = vrot.lane.b32.xlu0 %v5118, 24
        %v5174 = vpop.permute.xlu0 %5173
        %5175 = vrot.lane.b32.xlu0 %v5119, 24
        %v5176 = vpop.permute.xlu0 %5175
        %5177 = vrot.lane.b32.xlu0 %v5120, 24
        %v5178 = vpop.permute.xlu0 %5177
        %5179 = vrot.lane.b32.xlu0 %v5121, 24
        %v5180 = vpop.permute.xlu0 %5179
        %5181 = vrot.lane.b32.xlu0 %v5122, 24
        %v5182 = vpop.permute.xlu0 %5181
        %5183 = vrot.lane.b32.xlu0 %v5123, 24
        %v5184 = vpop.permute.xlu0 %5183
        %5185 = vrot.lane.b32.xlu0 %v5124, 24
        %v5186 = vpop.permute.xlu0 %5185
        %5187 = vrot.lane.b32.xlu0 %v5125, 24
        %v5188 = vpop.permute.xlu0 %5187
        %5189 = vrot.lane.b32.xlu0 %v5126, 24
        %v5190 = vpop.permute.xlu0 %5189
        %v5191 = vrot.slane %v2135, 6
        %v5192 = vrot.slane %v2136, 6
        %v5193 = vsel %vm4694, %v5191, %v5192
        %v5194 = vrot.slane %v2137, 6
        %v5195 = vrot.slane %v2138, 6
        %v5196 = vsel %vm4694, %v5194, %v5195
        %v5197 = vrot.slane %v2139, 6
        %v5198 = vrot.slane %v2140, 6
        %v5199 = vsel %vm4694, %v5197, %v5198
        %v5200 = vrot.slane %v2141, 6
        %v5201 = vrot.slane %v2142, 6
        %v5202 = vsel %vm4694, %v5200, %v5201
        %v5203 = vrot.slane %v2143, 6
        %v5204 = vrot.slane %v2144, 6
        %v5205 = vsel %vm4694, %v5203, %v5204
        %v5206 = vrot.slane %v2145, 6
        %v5207 = vrot.slane %v2146, 6
        %v5208 = vsel %vm4694, %v5206, %v5207
        %v5209 = vrot.slane %v2147, 6
        %v5210 = vrot.slane %v2148, 6
        %v5211 = vsel %vm4694, %v5209, %v5210
        %v5212 = vrot.slane %v2149, 6
        %v5213 = vrot.slane %v2150, 6
        %v5214 = vsel %vm4694, %v5212, %v5213
        %v5215 = vrot.slane %v2151, 6
        %v5216 = vrot.slane %v2152, 6
        %v5217 = vsel %vm4694, %v5215, %v5216
        %v5218 = vrot.slane %v2153, 6
        %v5219 = vrot.slane %v2154, 6
        %v5220 = vsel %vm4694, %v5218, %v5219
        %v5221 = vrot.slane %v2155, 6
        %v5222 = vrot.slane %v2156, 6
        %v5223 = vsel %vm4694, %v5221, %v5222
        %v5224 = vrot.slane %v2157, 6
        %v5225 = vrot.slane %v2158, 6
        %v5226 = vsel %vm4694, %v5224, %v5225
        %v5227 = vrot.slane %v2159, 6
        %v5228 = vrot.slane %v2160, 6
        %v5229 = vsel %vm4694, %v5227, %v5228
        %v5230 = vrot.slane %v2161, 6
        %v5231 = vrot.slane %v2162, 6
        %v5232 = vsel %vm4694, %v5230, %v5231
        %v5233 = vrot.slane %v2163, 6
        %v5234 = vrot.slane %v2164, 6
        %v5235 = vsel %vm4694, %v5233, %v5234
        %v5236 = vrot.slane %v2165, 6
        %v5237 = vrot.slane %v2166, 6
        %v5238 = vsel %vm4694, %v5236, %v5237
        %5239 = vrot.lane.b32.xlu0 %v5191, 32
        %v5240 = vpop.permute.xlu0 %5239
        %5241 = vrot.lane.b32.xlu0 %v5193, 32
        %v5242 = vpop.permute.xlu0 %5241
        %5243 = vrot.lane.b32.xlu0 %v5194, 32
        %v5244 = vpop.permute.xlu0 %5243
        %5245 = vrot.lane.b32.xlu0 %v5196, 32
        %v5246 = vpop.permute.xlu0 %5245
        %5247 = vrot.lane.b32.xlu0 %v5197, 32
        %v5248 = vpop.permute.xlu0 %5247
        %5249 = vrot.lane.b32.xlu0 %v5199, 32
        %v5250 = vpop.permute.xlu0 %5249
        %5251 = vrot.lane.b32.xlu0 %v5200, 32
        %v5252 = vpop.permute.xlu0 %5251
        %5253 = vrot.lane.b32.xlu0 %v5202, 32
        %v5254 = vpop.permute.xlu0 %5253
        %5255 = vrot.lane.b32.xlu0 %v5203, 32
        %v5256 = vpop.permute.xlu0 %5255
        %5257 = vrot.lane.b32.xlu0 %v5205, 32
        %v5258 = vpop.permute.xlu0 %5257
        %5259 = vrot.lane.b32.xlu0 %v5206, 32
        %v5260 = vpop.permute.xlu0 %5259
        %5261 = vrot.lane.b32.xlu0 %v5208, 32
        %v5262 = vpop.permute.xlu0 %5261
        %5263 = vrot.lane.b32.xlu0 %v5209, 32
        %v5264 = vpop.permute.xlu0 %5263
        %5265 = vrot.lane.b32.xlu0 %v5211, 32
        %v5266 = vpop.permute.xlu0 %5265
        %5267 = vrot.lane.b32.xlu0 %v5212, 32
        %v5268 = vpop.permute.xlu0 %5267
        %5269 = vrot.lane.b32.xlu0 %v5214, 32
        %v5270 = vpop.permute.xlu0 %5269
        %5271 = vrot.lane.b32.xlu0 %v5215, 32
        %v5272 = vpop.permute.xlu0 %5271
        %5273 = vrot.lane.b32.xlu0 %v5217, 32
        %v5274 = vpop.permute.xlu0 %5273
        %5275 = vrot.lane.b32.xlu0 %v5218, 32
        %v5276 = vpop.permute.xlu0 %5275
        %5277 = vrot.lane.b32.xlu0 %v5220, 32
        %v5278 = vpop.permute.xlu0 %5277
        %5279 = vrot.lane.b32.xlu0 %v5221, 32
        %v5280 = vpop.permute.xlu0 %5279
        %5281 = vrot.lane.b32.xlu0 %v5223, 32
        %v5282 = vpop.permute.xlu0 %5281
        %5283 = vrot.lane.b32.xlu0 %v5224, 32
        %v5284 = vpop.permute.xlu0 %5283
        %5285 = vrot.lane.b32.xlu0 %v5226, 32
        %v5286 = vpop.permute.xlu0 %5285
        %5287 = vrot.lane.b32.xlu0 %v5227, 32
        %v5288 = vpop.permute.xlu0 %5287
        %5289 = vrot.lane.b32.xlu0 %v5229, 32
        %v5290 = vpop.permute.xlu0 %5289
        %5291 = vrot.lane.b32.xlu0 %v5230, 32
        %v5292 = vpop.permute.xlu0 %5291
        %5293 = vrot.lane.b32.xlu0 %v5232, 32
        %v5294 = vpop.permute.xlu0 %5293
        %5295 = vrot.lane.b32.xlu0 %v5233, 32
        %v5296 = vpop.permute.xlu0 %5295
        %5297 = vrot.lane.b32.xlu0 %v5235, 32
        %v5298 = vpop.permute.xlu0 %5297
        %5299 = vrot.lane.b32.xlu0 %v5236, 32
        %v5300 = vpop.permute.xlu0 %5299
        %5301 = vrot.lane.b32.xlu0 %v5238, 32
        %v5302 = vpop.permute.xlu0 %5301
        %v5351 = vunpack.c.l.b16 %v4242
        %v5352 = vunpack.c.l.b16 %v4243
        %v5353 = vunpack.c.l.b16 %v4244
        %v5354 = vunpack.c.l.b16 %v4245
        %v5355 = vunpack.c.l.b16 %v4246
        %v5356 = vunpack.c.l.b16 %v4247
        %v5357 = vunpack.c.l.b16 %v4248
        %v5358 = vunpack.c.l.b16 %v4249
        %v5359 = vunpack.c.l.b16 %v4250
        %v5360 = vunpack.c.l.b16 %v4251
        %v5361 = vunpack.c.l.b16 %v4252
        %v5362 = vunpack.c.l.b16 %v4253
        %v5363 = vunpack.c.l.b16 %v4254
        %v5364 = vunpack.c.l.b16 %v4255
        %v5365 = vunpack.c.l.b16 %v4256
        %v5366 = vunpack.c.l.b16 %v4257
        %v5367 = vunpack.c.l.b16 %v4258
        %v5368 = vunpack.c.l.b16 %v4259
        %v5369 = vunpack.c.l.b16 %v4260
        %v5370 = vunpack.c.l.b16 %v4261
        %v5371 = vunpack.c.l.b16 %v4262
        %v5372 = vunpack.c.l.b16 %v4263
        %v5373 = vunpack.c.l.b16 %v4264
        %v5374 = vunpack.c.l.b16 %v4265
        %v5375 = vunpack.c.l.b16 %v4266
        %v5376 = vunpack.c.l.b16 %v4267
        %v5377 = vunpack.c.l.b16 %v4268
        %v5378 = vunpack.c.l.b16 %v4269
        %v5379 = vunpack.c.l.b16 %v4270
        %v5380 = vunpack.c.l.b16 %v4271
        %v5381 = vunpack.c.l.b16 %v4272
        %v5382 = vunpack.c.l.b16 %v4273
        %v5383 = vunpack.c.l.b16 %v4274
        %v5384 = vunpack.c.l.b16 %v4275
        %v5385 = vunpack.c.l.b16 %v4276
        %v5386 = vunpack.c.l.b16 %v4277
        %v5387 = vunpack.c.l.b16 %v4278
        %v5388 = vunpack.c.l.b16 %v4279
        %v5389 = vunpack.c.l.b16 %v4280
        %v5390 = vunpack.c.l.b16 %v4281
        %v5391 = vunpack.c.l.b16 %v4282
        %v5392 = vunpack.c.l.b16 %v4283
        %v5393 = vunpack.c.l.b16 %v4284
        %v5394 = vunpack.c.l.b16 %v4285
        %v5395 = vunpack.c.l.b16 %v4286
        %v5396 = vunpack.c.l.b16 %v4287
        %v5397 = vunpack.c.l.b16 %v4288
        %v5398 = vunpack.c.l.b16 %v4289
        %v5399 = vpack.c.b16 %v5352, %v5351
        %v5400 = vpack.c.b16 %v5353, %v5353
        %v5401 = vpack.c.b16 %v5355, %v5354
        %v5402 = vpack.c.b16 %v5356, %v5356
        %v5403 = vpack.c.b16 %v5358, %v5357
        %v5404 = vpack.c.b16 %v5359, %v5359
        %v5405 = vpack.c.b16 %v5361, %v5360
        %v5406 = vpack.c.b16 %v5362, %v5362
        %v5407 = vpack.c.b16 %v5364, %v5363
        %v5408 = vpack.c.b16 %v5365, %v5365
        %v5409 = vpack.c.b16 %v5367, %v5366
        %v5410 = vpack.c.b16 %v5368, %v5368
        %v5411 = vpack.c.b16 %v5370, %v5369
        %v5412 = vpack.c.b16 %v5371, %v5371
        %v5413 = vpack.c.b16 %v5373, %v5372
        %v5414 = vpack.c.b16 %v5374, %v5374
        %v5415 = vpack.c.b16 %v5376, %v5375
        %v5416 = vpack.c.b16 %v5377, %v5377
        %v5417 = vpack.c.b16 %v5379, %v5378
        %v5418 = vpack.c.b16 %v5380, %v5380
        %v5419 = vpack.c.b16 %v5382, %v5381
        %v5420 = vpack.c.b16 %v5383, %v5383
        %v5421 = vpack.c.b16 %v5385, %v5384
        %v5422 = vpack.c.b16 %v5386, %v5386
        %v5423 = vpack.c.b16 %v5388, %v5387
        %v5424 = vpack.c.b16 %v5389, %v5389
        %v5425 = vpack.c.b16 %v5391, %v5390
        %v5426 = vpack.c.b16 %v5392, %v5392
        %v5427 = vpack.c.b16 %v5394, %v5393
        %v5428 = vpack.c.b16 %v5395, %v5395
        %v5429 = vpack.c.b16 %v5397, %v5396
        %v5430 = vpack.c.b16 %v5398, %v5398
        %5431 = vrot.lane.b32.xlu0 %v5399, 40
        %v5432 = vpop.permute.xlu0 %5431
        %5433 = vrot.lane.b32.xlu0 %v5400, 40
        %v5434 = vpop.permute.xlu0 %5433
        %5435 = vrot.lane.b32.xlu0 %v5401, 40
        %v5436 = vpop.permute.xlu0 %5435
        %5437 = vrot.lane.b32.xlu0 %v5402, 40
        %v5438 = vpop.permute.xlu0 %5437
        %5439 = vrot.lane.b32.xlu0 %v5403, 40
        %v5440 = vpop.permute.xlu0 %5439
        %5441 = vrot.lane.b32.xlu0 %v5404, 40
        %v5442 = vpop.permute.xlu0 %5441
        %5443 = vrot.lane.b32.xlu0 %v5405, 40
        %v5444 = vpop.permute.xlu0 %5443
        %5445 = vrot.lane.b32.xlu0 %v5406, 40
        %v5446 = vpop.permute.xlu0 %5445
        %5447 = vrot.lane.b32.xlu0 %v5407, 40
        %v5448 = vpop.permute.xlu0 %5447
        %5449 = vrot.lane.b32.xlu0 %v5408, 40
        %v5450 = vpop.permute.xlu0 %5449
        %5451 = vrot.lane.b32.xlu0 %v5409, 40
        %v5452 = vpop.permute.xlu0 %5451
        %5453 = vrot.lane.b32.xlu0 %v5410, 40
        %v5454 = vpop.permute.xlu0 %5453
        %5455 = vrot.lane.b32.xlu0 %v5411, 40
        %v5456 = vpop.permute.xlu0 %5455
        %5457 = vrot.lane.b32.xlu0 %v5412, 40
        %v5458 = vpop.permute.xlu0 %5457
        %5459 = vrot.lane.b32.xlu0 %v5413, 40
        %v5460 = vpop.permute.xlu0 %5459
        %5461 = vrot.lane.b32.xlu0 %v5414, 40
        %v5462 = vpop.permute.xlu0 %5461
        %5463 = vrot.lane.b32.xlu0 %v5415, 40
        %v5464 = vpop.permute.xlu0 %5463
        %5465 = vrot.lane.b32.xlu0 %v5416, 40
        %v5466 = vpop.permute.xlu0 %5465
        %5467 = vrot.lane.b32.xlu0 %v5417, 40
        %v5468 = vpop.permute.xlu0 %5467
        %5469 = vrot.lane.b32.xlu0 %v5418, 40
        %v5470 = vpop.permute.xlu0 %5469
        %5471 = vrot.lane.b32.xlu0 %v5419, 40
        %v5472 = vpop.permute.xlu0 %5471
        %5473 = vrot.lane.b32.xlu0 %v5420, 40
        %v5474 = vpop.permute.xlu0 %5473
        %5475 = vrot.lane.b32.xlu0 %v5421, 40
        %v5476 = vpop.permute.xlu0 %5475
        %5477 = vrot.lane.b32.xlu0 %v5422, 40
        %v5478 = vpop.permute.xlu0 %5477
        %5479 = vrot.lane.b32.xlu0 %v5423, 40
        %v5480 = vpop.permute.xlu0 %5479
        %5481 = vrot.lane.b32.xlu0 %v5424, 40
        %v5482 = vpop.permute.xlu0 %5481
        %5483 = vrot.lane.b32.xlu0 %v5425, 40
        %v5484 = vpop.permute.xlu0 %5483
        %5485 = vrot.lane.b32.xlu0 %v5426, 40
        %v5486 = vpop.permute.xlu0 %5485
        %5487 = vrot.lane.b32.xlu0 %v5427, 40
        %v5488 = vpop.permute.xlu0 %5487
        %5489 = vrot.lane.b32.xlu0 %v5428, 40
        %v5490 = vpop.permute.xlu0 %5489
        %5491 = vrot.lane.b32.xlu0 %v5429, 40
        %v5492 = vpop.permute.xlu0 %5491
        %5493 = vrot.lane.b32.xlu0 %v5430, 40
        %v5494 = vpop.permute.xlu0 %5493
        %v5543 = vunpack.c.l.b16 %v4294
        %v5544 = vunpack.c.l.b16 %v4295
        %v5545 = vunpack.c.l.b16 %v4296
        %v5546 = vunpack.c.l.b16 %v4297
        %v5547 = vunpack.c.l.b16 %v4298
        %v5548 = vunpack.c.l.b16 %v4299
        %v5549 = vunpack.c.l.b16 %v4300
        %v5550 = vunpack.c.l.b16 %v4301
        %v5551 = vunpack.c.l.b16 %v4302
        %v5552 = vunpack.c.l.b16 %v4303
        %v5553 = vunpack.c.l.b16 %v4304
        %v5554 = vunpack.c.l.b16 %v4305
        %v5555 = vunpack.c.l.b16 %v4306
        %v5556 = vunpack.c.l.b16 %v4307
        %v5557 = vunpack.c.l.b16 %v4308
        %v5558 = vunpack.c.l.b16 %v4309
        %v5559 = vunpack.c.l.b16 %v4310
        %v5560 = vunpack.c.l.b16 %v4311
        %v5561 = vunpack.c.l.b16 %v4312
        %v5562 = vunpack.c.l.b16 %v4313
        %v5563 = vunpack.c.l.b16 %v4314
        %v5564 = vunpack.c.l.b16 %v4315
        %v5565 = vunpack.c.l.b16 %v4316
        %v5566 = vunpack.c.l.b16 %v4317
        %v5567 = vunpack.c.l.b16 %v4318
        %v5568 = vunpack.c.l.b16 %v4319
        %v5569 = vunpack.c.l.b16 %v4320
        %v5570 = vunpack.c.l.b16 %v4321
        %v5571 = vunpack.c.l.b16 %v4322
        %v5572 = vunpack.c.l.b16 %v4323
        %v5573 = vunpack.c.l.b16 %v4324
        %v5574 = vunpack.c.l.b16 %v4325
        %v5575 = vunpack.c.l.b16 %v4326
        %v5576 = vunpack.c.l.b16 %v4327
        %v5577 = vunpack.c.l.b16 %v4328
        %v5578 = vunpack.c.l.b16 %v4329
        %v5579 = vunpack.c.l.b16 %v4330
        %v5580 = vunpack.c.l.b16 %v4331
        %v5581 = vunpack.c.l.b16 %v4332
        %v5582 = vunpack.c.l.b16 %v4333
        %v5583 = vunpack.c.l.b16 %v4334
        %v5584 = vunpack.c.l.b16 %v4335
        %v5585 = vunpack.c.l.b16 %v4336
        %v5586 = vunpack.c.l.b16 %v4337
        %v5587 = vunpack.c.l.b16 %v4338
        %v5588 = vunpack.c.l.b16 %v4339
        %v5589 = vunpack.c.l.b16 %v4340
        %v5590 = vunpack.c.l.b16 %v4341
        %v5591 = vpack.c.b16 %v5544, %v5543
        %v5592 = vpack.c.b16 %v5545, %v5545
        %v5593 = vpack.c.b16 %v5547, %v5546
        %v5594 = vpack.c.b16 %v5548, %v5548
        %v5595 = vpack.c.b16 %v5550, %v5549
        %v5596 = vpack.c.b16 %v5551, %v5551
        %v5597 = vpack.c.b16 %v5553, %v5552
        %v5598 = vpack.c.b16 %v5554, %v5554
        %v5599 = vpack.c.b16 %v5556, %v5555
        %v5600 = vpack.c.b16 %v5557, %v5557
        %v5601 = vpack.c.b16 %v5559, %v5558
        %v5602 = vpack.c.b16 %v5560, %v5560
        %v5603 = vpack.c.b16 %v5562, %v5561
        %v5604 = vpack.c.b16 %v5563, %v5563
        %v5605 = vpack.c.b16 %v5565, %v5564
        %v5606 = vpack.c.b16 %v5566, %v5566
        %v5607 = vpack.c.b16 %v5568, %v5567
        %v5608 = vpack.c.b16 %v5569, %v5569
        %v5609 = vpack.c.b16 %v5571, %v5570
        %v5610 = vpack.c.b16 %v5572, %v5572
        %v5611 = vpack.c.b16 %v5574, %v5573
        %v5612 = vpack.c.b16 %v5575, %v5575
        %v5613 = vpack.c.b16 %v5577, %v5576
        %v5614 = vpack.c.b16 %v5578, %v5578
        %v5615 = vpack.c.b16 %v5580, %v5579
        %v5616 = vpack.c.b16 %v5581, %v5581
        %v5617 = vpack.c.b16 %v5583, %v5582
        %v5618 = vpack.c.b16 %v5584, %v5584
        %v5619 = vpack.c.b16 %v5586, %v5585
        %v5620 = vpack.c.b16 %v5587, %v5587
        %v5621 = vpack.c.b16 %v5589, %v5588
        %v5622 = vpack.c.b16 %v5590, %v5590
        %5623 = vrot.lane.b32.xlu0 %v5591, 48
        %v5624 = vpop.permute.xlu0 %5623
        %5625 = vrot.lane.b32.xlu0 %v5592, 48
        %v5626 = vpop.permute.xlu0 %5625
        %5627 = vrot.lane.b32.xlu0 %v5593, 48
        %v5628 = vpop.permute.xlu0 %5627
        %5629 = vrot.lane.b32.xlu0 %v5594, 48
        %v5630 = vpop.permute.xlu0 %5629
        %5631 = vrot.lane.b32.xlu0 %v5595, 48
        %v5632 = vpop.permute.xlu0 %5631
        %5633 = vrot.lane.b32.xlu0 %v5596, 48
        %v5634 = vpop.permute.xlu0 %5633
        %5635 = vrot.lane.b32.xlu0 %v5597, 48
        %v5636 = vpop.permute.xlu0 %5635
        %5637 = vrot.lane.b32.xlu0 %v5598, 48
        %v5638 = vpop.permute.xlu0 %5637
        %5639 = vrot.lane.b32.xlu0 %v5599, 48
        %v5640 = vpop.permute.xlu0 %5639
        %5641 = vrot.lane.b32.xlu0 %v5600, 48
        %v5642 = vpop.permute.xlu0 %5641
        %5643 = vrot.lane.b32.xlu0 %v5601, 48
        %v5644 = vpop.permute.xlu0 %5643
        %5645 = vrot.lane.b32.xlu0 %v5602, 48
        %v5646 = vpop.permute.xlu0 %5645
        %5647 = vrot.lane.b32.xlu0 %v5603, 48
        %v5648 = vpop.permute.xlu0 %5647
        %5649 = vrot.lane.b32.xlu0 %v5604, 48
        %v5650 = vpop.permute.xlu0 %5649
        %5651 = vrot.lane.b32.xlu0 %v5605, 48
        %v5652 = vpop.permute.xlu0 %5651
        %5653 = vrot.lane.b32.xlu0 %v5606, 48
        %v5654 = vpop.permute.xlu0 %5653
        %5655 = vrot.lane.b32.xlu0 %v5607, 48
        %v5656 = vpop.permute.xlu0 %5655
        %5657 = vrot.lane.b32.xlu0 %v5608, 48
        %v5658 = vpop.permute.xlu0 %5657
        %5659 = vrot.lane.b32.xlu0 %v5609, 48
        %v5660 = vpop.permute.xlu0 %5659
        %5661 = vrot.lane.b32.xlu0 %v5610, 48
        %v5662 = vpop.permute.xlu0 %5661
        %5663 = vrot.lane.b32.xlu0 %v5611, 48
        %v5664 = vpop.permute.xlu0 %5663
        %5665 = vrot.lane.b32.xlu0 %v5612, 48
        %v5666 = vpop.permute.xlu0 %5665
        %5667 = vrot.lane.b32.xlu0 %v5613, 48
        %v5668 = vpop.permute.xlu0 %5667
        %5669 = vrot.lane.b32.xlu0 %v5614, 48
        %v5670 = vpop.permute.xlu0 %5669
        %5671 = vrot.lane.b32.xlu0 %v5615, 48
        %v5672 = vpop.permute.xlu0 %5671
        %5673 = vrot.lane.b32.xlu0 %v5616, 48
        %v5674 = vpop.permute.xlu0 %5673
        %5675 = vrot.lane.b32.xlu0 %v5617, 48
        %v5676 = vpop.permute.xlu0 %5675
        %5677 = vrot.lane.b32.xlu0 %v5618, 48
        %v5678 = vpop.permute.xlu0 %5677
        %5679 = vrot.lane.b32.xlu0 %v5619, 48
        %v5680 = vpop.permute.xlu0 %5679
        %5681 = vrot.lane.b32.xlu0 %v5620, 48
        %v5682 = vpop.permute.xlu0 %5681
        %5683 = vrot.lane.b32.xlu0 %v5621, 48
        %v5684 = vpop.permute.xlu0 %5683
        %5685 = vrot.lane.b32.xlu0 %v5622, 48
        %v5686 = vpop.permute.xlu0 %5685
        %v5735 = vunpack.c.l.b16 %v4342
        %v5736 = vunpack.c.l.b16 %v4343
        %v5737 = vunpack.c.l.b16 %v4344
        %v5738 = vunpack.c.l.b16 %v4345
        %v5739 = vunpack.c.l.b16 %v4346
        %v5740 = vunpack.c.l.b16 %v4347
        %v5741 = vunpack.c.l.b16 %v4348
        %v5742 = vunpack.c.l.b16 %v4349
        %v5743 = vunpack.c.l.b16 %v4350
        %v5744 = vunpack.c.l.b16 %v4351
        %v5745 = vunpack.c.l.b16 %v4352
        %v5746 = vunpack.c.l.b16 %v4353
        %v5747 = vunpack.c.l.b16 %v4354
        %v5748 = vunpack.c.l.b16 %v4355
        %v5749 = vunpack.c.l.b16 %v4356
        %v5750 = vunpack.c.l.b16 %v4357
        %v5751 = vunpack.c.l.b16 %v4358
        %v5752 = vunpack.c.l.b16 %v4359
        %v5753 = vunpack.c.l.b16 %v4360
        %v5754 = vunpack.c.l.b16 %v4361
        %v5755 = vunpack.c.l.b16 %v4362
        %v5756 = vunpack.c.l.b16 %v4363
        %v5757 = vunpack.c.l.b16 %v4364
        %v5758 = vunpack.c.l.b16 %v4365
        %v5759 = vunpack.c.l.b16 %v4366
        %v5760 = vunpack.c.l.b16 %v4367
        %v5761 = vunpack.c.l.b16 %v4368
        %v5762 = vunpack.c.l.b16 %v4369
        %v5763 = vunpack.c.l.b16 %v4370
        %v5764 = vunpack.c.l.b16 %v4371
        %v5765 = vunpack.c.l.b16 %v4372
        %v5766 = vunpack.c.l.b16 %v4373
        %v5767 = vunpack.c.l.b16 %v4374
        %v5768 = vunpack.c.l.b16 %v4375
        %v5769 = vunpack.c.l.b16 %v4376
        %v5770 = vunpack.c.l.b16 %v4377
        %v5771 = vunpack.c.l.b16 %v4378
        %v5772 = vunpack.c.l.b16 %v4379
        %v5773 = vunpack.c.l.b16 %v4380
        %v5774 = vunpack.c.l.b16 %v4381
        %v5775 = vunpack.c.l.b16 %v4382
        %v5776 = vunpack.c.l.b16 %v4383
        %v5777 = vunpack.c.l.b16 %v4384
        %v5778 = vunpack.c.l.b16 %v4385
        %v5779 = vunpack.c.l.b16 %v4386
        %v5780 = vunpack.c.l.b16 %v4387
        %v5781 = vunpack.c.l.b16 %v4388
        %v5782 = vunpack.c.l.b16 %v4389
        %v5783 = vpack.c.b16 %v5736, %v5735
        %v5784 = vpack.c.b16 %v5737, %v5737
        %v5785 = vpack.c.b16 %v5739, %v5738
        %v5786 = vpack.c.b16 %v5740, %v5740
        %v5787 = vpack.c.b16 %v5742, %v5741
        %v5788 = vpack.c.b16 %v5743, %v5743
        %v5789 = vpack.c.b16 %v5745, %v5744
        %v5790 = vpack.c.b16 %v5746, %v5746
        %v5791 = vpack.c.b16 %v5748, %v5747
        %v5792 = vpack.c.b16 %v5749, %v5749
        %v5793 = vpack.c.b16 %v5751, %v5750
        %v5794 = vpack.c.b16 %v5752, %v5752
        %v5795 = vpack.c.b16 %v5754, %v5753
        %v5796 = vpack.c.b16 %v5755, %v5755
        %v5797 = vpack.c.b16 %v5757, %v5756
        %v5798 = vpack.c.b16 %v5758, %v5758
        %v5799 = vpack.c.b16 %v5760, %v5759
        %v5800 = vpack.c.b16 %v5761, %v5761
        %v5801 = vpack.c.b16 %v5763, %v5762
        %v5802 = vpack.c.b16 %v5764, %v5764
        %v5803 = vpack.c.b16 %v5766, %v5765
        %v5804 = vpack.c.b16 %v5767, %v5767
        %v5805 = vpack.c.b16 %v5769, %v5768
        %v5806 = vpack.c.b16 %v5770, %v5770
        %v5807 = vpack.c.b16 %v5772, %v5771
        %v5808 = vpack.c.b16 %v5773, %v5773
        %v5809 = vpack.c.b16 %v5775, %v5774
        %v5810 = vpack.c.b16 %v5776, %v5776
        %v5811 = vpack.c.b16 %v5778, %v5777
        %v5812 = vpack.c.b16 %v5779, %v5779
        %v5813 = vpack.c.b16 %v5781, %v5780
        %v5814 = vpack.c.b16 %v5782, %v5782
        %v5815 = vrot.slane %v5783, 6
        %v5816 = vrot.slane %v5784, 6
        %v5817 = vsel %vm4694, %v5815, %v5816
        %v5818 = vrot.slane %v5785, 6
        %v5819 = vrot.slane %v5786, 6
        %v5820 = vsel %vm4694, %v5818, %v5819
        %v5821 = vrot.slane %v5787, 6
        %v5822 = vrot.slane %v5788, 6
        %v5823 = vsel %vm4694, %v5821, %v5822
        %v5824 = vrot.slane %v5789, 6
        %v5825 = vrot.slane %v5790, 6
        %v5826 = vsel %vm4694, %v5824, %v5825
        %v5827 = vrot.slane %v5791, 6
        %v5828 = vrot.slane %v5792, 6
        %v5829 = vsel %vm4694, %v5827, %v5828
        %v5830 = vrot.slane %v5793, 6
        %v5831 = vrot.slane %v5794, 6
        %v5832 = vsel %vm4694, %v5830, %v5831
        %v5833 = vrot.slane %v5795, 6
        %v5834 = vrot.slane %v5796, 6
        %v5835 = vsel %vm4694, %v5833, %v5834
        %v5836 = vrot.slane %v5797, 6
        %v5837 = vrot.slane %v5798, 6
        %v5838 = vsel %vm4694, %v5836, %v5837
        %v5839 = vrot.slane %v5799, 6
        %v5840 = vrot.slane %v5800, 6
        %v5841 = vsel %vm4694, %v5839, %v5840
        %v5842 = vrot.slane %v5801, 6
        %v5843 = vrot.slane %v5802, 6
        %v5844 = vsel %vm4694, %v5842, %v5843
        %v5845 = vrot.slane %v5803, 6
        %v5846 = vrot.slane %v5804, 6
        %v5847 = vsel %vm4694, %v5845, %v5846
        %v5848 = vrot.slane %v5805, 6
        %v5849 = vrot.slane %v5806, 6
        %v5850 = vsel %vm4694, %v5848, %v5849
        %v5851 = vrot.slane %v5807, 6
        %v5852 = vrot.slane %v5808, 6
        %v5853 = vsel %vm4694, %v5851, %v5852
        %v5854 = vrot.slane %v5809, 6
        %v5855 = vrot.slane %v5810, 6
        %v5856 = vsel %vm4694, %v5854, %v5855
        %v5857 = vrot.slane %v5811, 6
        %v5858 = vrot.slane %v5812, 6
        %v5859 = vsel %vm4694, %v5857, %v5858
        %v5860 = vrot.slane %v5813, 6
        %v5861 = vrot.slane %v5814, 6
        %v5862 = vsel %vm4694, %v5860, %v5861
        %5863 = vrot.lane.b32.xlu0 %v5815, 56
        %v5864 = vpop.permute.xlu0 %5863
        %5865 = vrot.lane.b32.xlu0 %v5817, 56
        %v5866 = vpop.permute.xlu0 %5865
        %5867 = vrot.lane.b32.xlu0 %v5818, 56
        %v5868 = vpop.permute.xlu0 %5867
        %5869 = vrot.lane.b32.xlu0 %v5820, 56
        %v5870 = vpop.permute.xlu0 %5869
        %5871 = vrot.lane.b32.xlu0 %v5821, 56
        %v5872 = vpop.permute.xlu0 %5871
        %5873 = vrot.lane.b32.xlu0 %v5823, 56
        %v5874 = vpop.permute.xlu0 %5873
        %5875 = vrot.lane.b32.xlu0 %v5824, 56
        %v5876 = vpop.permute.xlu0 %5875
        %5877 = vrot.lane.b32.xlu0 %v5826, 56
        %v5878 = vpop.permute.xlu0 %5877
        %5879 = vrot.lane.b32.xlu0 %v5827, 56
        %v5880 = vpop.permute.xlu0 %5879
        %5881 = vrot.lane.b32.xlu0 %v5829, 56
        %v5882 = vpop.permute.xlu0 %5881
        %5883 = vrot.lane.b32.xlu0 %v5830, 56
        %v5884 = vpop.permute.xlu0 %5883
        %5885 = vrot.lane.b32.xlu0 %v5832, 56
        %v5886 = vpop.permute.xlu0 %5885
        %5887 = vrot.lane.b32.xlu0 %v5833, 56
        %v5888 = vpop.permute.xlu0 %5887
        %5889 = vrot.lane.b32.xlu0 %v5835, 56
        %v5890 = vpop.permute.xlu0 %5889
        %5891 = vrot.lane.b32.xlu0 %v5836, 56
        %v5892 = vpop.permute.xlu0 %5891
        %5893 = vrot.lane.b32.xlu0 %v5838, 56
        %v5894 = vpop.permute.xlu0 %5893
        %5895 = vrot.lane.b32.xlu0 %v5839, 56
        %v5896 = vpop.permute.xlu0 %5895
        %5897 = vrot.lane.b32.xlu0 %v5841, 56
        %v5898 = vpop.permute.xlu0 %5897
        %5899 = vrot.lane.b32.xlu0 %v5842, 56
        %v5900 = vpop.permute.xlu0 %5899
        %5901 = vrot.lane.b32.xlu0 %v5844, 56
        %v5902 = vpop.permute.xlu0 %5901
        %5903 = vrot.lane.b32.xlu0 %v5845, 56
        %v5904 = vpop.permute.xlu0 %5903
        %5905 = vrot.lane.b32.xlu0 %v5847, 56
        %v5906 = vpop.permute.xlu0 %5905
        %5907 = vrot.lane.b32.xlu0 %v5848, 56
        %v5908 = vpop.permute.xlu0 %5907
        %5909 = vrot.lane.b32.xlu0 %v5850, 56
        %v5910 = vpop.permute.xlu0 %5909
        %5911 = vrot.lane.b32.xlu0 %v5851, 56
        %v5912 = vpop.permute.xlu0 %5911
        %5913 = vrot.lane.b32.xlu0 %v5853, 56
        %v5914 = vpop.permute.xlu0 %5913
        %5915 = vrot.lane.b32.xlu0 %v5854, 56
        %v5916 = vpop.permute.xlu0 %5915
        %5917 = vrot.lane.b32.xlu0 %v5856, 56
        %v5918 = vpop.permute.xlu0 %5917
        %5919 = vrot.lane.b32.xlu0 %v5857, 56
        %v5920 = vpop.permute.xlu0 %5919
        %5921 = vrot.lane.b32.xlu0 %v5859, 56
        %v5922 = vpop.permute.xlu0 %5921
        %5923 = vrot.lane.b32.xlu0 %v5860, 56
        %v5924 = vpop.permute.xlu0 %5923
        %5925 = vrot.lane.b32.xlu0 %v5862, 56
        %v5926 = vpop.permute.xlu0 %5925
        %v5975 = vunpack.c.l.b16 %v4390
        %v5976 = vunpack.c.l.b16 %v4391
        %v5977 = vunpack.c.l.b16 %v4392
        %v5978 = vunpack.c.l.b16 %v4393
        %v5979 = vunpack.c.l.b16 %v4394
        %v5980 = vunpack.c.l.b16 %v4395
        %v5981 = vunpack.c.l.b16 %v4396
        %v5982 = vunpack.c.l.b16 %v4397
        %v5983 = vunpack.c.l.b16 %v4398
        %v5984 = vunpack.c.l.b16 %v4399
        %v5985 = vunpack.c.l.b16 %v4400
        %v5986 = vunpack.c.l.b16 %v4401
        %v5987 = vunpack.c.l.b16 %v4402
        %v5988 = vunpack.c.l.b16 %v4403
        %v5989 = vunpack.c.l.b16 %v4404
        %v5990 = vunpack.c.l.b16 %v4405
        %v5991 = vunpack.c.l.b16 %v4406
        %v5992 = vunpack.c.l.b16 %v4407
        %v5993 = vunpack.c.l.b16 %v4408
        %v5994 = vunpack.c.l.b16 %v4409
        %v5995 = vunpack.c.l.b16 %v4410
        %v5996 = vunpack.c.l.b16 %v4411
        %v5997 = vunpack.c.l.b16 %v4412
        %v5998 = vunpack.c.l.b16 %v4413
        %v5999 = vunpack.c.l.b16 %v4414
        %v6000 = vunpack.c.l.b16 %v4415
        %v6001 = vunpack.c.l.b16 %v4416
        %v6002 = vunpack.c.l.b16 %v4417
        %v6003 = vunpack.c.l.b16 %v4418
        %v6004 = vunpack.c.l.b16 %v4419
        %v6005 = vunpack.c.l.b16 %v4420
        %v6006 = vunpack.c.l.b16 %v4421
        %v6007 = vunpack.c.l.b16 %v4422
        %v6008 = vunpack.c.l.b16 %v4423
        %v6009 = vunpack.c.l.b16 %v4424
        %v6010 = vunpack.c.l.b16 %v4425
        %v6011 = vunpack.c.l.b16 %v4426
        %v6012 = vunpack.c.l.b16 %v4427
        %v6013 = vunpack.c.l.b16 %v4428
        %v6014 = vunpack.c.l.b16 %v4429
        %v6015 = vunpack.c.l.b16 %v4430
        %v6016 = vunpack.c.l.b16 %v4431
        %v6017 = vunpack.c.l.b16 %v4432
        %v6018 = vunpack.c.l.b16 %v4433
        %v6019 = vunpack.c.l.b16 %v4434
        %v6020 = vunpack.c.l.b16 %v4435
        %v6021 = vunpack.c.l.b16 %v4436
        %v6022 = vunpack.c.l.b16 %v4437
        %v6023 = vpack.c.b16 %v5976, %v5975
        %v6024 = vpack.c.b16 %v5977, %v5977
        %v6025 = vpack.c.b16 %v5979, %v5978
        %v6026 = vpack.c.b16 %v5980, %v5980
        %v6027 = vpack.c.b16 %v5982, %v5981
        %v6028 = vpack.c.b16 %v5983, %v5983
        %v6029 = vpack.c.b16 %v5985, %v5984
        %v6030 = vpack.c.b16 %v5986, %v5986
        %v6031 = vpack.c.b16 %v5988, %v5987
        %v6032 = vpack.c.b16 %v5989, %v5989
        %v6033 = vpack.c.b16 %v5991, %v5990
        %v6034 = vpack.c.b16 %v5992, %v5992
        %v6035 = vpack.c.b16 %v5994, %v5993
        %v6036 = vpack.c.b16 %v5995, %v5995
        %v6037 = vpack.c.b16 %v5997, %v5996
        %v6038 = vpack.c.b16 %v5998, %v5998
        %v6039 = vpack.c.b16 %v6000, %v5999
        %v6040 = vpack.c.b16 %v6001, %v6001
        %v6041 = vpack.c.b16 %v6003, %v6002
        %v6042 = vpack.c.b16 %v6004, %v6004
        %v6043 = vpack.c.b16 %v6006, %v6005
        %v6044 = vpack.c.b16 %v6007, %v6007
        %v6045 = vpack.c.b16 %v6009, %v6008
        %v6046 = vpack.c.b16 %v6010, %v6010
        %v6047 = vpack.c.b16 %v6012, %v6011
        %v6048 = vpack.c.b16 %v6013, %v6013
        %v6049 = vpack.c.b16 %v6015, %v6014
        %v6050 = vpack.c.b16 %v6016, %v6016
        %v6051 = vpack.c.b16 %v6018, %v6017
        %v6052 = vpack.c.b16 %v6019, %v6019
        %v6053 = vpack.c.b16 %v6021, %v6020
        %v6054 = vpack.c.b16 %v6022, %v6022
        %6055 = vrot.lane.b32.xlu0 %v6023, 64
        %v6056 = vpop.permute.xlu0 %6055
        %6057 = vrot.lane.b32.xlu0 %v6024, 64
        %v6058 = vpop.permute.xlu0 %6057
        %6059 = vrot.lane.b32.xlu0 %v6025, 64
        %v6060 = vpop.permute.xlu0 %6059
        %6061 = vrot.lane.b32.xlu0 %v6026, 64
        %v6062 = vpop.permute.xlu0 %6061
        %6063 = vrot.lane.b32.xlu0 %v6027, 64
        %v6064 = vpop.permute.xlu0 %6063
        %6065 = vrot.lane.b32.xlu0 %v6028, 64
        %v6066 = vpop.permute.xlu0 %6065
        %6067 = vrot.lane.b32.xlu0 %v6029, 64
        %v6068 = vpop.permute.xlu0 %6067
        %6069 = vrot.lane.b32.xlu0 %v6030, 64
        %v6070 = vpop.permute.xlu0 %6069
        %6071 = vrot.lane.b32.xlu0 %v6031, 64
        %v6072 = vpop.permute.xlu0 %6071
        %6073 = vrot.lane.b32.xlu0 %v6032, 64
        %v6074 = vpop.permute.xlu0 %6073
        %6075 = vrot.lane.b32.xlu0 %v6033, 64
        %v6076 = vpop.permute.xlu0 %6075
        %6077 = vrot.lane.b32.xlu0 %v6034, 64
        %v6078 = vpop.permute.xlu0 %6077
        %6079 = vrot.lane.b32.xlu0 %v6035, 64
        %v6080 = vpop.permute.xlu0 %6079
        %6081 = vrot.lane.b32.xlu0 %v6036, 64
        %v6082 = vpop.permute.xlu0 %6081
        %6083 = vrot.lane.b32.xlu0 %v6037, 64
        %v6084 = vpop.permute.xlu0 %6083
        %6085 = vrot.lane.b32.xlu0 %v6038, 64
        %v6086 = vpop.permute.xlu0 %6085
        %6087 = vrot.lane.b32.xlu0 %v6039, 64
        %v6088 = vpop.permute.xlu0 %6087
        %6089 = vrot.lane.b32.xlu0 %v6040, 64
        %v6090 = vpop.permute.xlu0 %6089
        %6091 = vrot.lane.b32.xlu0 %v6041, 64
        %v6092 = vpop.permute.xlu0 %6091
        %6093 = vrot.lane.b32.xlu0 %v6042, 64
        %v6094 = vpop.permute.xlu0 %6093
        %6095 = vrot.lane.b32.xlu0 %v6043, 64
        %v6096 = vpop.permute.xlu0 %6095
        %6097 = vrot.lane.b32.xlu0 %v6044, 64
        %v6098 = vpop.permute.xlu0 %6097
        %6099 = vrot.lane.b32.xlu0 %v6045, 64
        %v6100 = vpop.permute.xlu0 %6099
        %6101 = vrot.lane.b32.xlu0 %v6046, 64
        %v6102 = vpop.permute.xlu0 %6101
        %6103 = vrot.lane.b32.xlu0 %v6047, 64
        %v6104 = vpop.permute.xlu0 %6103
        %6105 = vrot.lane.b32.xlu0 %v6048, 64
        %v6106 = vpop.permute.xlu0 %6105
        %6107 = vrot.lane.b32.xlu0 %v6049, 64
        %v6108 = vpop.permute.xlu0 %6107
        %6109 = vrot.lane.b32.xlu0 %v6050, 64
        %v6110 = vpop.permute.xlu0 %6109
        %6111 = vrot.lane.b32.xlu0 %v6051, 64
        %v6112 = vpop.permute.xlu0 %6111
        %6113 = vrot.lane.b32.xlu0 %v6052, 64
        %v6114 = vpop.permute.xlu0 %6113
        %6115 = vrot.lane.b32.xlu0 %v6053, 64
        %v6116 = vpop.permute.xlu0 %6115
        %6117 = vrot.lane.b32.xlu0 %v6054, 64
        %v6118 = vpop.permute.xlu0 %6117
        %v6121 = vsel %vm609, %v4534, %v4744
        %v6124 = vsel %vm609, %v4535, %v4746
        %v6127 = vsel %vm609, %v4536, %v4748
        %v6130 = vsel %vm609, %v4537, %v4750
        %v6133 = vsel %vm609, %v4538, %v4752
        %v6136 = vsel %vm609, %v4539, %v4754
        %v6139 = vsel %vm609, %v4540, %v4756
        %v6142 = vsel %vm609, %v4541, %v4758
        %v6145 = vsel %vm609, %v4542, %v4760
        %v6148 = vsel %vm609, %v4543, %v4762
        %v6151 = vsel %vm609, %v4544, %v4764
        %v6154 = vsel %vm609, %v4545, %v4766
        %v6157 = vsel %vm609, %v4546, %v4768
        %v6160 = vsel %vm609, %v4547, %v4770
        %v6163 = vsel %vm609, %v4548, %v4772
        %v6166 = vsel %vm609, %v4549, %v4774
        %v6169 = vsel %vm609, %v4550, %v4776
        %v6172 = vsel %vm609, %v4551, %v4778
        %v6175 = vsel %vm609, %v4552, %v4780
        %v6178 = vsel %vm609, %v4553, %v4782
        %v6181 = vsel %vm609, %v4554, %v4784
        %v6184 = vsel %vm609, %v4555, %v4786
        %v6187 = vsel %vm609, %v4556, %v4788
        %v6190 = vsel %vm609, %v4557, %v4790
        %v6193 = vsel %vm609, %v4558, %v4792
        %v6196 = vsel %vm609, %v4559, %v4794
        %v6199 = vsel %vm609, %v4560, %v4796
        %v6202 = vsel %vm609, %v4561, %v4798
        %v6205 = vsel %vm609, %v4562, %v4800
        %v6208 = vsel %vm609, %v4563, %v4802
        %v6211 = vsel %vm609, %v4564, %v4804
        %v6214 = vsel %vm609, %v4565, %v4806
        %v6216 = vsel %vm2999, %v6121, %v4936
        %v6218 = vsel %vm2999, %v6124, %v4938
        %v6220 = vsel %vm2999, %v6127, %v4940
        %v6222 = vsel %vm2999, %v6130, %v4942
        %v6224 = vsel %vm2999, %v6133, %v4944
        %v6226 = vsel %vm2999, %v6136, %v4946
        %v6228 = vsel %vm2999, %v6139, %v4948
        %v6230 = vsel %vm2999, %v6142, %v4950
        %v6232 = vsel %vm2999, %v6145, %v4952
        %v6234 = vsel %vm2999, %v6148, %v4954
        %v6236 = vsel %vm2999, %v6151, %v4956
        %v6238 = vsel %vm2999, %v6154, %v4958
        %v6240 = vsel %vm2999, %v6157, %v4960
        %v6242 = vsel %vm2999, %v6160, %v4962
        %v6244 = vsel %vm2999, %v6163, %v4964
        %v6246 = vsel %vm2999, %v6166, %v4966
        %v6248 = vsel %vm2999, %v6169, %v4968
        %v6250 = vsel %vm2999, %v6172, %v4970
        %v6252 = vsel %vm2999, %v6175, %v4972
        %v6254 = vsel %vm2999, %v6178, %v4974
        %v6256 = vsel %vm2999, %v6181, %v4976
        %v6258 = vsel %vm2999, %v6184, %v4978
        %v6260 = vsel %vm2999, %v6187, %v4980
        %v6262 = vsel %vm2999, %v6190, %v4982
        %v6264 = vsel %vm2999, %v6193, %v4984
        %v6266 = vsel %vm2999, %v6196, %v4986
        %v6268 = vsel %vm2999, %v6199, %v4988
        %v6270 = vsel %vm2999, %v6202, %v4990
        %v6272 = vsel %vm2999, %v6205, %v4992
        %v6274 = vsel %vm2999, %v6208, %v4994
        %v6276 = vsel %vm2999, %v6211, %v4996
        %v6278 = vsel %vm2999, %v6214, %v4998
        %v6280 = vsel %vm3048, %v6216, %v5128
        %v6282 = vsel %vm3048, %v6218, %v5130
        %v6284 = vsel %vm3048, %v6220, %v5132
        %v6286 = vsel %vm3048, %v6222, %v5134
        %v6288 = vsel %vm3048, %v6224, %v5136
        %v6290 = vsel %vm3048, %v6226, %v5138
        %v6292 = vsel %vm3048, %v6228, %v5140
        %v6294 = vsel %vm3048, %v6230, %v5142
        %v6296 = vsel %vm3048, %v6232, %v5144
        %v6298 = vsel %vm3048, %v6234, %v5146
        %v6300 = vsel %vm3048, %v6236, %v5148
        %v6302 = vsel %vm3048, %v6238, %v5150
        %v6304 = vsel %vm3048, %v6240, %v5152
        %v6306 = vsel %vm3048, %v6242, %v5154
        %v6308 = vsel %vm3048, %v6244, %v5156
        %v6310 = vsel %vm3048, %v6246, %v5158
        %v6312 = vsel %vm3048, %v6248, %v5160
        %v6314 = vsel %vm3048, %v6250, %v5162
        %v6316 = vsel %vm3048, %v6252, %v5164
        %v6318 = vsel %vm3048, %v6254, %v5166
        %v6320 = vsel %vm3048, %v6256, %v5168
        %v6322 = vsel %vm3048, %v6258, %v5170
        %v6324 = vsel %vm3048, %v6260, %v5172
        %v6326 = vsel %vm3048, %v6262, %v5174
        %v6328 = vsel %vm3048, %v6264, %v5176
        %v6330 = vsel %vm3048, %v6266, %v5178
        %v6332 = vsel %vm3048, %v6268, %v5180
        %v6334 = vsel %vm3048, %v6270, %v5182
        %v6336 = vsel %vm3048, %v6272, %v5184
        %v6338 = vsel %vm3048, %v6274, %v5186
        %v6340 = vsel %vm3048, %v6276, %v5188
        %v6342 = vsel %vm3048, %v6278, %v5190
        %v6344 = vsel %vm3113, %v6280, %v5240
        %v6346 = vsel %vm3113, %v6282, %v5242
        %v6348 = vsel %vm3113, %v6284, %v5244
        %v6350 = vsel %vm3113, %v6286, %v5246
        %v6352 = vsel %vm3113, %v6288, %v5248
        %v6354 = vsel %vm3113, %v6290, %v5250
        %v6356 = vsel %vm3113, %v6292, %v5252
        %v6358 = vsel %vm3113, %v6294, %v5254
        %v6360 = vsel %vm3113, %v6296, %v5256
        %v6362 = vsel %vm3113, %v6298, %v5258
        %v6364 = vsel %vm3113, %v6300, %v5260
        %v6366 = vsel %vm3113, %v6302, %v5262
        %v6368 = vsel %vm3113, %v6304, %v5264
        %v6370 = vsel %vm3113, %v6306, %v5266
        %v6372 = vsel %vm3113, %v6308, %v5268
        %v6374 = vsel %vm3113, %v6310, %v5270
        %v6376 = vsel %vm3113, %v6312, %v5272
        %v6378 = vsel %vm3113, %v6314, %v5274
        %v6380 = vsel %vm3113, %v6316, %v5276
        %v6382 = vsel %vm3113, %v6318, %v5278
        %v6384 = vsel %vm3113, %v6320, %v5280
        %v6386 = vsel %vm3113, %v6322, %v5282
        %v6388 = vsel %vm3113, %v6324, %v5284
        %v6390 = vsel %vm3113, %v6326, %v5286
        %v6392 = vsel %vm3113, %v6328, %v5288
        %v6394 = vsel %vm3113, %v6330, %v5290
        %v6396 = vsel %vm3113, %v6332, %v5292
        %v6398 = vsel %vm3113, %v6334, %v5294
        %v6400 = vsel %vm3113, %v6336, %v5296
        %v6402 = vsel %vm3113, %v6338, %v5298
        %v6404 = vsel %vm3113, %v6340, %v5300
        %v6406 = vsel %vm3113, %v6342, %v5302
        %v6408 = vsel %vm3178, %v6344, %v5432
        %v6410 = vsel %vm3178, %v6346, %v5434
        %v6412 = vsel %vm3178, %v6348, %v5436
        %v6414 = vsel %vm3178, %v6350, %v5438
        %v6416 = vsel %vm3178, %v6352, %v5440
        %v6418 = vsel %vm3178, %v6354, %v5442
        %v6420 = vsel %vm3178, %v6356, %v5444
        %v6422 = vsel %vm3178, %v6358, %v5446
        %v6424 = vsel %vm3178, %v6360, %v5448
        %v6426 = vsel %vm3178, %v6362, %v5450
        %v6428 = vsel %vm3178, %v6364, %v5452
        %v6430 = vsel %vm3178, %v6366, %v5454
        %v6432 = vsel %vm3178, %v6368, %v5456
        %v6434 = vsel %vm3178, %v6370, %v5458
        %v6436 = vsel %vm3178, %v6372, %v5460
        %v6438 = vsel %vm3178, %v6374, %v5462
        %v6440 = vsel %vm3178, %v6376, %v5464
        %v6442 = vsel %vm3178, %v6378, %v5466
        %v6444 = vsel %vm3178, %v6380, %v5468
        %v6446 = vsel %vm3178, %v6382, %v5470
        %v6448 = vsel %vm3178, %v6384, %v5472
        %v6450 = vsel %vm3178, %v6386, %v5474
        %v6452 = vsel %vm3178, %v6388, %v5476
        %v6454 = vsel %vm3178, %v6390, %v5478
        %v6456 = vsel %vm3178, %v6392, %v5480
        %v6458 = vsel %vm3178, %v6394, %v5482
        %v6460 = vsel %vm3178, %v6396, %v5484
        %v6462 = vsel %vm3178, %v6398, %v5486
        %v6464 = vsel %vm3178, %v6400, %v5488
        %v6466 = vsel %vm3178, %v6402, %v5490
        %v6468 = vsel %vm3178, %v6404, %v5492
        %v6470 = vsel %vm3178, %v6406, %v5494
        %v6472 = vsel %vm3227, %v6408, %v5624
        %v6474 = vsel %vm3227, %v6410, %v5626
        %v6476 = vsel %vm3227, %v6412, %v5628
        %v6478 = vsel %vm3227, %v6414, %v5630
        %v6480 = vsel %vm3227, %v6416, %v5632
        %v6482 = vsel %vm3227, %v6418, %v5634
        %v6484 = vsel %vm3227, %v6420, %v5636
        %v6486 = vsel %vm3227, %v6422, %v5638
        %v6488 = vsel %vm3227, %v6424, %v5640
        %v6490 = vsel %vm3227, %v6426, %v5642
        %v6492 = vsel %vm3227, %v6428, %v5644
        %v6494 = vsel %vm3227, %v6430, %v5646
        %v6496 = vsel %vm3227, %v6432, %v5648
        %v6498 = vsel %vm3227, %v6434, %v5650
        %v6500 = vsel %vm3227, %v6436, %v5652
        %v6502 = vsel %vm3227, %v6438, %v5654
        %v6504 = vsel %vm3227, %v6440, %v5656
        %v6506 = vsel %vm3227, %v6442, %v5658
        %v6508 = vsel %vm3227, %v6444, %v5660
        %v6510 = vsel %vm3227, %v6446, %v5662
        %v6512 = vsel %vm3227, %v6448, %v5664
        %v6514 = vsel %vm3227, %v6450, %v5666
        %v6516 = vsel %vm3227, %v6452, %v5668
        %v6518 = vsel %vm3227, %v6454, %v5670
        %v6520 = vsel %vm3227, %v6456, %v5672
        %v6522 = vsel %vm3227, %v6458, %v5674
        %v6524 = vsel %vm3227, %v6460, %v5676
        %v6526 = vsel %vm3227, %v6462, %v5678
        %v6528 = vsel %vm3227, %v6464, %v5680
        %v6530 = vsel %vm3227, %v6466, %v5682
        %v6532 = vsel %vm3227, %v6468, %v5684
        %v6534 = vsel %vm3227, %v6470, %v5686
        %v6536 = vsel %vm3292, %v6472, %v5864
        %v6538 = vsel %vm3292, %v6474, %v5866
        %v6540 = vsel %vm3292, %v6476, %v5868
        %v6542 = vsel %vm3292, %v6478, %v5870
        %v6544 = vsel %vm3292, %v6480, %v5872
        %v6546 = vsel %vm3292, %v6482, %v5874
        %v6548 = vsel %vm3292, %v6484, %v5876
        %v6550 = vsel %vm3292, %v6486, %v5878
        %v6552 = vsel %vm3292, %v6488, %v5880
        %v6554 = vsel %vm3292, %v6490, %v5882
        %v6556 = vsel %vm3292, %v6492, %v5884
        %v6558 = vsel %vm3292, %v6494, %v5886
        %v6560 = vsel %vm3292, %v6496, %v5888
        %v6562 = vsel %vm3292, %v6498, %v5890
        %v6564 = vsel %vm3292, %v6500, %v5892
        %v6566 = vsel %vm3292, %v6502, %v5894
        %v6568 = vsel %vm3292, %v6504, %v5896
        %v6570 = vsel %vm3292, %v6506, %v5898
        %v6572 = vsel %vm3292, %v6508, %v5900
        %v6574 = vsel %vm3292, %v6510, %v5902
        %v6576 = vsel %vm3292, %v6512, %v5904
        %v6578 = vsel %vm3292, %v6514, %v5906
        %v6580 = vsel %vm3292, %v6516, %v5908
        %v6582 = vsel %vm3292, %v6518, %v5910
        %v6584 = vsel %vm3292, %v6520, %v5912
        %v6586 = vsel %vm3292, %v6522, %v5914
        %v6588 = vsel %vm3292, %v6524, %v5916
        %v6590 = vsel %vm3292, %v6526, %v5918
        %v6592 = vsel %vm3292, %v6528, %v5920
        %v6594 = vsel %vm3292, %v6530, %v5922
        %v6596 = vsel %vm3292, %v6532, %v5924
        %v6598 = vsel %vm3292, %v6534, %v5926
        %v6600 = vsel %vm3357, %v6536, %v6056
        %v6602 = vsel %vm3357, %v6538, %v6058
        %v6604 = vsel %vm3357, %v6540, %v6060
        %v6606 = vsel %vm3357, %v6542, %v6062
        %v6608 = vsel %vm3357, %v6544, %v6064
        %v6610 = vsel %vm3357, %v6546, %v6066
        %v6612 = vsel %vm3357, %v6548, %v6068
        %v6614 = vsel %vm3357, %v6550, %v6070
        %v6616 = vsel %vm3357, %v6552, %v6072
        %v6618 = vsel %vm3357, %v6554, %v6074
        %v6620 = vsel %vm3357, %v6556, %v6076
        %v6622 = vsel %vm3357, %v6558, %v6078
        %v6624 = vsel %vm3357, %v6560, %v6080
        %v6626 = vsel %vm3357, %v6562, %v6082
        %v6628 = vsel %vm3357, %v6564, %v6084
        %v6630 = vsel %vm3357, %v6566, %v6086
        %v6632 = vsel %vm3357, %v6568, %v6088
        %v6634 = vsel %vm3357, %v6570, %v6090
        %v6636 = vsel %vm3357, %v6572, %v6092
        %v6638 = vsel %vm3357, %v6574, %v6094
        %v6640 = vsel %vm3357, %v6576, %v6096
        %v6642 = vsel %vm3357, %v6578, %v6098
        %v6644 = vsel %vm3357, %v6580, %v6100
        %v6646 = vsel %vm3357, %v6582, %v6102
        %v6648 = vsel %vm3357, %v6584, %v6104
        %v6650 = vsel %vm3357, %v6586, %v6106
        %v6652 = vsel %vm3357, %v6588, %v6108
        %v6654 = vsel %vm3357, %v6590, %v6110
        %v6656 = vsel %vm3357, %v6592, %v6112
        %v6658 = vsel %vm3357, %v6594, %v6114
        %v6660 = vsel %vm3357, %v6596, %v6116
        %v6662 = vsel %vm3357, %v6598, %v6118
        %vm6695 = vcmask 1044480
        %v6696 = vrot.slane %v6600, 3
        %v6697 = vrot.slane %v6602, 3
        %v6698 = vsel %vm6695, %v6696, %v6697
        %v6699 = vrot.slane %v6604, 3
        %v6700 = vrot.slane %v6606, 3
        %v6701 = vsel %vm6695, %v6699, %v6700
        %v6702 = vrot.slane %v6608, 3
        %v6703 = vrot.slane %v6610, 3
        %v6704 = vsel %vm6695, %v6702, %v6703
        %v6705 = vrot.slane %v6612, 3
        %v6706 = vrot.slane %v6614, 3
        %v6707 = vsel %vm6695, %v6705, %v6706
        %v6708 = vrot.slane %v6616, 3
        %v6709 = vrot.slane %v6618, 3
        %v6710 = vsel %vm6695, %v6708, %v6709
        %v6711 = vrot.slane %v6620, 3
        %v6712 = vrot.slane %v6622, 3
        %v6713 = vsel %vm6695, %v6711, %v6712
        %v6714 = vrot.slane %v6624, 3
        %v6715 = vrot.slane %v6626, 3
        %v6716 = vsel %vm6695, %v6714, %v6715
        %v6717 = vrot.slane %v6628, 3
        %v6718 = vrot.slane %v6630, 3
        %v6719 = vsel %vm6695, %v6717, %v6718
        %v6720 = vrot.slane %v6632, 3
        %v6721 = vrot.slane %v6634, 3
        %v6722 = vsel %vm6695, %v6720, %v6721
        %v6723 = vrot.slane %v6636, 3
        %v6724 = vrot.slane %v6638, 3
        %v6725 = vsel %vm6695, %v6723, %v6724
        %v6726 = vrot.slane %v6640, 3
        %v6727 = vrot.slane %v6642, 3
        %v6728 = vsel %vm6695, %v6726, %v6727
        %v6729 = vrot.slane %v6644, 3
        %v6730 = vrot.slane %v6646, 3
        %v6731 = vsel %vm6695, %v6729, %v6730
        %v6732 = vrot.slane %v6648, 3
        %v6733 = vrot.slane %v6650, 3
        %v6734 = vsel %vm6695, %v6732, %v6733
        %v6735 = vrot.slane %v6652, 3
        %v6736 = vrot.slane %v6654, 3
        %v6737 = vsel %vm6695, %v6735, %v6736
        %v6738 = vrot.slane %v6656, 3
        %v6739 = vrot.slane %v6658, 3
        %v6740 = vsel %vm6695, %v6738, %v6739
        %v6741 = vrot.slane %v6660, 3
        %v6742 = vrot.slane %v6662, 3
        %v6743 = vsel %vm6695, %v6741, %v6742
        %v6744 = vld [vmem:[%s3 + $0x24] sm:$0xf]
        %v6745 = vld [vmem:[%s3 + $0x28] sm:$0xf]
        %v6746 = vld [vmem:[%s3 + $0x2c] sm:$0xf]
        %v6747 = vld [vmem:[%s3 + $0x30] sm:$0xf]
        %v6748 = vld [vmem:[%s3 + $0x34] sm:$0xf]
        %v6749 = vld [vmem:[%s3 + $0x38] sm:$0xf]
        %v6750 = vld [vmem:[%s3 + $0x3c] sm:$0xf]
        %v6751 = vld [vmem:[%s3 + $0x40] sm:$0xf]
        %v6752 = vld [vmem:[%s3 + $0x44] sm:$0xf]
        %v6753 = vld [vmem:[%s6 + $0x1] sm:$0x1]
        %v6754 = vlaneseq
        %v6755 = vshrl.u32 %v6754, 7
        %v6756 = vsub.s32 0, %v6755
        %v6757 = vrot.slane %v6753, %v6756
        %v6767 = vunpack.c.l.b16 %v6744
        %v6768 = vunpack.c.l.b16 %v6745
        %v6769 = vunpack.c.l.b16 %v6746
        %v6770 = vunpack.c.l.b16 %v6747
        %v6771 = vunpack.c.l.b16 %v6748
        %v6772 = vunpack.c.l.b16 %v6749
        %v6773 = vunpack.c.l.b16 %v6750
        %v6774 = vunpack.c.l.b16 %v6751
        %v6775 = vunpack.c.l.b16 %v6752
        %v6776 = vpack.c.b16 %v6768, %v6767
        %v6777 = vpack.c.b16 %v6770, %v6769
        %v6778 = vpack.c.b16 %v6772, %v6771
        %v6779 = vpack.c.b16 %v6774, %v6773
        %v6780 = vpack.c.b16 %v6775, %v6775
        %v6786 = vsel %vm3528, %v6698, 0
        %v6789 = vsel %vm3528, %v6701, 0
        %v6792 = vsel %vm3528, %v6704, 0
        %v6795 = vsel %vm3528, %v6707, 0
        %v6798 = vsel %vm3528, %v6710, 0
        %v6801 = vsel %vm3528, %v6713, 0
        %v6804 = vsel %vm3528, %v6716, 0
        %v6807 = vsel %vm3528, %v6719, 0
        %v6810 = vsel %vm3528, %v6722, 0
        %v6813 = vsel %vm3528, %v6725, 0
        %v6816 = vsel %vm3528, %v6728, 0
        %v6819 = vsel %vm3528, %v6731, 0
        %v6822 = vsel %vm3528, %v6734, 0
        %v6825 = vsel %vm3528, %v6737, 0
        %v6828 = vsel %vm3528, %v6740, 0
        %v6831 = vsel %vm3528, %v6743, 0
        %v6834 = vsel %vm658, %v6780, 0
        %6836 = vmatprep.subr.bf16.mxu0 0
        %6837 = vmatpush1.bf16.msra.mxu0 0
        %6838 = vmatprep.subr.bf16.mxu0 0
        %6839 = vmatpush1.bf16.msra.mxu0 0
        %6840 = vmatprep.subr.bf16.mxu0 0
        %6841 = vmatpush1.bf16.msra.mxu0 0
        %6842 = vmatprep.subr.bf16.mxu0 0
        %6843 = vmatpush1.bf16.msra.mxu0 %v6834
        %6844 = vmatprep.subr.bf16.mxu0 0
        %6845 = vmatpush1.bf16.msra.mxu0 %v6779
        %6846 = vmatprep.subr.bf16.mxu0 0
        %6847 = vmatpush1.bf16.msra.mxu0 %v6778
        %6848 = vmatprep.subr.bf16.mxu0 0
        %6849 = vmatpush1.bf16.msra.mxu0 %v6777
        %6850 = vmatprep.subr.bf16.mxu0 0
        %6851 = vmatpush1.bf16.msra.mxu0 %v6776
        %6852 = vmatprep.subr.bf16.mxu0 0
        %6853 = vmatpush2.bf16.msra.mxu0 0
        %6854 = vmatprep.subr.bf16.mxu0 0
        %6855 = vmatpush2.bf16.msra.mxu0 0
        %6856 = vmatprep.subr.bf16.mxu0 0
        %6857 = vmatpush2.bf16.msra.mxu0 0
        %6858 = vmatprep.subr.bf16.mxu0 0
        %6859 = vmatpush2.bf16.msra.mxu0 0
        %6860 = vmatprep.subr.bf16.mxu0 0
        %6861 = vmatpush2.bf16.msra.mxu0 0
        %6862 = vmatprep.subr.bf16.mxu0 0
        %6863 = vmatpush2.bf16.msra.mxu0 0
        %6864 = vmatprep.subr.bf16.mxu0 0
        %6865 = vmatpush2.bf16.msra.mxu0 0
        %6866 = vmatprep.subr.bf16.mxu0 0
        %6867 = vmatpush2.bf16.msra.mxu0 0
        %6868 = vmatprep.mubr.bf16.mxu0 0
        %6869 = vmatmul.mubr.bf16.gmra.mxu0 %v6786
        %v6870 = vpop.f32.mrf.mxu0
        %v6871 = vadd.f32 %v6757, %v6870
        %v6872 = vpop.f32.mrf.mxu0
        %v6873 = vpop.f32.mrf.mxu0
        %v6874 = vadd.f32 %v6757, %v6873
        %v6875 = vpop.f32.mrf.mxu0
        %6876 = vmatprep.mubr.bf16.mxu0 0
        %6877 = vmatmul.mubr.bf16.gmra.mxu0 %v6789
        %v6878 = vpop.f32.mrf.mxu0
        %v6879 = vadd.f32 %v6757, %v6878
        %v6880 = vpop.f32.mrf.mxu0
        %v6881 = vpop.f32.mrf.mxu0
        %v6882 = vadd.f32 %v6757, %v6881
        %v6883 = vpop.f32.mrf.mxu0
        %6884 = vmatprep.mubr.bf16.mxu0 0
        %6885 = vmatmul.mubr.bf16.gmra.mxu0 %v6792
        %v6886 = vpop.f32.mrf.mxu0
        %v6887 = vadd.f32 %v6757, %v6886
        %v6888 = vpop.f32.mrf.mxu0
        %v6889 = vpop.f32.mrf.mxu0
        %v6890 = vadd.f32 %v6757, %v6889
        %v6891 = vpop.f32.mrf.mxu0
        %6892 = vmatprep.mubr.bf16.mxu0 0
        %6893 = vmatmul.mubr.bf16.gmra.mxu0 %v6795
        %v6894 = vpop.f32.mrf.mxu0
        %v6895 = vadd.f32 %v6757, %v6894
        %v6896 = vpop.f32.mrf.mxu0
        %v6897 = vpop.f32.mrf.mxu0
        %v6898 = vadd.f32 %v6757, %v6897
        %v6899 = vpop.f32.mrf.mxu0
        %6900 = vmatprep.mubr.bf16.mxu0 0
        %6901 = vmatmul.mubr.bf16.gmra.mxu0 %v6798
        %v6902 = vpop.f32.mrf.mxu0
        %v6903 = vadd.f32 %v6757, %v6902
        %v6904 = vpop.f32.mrf.mxu0
        %v6905 = vpop.f32.mrf.mxu0
        %v6906 = vadd.f32 %v6757, %v6905
        %v6907 = vpop.f32.mrf.mxu0
        %6908 = vmatprep.mubr.bf16.mxu0 0
        %6909 = vmatmul.mubr.bf16.gmra.mxu0 %v6801
        %v6910 = vpop.f32.mrf.mxu0
        %v6911 = vadd.f32 %v6757, %v6910
        %v6912 = vpop.f32.mrf.mxu0
        %v6913 = vpop.f32.mrf.mxu0
        %v6914 = vadd.f32 %v6757, %v6913
        %v6915 = vpop.f32.mrf.mxu0
        %6916 = vmatprep.mubr.bf16.mxu0 0
        %6917 = vmatmul.mubr.bf16.gmra.mxu0 %v6804
        %v6918 = vpop.f32.mrf.mxu0
        %v6919 = vadd.f32 %v6757, %v6918
        %v6920 = vpop.f32.mrf.mxu0
        %v6921 = vpop.f32.mrf.mxu0
        %v6922 = vadd.f32 %v6757, %v6921
        %v6923 = vpop.f32.mrf.mxu0
        %6924 = vmatprep.mubr.bf16.mxu0 0
        %6925 = vmatmul.mubr.bf16.gmra.mxu0 %v6807
        %v6926 = vpop.f32.mrf.mxu0
        %v6927 = vadd.f32 %v6757, %v6926
        %v6928 = vpop.f32.mrf.mxu0
        %v6929 = vpop.f32.mrf.mxu0
        %v6930 = vadd.f32 %v6757, %v6929
        %v6931 = vpop.f32.mrf.mxu0
        %6932 = vmatprep.mubr.bf16.mxu0 0
        %6933 = vmatmul.mubr.bf16.gmra.mxu0 %v6810
        %v6934 = vpop.f32.mrf.mxu0
        %v6935 = vadd.f32 %v6757, %v6934
        %v6936 = vpop.f32.mrf.mxu0
        %v6937 = vpop.f32.mrf.mxu0
        %v6938 = vadd.f32 %v6757, %v6937
        %v6939 = vpop.f32.mrf.mxu0
        %6940 = vmatprep.mubr.bf16.mxu0 0
        %6941 = vmatmul.mubr.bf16.gmra.mxu0 %v6813
        %v6942 = vpop.f32.mrf.mxu0
        %v6943 = vadd.f32 %v6757, %v6942
        %v6944 = vpop.f32.mrf.mxu0
        %v6945 = vpop.f32.mrf.mxu0
        %v6946 = vadd.f32 %v6757, %v6945
        %v6947 = vpop.f32.mrf.mxu0
        %6948 = vmatprep.mubr.bf16.mxu0 0
        %6949 = vmatmul.mubr.bf16.gmra.mxu0 %v6816
        %v6950 = vpop.f32.mrf.mxu0
        %v6951 = vadd.f32 %v6757, %v6950
        %v6952 = vpop.f32.mrf.mxu0
        %v6953 = vpop.f32.mrf.mxu0
        %v6954 = vadd.f32 %v6757, %v6953
        %v6955 = vpop.f32.mrf.mxu0
        %6956 = vmatprep.mubr.bf16.mxu0 0
        %6957 = vmatmul.mubr.bf16.gmra.mxu0 %v6819
        %v6958 = vpop.f32.mrf.mxu0
        %v6959 = vadd.f32 %v6757, %v6958
        %v6960 = vpop.f32.mrf.mxu0
        %v6961 = vpop.f32.mrf.mxu0
        %v6962 = vadd.f32 %v6757, %v6961
        %v6963 = vpop.f32.mrf.mxu0
        %6964 = vmatprep.mubr.bf16.mxu0 0
        %6965 = vmatmul.mubr.bf16.gmra.mxu0 %v6822
        %v6966 = vpop.f32.mrf.mxu0
        %v6967 = vadd.f32 %v6757, %v6966
        %v6968 = vpop.f32.mrf.mxu0
        %v6969 = vpop.f32.mrf.mxu0
        %v6970 = vadd.f32 %v6757, %v6969
        %v6971 = vpop.f32.mrf.mxu0
        %6972 = vmatprep.mubr.bf16.mxu0 0
        %6973 = vmatmul.mubr.bf16.gmra.mxu0 %v6825
        %v6974 = vpop.f32.mrf.mxu0
        %v6975 = vadd.f32 %v6757, %v6974
        %v6976 = vpop.f32.mrf.mxu0
        %v6977 = vpop.f32.mrf.mxu0
        %v6978 = vadd.f32 %v6757, %v6977
        %v6979 = vpop.f32.mrf.mxu0
        %6980 = vmatprep.mubr.bf16.mxu0 0
        %6981 = vmatmul.mubr.bf16.gmra.mxu0 %v6828
        %v6982 = vpop.f32.mrf.mxu0
        %v6983 = vadd.f32 %v6757, %v6982
        %v6984 = vpop.f32.mrf.mxu0
        %v6985 = vpop.f32.mrf.mxu0
        %v6986 = vadd.f32 %v6757, %v6985
        %v6987 = vpop.f32.mrf.mxu0
        %6988 = vmatprep.mubr.bf16.mxu0 0
        %6989 = vmatmul.mubr.bf16.gmra.mxu0 %v6831
        %v6990 = vpop.f32.mrf.mxu0
        %v6991 = vadd.f32 %v6757, %v6990
        %v6992 = vpop.f32.mrf.mxu0
        %v6993 = vpop.f32.mrf.mxu0
        %v6994 = vadd.f32 %v6757, %v6993
        %v6995 = vpop.f32.mrf.mxu0
        %6996 = vdwg.mxu0
        %v6997 = vmax.f32 %v6871, 0.0
        %v6998 = vmax.f32 %v6874, 0.0
        %v6999 = vmax.f32 %v6879, 0.0
        %v7000 = vmax.f32 %v6882, 0.0
        %v7001 = vmax.f32 %v6887, 0.0
        %v7002 = vmax.f32 %v6890, 0.0
        %v7003 = vmax.f32 %v6895, 0.0
        %v7004 = vmax.f32 %v6898, 0.0
        %v7005 = vmax.f32 %v6903, 0.0
        %v7006 = vmax.f32 %v6906, 0.0
        %v7007 = vmax.f32 %v6911, 0.0
        %v7008 = vmax.f32 %v6914, 0.0
        %v7009 = vmax.f32 %v6919, 0.0
        %v7010 = vmax.f32 %v6922, 0.0
        %v7011 = vmax.f32 %v6927, 0.0
        %v7012 = vmax.f32 %v6930, 0.0
        %v7013 = vmax.f32 %v6935, 0.0
        %v7014 = vmax.f32 %v6938, 0.0
        %v7015 = vmax.f32 %v6943, 0.0
        %v7016 = vmax.f32 %v6946, 0.0
        %v7017 = vmax.f32 %v6951, 0.0
        %v7018 = vmax.f32 %v6954, 0.0
        %v7019 = vmax.f32 %v6959, 0.0
        %v7020 = vmax.f32 %v6962, 0.0
        %v7021 = vmax.f32 %v6967, 0.0
        %v7022 = vmax.f32 %v6970, 0.0
        %v7023 = vmax.f32 %v6975, 0.0
        %v7024 = vmax.f32 %v6978, 0.0
        %v7025 = vmax.f32 %v6983, 0.0
        %v7026 = vmax.f32 %v6986, 0.0
        %v7027 = vmax.f32 %v6991, 0.0
        %v7028 = vmax.f32 %v6994, 0.0
        %v7029 = vpack.c.bf16 %v6998, %v6997
        %v7030 = vpack.c.bf16 %v7000, %v6999
        %v7031 = vpack.c.bf16 %v7002, %v7001
        %v7032 = vpack.c.bf16 %v7004, %v7003
        %v7033 = vpack.c.bf16 %v7006, %v7005
        %v7034 = vpack.c.bf16 %v7008, %v7007
        %v7035 = vpack.c.bf16 %v7010, %v7009
        %v7036 = vpack.c.bf16 %v7012, %v7011
        %v7037 = vpack.c.bf16 %v7014, %v7013
        %v7038 = vpack.c.bf16 %v7016, %v7015
        %v7039 = vpack.c.bf16 %v7018, %v7017
        %v7040 = vpack.c.bf16 %v7020, %v7019
        %v7041 = vpack.c.bf16 %v7022, %v7021
        %v7042 = vpack.c.bf16 %v7024, %v7023
        %v7043 = vpack.c.bf16 %v7026, %v7025
        %v7044 = vpack.c.bf16 %v7028, %v7027
        %v7045 = vld [vmem:[%s4 + $0x80] sm:$0xf]
        %v7046 = vld [vmem:[%s4 + $0x84] sm:$0xf]
        %v7047 = vld [vmem:[%s4 + $0x88] sm:$0xf]
        %v7048 = vld [vmem:[%s4 + $0x8c] sm:$0xf]
        %v7049 = vld [vmem:[%s4 + $0x90] sm:$0xf]
        %v7050 = vld [vmem:[%s4 + $0x94] sm:$0xf]
        %v7051 = vld [vmem:[%s4 + $0x98] sm:$0xf]
        %v7052 = vld [vmem:[%s4 + $0x9c] sm:$0xf]
        %v7053 = vld [vmem:[%s4 + $0xa0] sm:$0xf]
        %v7054 = vld [vmem:[%s4 + $0xa4] sm:$0xf]
        %v7055 = vld [vmem:[%s4 + $0xa8] sm:$0xf]
        %v7056 = vld [vmem:[%s4 + $0xac] sm:$0xf]
        %v7057 = vld [vmem:[%s4 + $0xb0] sm:$0xf]
        %v7058 = vld [vmem:[%s4 + $0xb4] sm:$0xf]
        %v7059 = vld [vmem:[%s4 + $0xb8] sm:$0xf]
        %v7060 = vld [vmem:[%s4 + $0xbc] sm:$0xf]
        %v7077 = vunpack.c.l.b16 %v7045
        %v7078 = vunpack.c.l.b16 %v7046
        %v7079 = vunpack.c.l.b16 %v7047
        %v7080 = vunpack.c.l.b16 %v7048
        %v7081 = vunpack.c.l.b16 %v7049
        %v7082 = vunpack.c.l.b16 %v7050
        %v7083 = vunpack.c.l.b16 %v7051
        %v7084 = vunpack.c.l.b16 %v7052
        %v7085 = vunpack.c.l.b16 %v7053
        %v7086 = vunpack.c.l.b16 %v7054
        %v7087 = vunpack.c.l.b16 %v7055
        %v7088 = vunpack.c.l.b16 %v7056
        %v7089 = vunpack.c.l.b16 %v7057
        %v7090 = vunpack.c.l.b16 %v7058
        %v7091 = vunpack.c.l.b16 %v7059
        %v7092 = vunpack.c.l.b16 %v7060
        %v7093 = vpack.c.b16 %v7078, %v7077
        %v7094 = vpack.c.b16 %v7080, %v7079
        %v7095 = vpack.c.b16 %v7082, %v7081
        %v7096 = vpack.c.b16 %v7084, %v7083
        %v7097 = vpack.c.b16 %v7086, %v7085
        %v7098 = vpack.c.b16 %v7088, %v7087
        %v7099 = vpack.c.b16 %v7090, %v7089
        %v7100 = vpack.c.b16 %v7092, %v7091
        %7109 = vmatprep.subr.bf16.mxu0 0
        %7110 = vmatpush1.bf16.msra.mxu0 %v7100
        %7111 = vmatprep.subr.bf16.mxu0 0
        %7112 = vmatpush1.bf16.msra.mxu0 %v7099
        %7113 = vmatprep.subr.bf16.mxu0 0
        %7114 = vmatpush1.bf16.msra.mxu0 %v7098
        %7115 = vmatprep.subr.bf16.mxu0 0
        %7116 = vmatpush1.bf16.msra.mxu0 %v7097
        %7117 = vmatprep.subr.bf16.mxu0 0
        %7118 = vmatpush1.bf16.msra.mxu0 %v7096
        %7119 = vmatprep.subr.bf16.mxu0 0
        %7120 = vmatpush1.bf16.msra.mxu0 %v7095
        %7121 = vmatprep.subr.bf16.mxu0 0
        %7122 = vmatpush1.bf16.msra.mxu0 %v7094
        %7123 = vmatprep.subr.bf16.mxu0 0
        %7124 = vmatpush1.bf16.msra.mxu0 %v7093
        %7125 = vmatprep.subr.bf16.mxu0 0
        %7126 = vmatpush2.bf16.msra.mxu0 0
        %7127 = vmatprep.subr.bf16.mxu0 0
        %7128 = vmatpush2.bf16.msra.mxu0 0
        %7129 = vmatprep.subr.bf16.mxu0 0
        %7130 = vmatpush2.bf16.msra.mxu0 0
        %7131 = vmatprep.subr.bf16.mxu0 0
        %7132 = vmatpush2.bf16.msra.mxu0 0
        %7133 = vmatprep.subr.bf16.mxu0 0
        %7134 = vmatpush2.bf16.msra.mxu0 0
        %7135 = vmatprep.subr.bf16.mxu0 0
        %7136 = vmatpush2.bf16.msra.mxu0 0
        %7137 = vmatprep.subr.bf16.mxu0 0
        %7138 = vmatpush2.bf16.msra.mxu0 0
        %7139 = vmatprep.subr.bf16.mxu0 0
        %7140 = vmatpush2.bf16.msra.mxu0 0
        %7141 = vmatprep.mubr.bf16.mxu0 0
        %7142 = vmatmul.mubr.bf16.gmra.mxu0 %v7029
        %v7143 = vpop.f32.mrf.mxu0
        %v7144 = vadd.f32 0.0, %v7143
        %v7145 = vpop.f32.mrf.mxu0
        %v7146 = vpop.f32.mrf.mxu0
        %v7147 = vadd.f32 0.0, %v7146
        %v7148 = vpop.f32.mrf.mxu0
        %7149 = vmatprep.mubr.bf16.mxu0 0
        %7150 = vmatmul.mubr.bf16.gmra.mxu0 %v7030
        %v7151 = vpop.f32.mrf.mxu0
        %v7152 = vadd.f32 0.0, %v7151
        %v7153 = vpop.f32.mrf.mxu0
        %v7154 = vpop.f32.mrf.mxu0
        %v7155 = vadd.f32 0.0, %v7154
        %v7156 = vpop.f32.mrf.mxu0
        %7157 = vmatprep.mubr.bf16.mxu0 0
        %7158 = vmatmul.mubr.bf16.gmra.mxu0 %v7031
        %v7159 = vpop.f32.mrf.mxu0
        %v7160 = vadd.f32 0.0, %v7159
        %v7161 = vpop.f32.mrf.mxu0
        %v7162 = vpop.f32.mrf.mxu0
        %v7163 = vadd.f32 0.0, %v7162
        %v7164 = vpop.f32.mrf.mxu0
        %7165 = vmatprep.mubr.bf16.mxu0 0
        %7166 = vmatmul.mubr.bf16.gmra.mxu0 %v7032
        %v7167 = vpop.f32.mrf.mxu0
        %v7168 = vadd.f32 0.0, %v7167
        %v7169 = vpop.f32.mrf.mxu0
        %v7170 = vpop.f32.mrf.mxu0
        %v7171 = vadd.f32 0.0, %v7170
        %v7172 = vpop.f32.mrf.mxu0
        %7173 = vmatprep.mubr.bf16.mxu0 0
        %7174 = vmatmul.mubr.bf16.gmra.mxu0 %v7033
        %v7175 = vpop.f32.mrf.mxu0
        %v7176 = vadd.f32 0.0, %v7175
        %v7177 = vpop.f32.mrf.mxu0
        %v7178 = vpop.f32.mrf.mxu0
        %v7179 = vadd.f32 0.0, %v7178
        %v7180 = vpop.f32.mrf.mxu0
        %7181 = vmatprep.mubr.bf16.mxu0 0
        %7182 = vmatmul.mubr.bf16.gmra.mxu0 %v7034
        %v7183 = vpop.f32.mrf.mxu0
        %v7184 = vadd.f32 0.0, %v7183
        %v7185 = vpop.f32.mrf.mxu0
        %v7186 = vpop.f32.mrf.mxu0
        %v7187 = vadd.f32 0.0, %v7186
        %v7188 = vpop.f32.mrf.mxu0
        %7189 = vmatprep.mubr.bf16.mxu0 0
        %7190 = vmatmul.mubr.bf16.gmra.mxu0 %v7035
        %v7191 = vpop.f32.mrf.mxu0
        %v7192 = vadd.f32 0.0, %v7191
        %v7193 = vpop.f32.mrf.mxu0
        %v7194 = vpop.f32.mrf.mxu0
        %v7195 = vadd.f32 0.0, %v7194
        %v7196 = vpop.f32.mrf.mxu0
        %7197 = vmatprep.mubr.bf16.mxu0 0
        %7198 = vmatmul.mubr.bf16.gmra.mxu0 %v7036
        %v7199 = vpop.f32.mrf.mxu0
        %v7200 = vadd.f32 0.0, %v7199
        %v7201 = vpop.f32.mrf.mxu0
        %v7202 = vpop.f32.mrf.mxu0
        %v7203 = vadd.f32 0.0, %v7202
        %v7204 = vpop.f32.mrf.mxu0
        %7205 = vmatprep.mubr.bf16.mxu0 0
        %7206 = vmatmul.mubr.bf16.gmra.mxu0 %v7037
        %v7207 = vpop.f32.mrf.mxu0
        %v7208 = vadd.f32 0.0, %v7207
        %v7209 = vpop.f32.mrf.mxu0
        %v7210 = vpop.f32.mrf.mxu0
        %v7211 = vadd.f32 0.0, %v7210
        %v7212 = vpop.f32.mrf.mxu0
        %7213 = vmatprep.mubr.bf16.mxu0 0
        %7214 = vmatmul.mubr.bf16.gmra.mxu0 %v7038
        %v7215 = vpop.f32.mrf.mxu0
        %v7216 = vadd.f32 0.0, %v7215
        %v7217 = vpop.f32.mrf.mxu0
        %v7218 = vpop.f32.mrf.mxu0
        %v7219 = vadd.f32 0.0, %v7218
        %v7220 = vpop.f32.mrf.mxu0
        %7221 = vmatprep.mubr.bf16.mxu0 0
        %7222 = vmatmul.mubr.bf16.gmra.mxu0 %v7039
        %v7223 = vpop.f32.mrf.mxu0
        %v7224 = vadd.f32 0.0, %v7223
        %v7225 = vpop.f32.mrf.mxu0
        %v7226 = vpop.f32.mrf.mxu0
        %v7227 = vadd.f32 0.0, %v7226
        %v7228 = vpop.f32.mrf.mxu0
        %7229 = vmatprep.mubr.bf16.mxu0 0
        %7230 = vmatmul.mubr.bf16.gmra.mxu0 %v7040
        %v7231 = vpop.f32.mrf.mxu0
        %v7232 = vadd.f32 0.0, %v7231
        %v7233 = vpop.f32.mrf.mxu0
        %v7234 = vpop.f32.mrf.mxu0
        %v7235 = vadd.f32 0.0, %v7234
        %v7236 = vpop.f32.mrf.mxu0
        %7237 = vmatprep.mubr.bf16.mxu0 0
        %7238 = vmatmul.mubr.bf16.gmra.mxu0 %v7041
        %v7239 = vpop.f32.mrf.mxu0
        %v7240 = vadd.f32 0.0, %v7239
        %v7241 = vpop.f32.mrf.mxu0
        %v7242 = vpop.f32.mrf.mxu0
        %v7243 = vadd.f32 0.0, %v7242
        %v7244 = vpop.f32.mrf.mxu0
        %7245 = vmatprep.mubr.bf16.mxu0 0
        %7246 = vmatmul.mubr.bf16.gmra.mxu0 %v7042
        %v7247 = vpop.f32.mrf.mxu0
        %v7248 = vadd.f32 0.0, %v7247
        %v7249 = vpop.f32.mrf.mxu0
        %v7250 = vpop.f32.mrf.mxu0
        %v7251 = vadd.f32 0.0, %v7250
        %v7252 = vpop.f32.mrf.mxu0
        %7253 = vmatprep.mubr.bf16.mxu0 0
        %7254 = vmatmul.mubr.bf16.gmra.mxu0 %v7043
        %v7255 = vpop.f32.mrf.mxu0
        %v7256 = vadd.f32 0.0, %v7255
        %v7257 = vpop.f32.mrf.mxu0
        %v7258 = vpop.f32.mrf.mxu0
        %v7259 = vadd.f32 0.0, %v7258
        %v7260 = vpop.f32.mrf.mxu0
        %7261 = vmatprep.mubr.bf16.mxu0 0
        %7262 = vmatmul.mubr.bf16.gmra.mxu0 %v7044
        %v7263 = vpop.f32.mrf.mxu0
        %v7264 = vadd.f32 0.0, %v7263
        %v7265 = vpop.f32.mrf.mxu0
        %v7266 = vpop.f32.mrf.mxu0
        %v7267 = vadd.f32 0.0, %v7266
        %v7268 = vpop.f32.mrf.mxu0
        %7269 = vdwg.mxu0
        %v7270 = vadd.f32 %v4014, %v7144
        %v7271 = vadd.f32 %v4015, %v7147
        %v7272 = vadd.f32 %v4016, %v7152
        %v7273 = vadd.f32 %v4017, %v7155
        %v7274 = vadd.f32 %v4018, %v7160
        %v7275 = vadd.f32 %v4019, %v7163
        %v7276 = vadd.f32 %v4020, %v7168
        %v7277 = vadd.f32 %v4021, %v7171
        %v7278 = vadd.f32 %v4022, %v7176
        %v7279 = vadd.f32 %v4023, %v7179
        %v7280 = vadd.f32 %v4024, %v7184
        %v7281 = vadd.f32 %v4025, %v7187
        %v7282 = vadd.f32 %v4026, %v7192
        %v7283 = vadd.f32 %v4027, %v7195
        %v7284 = vadd.f32 %v4028, %v7200
        %v7285 = vadd.f32 %v4029, %v7203
        %v7286 = vadd.f32 %v4030, %v7208
        %v7287 = vadd.f32 %v4031, %v7211
        %v7288 = vadd.f32 %v4032, %v7216
        %v7289 = vadd.f32 %v4033, %v7219
        %v7290 = vadd.f32 %v4034, %v7224
        %v7291 = vadd.f32 %v4035, %v7227
        %v7292 = vadd.f32 %v4036, %v7232
        %v7293 = vadd.f32 %v4037, %v7235
        %v7294 = vadd.f32 %v4038, %v7240
        %v7295 = vadd.f32 %v4039, %v7243
        %v7296 = vadd.f32 %v4040, %v7248
        %v7297 = vadd.f32 %v4041, %v7251
        %v7298 = vadd.f32 %v4042, %v7256
        %v7299 = vadd.f32 %v4043, %v7259
        %v7300 = vadd.f32 %v4044, %v7264
        %v7301 = vadd.f32 %v4045, %v7267
        %v7302 = vld [vmem:[%s3 + $0x58] sm:$0xf]
        %v7303 = vld [vmem:[%s6 + $0x2] sm:$0x1]
        %v7304 = vlaneseq
        %v7305 = vshrl.u32 %v7304, 7
        %v7306 = vsub.s32 0, %v7305
        %v7307 = vrot.slane %v7303, %v7306
        %v7309 = vsel %vm658, %v7302, 0
        %7311 = vmatprep.subr.bf16.mxu0 0
        %7312 = vmatpush1.bf16.msra.mxu0 0
        %7313 = vmatprep.subr.bf16.mxu0 0
        %7314 = vmatpush1.bf16.msra.mxu0 0
        %7315 = vmatprep.subr.bf16.mxu0 0
        %7316 = vmatpush1.bf16.msra.mxu0 0
        %7317 = vmatprep.subr.bf16.mxu0 0
        %7318 = vmatpush1.bf16.msra.mxu0 0
        %7319 = vmatprep.subr.bf16.mxu0 0
        %7320 = vmatpush1.bf16.msra.mxu0 0
        %7321 = vmatprep.subr.bf16.mxu0 0
        %7322 = vmatpush1.bf16.msra.mxu0 0
        %7323 = vmatprep.subr.bf16.mxu0 0
        %7324 = vmatpush1.bf16.msra.mxu0 0
        %7325 = vmatprep.subr.bf16.mxu0 0
        %7326 = vmatpush1.bf16.msra.mxu0 %v7309
        %7327 = vmatprep.subr.bf16.mxu0 0
        %7328 = vmatpush2.bf16.msra.mxu0 0
        %7329 = vmatprep.subr.bf16.mxu0 0
        %7330 = vmatpush2.bf16.msra.mxu0 0
        %7331 = vmatprep.subr.bf16.mxu0 0
        %7332 = vmatpush2.bf16.msra.mxu0 0
        %7333 = vmatprep.subr.bf16.mxu0 0
        %7334 = vmatpush2.bf16.msra.mxu0 0
        %7335 = vmatprep.subr.bf16.mxu0 0
        %7336 = vmatpush2.bf16.msra.mxu0 0
        %7337 = vmatprep.subr.bf16.mxu0 0
        %7338 = vmatpush2.bf16.msra.mxu0 0
        %7339 = vmatprep.subr.bf16.mxu0 0
        %7340 = vmatpush2.bf16.msra.mxu0 0
        %7341 = vmatprep.subr.bf16.mxu0 0
        %7342 = vmatpush2.bf16.msra.mxu0 0
        %7343 = vmatprep.mubr.bf16.mxu0 0
        %7344 = vmatmul.mubr.bf16.gmra.mxu0 %v611
        %v7345 = vpop.f32.mrf.mxu0
        %v7346 = vadd.f32 %v7307, %v7345
        %v7347 = vpop.f32.mrf.mxu0
        %v7348 = vpop.f32.mrf.mxu0
        %v7349 = vadd.f32 %v7307, %v7348
        %v7350 = vpop.f32.mrf.mxu0
        %7351 = vmatprep.mubr.bf16.mxu0 0
        %7352 = vmatmul.mubr.bf16.gmra.mxu0 %v614
        %v7353 = vpop.f32.mrf.mxu0
        %v7354 = vadd.f32 %v7307, %v7353
        %v7355 = vpop.f32.mrf.mxu0
        %v7356 = vpop.f32.mrf.mxu0
        %v7357 = vadd.f32 %v7307, %v7356
        %v7358 = vpop.f32.mrf.mxu0
        %7359 = vmatprep.mubr.bf16.mxu0 0
        %7360 = vmatmul.mubr.bf16.gmra.mxu0 %v617
        %v7361 = vpop.f32.mrf.mxu0
        %v7362 = vadd.f32 %v7307, %v7361
        %v7363 = vpop.f32.mrf.mxu0
        %v7364 = vpop.f32.mrf.mxu0
        %v7365 = vadd.f32 %v7307, %v7364
        %v7366 = vpop.f32.mrf.mxu0
        %7367 = vmatprep.mubr.bf16.mxu0 0
        %7368 = vmatmul.mubr.bf16.gmra.mxu0 %v620
        %v7369 = vpop.f32.mrf.mxu0
        %v7370 = vadd.f32 %v7307, %v7369
        %v7371 = vpop.f32.mrf.mxu0
        %v7372 = vpop.f32.mrf.mxu0
        %v7373 = vadd.f32 %v7307, %v7372
        %v7374 = vpop.f32.mrf.mxu0
        %7375 = vmatprep.mubr.bf16.mxu0 0
        %7376 = vmatmul.mubr.bf16.gmra.mxu0 %v623
        %v7377 = vpop.f32.mrf.mxu0
        %v7378 = vadd.f32 %v7307, %v7377
        %v7379 = vpop.f32.mrf.mxu0
        %v7380 = vpop.f32.mrf.mxu0
        %v7381 = vadd.f32 %v7307, %v7380
        %v7382 = vpop.f32.mrf.mxu0
        %7383 = vmatprep.mubr.bf16.mxu0 0
        %7384 = vmatmul.mubr.bf16.gmra.mxu0 %v626
        %v7385 = vpop.f32.mrf.mxu0
        %v7386 = vadd.f32 %v7307, %v7385
        %v7387 = vpop.f32.mrf.mxu0
        %v7388 = vpop.f32.mrf.mxu0
        %v7389 = vadd.f32 %v7307, %v7388
        %v7390 = vpop.f32.mrf.mxu0
        %7391 = vmatprep.mubr.bf16.mxu0 0
        %7392 = vmatmul.mubr.bf16.gmra.mxu0 %v629
        %v7393 = vpop.f32.mrf.mxu0
        %v7394 = vadd.f32 %v7307, %v7393
        %v7395 = vpop.f32.mrf.mxu0
        %v7396 = vpop.f32.mrf.mxu0
        %v7397 = vadd.f32 %v7307, %v7396
        %v7398 = vpop.f32.mrf.mxu0
        %7399 = vmatprep.mubr.bf16.mxu0 0
        %7400 = vmatmul.mubr.bf16.gmra.mxu0 %v632
        %v7401 = vpop.f32.mrf.mxu0
        %v7402 = vadd.f32 %v7307, %v7401
        %v7403 = vpop.f32.mrf.mxu0
        %v7404 = vpop.f32.mrf.mxu0
        %v7405 = vadd.f32 %v7307, %v7404
        %v7406 = vpop.f32.mrf.mxu0
        %7407 = vmatprep.mubr.bf16.mxu0 0
        %7408 = vmatmul.mubr.bf16.gmra.mxu0 %v635
        %v7409 = vpop.f32.mrf.mxu0
        %v7410 = vadd.f32 %v7307, %v7409
        %v7411 = vpop.f32.mrf.mxu0
        %v7412 = vpop.f32.mrf.mxu0
        %v7413 = vadd.f32 %v7307, %v7412
        %v7414 = vpop.f32.mrf.mxu0
        %7415 = vmatprep.mubr.bf16.mxu0 0
        %7416 = vmatmul.mubr.bf16.gmra.mxu0 %v638
        %v7417 = vpop.f32.mrf.mxu0
        %v7418 = vadd.f32 %v7307, %v7417
        %v7419 = vpop.f32.mrf.mxu0
        %v7420 = vpop.f32.mrf.mxu0
        %v7421 = vadd.f32 %v7307, %v7420
        %v7422 = vpop.f32.mrf.mxu0
        %7423 = vmatprep.mubr.bf16.mxu0 0
        %7424 = vmatmul.mubr.bf16.gmra.mxu0 %v641
        %v7425 = vpop.f32.mrf.mxu0
        %v7426 = vadd.f32 %v7307, %v7425
        %v7427 = vpop.f32.mrf.mxu0
        %v7428 = vpop.f32.mrf.mxu0
        %v7429 = vadd.f32 %v7307, %v7428
        %v7430 = vpop.f32.mrf.mxu0
        %7431 = vmatprep.mubr.bf16.mxu0 0
        %7432 = vmatmul.mubr.bf16.gmra.mxu0 %v644
        %v7433 = vpop.f32.mrf.mxu0
        %v7434 = vadd.f32 %v7307, %v7433
        %v7435 = vpop.f32.mrf.mxu0
        %v7436 = vpop.f32.mrf.mxu0
        %v7437 = vadd.f32 %v7307, %v7436
        %v7438 = vpop.f32.mrf.mxu0
        %7439 = vmatprep.mubr.bf16.mxu0 0
        %7440 = vmatmul.mubr.bf16.gmra.mxu0 %v647
        %v7441 = vpop.f32.mrf.mxu0
        %v7442 = vadd.f32 %v7307, %v7441
        %v7443 = vpop.f32.mrf.mxu0
        %v7444 = vpop.f32.mrf.mxu0
        %v7445 = vadd.f32 %v7307, %v7444
        %v7446 = vpop.f32.mrf.mxu0
        %7447 = vmatprep.mubr.bf16.mxu0 0
        %7448 = vmatmul.mubr.bf16.gmra.mxu0 %v650
        %v7449 = vpop.f32.mrf.mxu0
        %v7450 = vadd.f32 %v7307, %v7449
        %v7451 = vpop.f32.mrf.mxu0
        %v7452 = vpop.f32.mrf.mxu0
        %v7453 = vadd.f32 %v7307, %v7452
        %v7454 = vpop.f32.mrf.mxu0
        %7455 = vmatprep.mubr.bf16.mxu0 0
        %7456 = vmatmul.mubr.bf16.gmra.mxu0 %v653
        %v7457 = vpop.f32.mrf.mxu0
        %v7458 = vadd.f32 %v7307, %v7457
        %v7459 = vpop.f32.mrf.mxu0
        %v7460 = vpop.f32.mrf.mxu0
        %v7461 = vadd.f32 %v7307, %v7460
        %v7462 = vpop.f32.mrf.mxu0
        %7463 = vmatprep.mubr.bf16.mxu0 0
        %7464 = vmatmul.mubr.bf16.gmra.mxu0 %v656
        %v7465 = vpop.f32.mrf.mxu0
        %v7466 = vadd.f32 %v7307, %v7465
        %v7467 = vpop.f32.mrf.mxu0
        %v7468 = vpop.f32.mrf.mxu0
        %v7469 = vadd.f32 %v7307, %v7468
        %v7470 = vpop.f32.mrf.mxu0
        %7471 = vdwg.mxu0
        %v7472 = vmax.f32 %v7346, 0.0
        %v7473 = vmax.f32 %v7349, 0.0
        %v7474 = vmax.f32 %v7354, 0.0
        %v7475 = vmax.f32 %v7357, 0.0
        %v7476 = vmax.f32 %v7362, 0.0
        %v7477 = vmax.f32 %v7365, 0.0
        %v7478 = vmax.f32 %v7370, 0.0
        %v7479 = vmax.f32 %v7373, 0.0
        %v7480 = vmax.f32 %v7378, 0.0
        %v7481 = vmax.f32 %v7381, 0.0
        %v7482 = vmax.f32 %v7386, 0.0
        %v7483 = vmax.f32 %v7389, 0.0
        %v7484 = vmax.f32 %v7394, 0.0
        %v7485 = vmax.f32 %v7397, 0.0
        %v7486 = vmax.f32 %v7402, 0.0
        %v7487 = vmax.f32 %v7405, 0.0
        %v7488 = vmax.f32 %v7410, 0.0
        %v7489 = vmax.f32 %v7413, 0.0
        %v7490 = vmax.f32 %v7418, 0.0
        %v7491 = vmax.f32 %v7421, 0.0
        %v7492 = vmax.f32 %v7426, 0.0
        %v7493 = vmax.f32 %v7429, 0.0
        %v7494 = vmax.f32 %v7434, 0.0
        %v7495 = vmax.f32 %v7437, 0.0
        %v7496 = vmax.f32 %v7442, 0.0
        %v7497 = vmax.f32 %v7445, 0.0
        %v7498 = vmax.f32 %v7450, 0.0
        %v7499 = vmax.f32 %v7453, 0.0
        %v7500 = vmax.f32 %v7458, 0.0
        %v7501 = vmax.f32 %v7461, 0.0
        %v7502 = vmax.f32 %v7466, 0.0
        %v7503 = vmax.f32 %v7469, 0.0
        %v7504 = vpack.c.bf16 %v7473, %v7472
        %v7505 = vpack.c.bf16 %v7475, %v7474
        %v7506 = vpack.c.bf16 %v7477, %v7476
        %v7507 = vpack.c.bf16 %v7479, %v7478
        %v7508 = vpack.c.bf16 %v7481, %v7480
        %v7509 = vpack.c.bf16 %v7483, %v7482
        %v7510 = vpack.c.bf16 %v7485, %v7484
        %v7511 = vpack.c.bf16 %v7487, %v7486
        %v7512 = vpack.c.bf16 %v7489, %v7488
        %v7513 = vpack.c.bf16 %v7491, %v7490
        %v7514 = vpack.c.bf16 %v7493, %v7492
        %v7515 = vpack.c.bf16 %v7495, %v7494
        %v7516 = vpack.c.bf16 %v7497, %v7496
        %v7517 = vpack.c.bf16 %v7499, %v7498
        %v7518 = vpack.c.bf16 %v7501, %v7500
        %v7519 = vpack.c.bf16 %v7503, %v7502
        %v7520 = vld [vmem:[%s4 + $0xc0] sm:$0xf]
        %v7521 = vld [vmem:[%s4 + $0xc4] sm:$0xf]
        %v7522 = vld [vmem:[%s4 + $0xc8] sm:$0xf]
        %v7523 = vld [vmem:[%s4 + $0xcc] sm:$0xf]
        %v7524 = vld [vmem:[%s4 + $0xd0] sm:$0xf]
        %v7525 = vld [vmem:[%s4 + $0xd4] sm:$0xf]
        %v7526 = vld [vmem:[%s4 + $0xd8] sm:$0xf]
        %v7527 = vld [vmem:[%s4 + $0xdc] sm:$0xf]
        %v7528 = vld [vmem:[%s4 + $0xe0] sm:$0xf]
        %v7529 = vld [vmem:[%s4 + $0xe4] sm:$0xf]
        %v7530 = vld [vmem:[%s4 + $0xe8] sm:$0xf]
        %v7531 = vld [vmem:[%s4 + $0xec] sm:$0xf]
        %v7532 = vld [vmem:[%s4 + $0xf0] sm:$0xf]
        %v7533 = vld [vmem:[%s4 + $0xf4] sm:$0xf]
        %v7534 = vld [vmem:[%s4 + $0xf8] sm:$0xf]
        %v7535 = vld [vmem:[%s4 + $0xfc] sm:$0xf]
        %v7552 = vunpack.c.l.b16 %v7520
        %v7553 = vunpack.c.l.b16 %v7521
        %v7554 = vunpack.c.l.b16 %v7522
        %v7555 = vunpack.c.l.b16 %v7523
        %v7556 = vunpack.c.l.b16 %v7524
        %v7557 = vunpack.c.l.b16 %v7525
        %v7558 = vunpack.c.l.b16 %v7526
        %v7559 = vunpack.c.l.b16 %v7527
        %v7560 = vunpack.c.l.b16 %v7528
        %v7561 = vunpack.c.l.b16 %v7529
        %v7562 = vunpack.c.l.b16 %v7530
        %v7563 = vunpack.c.l.b16 %v7531
        %v7564 = vunpack.c.l.b16 %v7532
        %v7565 = vunpack.c.l.b16 %v7533
        %v7566 = vunpack.c.l.b16 %v7534
        %v7567 = vunpack.c.l.b16 %v7535
        %v7568 = vpack.c.b16 %v7553, %v7552
        %v7569 = vpack.c.b16 %v7555, %v7554
        %v7570 = vpack.c.b16 %v7557, %v7556
        %v7571 = vpack.c.b16 %v7559, %v7558
        %v7572 = vpack.c.b16 %v7561, %v7560
        %v7573 = vpack.c.b16 %v7563, %v7562
        %v7574 = vpack.c.b16 %v7565, %v7564
        %v7575 = vpack.c.b16 %v7567, %v7566
        %7584 = vmatprep.subr.bf16.mxu0 0
        %7585 = vmatpush1.bf16.msra.mxu0 %v7575
        %7586 = vmatprep.subr.bf16.mxu0 0
        %7587 = vmatpush1.bf16.msra.mxu0 %v7574
        %7588 = vmatprep.subr.bf16.mxu0 0
        %7589 = vmatpush1.bf16.msra.mxu0 %v7573
        %7590 = vmatprep.subr.bf16.mxu0 0
        %7591 = vmatpush1.bf16.msra.mxu0 %v7572
        %7592 = vmatprep.subr.bf16.mxu0 0
        %7593 = vmatpush1.bf16.msra.mxu0 %v7571
        %7594 = vmatprep.subr.bf16.mxu0 0
        %7595 = vmatpush1.bf16.msra.mxu0 %v7570
        %7596 = vmatprep.subr.bf16.mxu0 0
        %7597 = vmatpush1.bf16.msra.mxu0 %v7569
        %7598 = vmatprep.subr.bf16.mxu0 0
        %7599 = vmatpush1.bf16.msra.mxu0 %v7568
        %7600 = vmatprep.subr.bf16.mxu0 0
        %7601 = vmatpush2.bf16.msra.mxu0 0
        %7602 = vmatprep.subr.bf16.mxu0 0
        %7603 = vmatpush2.bf16.msra.mxu0 0
        %7604 = vmatprep.subr.bf16.mxu0 0
        %7605 = vmatpush2.bf16.msra.mxu0 0
        %7606 = vmatprep.subr.bf16.mxu0 0
        %7607 = vmatpush2.bf16.msra.mxu0 0
        %7608 = vmatprep.subr.bf16.mxu0 0
        %7609 = vmatpush2.bf16.msra.mxu0 0
        %7610 = vmatprep.subr.bf16.mxu0 0
        %7611 = vmatpush2.bf16.msra.mxu0 0
        %7612 = vmatprep.subr.bf16.mxu0 0
        %7613 = vmatpush2.bf16.msra.mxu0 0
        %7614 = vmatprep.subr.bf16.mxu0 0
        %7615 = vmatpush2.bf16.msra.mxu0 0
        %7616 = vmatprep.mubr.bf16.mxu0 0
        %7617 = vmatmul.mubr.bf16.gmra.mxu0 %v7504
        %v7618 = vpop.f32.mrf.mxu0
        %v7619 = vadd.f32 0.0, %v7618
        %v7620 = vpop.f32.mrf.mxu0
        %v7621 = vpop.f32.mrf.mxu0
        %v7622 = vadd.f32 0.0, %v7621
        %v7623 = vpop.f32.mrf.mxu0
        %7624 = vmatprep.mubr.bf16.mxu0 0
        %7625 = vmatmul.mubr.bf16.gmra.mxu0 %v7505
        %v7626 = vpop.f32.mrf.mxu0
        %v7627 = vadd.f32 0.0, %v7626
        %v7628 = vpop.f32.mrf.mxu0
        %v7629 = vpop.f32.mrf.mxu0
        %v7630 = vadd.f32 0.0, %v7629
        %v7631 = vpop.f32.mrf.mxu0
        %7632 = vmatprep.mubr.bf16.mxu0 0
        %7633 = vmatmul.mubr.bf16.gmra.mxu0 %v7506
        %v7634 = vpop.f32.mrf.mxu0
        %v7635 = vadd.f32 0.0, %v7634
        %v7636 = vpop.f32.mrf.mxu0
        %v7637 = vpop.f32.mrf.mxu0
        %v7638 = vadd.f32 0.0, %v7637
        %v7639 = vpop.f32.mrf.mxu0
        %7640 = vmatprep.mubr.bf16.mxu0 0
        %7641 = vmatmul.mubr.bf16.gmra.mxu0 %v7507
        %v7642 = vpop.f32.mrf.mxu0
        %v7643 = vadd.f32 0.0, %v7642
        %v7644 = vpop.f32.mrf.mxu0
        %v7645 = vpop.f32.mrf.mxu0
        %v7646 = vadd.f32 0.0, %v7645
        %v7647 = vpop.f32.mrf.mxu0
        %7648 = vmatprep.mubr.bf16.mxu0 0
        %7649 = vmatmul.mubr.bf16.gmra.mxu0 %v7508
        %v7650 = vpop.f32.mrf.mxu0
        %v7651 = vadd.f32 0.0, %v7650
        %v7652 = vpop.f32.mrf.mxu0
        %v7653 = vpop.f32.mrf.mxu0
        %v7654 = vadd.f32 0.0, %v7653
        %v7655 = vpop.f32.mrf.mxu0
        %7656 = vmatprep.mubr.bf16.mxu0 0
        %7657 = vmatmul.mubr.bf16.gmra.mxu0 %v7509
        %v7658 = vpop.f32.mrf.mxu0
        %v7659 = vadd.f32 0.0, %v7658
        %v7660 = vpop.f32.mrf.mxu0
        %v7661 = vpop.f32.mrf.mxu0
        %v7662 = vadd.f32 0.0, %v7661
        %v7663 = vpop.f32.mrf.mxu0
        %7664 = vmatprep.mubr.bf16.mxu0 0
        %7665 = vmatmul.mubr.bf16.gmra.mxu0 %v7510
        %v7666 = vpop.f32.mrf.mxu0
        %v7667 = vadd.f32 0.0, %v7666
        %v7668 = vpop.f32.mrf.mxu0
        %v7669 = vpop.f32.mrf.mxu0
        %v7670 = vadd.f32 0.0, %v7669
        %v7671 = vpop.f32.mrf.mxu0
        %7672 = vmatprep.mubr.bf16.mxu0 0
        %7673 = vmatmul.mubr.bf16.gmra.mxu0 %v7511
        %v7674 = vpop.f32.mrf.mxu0
        %v7675 = vadd.f32 0.0, %v7674
        %v7676 = vpop.f32.mrf.mxu0
        %v7677 = vpop.f32.mrf.mxu0
        %v7678 = vadd.f32 0.0, %v7677
        %v7679 = vpop.f32.mrf.mxu0
        %7680 = vmatprep.mubr.bf16.mxu0 0
        %7681 = vmatmul.mubr.bf16.gmra.mxu0 %v7512
        %v7682 = vpop.f32.mrf.mxu0
        %v7683 = vadd.f32 0.0, %v7682
        %v7684 = vpop.f32.mrf.mxu0
        %v7685 = vpop.f32.mrf.mxu0
        %v7686 = vadd.f32 0.0, %v7685
        %v7687 = vpop.f32.mrf.mxu0
        %7688 = vmatprep.mubr.bf16.mxu0 0
        %7689 = vmatmul.mubr.bf16.gmra.mxu0 %v7513
        %v7690 = vpop.f32.mrf.mxu0
        %v7691 = vadd.f32 0.0, %v7690
        %v7692 = vpop.f32.mrf.mxu0
        %v7693 = vpop.f32.mrf.mxu0
        %v7694 = vadd.f32 0.0, %v7693
        %v7695 = vpop.f32.mrf.mxu0
        %7696 = vmatprep.mubr.bf16.mxu0 0
        %7697 = vmatmul.mubr.bf16.gmra.mxu0 %v7514
        %v7698 = vpop.f32.mrf.mxu0
        %v7699 = vadd.f32 0.0, %v7698
        %v7700 = vpop.f32.mrf.mxu0
        %v7701 = vpop.f32.mrf.mxu0
        %v7702 = vadd.f32 0.0, %v7701
        %v7703 = vpop.f32.mrf.mxu0
        %7704 = vmatprep.mubr.bf16.mxu0 0
        %7705 = vmatmul.mubr.bf16.gmra.mxu0 %v7515
        %v7706 = vpop.f32.mrf.mxu0
        %v7707 = vadd.f32 0.0, %v7706
        %v7708 = vpop.f32.mrf.mxu0
        %v7709 = vpop.f32.mrf.mxu0
        %v7710 = vadd.f32 0.0, %v7709
        %v7711 = vpop.f32.mrf.mxu0
        %7712 = vmatprep.mubr.bf16.mxu0 0
        %7713 = vmatmul.mubr.bf16.gmra.mxu0 %v7516
        %v7714 = vpop.f32.mrf.mxu0
        %v7715 = vadd.f32 0.0, %v7714
        %v7716 = vpop.f32.mrf.mxu0
        %v7717 = vpop.f32.mrf.mxu0
        %v7718 = vadd.f32 0.0, %v7717
        %v7719 = vpop.f32.mrf.mxu0
        %7720 = vmatprep.mubr.bf16.mxu0 0
        %7721 = vmatmul.mubr.bf16.gmra.mxu0 %v7517
        %v7722 = vpop.f32.mrf.mxu0
        %v7723 = vadd.f32 0.0, %v7722
        %v7724 = vpop.f32.mrf.mxu0
        %v7725 = vpop.f32.mrf.mxu0
        %v7726 = vadd.f32 0.0, %v7725
        %v7727 = vpop.f32.mrf.mxu0
        %7728 = vmatprep.mubr.bf16.mxu0 0
        %7729 = vmatmul.mubr.bf16.gmra.mxu0 %v7518
        %v7730 = vpop.f32.mrf.mxu0
        %v7731 = vadd.f32 0.0, %v7730
        %v7732 = vpop.f32.mrf.mxu0
        %v7733 = vpop.f32.mrf.mxu0
        %v7734 = vadd.f32 0.0, %v7733
        %v7735 = vpop.f32.mrf.mxu0
        %7736 = vmatprep.mubr.bf16.mxu0 0
        %7737 = vmatmul.mubr.bf16.gmra.mxu0 %v7519
        %v7738 = vpop.f32.mrf.mxu0
        %v7739 = vadd.f32 0.0, %v7738
        %v7740 = vpop.f32.mrf.mxu0
        %v7741 = vpop.f32.mrf.mxu0
        %v7742 = vadd.f32 0.0, %v7741
        %v7743 = vpop.f32.mrf.mxu0
        %7744 = vdwg.mxu0
        %v7745 = vadd.f32 %v7270, %v7619
        %v7746 = vadd.f32 %v7271, %v7622
        %v7747 = vadd.f32 %v7272, %v7627
        %v7748 = vadd.f32 %v7273, %v7630
        %v7749 = vadd.f32 %v7274, %v7635
        %v7750 = vadd.f32 %v7275, %v7638
        %v7751 = vadd.f32 %v7276, %v7643
        %v7752 = vadd.f32 %v7277, %v7646
        %v7753 = vadd.f32 %v7278, %v7651
        %v7754 = vadd.f32 %v7279, %v7654
        %v7755 = vadd.f32 %v7280, %v7659
        %v7756 = vadd.f32 %v7281, %v7662
        %v7757 = vadd.f32 %v7282, %v7667
        %v7758 = vadd.f32 %v7283, %v7670
        %v7759 = vadd.f32 %v7284, %v7675
        %v7760 = vadd.f32 %v7285, %v7678
        %v7761 = vadd.f32 %v7286, %v7683
        %v7762 = vadd.f32 %v7287, %v7686
        %v7763 = vadd.f32 %v7288, %v7691
        %v7764 = vadd.f32 %v7289, %v7694
        %v7765 = vadd.f32 %v7290, %v7699
        %v7766 = vadd.f32 %v7291, %v7702
        %v7767 = vadd.f32 %v7292, %v7707
        %v7768 = vadd.f32 %v7293, %v7710
        %v7769 = vadd.f32 %v7294, %v7715
        %v7770 = vadd.f32 %v7295, %v7718
        %v7771 = vadd.f32 %v7296, %v7723
        %v7772 = vadd.f32 %v7297, %v7726
        %v7773 = vadd.f32 %v7298, %v7731
        %v7774 = vadd.f32 %v7299, %v7734
        %v7775 = vadd.f32 %v7300, %v7739
        %v7776 = vadd.f32 %v7301, %v7742
        %v7777 = vmax.f32 %v7745, 0.0
        %v7778 = vmax.f32 %v7746, 0.0
        %v7779 = vmax.f32 %v7747, 0.0
        %v7780 = vmax.f32 %v7748, 0.0
        %v7781 = vmax.f32 %v7749, 0.0
        %v7782 = vmax.f32 %v7750, 0.0
        %v7783 = vmax.f32 %v7751, 0.0
        %v7784 = vmax.f32 %v7752, 0.0
        %v7785 = vmax.f32 %v7753, 0.0
        %v7786 = vmax.f32 %v7754, 0.0
        %v7787 = vmax.f32 %v7755, 0.0
        %v7788 = vmax.f32 %v7756, 0.0
        %v7789 = vmax.f32 %v7757, 0.0
        %v7790 = vmax.f32 %v7758, 0.0
        %v7791 = vmax.f32 %v7759, 0.0
        %v7792 = vmax.f32 %v7760, 0.0
        %v7793 = vmax.f32 %v7761, 0.0
        %v7794 = vmax.f32 %v7762, 0.0
        %v7795 = vmax.f32 %v7763, 0.0
        %v7796 = vmax.f32 %v7764, 0.0
        %v7797 = vmax.f32 %v7765, 0.0
        %v7798 = vmax.f32 %v7766, 0.0
        %v7799 = vmax.f32 %v7767, 0.0
        %v7800 = vmax.f32 %v7768, 0.0
        %v7801 = vmax.f32 %v7769, 0.0
        %v7802 = vmax.f32 %v7770, 0.0
        %v7803 = vmax.f32 %v7771, 0.0
        %v7804 = vmax.f32 %v7772, 0.0
        %v7805 = vmax.f32 %v7773, 0.0
        %v7806 = vmax.f32 %v7774, 0.0
        %v7807 = vmax.f32 %v7775, 0.0
        %v7808 = vmax.f32 %v7776, 0.0
        %7809 = vst [vmem:[%s323] sm:$0xff] %v7777
        %7810 = vst [vmem:[%s323 + $0x8] sm:$0xff] %v7778
        %7811 = vst [vmem:[%s323 + $0x10] sm:$0xff] %v7779
        %7812 = vst [vmem:[%s323 + $0x18] sm:$0xff] %v7780
        %7813 = vst [vmem:[%s323 + $0x20] sm:$0xff] %v7781
        %7814 = vst [vmem:[%s323 + $0x28] sm:$0xff] %v7782
        %7815 = vst [vmem:[%s323 + $0x30] sm:$0xff] %v7783
        %7816 = vst [vmem:[%s323 + $0x38] sm:$0xff] %v7784
        %7817 = vst [vmem:[%s323 + $0x40] sm:$0xff] %v7785
        %7818 = vst [vmem:[%s323 + $0x48] sm:$0xff] %v7786
        %7819 = vst [vmem:[%s323 + $0x50] sm:$0xff] %v7787
        %7820 = vst [vmem:[%s323 + $0x58] sm:$0xff] %v7788
        %7821 = vst [vmem:[%s323 + $0x60] sm:$0xff] %v7789
        %7822 = vst [vmem:[%s323 + $0x68] sm:$0xff] %v7790
        %7823 = vst [vmem:[%s323 + $0x70] sm:$0xff] %v7791
        %7824 = vst [vmem:[%s323 + $0x78] sm:$0xff] %v7792
        %7825 = vst [vmem:[%s323 + $0x80] sm:$0xff] %v7793
        %7826 = vst [vmem:[%s323 + $0x88] sm:$0xff] %v7794
        %7827 = vst [vmem:[%s323 + $0x90] sm:$0xff] %v7795
        %7828 = vst [vmem:[%s323 + $0x98] sm:$0xff] %v7796
        %7829 = vst [vmem:[%s323 + $0xa0] sm:$0xff] %v7797
        %7830 = vst [vmem:[%s323 + $0xa8] sm:$0xff] %v7798
        %7831 = vst [vmem:[%s323 + $0xb0] sm:$0xff] %v7799
        %7832 = vst [vmem:[%s323 + $0xb8] sm:$0xff] %v7800
        %7833 = vst [vmem:[%s323 + $0xc0] sm:$0xff] %v7801
        %7834 = vst [vmem:[%s323 + $0xc8] sm:$0xff] %v7802
        %7835 = vst [vmem:[%s323 + $0xd0] sm:$0xff] %v7803
        %7836 = vst [vmem:[%s323 + $0xd8] sm:$0xff] %v7804
        %7837 = vst [vmem:[%s323 + $0xe0] sm:$0xff] %v7805
        %7838 = vst [vmem:[%s323 + $0xe8] sm:$0xff] %v7806
        %7839 = vst [vmem:[%s323 + $0xf0] sm:$0xff] %v7807
        %7840 = vst [vmem:[%s323 + $0xf8] sm:$0xff] %v7808
        %s7841 = sand.u32 %s222, 1
        %s7842 = scalar_lea.sflag [#allocation3], %s7841
        %s7843 = sand.u32 %s222, 1
        %s7844 = smul.addr %s7843, 256
        %s7845 = scalar_lea.vmem [#allocation2], %s7844
        // Predicated region
        $region53: #{tpu_custom_call.1} parent=51 // pred_check
          %p7846 = pneg %p232
        $region54: #{tpu_custom_call.1} parent=51 // pred_check_branch
          %7848 = sbr.rel (%p7846) target = $region56
        $region55: #{tpu_custom_call.1} parent=51 // pred_region
          %s7849 = smul.u32 16, %s27
          %s7851 = ssub.s32 4096, 4096
          %7852 = vsyncadd %s7842, %s7851
          %s7853 = smul.addr %s7849, 2
          %s7854 = smul.addr %s26, 32
          %s7855 = sadd.s32 %s7853, %s7854
          %s7856 = smul.addr %s7855, 128
          %s7857 = scalar_lea.hbm %s8, %s7856
          %s7858 = sshll.u32 %s7845, 4
          %s7859 = int_to_ptr.vmem [resolvable:$true] %s7858
          %7864 = dma.vmem_to_hbm [thread:$0]  %s7859, 4096, %s7857, %s7842, 128, 128, 8
        $region56: #{tpu_custom_call.1} parent=51 // pred_fallthru
          _
      $region52: #{tpu_custom_call.1} parent=5 // pred_fallthru
        _
      %p7865 = scmp.le.s32.totalorder 2, %s17
      // Predicated region
      $region57: #{tpu_custom_call.1} parent=5 // pred_check
        %p7866 = pneg %p7865
      $region58: #{tpu_custom_call.1} parent=5 // pred_check_branch
        %7868 = sbr.rel (%p7866) target = $region60
      $region59: #{tpu_custom_call.1} parent=5 // pred_region
        %s7869 = ssub.s32 %s17, 2
        // Predicated region
        $region61: #{tpu_custom_call.1} parent=59 // pred_check
          %p7870 = pneg %p238
        $region62: #{tpu_custom_call.1} parent=59 // pred_check_branch
          %7872 = sbr.rel (%p7870) target = $region64
        $region63: #{tpu_custom_call.1} parent=59 // pred_region
          %s7873 = sand.u32 %s223, 1
          %s7874 = scalar_lea.sflag [#allocation3], %s7873
          %s7875 = sand.u32 %s223, 1
          %s7876 = smul.addr %s7875, 256
          %s7877 = scalar_lea.vmem [#allocation2], %s7876
          %7878 = dma.done %s7874, 4096
        $region64: #{tpu_custom_call.1} parent=59 // pred_fallthru
          _
      $region60: #{tpu_custom_call.1} parent=5 // pred_fallthru
        _
    $region6: #{tpu_custom_call.1} parent=1 // loop_footer
      %s21 = sadd.s32 1, %s17
    $region7: #{tpu_custom_call.1} parent=1 // loop_footer_branch
      %16 = sbr.rel target = $region3
    $region8: #{tpu_custom_call.1} parent=1 // loop_exit
      _
    %7879 = vsyncpa [#allocation3], 1
    %s7880 = scalar_lea.sflag [#allocation3], 1
    %7881 = vsyncpa %s7880, 1

</llo_original>
